<compile_context>
chip_gen: v7x
topology: tpu7x:2x2x1
jax: 0.10.0
libtpu: 0.0.40
codegen_flags: <defaults>
</compile_context>

<pallas_src>
import functools

import jax
import jax.numpy as jnp
from jax.experimental import pallas as pl
from jax.experimental.pallas import tpu as pltpu


# ----------------------------------------------------------------------------
# Fused residual-block kernel (one batch element per grid step)
# ----------------------------------------------------------------------------
def _resblock_kernel(xg_ref, w1_ref, w2_ref, cmask_ref,
                     g1_ref, b1_ref, g2_ref, b2_ref,
                     o_ref, h_ref, *, H, W, C, eps):
    """xg_ref : [HWg, C] f32  zero-guarded flattened NHWC input (guard = W+1 rows)
       w*_ref : [9, C, C] bf16 per-tap weight matrices (tap index = ky*3+kx)
       cmask  : [3, HW, 1] f32 column-validity masks, indexed by dx+1
       g*/b*  : [1, C]   f32  InstanceNorm affine params
       o_ref  : [HW, C]  f32  output  x + main(x)
       h_ref  : [HWg, C] f32  VMEM scratch holding the guarded intermediate"""
    HW = H * W
    G = W + 1
    taps = [(dy, dx) for dy in (-1, 0, 1) for dx in (-1, 0, 1)]

    def conv3x3(src_ref, w_ref):
        acc = jnp.zeros((HW, C), jnp.float32)
        for t, (dy, dx) in enumerate(taps):
            start = G + dy * W + dx                 # static slice offset
            a = src_ref[start:start + HW, :]        # shifted rows (f32)
            if dx != 0:
                a = a * cmask_ref[dx + 1]           # zero column-wrap rows
            acc += jnp.dot(a.astype(jnp.bfloat16), w_ref[t],
                           preferred_element_type=jnp.float32)
        return acc

    def inst_norm_affine(acc, g_ref, bta_ref):
        # channels live in lanes -> reduce over the sublane (spatial) axis
        mean = jnp.mean(acc, axis=0, keepdims=True)                    # [1, C]
        var = jnp.mean(jnp.square(acc - mean), axis=0, keepdims=True)  # biased
        y = (acc - mean) * jax.lax.rsqrt(var + eps)
        return y * g_ref[...] + bta_ref[...]

    # conv1 -> InstanceNorm -> ReLU, written into the guarded scratch buffer
    h1 = jnp.maximum(
        inst_norm_affine(conv3x3(xg_ref, w1_ref), g1_ref, b1_ref), 0.0)
    zg = jnp.zeros((G, C), jnp.float32)
    h_ref[0:G, :] = zg                    # zero guards every step (megacore-safe)
    h_ref[G + HW:G + HW + G, :] = zg
    h_ref[G:G + HW, :] = h1

    # conv2 -> InstanceNorm -> residual add
    h2 = inst_norm_affine(conv3x3(h_ref, w2_ref), g2_ref, b2_ref)
    o_ref[...] = xg_ref[G:G + HW, :] + h2


# ----------------------------------------------------------------------------
# Wrapper: NCHW module boundary -> lane-dense guarded layout -> pallas_call
# ----------------------------------------------------------------------------
def image_residual_block(x, w1, w2, gamma1, beta1, gamma2, beta2, eps=1e-5):
    """x:[B,C,H,W] f32, w*: [C,C,3,3] torch layout, gamma/beta: [C]."""
    B, C, H, W = x.shape
    Cout = w1.shape[0]
    assert w1.shape == (Cout, C, 3, 3) and w2.shape == (Cout, Cout, 3, 3)
    assert Cout == C, "residual add requires dim_in == dim_out"
    HW = H * W
    G = W + 1
    HWg = HW + 2 * G

    # NCHW -> [B, H*W, C] lane-dense layout with flat-spatial zero guards
    x_flat = x.transpose(0, 2, 3, 1).reshape(B, HW, C)
    xg = jnp.pad(x_flat, ((0, 0), (G, G), (0, 0)))

    # per-tap weight matrices [9, Cin, Cout], bf16 MXU operands (tap = ky*3+kx)
    w1t = w1.transpose(2, 3, 1, 0).reshape(9, C, C).astype(jnp.bfloat16)
    w2t = w2.transpose(2, 3, 1, 0).reshape(9, C, C).astype(jnp.bfloat16)

    # column-validity masks for dx = -1 / 0 / +1
    col = jnp.arange(HW, dtype=jnp.int32) % W
    cmask = jnp.stack(
        [(col != 0), jnp.ones((HW,), jnp.bool_), (col != W - 1)], axis=0
    ).astype(jnp.float32).reshape(3, HW, 1)

    g1 = gamma1.reshape(1, C).astype(jnp.float32)
    b1 = beta1.reshape(1, C).astype(jnp.float32)
    g2 = gamma2.reshape(1, C).astype(jnp.float32)
    b2 = beta2.reshape(1, C).astype(jnp.float32)

    kernel = functools.partial(_resblock_kernel, H=H, W=W, C=C, eps=eps)

    out = pl.pallas_call(
        kernel,
        out_shape=jax.ShapeDtypeStruct((B, HW, C), jnp.float32),
        grid_spec=pltpu.PrefetchScalarGridSpec(
            num_scalar_prefetch=0,
            grid=(B,),
            in_specs=[
                pl.BlockSpec((None, HWg, C), lambda b: (b, 0, 0)),  # xg
                pl.BlockSpec((9, C, C), lambda b: (0, 0, 0)),       # w1t
                pl.BlockSpec((9, C, C), lambda b: (0, 0, 0)),       # w2t
                pl.BlockSpec((3, HW, 1), lambda b: (0, 0, 0)),      # cmask
                pl.BlockSpec((1, C), lambda b: (0, 0)),             # gamma1
                pl.BlockSpec((1, C), lambda b: (0, 0)),             # beta1
                pl.BlockSpec((1, C), lambda b: (0, 0)),             # gamma2
                pl.BlockSpec((1, C), lambda b: (0, 0)),             # beta2
            ],
            out_specs=pl.BlockSpec((None, HW, C), lambda b: (b, 0, 0)),
            scratch_shapes=[pltpu.VMEM((HWg, C), jnp.float32)],
        ),
        compiler_params=pltpu.CompilerParams(
            dimension_semantics=("parallel",)),
    )(xg, w1t, w2t, cmask, g1, b1, g2, b2)

    return out.reshape(B, H, W, C).transpose(0, 3, 1, 2)


# ----------------------------------------------------------------------------
# Pure-JAX reference (matches PyTorch semantics) for a correctness check
# ----------------------------------------------------------------------------
def _conv3x3_ref(x, w):
    return jax.lax.conv_general_dilated(
        x, w, window_strides=(1, 1), padding=((1, 1), (1, 1)),
        dimension_numbers=("NCHW", "OIHW", "NCHW"),
        precision=jax.lax.Precision.HIGHEST)


def _instance_norm_ref(x, g, b, eps=1e-5):
    mean = jnp.mean(x, axis=(2, 3), keepdims=True)
    var = jnp.mean(jnp.square(x - mean), axis=(2, 3), keepdims=True)
    y = (x - mean) * jax.lax.rsqrt(var + eps)
    return y * g.reshape(1, -1, 1, 1) + b.reshape(1, -1, 1, 1)


def resblock_reference(x, w1, w2, g1, b1, g2, b2, eps=1e-5):
    h = jnp.maximum(_instance_norm_ref(_conv3x3_ref(x, w1), g1, b1, eps), 0.0)
    h = _instance_norm_ref(_conv3x3_ref(h, w2), g2, b2, eps)
    return x + h


# ----------------------------------------------------------------------------
if __name__ == "__main__":
    key = jax.random.PRNGKey(0)
    kx, k1, k2, kg1, kb1, kg2, kb2 = jax.random.split(key, 7)

    B, C, H, W = 2, 128, 16, 16
    x = jax.random.normal(kx, (B, C, H, W), dtype=jnp.float32)
    w1 = 0.05 * jax.random.normal(k1, (C, C, 3, 3), dtype=jnp.float32)
    w2 = 0.05 * jax.random.normal(k2, (C, C, 3, 3), dtype=jnp.float32)
    g1 = 1.0 + 0.1 * jax.random.normal(kg1, (C,), dtype=jnp.float32)
    b1 = 0.1 * jax.random.normal(kb1, (C,), dtype=jnp.float32)
    g2 = 1.0 + 0.1 * jax.random.normal(kg2, (C,), dtype=jnp.float32)
    b2 = 0.1 * jax.random.normal(kb2, (C,), dtype=jnp.float32)

    fwd = jax.jit(image_residual_block)
    out = fwd(x, w1, w2, g1, b1, g2, b2)
    jax.block_until_ready(out)

    ref = resblock_reference(x, w1, w2, g1, b1, g2, b2)
    jax.block_until_ready(ref)

    assert out.shape == (B, C, H, W), out.shape
    assert out.dtype == jnp.float32
    rel_err = float(jnp.linalg.norm(out - ref) / jnp.linalg.norm(ref))
    max_err = float(jnp.max(jnp.abs(out - ref)))
    # bf16 MXU operands with f32 accumulation -> ~1% relative error expected
    assert rel_err < 3e-2, f"relative error {rel_err}"
    assert max_err < 3e-1, f"max abs error {max_err}"
    print("KERNEL_OK")
</pallas_src>

<mosaic_0001>
module attributes {stable_mosaic.version = 11 : i64} {
  func.func @_resblock_kernel(%arg0: i32, %arg1: memref<1x290x128xf32, #tpu.memory_space<vmem>>, %arg2: memref<9x128x128xbf16, #tpu.memory_space<vmem>>, %arg3: memref<9x128x128xbf16, #tpu.memory_space<vmem>>, %arg4: memref<3x256x1xf32, #tpu.memory_space<vmem>>, %arg5: memref<1x128xf32, #tpu.memory_space<vmem>>, %arg6: memref<1x128xf32, #tpu.memory_space<vmem>>, %arg7: memref<1x128xf32, #tpu.memory_space<vmem>>, %arg8: memref<1x128xf32, #tpu.memory_space<vmem>>, %arg9: memref<1x256x128xf32, #tpu.memory_space<vmem>>, %arg10: memref<290x128xf32, #tpu.memory_space<vmem>>) attributes {dimension_semantics = [#tpu.dimension_semantics<parallel>], iteration_bounds = array<i64: 2>, scalar_prefetch = 0 : i64, scratch_operands = 1 : i64, tpu.core_type = #tpu.core_type<tc>, window_params = [{transform_indices = @transform_0, window_bounds = array<i64: 1, 290, 128>}, {pipeline_mode = #tpu.pipeline_mode<synchronous>, transform_indices = @transform_1, window_bounds = array<i64: 9, 128, 128>}, {pipeline_mode = #tpu.pipeline_mode<synchronous>, transform_indices = @transform_2, window_bounds = array<i64: 9, 128, 128>}, {pipeline_mode = #tpu.pipeline_mode<synchronous>, transform_indices = @transform_3, window_bounds = array<i64: 3, 256, 1>}, {pipeline_mode = #tpu.pipeline_mode<synchronous>, transform_indices = @transform_4, window_bounds = array<i64: 1, 128>}, {pipeline_mode = #tpu.pipeline_mode<synchronous>, transform_indices = @transform_5, window_bounds = array<i64: 1, 128>}, {pipeline_mode = #tpu.pipeline_mode<synchronous>, transform_indices = @transform_6, window_bounds = array<i64: 1, 128>}, {pipeline_mode = #tpu.pipeline_mode<synchronous>, transform_indices = @transform_7, window_bounds = array<i64: 1, 128>}, {transform_indices = @transform_8, window_bounds = array<i64: 1, 256, 128>}]} {
    %cst = arith.constant 0.000000e+00 : f32
    %0 = vector.broadcast %cst : f32 to vector<256x128xf32>
    %c0 = arith.constant 0 : index
    %c0_0 = arith.constant 0 : index
    %c0_1 = arith.constant 0 : index
    %1 = vector.load %arg1[%c0, %c0_0, %c0_1] : memref<1x290x128xf32, #tpu.memory_space<vmem>>, vector<1x256x128xf32>
    %2 = vector.shape_cast %1 : vector<1x256x128xf32> to vector<256x128xf32>
    %c0_2 = arith.constant 0 : index
    %c0_3 = arith.constant 0 : index
    %c0_4 = arith.constant 0 : index
    %3 = vector.load %arg4[%c0_2, %c0_3, %c0_4] : memref<3x256x1xf32, #tpu.memory_space<vmem>>, vector<1x256x1xf32>
    %4 = vector.shape_cast %3 : vector<1x256x1xf32> to vector<256x1xf32>
    %5 = vector.broadcast %4 : vector<256x1xf32> to vector<256x128xf32>
    %6 = arith.mulf %2, %5 : vector<256x128xf32>
    %7 = arith.truncf %6 : vector<256x128xf32> to vector<256x128xbf16>
    %c0_5 = arith.constant 0 : index
    %c0_6 = arith.constant 0 : index
    %c0_7 = arith.constant 0 : index
    %8 = vector.load %arg2[%c0_5, %c0_6, %c0_7] : memref<9x128x128xbf16, #tpu.memory_space<vmem>>, vector<1x128x128xbf16>
    %9 = vector.shape_cast %8 : vector<1x128x128xbf16> to vector<128x128xbf16>
    %cst_8 = arith.constant dense<0.000000e+00> : vector<256x128xf32>
    %10 = tpu.matmul %7, %9, %cst_8 {dimension_numbers = #tpu.dot_dimension_numbers<[1], [0], [0], [1], [0, 0, 1, 1], [], []>} : vector<256x128xbf16>, vector<128x128xbf16>, vector<256x128xf32> -> vector<256x128xf32>
    %11 = arith.addf %0, %10 : vector<256x128xf32>
    %c0_9 = arith.constant 0 : index
    %c1 = arith.constant 1 : index
    %c0_10 = arith.constant 0 : index
    %12 = vector.load %arg1[%c0_9, %c1, %c0_10] : memref<1x290x128xf32, #tpu.memory_space<vmem>>, vector<1x256x128xf32>
    %13 = vector.shape_cast %12 : vector<1x256x128xf32> to vector<256x128xf32>
    %14 = arith.truncf %13 : vector<256x128xf32> to vector<256x128xbf16>
    %c1_11 = arith.constant 1 : index
    %c0_12 = arith.constant 0 : index
    %c0_13 = arith.constant 0 : index
    %15 = vector.load %arg2[%c1_11, %c0_12, %c0_13] : memref<9x128x128xbf16, #tpu.memory_space<vmem>>, vector<1x128x128xbf16>
    %16 = vector.shape_cast %15 : vector<1x128x128xbf16> to vector<128x128xbf16>
    %cst_14 = arith.constant dense<0.000000e+00> : vector<256x128xf32>
    %17 = tpu.matmul %14, %16, %cst_14 {dimension_numbers = #tpu.dot_dimension_numbers<[1], [0], [0], [1], [0, 0, 1, 1], [], []>} : vector<256x128xbf16>, vector<128x128xbf16>, vector<256x128xf32> -> vector<256x128xf32>
    %18 = arith.addf %11, %17 : vector<256x128xf32>
    %c0_15 = arith.constant 0 : index
    %c2 = arith.constant 2 : index
    %c0_16 = arith.constant 0 : index
    %19 = vector.load %arg1[%c0_15, %c2, %c0_16] : memref<1x290x128xf32, #tpu.memory_space<vmem>>, vector<1x256x128xf32>
    %20 = vector.shape_cast %19 : vector<1x256x128xf32> to vector<256x128xf32>
    %c2_17 = arith.constant 2 : index
    %c0_18 = arith.constant 0 : index
    %c0_19 = arith.constant 0 : index
    %21 = vector.load %arg4[%c2_17, %c0_18, %c0_19] : memref<3x256x1xf32, #tpu.memory_space<vmem>>, vector<1x256x1xf32>
    %22 = vector.shape_cast %21 : vector<1x256x1xf32> to vector<256x1xf32>
    %23 = vector.broadcast %22 : vector<256x1xf32> to vector<256x128xf32>
    %24 = arith.mulf %20, %23 : vector<256x128xf32>
    %25 = arith.truncf %24 : vector<256x128xf32> to vector<256x128xbf16>
    %c2_20 = arith.constant 2 : index
    %c0_21 = arith.constant 0 : index
    %c0_22 = arith.constant 0 : index
    %26 = vector.load %arg2[%c2_20, %c0_21, %c0_22] : memref<9x128x128xbf16, #tpu.memory_space<vmem>>, vector<1x128x128xbf16>
    %27 = vector.shape_cast %26 : vector<1x128x128xbf16> to vector<128x128xbf16>
    %cst_23 = arith.constant dense<0.000000e+00> : vector<256x128xf32>
    %28 = tpu.matmul %25, %27, %cst_23 {dimension_numbers = #tpu.dot_dimension_numbers<[1], [0], [0], [1], [0, 0, 1, 1], [], []>} : vector<256x128xbf16>, vector<128x128xbf16>, vector<256x128xf32> -> vector<256x128xf32>
    %29 = arith.addf %18, %28 : vector<256x128xf32>
    %c0_24 = arith.constant 0 : index
    %c16 = arith.constant 16 : index
    %c0_25 = arith.constant 0 : index
    %30 = vector.load %arg1[%c0_24, %c16, %c0_25] : memref<1x290x128xf32, #tpu.memory_space<vmem>>, vector<1x256x128xf32>
    %31 = vector.shape_cast %30 : vector<1x256x128xf32> to vector<256x128xf32>
    %c0_26 = arith.constant 0 : index
    %c0_27 = arith.constant 0 : index
    %c0_28 = arith.constant 0 : index
    %32 = vector.load %arg4[%c0_26, %c0_27, %c0_28] : memref<3x256x1xf32, #tpu.memory_space<vmem>>, vector<1x256x1xf32>
    %33 = vector.shape_cast %32 : vector<1x256x1xf32> to vector<256x1xf32>
    %34 = vector.broadcast %33 : vector<256x1xf32> to vector<256x128xf32>
    %35 = arith.mulf %31, %34 : vector<256x128xf32>
    %36 = arith.truncf %35 : vector<256x128xf32> to vector<256x128xbf16>
    %c3 = arith.constant 3 : index
    %c0_29 = arith.constant 0 : index
    %c0_30 = arith.constant 0 : index
    %37 = vector.load %arg2[%c3, %c0_29, %c0_30] : memref<9x128x128xbf16, #tpu.memory_space<vmem>>, vector<1x128x128xbf16>
    %38 = vector.shape_cast %37 : vector<1x128x128xbf16> to vector<128x128xbf16>
    %cst_31 = arith.constant dense<0.000000e+00> : vector<256x128xf32>
    %39 = tpu.matmul %36, %38, %cst_31 {dimension_numbers = #tpu.dot_dimension_numbers<[1], [0], [0], [1], [0, 0, 1, 1], [], []>} : vector<256x128xbf16>, vector<128x128xbf16>, vector<256x128xf32> -> vector<256x128xf32>
    %40 = arith.addf %29, %39 : vector<256x128xf32>
    %c0_32 = arith.constant 0 : index
    %c17 = arith.constant 17 : index
    %c0_33 = arith.constant 0 : index
    %41 = vector.load %arg1[%c0_32, %c17, %c0_33] : memref<1x290x128xf32, #tpu.memory_space<vmem>>, vector<1x256x128xf32>
    %42 = vector.shape_cast %41 : vector<1x256x128xf32> to vector<256x128xf32>
    %43 = arith.truncf %42 : vector<256x128xf32> to vector<256x128xbf16>
    %c4 = arith.constant 4 : index
    %c0_34 = arith.constant 0 : index
    %c0_35 = arith.constant 0 : index
    %44 = vector.load %arg2[%c4, %c0_34, %c0_35] : memref<9x128x128xbf16, #tpu.memory_space<vmem>>, vector<1x128x128xbf16>
    %45 = vector.shape_cast %44 : vector<1x128x128xbf16> to vector<128x128xbf16>
    %cst_36 = arith.constant dense<0.000000e+00> : vector<256x128xf32>
    %46 = tpu.matmul %43, %45, %cst_36 {dimension_numbers = #tpu.dot_dimension_numbers<[1], [0], [0], [1], [0, 0, 1, 1], [], []>} : vector<256x128xbf16>, vector<128x128xbf16>, vector<256x128xf32> -> vector<256x128xf32>
    %47 = arith.addf %40, %46 : vector<256x128xf32>
    %c0_37 = arith.constant 0 : index
    %c18 = arith.constant 18 : index
    %c0_38 = arith.constant 0 : index
    %48 = vector.load %arg1[%c0_37, %c18, %c0_38] : memref<1x290x128xf32, #tpu.memory_space<vmem>>, vector<1x256x128xf32>
    %49 = vector.shape_cast %48 : vector<1x256x128xf32> to vector<256x128xf32>
    %c2_39 = arith.constant 2 : index
    %c0_40 = arith.constant 0 : index
    %c0_41 = arith.constant 0 : index
    %50 = vector.load %arg4[%c2_39, %c0_40, %c0_41] : memref<3x256x1xf32, #tpu.memory_space<vmem>>, vector<1x256x1xf32>
    %51 = vector.shape_cast %50 : vector<1x256x1xf32> to vector<256x1xf32>
    %52 = vector.broadcast %51 : vector<256x1xf32> to vector<256x128xf32>
    %53 = arith.mulf %49, %52 : vector<256x128xf32>
    %54 = arith.truncf %53 : vector<256x128xf32> to vector<256x128xbf16>
    %c5 = arith.constant 5 : index
    %c0_42 = arith.constant 0 : index
    %c0_43 = arith.constant 0 : index
    %55 = vector.load %arg2[%c5, %c0_42, %c0_43] : memref<9x128x128xbf16, #tpu.memory_space<vmem>>, vector<1x128x128xbf16>
    %56 = vector.shape_cast %55 : vector<1x128x128xbf16> to vector<128x128xbf16>
    %cst_44 = arith.constant dense<0.000000e+00> : vector<256x128xf32>
    %57 = tpu.matmul %54, %56, %cst_44 {dimension_numbers = #tpu.dot_dimension_numbers<[1], [0], [0], [1], [0, 0, 1, 1], [], []>} : vector<256x128xbf16>, vector<128x128xbf16>, vector<256x128xf32> -> vector<256x128xf32>
    %58 = arith.addf %47, %57 : vector<256x128xf32>
    %c0_45 = arith.constant 0 : index
    %c32 = arith.constant 32 : index
    %c0_46 = arith.constant 0 : index
    %59 = vector.load %arg1[%c0_45, %c32, %c0_46] : memref<1x290x128xf32, #tpu.memory_space<vmem>>, vector<1x256x128xf32>
    %60 = vector.shape_cast %59 : vector<1x256x128xf32> to vector<256x128xf32>
    %c0_47 = arith.constant 0 : index
    %c0_48 = arith.constant 0 : index
    %c0_49 = arith.constant 0 : index
    %61 = vector.load %arg4[%c0_47, %c0_48, %c0_49] : memref<3x256x1xf32, #tpu.memory_space<vmem>>, vector<1x256x1xf32>
    %62 = vector.shape_cast %61 : vector<1x256x1xf32> to vector<256x1xf32>
    %63 = vector.broadcast %62 : vector<256x1xf32> to vector<256x128xf32>
    %64 = arith.mulf %60, %63 : vector<256x128xf32>
    %65 = arith.truncf %64 : vector<256x128xf32> to vector<256x128xbf16>
    %c6 = arith.constant 6 : index
    %c0_50 = arith.constant 0 : index
    %c0_51 = arith.constant 0 : index
    %66 = vector.load %arg2[%c6, %c0_50, %c0_51] : memref<9x128x128xbf16, #tpu.memory_space<vmem>>, vector<1x128x128xbf16>
    %67 = vector.shape_cast %66 : vector<1x128x128xbf16> to vector<128x128xbf16>
    %cst_52 = arith.constant dense<0.000000e+00> : vector<256x128xf32>
    %68 = tpu.matmul %65, %67, %cst_52 {dimension_numbers = #tpu.dot_dimension_numbers<[1], [0], [0], [1], [0, 0, 1, 1], [], []>} : vector<256x128xbf16>, vector<128x128xbf16>, vector<256x128xf32> -> vector<256x128xf32>
    %69 = arith.addf %58, %68 : vector<256x128xf32>
    %c0_53 = arith.constant 0 : index
    %c33 = arith.constant 33 : index
    %c0_54 = arith.constant 0 : index
    %70 = vector.load %arg1[%c0_53, %c33, %c0_54] : memref<1x290x128xf32, #tpu.memory_space<vmem>>, vector<1x256x128xf32>
    %71 = vector.shape_cast %70 : vector<1x256x128xf32> to vector<256x128xf32>
    %72 = arith.truncf %71 : vector<256x128xf32> to vector<256x128xbf16>
    %c7 = arith.constant 7 : index
    %c0_55 = arith.constant 0 : index
    %c0_56 = arith.constant 0 : index
    %73 = vector.load %arg2[%c7, %c0_55, %c0_56] : memref<9x128x128xbf16, #tpu.memory_space<vmem>>, vector<1x128x128xbf16>
    %74 = vector.shape_cast %73 : vector<1x128x128xbf16> to vector<128x128xbf16>
    %cst_57 = arith.constant dense<0.000000e+00> : vector<256x128xf32>
    %75 = tpu.matmul %72, %74, %cst_57 {dimension_numbers = #tpu.dot_dimension_numbers<[1], [0], [0], [1], [0, 0, 1, 1], [], []>} : vector<256x128xbf16>, vector<128x128xbf16>, vector<256x128xf32> -> vector<256x128xf32>
    %76 = arith.addf %69, %75 : vector<256x128xf32>
    %c0_58 = arith.constant 0 : index
    %c34 = arith.constant 34 : index
    %c0_59 = arith.constant 0 : index
    %77 = vector.load %arg1[%c0_58, %c34, %c0_59] : memref<1x290x128xf32, #tpu.memory_space<vmem>>, vector<1x256x128xf32>
    %78 = vector.shape_cast %77 : vector<1x256x128xf32> to vector<256x128xf32>
    %c2_60 = arith.constant 2 : index
    %c0_61 = arith.constant 0 : index
    %c0_62 = arith.constant 0 : index
    %79 = vector.load %arg4[%c2_60, %c0_61, %c0_62] : memref<3x256x1xf32, #tpu.memory_space<vmem>>, vector<1x256x1xf32>
    %80 = vector.shape_cast %79 : vector<1x256x1xf32> to vector<256x1xf32>
    %81 = vector.broadcast %80 : vector<256x1xf32> to vector<256x128xf32>
    %82 = arith.mulf %78, %81 : vector<256x128xf32>
    %83 = arith.truncf %82 : vector<256x128xf32> to vector<256x128xbf16>
    %c8 = arith.constant 8 : index
    %c0_63 = arith.constant 0 : index
    %c0_64 = arith.constant 0 : index
    %84 = vector.load %arg2[%c8, %c0_63, %c0_64] : memref<9x128x128xbf16, #tpu.memory_space<vmem>>, vector<1x128x128xbf16>
    %85 = vector.shape_cast %84 : vector<1x128x128xbf16> to vector<128x128xbf16>
    %cst_65 = arith.constant dense<0.000000e+00> : vector<256x128xf32>
    %86 = tpu.matmul %83, %85, %cst_65 {dimension_numbers = #tpu.dot_dimension_numbers<[1], [0], [0], [1], [0, 0, 1, 1], [], []>} : vector<256x128xbf16>, vector<128x128xbf16>, vector<256x128xf32> -> vector<256x128xf32>
    %87 = arith.addf %76, %86 : vector<256x128xf32>
    %cst_66 = arith.constant dense<0.000000e+00> : vector<128xf32>
    %88 = vector.multi_reduction <add>, %87, %cst_66 [0] : vector<256x128xf32> to vector<128xf32>
    %89 = vector.shape_cast %88 : vector<128xf32> to vector<1x128xf32>
    %cst_67 = arith.constant 2.560000e+02 : f32
    %90 = vector.broadcast %cst_67 : f32 to vector<1x128xf32>
    %91 = arith.divf %89, %90 : vector<1x128xf32>
    %92 = vector.broadcast %91 : vector<1x128xf32> to vector<256x128xf32>
    %93 = arith.subf %87, %92 : vector<256x128xf32>
    %94 = arith.mulf %93, %93 : vector<256x128xf32>
    %cst_68 = arith.constant dense<0.000000e+00> : vector<128xf32>
    %95 = vector.multi_reduction <add>, %94, %cst_68 [0] : vector<256x128xf32> to vector<128xf32>
    %96 = vector.shape_cast %95 : vector<128xf32> to vector<1x128xf32>
    %cst_69 = arith.constant 2.560000e+02 : f32
    %97 = vector.broadcast %cst_69 : f32 to vector<1x128xf32>
    %98 = arith.divf %96, %97 : vector<1x128xf32>
    %99 = vector.broadcast %91 : vector<1x128xf32> to vector<256x128xf32>
    %100 = arith.subf %87, %99 : vector<256x128xf32>
    %cst_70 = arith.constant 9.99999974E-6 : f32
    %101 = vector.broadcast %cst_70 : f32 to vector<1x128xf32>
    %102 = arith.addf %98, %101 : vector<1x128xf32>
    %103 = math.rsqrt %102 : vector<1x128xf32>
    %104 = vector.broadcast %103 : vector<1x128xf32> to vector<256x128xf32>
    %105 = arith.mulf %100, %104 : vector<256x128xf32>
    %c0_71 = arith.constant 0 : index
    %c0_72 = arith.constant 0 : index
    %106 = vector.load %arg5[%c0_71, %c0_72] : memref<1x128xf32, #tpu.memory_space<vmem>>, vector<1x128xf32>
    %107 = vector.broadcast %106 : vector<1x128xf32> to vector<256x128xf32>
    %108 = arith.mulf %105, %107 : vector<256x128xf32>
    %c0_73 = arith.constant 0 : index
    %c0_74 = arith.constant 0 : index
    %109 = vector.load %arg6[%c0_73, %c0_74] : memref<1x128xf32, #tpu.memory_space<vmem>>, vector<1x128xf32>
    %110 = vector.broadcast %109 : vector<1x128xf32> to vector<256x128xf32>
    %111 = arith.addf %108, %110 : vector<256x128xf32>
    %cst_75 = arith.constant 0.000000e+00 : f32
    %112 = vector.broadcast %cst_75 : f32 to vector<256x128xf32>
    %113 = arith.maximumf %111, %112 : vector<256x128xf32>
    %cst_76 = arith.constant 0.000000e+00 : f32
    %114 = vector.broadcast %cst_76 : f32 to vector<17x128xf32>
    %c0_77 = arith.constant 0 : index
    %c0_78 = arith.constant 0 : index
    %115 = vector.load %arg10[%c0_77, %c0_78] : memref<290x128xf32, #tpu.memory_space<vmem>>, vector<17x128xf32>
    tpu.vector_store %arg10[%c0_77, %c0_78], %114 {strides = array<i32>} : memref<290x128xf32, #tpu.memory_space<vmem>>, vector<17x128xf32>,
    %c273 = arith.constant 273 : index
    %c0_79 = arith.constant 0 : index
    %116 = vector.load %arg10[%c273, %c0_79] : memref<290x128xf32, #tpu.memory_space<vmem>>, vector<17x128xf32>
    tpu.vector_store %arg10[%c273, %c0_79], %114 {strides = array<i32>} : memref<290x128xf32, #tpu.memory_space<vmem>>, vector<17x128xf32>,
    %c17_80 = arith.constant 17 : index
    %c0_81 = arith.constant 0 : index
    %117 = vector.load %arg10[%c17_80, %c0_81] : memref<290x128xf32, #tpu.memory_space<vmem>>, vector<256x128xf32>
    tpu.vector_store %arg10[%c17_80, %c0_81], %113 {strides = array<i32>} : memref<290x128xf32, #tpu.memory_space<vmem>>, vector<256x128xf32>,
    %cst_82 = arith.constant 0.000000e+00 : f32
    %118 = vector.broadcast %cst_82 : f32 to vector<256x128xf32>
    %c0_83 = arith.constant 0 : index
    %c0_84 = arith.constant 0 : index
    %119 = vector.load %arg10[%c0_83, %c0_84] : memref<290x128xf32, #tpu.memory_space<vmem>>, vector<256x128xf32>
    %c0_85 = arith.constant 0 : index
    %c0_86 = arith.constant 0 : index
    %c0_87 = arith.constant 0 : index
    %120 = vector.load %arg4[%c0_85, %c0_86, %c0_87] : memref<3x256x1xf32, #tpu.memory_space<vmem>>, vector<1x256x1xf32>
    %121 = vector.shape_cast %120 : vector<1x256x1xf32> to vector<256x1xf32>
    %122 = vector.broadcast %121 : vector<256x1xf32> to vector<256x128xf32>
    %123 = arith.mulf %119, %122 : vector<256x128xf32>
    %124 = arith.truncf %123 : vector<256x128xf32> to vector<256x128xbf16>
    %c0_88 = arith.constant 0 : index
    %c0_89 = arith.constant 0 : index
    %c0_90 = arith.constant 0 : index
    %125 = vector.load %arg3[%c0_88, %c0_89, %c0_90] : memref<9x128x128xbf16, #tpu.memory_space<vmem>>, vector<1x128x128xbf16>
    %126 = vector.shape_cast %125 : vector<1x128x128xbf16> to vector<128x128xbf16>
    %cst_91 = arith.constant dense<0.000000e+00> : vector<256x128xf32>
    %127 = tpu.matmul %124, %126, %cst_91 {dimension_numbers = #tpu.dot_dimension_numbers<[1], [0], [0], [1], [0, 0, 1, 1], [], []>} : vector<256x128xbf16>, vector<128x128xbf16>, vector<256x128xf32> -> vector<256x128xf32>
    %128 = arith.addf %118, %127 : vector<256x128xf32>
    %c1_92 = arith.constant 1 : index
    %c0_93 = arith.constant 0 : index
    %129 = vector.load %arg10[%c1_92, %c0_93] : memref<290x128xf32, #tpu.memory_space<vmem>>, vector<256x128xf32>
    %130 = arith.truncf %129 : vector<256x128xf32> to vector<256x128xbf16>
    %c1_94 = arith.constant 1 : index
    %c0_95 = arith.constant 0 : index
    %c0_96 = arith.constant 0 : index
    %131 = vector.load %arg3[%c1_94, %c0_95, %c0_96] : memref<9x128x128xbf16, #tpu.memory_space<vmem>>, vector<1x128x128xbf16>
    %132 = vector.shape_cast %131 : vector<1x128x128xbf16> to vector<128x128xbf16>
    %cst_97 = arith.constant dense<0.000000e+00> : vector<256x128xf32>
    %133 = tpu.matmul %130, %132, %cst_97 {dimension_numbers = #tpu.dot_dimension_numbers<[1], [0], [0], [1], [0, 0, 1, 1], [], []>} : vector<256x128xbf16>, vector<128x128xbf16>, vector<256x128xf32> -> vector<256x128xf32>
    %134 = arith.addf %128, %133 : vector<256x128xf32>
    %c2_98 = arith.constant 2 : index
    %c0_99 = arith.constant 0 : index
    %135 = vector.load %arg10[%c2_98, %c0_99] : memref<290x128xf32, #tpu.memory_space<vmem>>, vector<256x128xf32>
    %c2_100 = arith.constant 2 : index
    %c0_101 = arith.constant 0 : index
    %c0_102 = arith.constant 0 : index
    %136 = vector.load %arg4[%c2_100, %c0_101, %c0_102] : memref<3x256x1xf32, #tpu.memory_space<vmem>>, vector<1x256x1xf32>
    %137 = vector.shape_cast %136 : vector<1x256x1xf32> to vector<256x1xf32>
    %138 = vector.broadcast %137 : vector<256x1xf32> to vector<256x128xf32>
    %139 = arith.mulf %135, %138 : vector<256x128xf32>
    %140 = arith.truncf %139 : vector<256x128xf32> to vector<256x128xbf16>
    %c2_103 = arith.constant 2 : index
    %c0_104 = arith.constant 0 : index
    %c0_105 = arith.constant 0 : index
    %141 = vector.load %arg3[%c2_103, %c0_104, %c0_105] : memref<9x128x128xbf16, #tpu.memory_space<vmem>>, vector<1x128x128xbf16>
    %142 = vector.shape_cast %141 : vector<1x128x128xbf16> to vector<128x128xbf16>
    %cst_106 = arith.constant dense<0.000000e+00> : vector<256x128xf32>
    %143 = tpu.matmul %140, %142, %cst_106 {dimension_numbers = #tpu.dot_dimension_numbers<[1], [0], [0], [1], [0, 0, 1, 1], [], []>} : vector<256x128xbf16>, vector<128x128xbf16>, vector<256x128xf32> -> vector<256x128xf32>
    %144 = arith.addf %134, %143 : vector<256x128xf32>
    %c16_107 = arith.constant 16 : index
    %c0_108 = arith.constant 0 : index
    %145 = vector.load %arg10[%c16_107, %c0_108] : memref<290x128xf32, #tpu.memory_space<vmem>>, vector<256x128xf32>
    %c0_109 = arith.constant 0 : index
    %c0_110 = arith.constant 0 : index
    %c0_111 = arith.constant 0 : index
    %146 = vector.load %arg4[%c0_109, %c0_110, %c0_111] : memref<3x256x1xf32, #tpu.memory_space<vmem>>, vector<1x256x1xf32>
    %147 = vector.shape_cast %146 : vector<1x256x1xf32> to vector<256x1xf32>
    %148 = vector.broadcast %147 : vector<256x1xf32> to vector<256x128xf32>
    %149 = arith.mulf %145, %148 : vector<256x128xf32>
    %150 = arith.truncf %149 : vector<256x128xf32> to vector<256x128xbf16>
    %c3_112 = arith.constant 3 : index
    %c0_113 = arith.constant 0 : index
    %c0_114 = arith.constant 0 : index
    %151 = vector.load %arg3[%c3_112, %c0_113, %c0_114] : memref<9x128x128xbf16, #tpu.memory_space<vmem>>, vector<1x128x128xbf16>
    %152 = vector.shape_cast %151 : vector<1x128x128xbf16> to vector<128x128xbf16>
    %cst_115 = arith.constant dense<0.000000e+00> : vector<256x128xf32>
    %153 = tpu.matmul %150, %152, %cst_115 {dimension_numbers = #tpu.dot_dimension_numbers<[1], [0], [0], [1], [0, 0, 1, 1], [], []>} : vector<256x128xbf16>, vector<128x128xbf16>, vector<256x128xf32> -> vector<256x128xf32>
    %154 = arith.addf %144, %153 : vector<256x128xf32>
    %c17_116 = arith.constant 17 : index
    %c0_117 = arith.constant 0 : index
    %155 = vector.load %arg10[%c17_116, %c0_117] : memref<290x128xf32, #tpu.memory_space<vmem>>, vector<256x128xf32>
    %156 = arith.truncf %155 : vector<256x128xf32> to vector<256x128xbf16>
    %c4_118 = arith.constant 4 : index
    %c0_119 = arith.constant 0 : index
    %c0_120 = arith.constant 0 : index
    %157 = vector.load %arg3[%c4_118, %c0_119, %c0_120] : memref<9x128x128xbf16, #tpu.memory_space<vmem>>, vector<1x128x128xbf16>
    %158 = vector.shape_cast %157 : vector<1x128x128xbf16> to vector<128x128xbf16>
    %cst_121 = arith.constant dense<0.000000e+00> : vector<256x128xf32>
    %159 = tpu.matmul %156, %158, %cst_121 {dimension_numbers = #tpu.dot_dimension_numbers<[1], [0], [0], [1], [0, 0, 1, 1], [], []>} : vector<256x128xbf16>, vector<128x128xbf16>, vector<256x128xf32> -> vector<256x128xf32>
    %160 = arith.addf %154, %159 : vector<256x128xf32>
    %c18_122 = arith.constant 18 : index
    %c0_123 = arith.constant 0 : index
    %161 = vector.load %arg10[%c18_122, %c0_123] : memref<290x128xf32, #tpu.memory_space<vmem>>, vector<256x128xf32>
    %c2_124 = arith.constant 2 : index
    %c0_125 = arith.constant 0 : index
    %c0_126 = arith.constant 0 : index
    %162 = vector.load %arg4[%c2_124, %c0_125, %c0_126] : memref<3x256x1xf32, #tpu.memory_space<vmem>>, vector<1x256x1xf32>
    %163 = vector.shape_cast %162 : vector<1x256x1xf32> to vector<256x1xf32>
    %164 = vector.broadcast %163 : vector<256x1xf32> to vector<256x128xf32>
    %165 = arith.mulf %161, %164 : vector<256x128xf32>
    %166 = arith.truncf %165 : vector<256x128xf32> to vector<256x128xbf16>
    %c5_127 = arith.constant 5 : index
    %c0_128 = arith.constant 0 : index
    %c0_129 = arith.constant 0 : index
    %167 = vector.load %arg3[%c5_127, %c0_128, %c0_129] : memref<9x128x128xbf16, #tpu.memory_space<vmem>>, vector<1x128x128xbf16>
    %168 = vector.shape_cast %167 : vector<1x128x128xbf16> to vector<128x128xbf16>
    %cst_130 = arith.constant dense<0.000000e+00> : vector<256x128xf32>
    %169 = tpu.matmul %166, %168, %cst_130 {dimension_numbers = #tpu.dot_dimension_numbers<[1], [0], [0], [1], [0, 0, 1, 1], [], []>} : vector<256x128xbf16>, vector<128x128xbf16>, vector<256x128xf32> -> vector<256x128xf32>
    %170 = arith.addf %160, %169 : vector<256x128xf32>
    %c32_131 = arith.constant 32 : index
    %c0_132 = arith.constant 0 : index
    %171 = vector.load %arg10[%c32_131, %c0_132] : memref<290x128xf32, #tpu.memory_space<vmem>>, vector<256x128xf32>
    %c0_133 = arith.constant 0 : index
    %c0_134 = arith.constant 0 : index
    %c0_135 = arith.constant 0 : index
    %172 = vector.load %arg4[%c0_133, %c0_134, %c0_135] : memref<3x256x1xf32, #tpu.memory_space<vmem>>, vector<1x256x1xf32>
    %173 = vector.shape_cast %172 : vector<1x256x1xf32> to vector<256x1xf32>
    %174 = vector.broadcast %173 : vector<256x1xf32> to vector<256x128xf32>
    %175 = arith.mulf %171, %174 : vector<256x128xf32>
    %176 = arith.truncf %175 : vector<256x128xf32> to vector<256x128xbf16>
    %c6_136 = arith.constant 6 : index
    %c0_137 = arith.constant 0 : index
    %c0_138 = arith.constant 0 : index
    %177 = vector.load %arg3[%c6_136, %c0_137, %c0_138] : memref<9x128x128xbf16, #tpu.memory_space<vmem>>, vector<1x128x128xbf16>
    %178 = vector.shape_cast %177 : vector<1x128x128xbf16> to vector<128x128xbf16>
    %cst_139 = arith.constant dense<0.000000e+00> : vector<256x128xf32>
    %179 = tpu.matmul %176, %178, %cst_139 {dimension_numbers = #tpu.dot_dimension_numbers<[1], [0], [0], [1], [0, 0, 1, 1], [], []>} : vector<256x128xbf16>, vector<128x128xbf16>, vector<256x128xf32> -> vector<256x128xf32>
    %180 = arith.addf %170, %179 : vector<256x128xf32>
    %c33_140 = arith.constant 33 : index
    %c0_141 = arith.constant 0 : index
    %181 = vector.load %arg10[%c33_140, %c0_141] : memref<290x128xf32, #tpu.memory_space<vmem>>, vector<256x128xf32>
    %182 = arith.truncf %181 : vector<256x128xf32> to vector<256x128xbf16>
    %c7_142 = arith.constant 7 : index
    %c0_143 = arith.constant 0 : index
    %c0_144 = arith.constant 0 : index
    %183 = vector.load %arg3[%c7_142, %c0_143, %c0_144] : memref<9x128x128xbf16, #tpu.memory_space<vmem>>, vector<1x128x128xbf16>
    %184 = vector.shape_cast %183 : vector<1x128x128xbf16> to vector<128x128xbf16>
    %cst_145 = arith.constant dense<0.000000e+00> : vector<256x128xf32>
    %185 = tpu.matmul %182, %184, %cst_145 {dimension_numbers = #tpu.dot_dimension_numbers<[1], [0], [0], [1], [0, 0, 1, 1], [], []>} : vector<256x128xbf16>, vector<128x128xbf16>, vector<256x128xf32> -> vector<256x128xf32>
    %186 = arith.addf %180, %185 : vector<256x128xf32>
    %c34_146 = arith.constant 34 : index
    %c0_147 = arith.constant 0 : index
    %187 = vector.load %arg10[%c34_146, %c0_147] : memref<290x128xf32, #tpu.memory_space<vmem>>, vector<256x128xf32>
    %c2_148 = arith.constant 2 : index
    %c0_149 = arith.constant 0 : index
    %c0_150 = arith.constant 0 : index
    %188 = vector.load %arg4[%c2_148, %c0_149, %c0_150] : memref<3x256x1xf32, #tpu.memory_space<vmem>>, vector<1x256x1xf32>
    %189 = vector.shape_cast %188 : vector<1x256x1xf32> to vector<256x1xf32>
    %190 = vector.broadcast %189 : vector<256x1xf32> to vector<256x128xf32>
    %191 = arith.mulf %187, %190 : vector<256x128xf32>
    %192 = arith.truncf %191 : vector<256x128xf32> to vector<256x128xbf16>
    %c8_151 = arith.constant 8 : index
    %c0_152 = arith.constant 0 : index
    %c0_153 = arith.constant 0 : index
    %193 = vector.load %arg3[%c8_151, %c0_152, %c0_153] : memref<9x128x128xbf16, #tpu.memory_space<vmem>>, vector<1x128x128xbf16>
    %194 = vector.shape_cast %193 : vector<1x128x128xbf16> to vector<128x128xbf16>
    %cst_154 = arith.constant dense<0.000000e+00> : vector<256x128xf32>
    %195 = tpu.matmul %192, %194, %cst_154 {dimension_numbers = #tpu.dot_dimension_numbers<[1], [0], [0], [1], [0, 0, 1, 1], [], []>} : vector<256x128xbf16>, vector<128x128xbf16>, vector<256x128xf32> -> vector<256x128xf32>
    %196 = arith.addf %186, %195 : vector<256x128xf32>
    %cst_155 = arith.constant dense<0.000000e+00> : vector<128xf32>
    %197 = vector.multi_reduction <add>, %196, %cst_155 [0] : vector<256x128xf32> to vector<128xf32>
    %198 = vector.shape_cast %197 : vector<128xf32> to vector<1x128xf32>
    %cst_156 = arith.constant 2.560000e+02 : f32
    %199 = vector.broadcast %cst_156 : f32 to vector<1x128xf32>
    %200 = arith.divf %198, %199 : vector<1x128xf32>
    %201 = vector.broadcast %200 : vector<1x128xf32> to vector<256x128xf32>
    %202 = arith.subf %196, %201 : vector<256x128xf32>
    %203 = arith.mulf %202, %202 : vector<256x128xf32>
    %cst_157 = arith.constant dense<0.000000e+00> : vector<128xf32>
    %204 = vector.multi_reduction <add>, %203, %cst_157 [0] : vector<256x128xf32> to vector<128xf32>
    %205 = vector.shape_cast %204 : vector<128xf32> to vector<1x128xf32>
    %cst_158 = arith.constant 2.560000e+02 : f32
    %206 = vector.broadcast %cst_158 : f32 to vector<1x128xf32>
    %207 = arith.divf %205, %206 : vector<1x128xf32>
    %208 = vector.broadcast %200 : vector<1x128xf32> to vector<256x128xf32>
    %209 = arith.subf %196, %208 : vector<256x128xf32>
    %cst_159 = arith.constant 9.99999974E-6 : f32
    %210 = vector.broadcast %cst_159 : f32 to vector<1x128xf32>
    %211 = arith.addf %207, %210 : vector<1x128xf32>
    %212 = math.rsqrt %211 : vector<1x128xf32>
    %213 = vector.broadcast %212 : vector<1x128xf32> to vector<256x128xf32>
    %214 = arith.mulf %209, %213 : vector<256x128xf32>
    %c0_160 = arith.constant 0 : index
    %c0_161 = arith.constant 0 : index
    %215 = vector.load %arg7[%c0_160, %c0_161] : memref<1x128xf32, #tpu.memory_space<vmem>>, vector<1x128xf32>
    %216 = vector.broadcast %215 : vector<1x128xf32> to vector<256x128xf32>
    %217 = arith.mulf %214, %216 : vector<256x128xf32>
    %c0_162 = arith.constant 0 : index
    %c0_163 = arith.constant 0 : index
    %218 = vector.load %arg8[%c0_162, %c0_163] : memref<1x128xf32, #tpu.memory_space<vmem>>, vector<1x128xf32>
    %219 = vector.broadcast %218 : vector<1x128xf32> to vector<256x128xf32>
    %220 = arith.addf %217, %219 : vector<256x128xf32>
    %c0_164 = arith.constant 0 : index
    %c17_165 = arith.constant 17 : index
    %c0_166 = arith.constant 0 : index
    %221 = vector.load %arg1[%c0_164, %c17_165, %c0_166] : memref<1x290x128xf32, #tpu.memory_space<vmem>>, vector<1x256x128xf32>
    %222 = vector.shape_cast %221 : vector<1x256x128xf32> to vector<256x128xf32>
    %223 = arith.addf %222, %220 : vector<256x128xf32>
    %c0_167 = arith.constant 0 : index
    %c0_168 = arith.constant 0 : index
    %c0_169 = arith.constant 0 : index
    %224 = vector.load %arg9[%c0_167, %c0_168, %c0_169] : memref<1x256x128xf32, #tpu.memory_space<vmem>>, vector<1x256x128xf32>
    %225 = vector.shape_cast %224 : vector<1x256x128xf32> to vector<256x128xf32>
    %226 = vector.shape_cast %223 : vector<256x128xf32> to vector<1x256x128xf32>
    tpu.vector_store %arg9[%c0_167, %c0_168, %c0_169], %226 {strides = array<i32>} : memref<1x256x128xf32, #tpu.memory_space<vmem>>, vector<1x256x128xf32>,
    return
  }
  func.func @transform_0(%arg0: i32) -> (i32, i32, i32) {
    %c0_i32 = arith.constant 0 : i32
    %c0_i32_0 = arith.constant 0 : i32
    %c0_i32_1 = arith.constant 0 : i32
    return %arg0, %c0_i32, %c0_i32_0 : i32, i32, i32
  }
  func.func @transform_1(%arg0: i32) -> (i32, i32, i32) {
    %c0_i32 = arith.constant 0 : i32
    %c0_i32_0 = arith.constant 0 : i32
    %c0_i32_1 = arith.constant 0 : i32
    %c0_i32_2 = arith.constant 0 : i32
    return %c0_i32, %c0_i32_0, %c0_i32_1 : i32, i32, i32
  }
  func.func @transform_2(%arg0: i32) -> (i32, i32, i32) {
    %c0_i32 = arith.constant 0 : i32
    %c0_i32_0 = arith.constant 0 : i32
    %c0_i32_1 = arith.constant 0 : i32
    %c0_i32_2 = arith.constant 0 : i32
    return %c0_i32, %c0_i32_0, %c0_i32_1 : i32, i32, i32
  }
  func.func @transform_3(%arg0: i32) -> (i32, i32, i32) {
    %c0_i32 = arith.constant 0 : i32
    %c0_i32_0 = arith.constant 0 : i32
    %c0_i32_1 = arith.constant 0 : i32
    %c0_i32_2 = arith.constant 0 : i32
    return %c0_i32, %c0_i32_0, %c0_i32_1 : i32, i32, i32
  }
  func.func @transform_4(%arg0: i32) -> (i32, i32) {
    %c0_i32 = arith.constant 0 : i32
    %c0_i32_0 = arith.constant 0 : i32
    %c0_i32_1 = arith.constant 0 : i32
    return %c0_i32, %c0_i32_0 : i32, i32
  }
  func.func @transform_5(%arg0: i32) -> (i32, i32) {
    %c0_i32 = arith.constant 0 : i32
    %c0_i32_0 = arith.constant 0 : i32
    %c0_i32_1 = arith.constant 0 : i32
    return %c0_i32, %c0_i32_0 : i32, i32
  }
  func.func @transform_6(%arg0: i32) -> (i32, i32) {
    %c0_i32 = arith.constant 0 : i32
    %c0_i32_0 = arith.constant 0 : i32
    %c0_i32_1 = arith.constant 0 : i32
    return %c0_i32, %c0_i32_0 : i32, i32
  }
  func.func @transform_7(%arg0: i32) -> (i32, i32) {
    %c0_i32 = arith.constant 0 : i32
    %c0_i32_0 = arith.constant 0 : i32
    %c0_i32_1 = arith.constant 0 : i32
    return %c0_i32, %c0_i32_0 : i32, i32
  }
  func.func @transform_8(%arg0: i32) -> (i32, i32, i32) {
    %c0_i32 = arith.constant 0 : i32
    %c0_i32_0 = arith.constant 0 : i32
    %c0_i32_1 = arith.constant 0 : i32
    return %arg0, %c0_i32, %c0_i32_0 : i32, i32, i32
  }
}

</mosaic_0001>

<llo_original>
// kernel: image_residual_block.1
$region0: #{image_residual_block.1}
  #allocation0 [shape = 'u32[]', space=smem, size = 0x4, offset = 0x4, fixed_abs, tag = 'smem constant byte address 0x4 - core index']
  #allocation1 [shape = 'u32[144,128]{1,0:T(1,128)}', space=vmem, size = 0x12000, scoped, tag = 'internal scratch']
  #allocation2 [shape = 'f32[290,128]{1,0:T(8,128)}', space=vmem, size = 0x25000, scoped, tag = 'scratch operand']
  %s0 = inlined_call_operand.vmem [shape: f32[2,290,128], index: 0, kind: input, shape index: {}]
  %s1 = inlined_call_operand.vmem [shape: bf16[9,128,128], index: 1, kind: input, shape index: {}]
  %s2 = inlined_call_operand.vmem [shape: bf16[9,128,128], index: 2, kind: input, shape index: {}]
  %s3 = inlined_call_operand.vmem [shape: f32[3,256,1], index: 3, kind: input, shape index: {}]
  %s4 = inlined_call_operand.vmem [shape: f32[1,128], index: 4, kind: input, shape index: {}]
  %s5 = inlined_call_operand.vmem [shape: f32[1,128], index: 5, kind: input, shape index: {}]
  %s6 = inlined_call_operand.vmem [shape: f32[1,128], index: 6, kind: input, shape index: {}]
  %s7 = inlined_call_operand.vmem [shape: f32[1,128], index: 7, kind: input, shape index: {}]
  %s8 = inlined_call_operand.hbm [shape: f32[2,256,128], index: 8, kind: output, shape index: {}]
  %s9 = sld [smem:[#allocation0]]
  $region65: #{image_residual_block.1} parent=0
    _
  %s11 = ssub.s32 1, %s9
  %s12 = scalar_select 0, %s11, %s9
  $region1: #{image_residual_block.1} parent=0
    #allocation3 [shape = 'u8[262144]{0}', space=vmem, size = 0x40000, scoped, tag = 'output window, operand 0']
    #allocation4 [shape = 's32[2]{0}', space=sflag, size = 0x8, scoped, tag = 'scoped memory for image_residual_block.1']
    %13 = vsyncpa [#allocation4], 0
    %s14 = scalar_lea.sflag [#allocation4], 1
    %15 = vsyncpa %s14, 0
    loop: start=0, step=1, limit=4
    $region2: #{image_residual_block.1} parent=1 // loop_pre_header
      _
    $region3: #{image_residual_block.1} parent=1 // loop_header
      %s17 = sphi 0, %s21
      %p18 = scmp.ge.s32.totalorder %s17, 4
      %s27 = sphi 0, %s29
      %s30 = sphi 0, %s27
      %s31 = sphi 0, %s30
      %s47 = sphi 0, %s31
      %s51 = sphi 0, %s51
      %s53 = sphi 0, %s51
      %s54 = sphi 0, %s53
      %s68 = sphi 0, %s54
      %s72 = sphi 0, %s72
      %s74 = sphi 0, %s72
      %s75 = sphi 0, %s74
      %s89 = sphi 0, %s75
      %s93 = sphi 0, %s93
      %s95 = sphi 0, %s93
      %s96 = sphi 0, %s95
      %s110 = sphi 0, %s96
      %s114 = sphi 0, %s114
      %s116 = sphi 0, %s114
      %s117 = sphi 0, %s116
      %s131 = sphi 0, %s117
      %s135 = sphi 0, %s135
      %s137 = sphi 0, %s135
      %s138 = sphi 0, %s137
      %s152 = sphi 0, %s138
      %s156 = sphi 0, %s156
      %s158 = sphi 0, %s156
      %s159 = sphi 0, %s158
      %s173 = sphi 0, %s159
      %s177 = sphi 0, %s177
      %s179 = sphi 0, %s177
      %s180 = sphi 0, %s179
      %s194 = sphi 0, %s180
      %s200 = sphi 0, %s202
      %s203 = sphi 0, %s200
      %s204 = sphi 0, %s203
      %s220 = sphi 0, %s204
    $region4: #{image_residual_block.1} parent=1 // loop_header_branch
      %20 = sbr.rel (%p18) target = $region8
    $region5: #{image_residual_block.1} parent=1 // loop_body
      %s22 = ssub.s32 %s17, 1
      %s23 = ssub.s32 %s17, 2
      %s24 = sadd.s32 %s17, 1
      %s25 = ssub.s32 %s17, %s24
      %p26 = scmp.eq.s32.totalorder %s25, 0
      %s28 = sadd.s32 %s27, 1
      %s29 = scalar_select %p26, %s27, %s28
      %p32 = pneg %p26
      %p33 = scmp.eq.s32.totalorder %s17, 1
      %p34 = por %p32, %p33
      %p35 = scmp.ne.s32.totalorder %s27, %s30
      %p36 = scmp.eq.s32.totalorder %s17, 0
      %p37 = por %p35, %p36
      %p38 = scmp.ne.s32.totalorder %s27, %s30
      %p39 = scmp.eq.s32.totalorder %s22, 1
      %p40 = por %p38, %p39
      %p41 = scmp.ne.s32.totalorder %s30, %s31
      %p42 = scmp.eq.s32.totalorder %s22, 0
      %p43 = por %p41, %p42
      %p44 = scmp.ne.s32.totalorder %s30, %s31
      %p45 = scmp.eq.s32.totalorder %s23, 1
      %p46 = por %p44, %p45
      %p48 = scmp.ne.s32.totalorder %s31, %s47
      %p49 = scmp.eq.s32.totalorder %s23, 0
      %p50 = por %p48, %p49
      %s52 = sadd.s32 %s51, 1
      %p55 = scmp.eq.s32.totalorder %s17, 1
      %p56 = scmp.ne.s32.totalorder %s51, %s53
      %p57 = scmp.eq.s32.totalorder %s17, 0
      %p58 = por %p56, %p57
      %p59 = scmp.ne.s32.totalorder %s51, %s53
      %p60 = scmp.eq.s32.totalorder %s22, 1
      %p61 = por %p59, %p60
      %p62 = scmp.ne.s32.totalorder %s53, %s54
      %p63 = scmp.eq.s32.totalorder %s22, 0
      %p64 = por %p62, %p63
      %p65 = scmp.ne.s32.totalorder %s53, %s54
      %p66 = scmp.eq.s32.totalorder %s23, 1
      %p67 = por %p65, %p66
      %p69 = scmp.ne.s32.totalorder %s54, %s68
      %p70 = scmp.eq.s32.totalorder %s23, 0
      %p71 = por %p69, %p70
      %s73 = sadd.s32 %s72, 1
      %p76 = scmp.eq.s32.totalorder %s17, 1
      %p77 = scmp.ne.s32.totalorder %s72, %s74
      %p78 = scmp.eq.s32.totalorder %s17, 0
      %p79 = por %p77, %p78
      %p80 = scmp.ne.s32.totalorder %s72, %s74
      %p81 = scmp.eq.s32.totalorder %s22, 1
      %p82 = por %p80, %p81
      %p83 = scmp.ne.s32.totalorder %s74, %s75
      %p84 = scmp.eq.s32.totalorder %s22, 0
      %p85 = por %p83, %p84
      %p86 = scmp.ne.s32.totalorder %s74, %s75
      %p87 = scmp.eq.s32.totalorder %s23, 1
      %p88 = por %p86, %p87
      %p90 = scmp.ne.s32.totalorder %s75, %s89
      %p91 = scmp.eq.s32.totalorder %s23, 0
      %p92 = por %p90, %p91
      %s94 = sadd.s32 %s93, 1
      %p97 = scmp.eq.s32.totalorder %s17, 1
      %p98 = scmp.ne.s32.totalorder %s93, %s95
      %p99 = scmp.eq.s32.totalorder %s17, 0
      %p100 = por %p98, %p99
      %p101 = scmp.ne.s32.totalorder %s93, %s95
      %p102 = scmp.eq.s32.totalorder %s22, 1
      %p103 = por %p101, %p102
      %p104 = scmp.ne.s32.totalorder %s95, %s96
      %p105 = scmp.eq.s32.totalorder %s22, 0
      %p106 = por %p104, %p105
      %p107 = scmp.ne.s32.totalorder %s95, %s96
      %p108 = scmp.eq.s32.totalorder %s23, 1
      %p109 = por %p107, %p108
      %p111 = scmp.ne.s32.totalorder %s96, %s110
      %p112 = scmp.eq.s32.totalorder %s23, 0
      %p113 = por %p111, %p112
      %s115 = sadd.s32 %s114, 1
      %p118 = scmp.eq.s32.totalorder %s17, 1
      %p119 = scmp.ne.s32.totalorder %s114, %s116
      %p120 = scmp.eq.s32.totalorder %s17, 0
      %p121 = por %p119, %p120
      %p122 = scmp.ne.s32.totalorder %s114, %s116
      %p123 = scmp.eq.s32.totalorder %s22, 1
      %p124 = por %p122, %p123
      %p125 = scmp.ne.s32.totalorder %s116, %s117
      %p126 = scmp.eq.s32.totalorder %s22, 0
      %p127 = por %p125, %p126
      %p128 = scmp.ne.s32.totalorder %s116, %s117
      %p129 = scmp.eq.s32.totalorder %s23, 1
      %p130 = por %p128, %p129
      %p132 = scmp.ne.s32.totalorder %s117, %s131
      %p133 = scmp.eq.s32.totalorder %s23, 0
      %p134 = por %p132, %p133
      %s136 = sadd.s32 %s135, 1
      %p139 = scmp.eq.s32.totalorder %s17, 1
      %p140 = scmp.ne.s32.totalorder %s135, %s137
      %p141 = scmp.eq.s32.totalorder %s17, 0
      %p142 = por %p140, %p141
      %p143 = scmp.ne.s32.totalorder %s135, %s137
      %p144 = scmp.eq.s32.totalorder %s22, 1
      %p145 = por %p143, %p144
      %p146 = scmp.ne.s32.totalorder %s137, %s138
      %p147 = scmp.eq.s32.totalorder %s22, 0
      %p148 = por %p146, %p147
      %p149 = scmp.ne.s32.totalorder %s137, %s138
      %p150 = scmp.eq.s32.totalorder %s23, 1
      %p151 = por %p149, %p150
      %p153 = scmp.ne.s32.totalorder %s138, %s152
      %p154 = scmp.eq.s32.totalorder %s23, 0
      %p155 = por %p153, %p154
      %s157 = sadd.s32 %s156, 1
      %p160 = scmp.eq.s32.totalorder %s17, 1
      %p161 = scmp.ne.s32.totalorder %s156, %s158
      %p162 = scmp.eq.s32.totalorder %s17, 0
      %p163 = por %p161, %p162
      %p164 = scmp.ne.s32.totalorder %s156, %s158
      %p165 = scmp.eq.s32.totalorder %s22, 1
      %p166 = por %p164, %p165
      %p167 = scmp.ne.s32.totalorder %s158, %s159
      %p168 = scmp.eq.s32.totalorder %s22, 0
      %p169 = por %p167, %p168
      %p170 = scmp.ne.s32.totalorder %s158, %s159
      %p171 = scmp.eq.s32.totalorder %s23, 1
      %p172 = por %p170, %p171
      %p174 = scmp.ne.s32.totalorder %s159, %s173
      %p175 = scmp.eq.s32.totalorder %s23, 0
      %p176 = por %p174, %p175
      %s178 = sadd.s32 %s177, 1
      %p181 = scmp.eq.s32.totalorder %s17, 1
      %p182 = scmp.ne.s32.totalorder %s177, %s179
      %p183 = scmp.eq.s32.totalorder %s17, 0
      %p184 = por %p182, %p183
      %p185 = scmp.ne.s32.totalorder %s177, %s179
      %p186 = scmp.eq.s32.totalorder %s22, 1
      %p187 = por %p185, %p186
      %p188 = scmp.ne.s32.totalorder %s179, %s180
      %p189 = scmp.eq.s32.totalorder %s22, 0
      %p190 = por %p188, %p189
      %p191 = scmp.ne.s32.totalorder %s179, %s180
      %p192 = scmp.eq.s32.totalorder %s23, 1
      %p193 = por %p191, %p192
      %p195 = scmp.ne.s32.totalorder %s180, %s194
      %p196 = scmp.eq.s32.totalorder %s23, 0
      %p197 = por %p195, %p196
      %s198 = ssub.s32 %s17, %s24
      %p199 = scmp.eq.s32.totalorder %s198, 0
      %s201 = sadd.s32 %s200, 1
      %s202 = scalar_select %p199, %s200, %s201
      %p205 = pneg %p199
      %p206 = scmp.eq.s32.totalorder %s17, 1
      %p207 = por %p205, %p206
      %p208 = scmp.ne.s32.totalorder %s200, %s203
      %p209 = scmp.eq.s32.totalorder %s17, 0
      %p210 = por %p208, %p209
      %p211 = scmp.ne.s32.totalorder %s200, %s203
      %p212 = scmp.eq.s32.totalorder %s22, 1
      %p213 = por %p211, %p212
      %p214 = scmp.ne.s32.totalorder %s203, %s204
      %p215 = scmp.eq.s32.totalorder %s22, 0
      %p216 = por %p214, %p215
      %p217 = scmp.ne.s32.totalorder %s203, %s204
      %p218 = scmp.eq.s32.totalorder %s23, 1
      %p219 = por %p217, %p218
      %p221 = scmp.ne.s32.totalorder %s204, %s220
      %p222 = scmp.eq.s32.totalorder %s23, 0
      %p223 = por %p221, %p222
      %p224 = scmp.le.s32.totalorder 1, %s17
      %p225 = scmp.lt.s32.totalorder %s17, 3
      %p226 = pnand %p224, %p225
      %p227 = pneg %p226
      // Predicated region
      $region9: #{image_residual_block.1} parent=5 // pred_check
        _
      $region10: #{image_residual_block.1} parent=5 // pred_check_branch
        %229 = sbr.rel (%p226) target = $region12
      $region11: #{image_residual_block.1} parent=5 // pred_region
        %s230 = ssub.s32 %s17, 1
        // Predicated region
        $region13: #{image_residual_block.1} parent=11 // pred_check
          %p231 = pneg %p64
        $region14: #{image_residual_block.1} parent=11 // pred_check_branch
          %233 = sbr.rel (%p231) target = $region16
        $region15: #{image_residual_block.1} parent=11 // pred_region
          _
        $region16: #{image_residual_block.1} parent=11 // pred_fallthru
          _
        // Predicated region
        $region17: #{image_residual_block.1} parent=11 // pred_check
          %p234 = pneg %p85
        $region18: #{image_residual_block.1} parent=11 // pred_check_branch
          %236 = sbr.rel (%p234) target = $region20
        $region19: #{image_residual_block.1} parent=11 // pred_region
          _
        $region20: #{image_residual_block.1} parent=11 // pred_fallthru
          _
        // Predicated region
        $region21: #{image_residual_block.1} parent=11 // pred_check
          %p237 = pneg %p106
        $region22: #{image_residual_block.1} parent=11 // pred_check_branch
          %239 = sbr.rel (%p237) target = $region24
        $region23: #{image_residual_block.1} parent=11 // pred_region
          _
        $region24: #{image_residual_block.1} parent=11 // pred_fallthru
          _
        // Predicated region
        $region25: #{image_residual_block.1} parent=11 // pred_check
          %p240 = pneg %p127
        $region26: #{image_residual_block.1} parent=11 // pred_check_branch
          %242 = sbr.rel (%p240) target = $region28
        $region27: #{image_residual_block.1} parent=11 // pred_region
          _
        $region28: #{image_residual_block.1} parent=11 // pred_fallthru
          _
        // Predicated region
        $region29: #{image_residual_block.1} parent=11 // pred_check
          %p243 = pneg %p148
        $region30: #{image_residual_block.1} parent=11 // pred_check_branch
          %245 = sbr.rel (%p243) target = $region32
        $region31: #{image_residual_block.1} parent=11 // pred_region
          _
        $region32: #{image_residual_block.1} parent=11 // pred_fallthru
          _
        // Predicated region
        $region33: #{image_residual_block.1} parent=11 // pred_check
          %p246 = pneg %p169
        $region34: #{image_residual_block.1} parent=11 // pred_check_branch
          %248 = sbr.rel (%p246) target = $region36
        $region35: #{image_residual_block.1} parent=11 // pred_region
          _
        $region36: #{image_residual_block.1} parent=11 // pred_fallthru
          _
        // Predicated region
        $region37: #{image_residual_block.1} parent=11 // pred_check
          %p249 = pneg %p190
        $region38: #{image_residual_block.1} parent=11 // pred_check_branch
          %251 = sbr.rel (%p249) target = $region40
        $region39: #{image_residual_block.1} parent=11 // pred_region
          _
        $region40: #{image_residual_block.1} parent=11 // pred_fallthru
          _
      $region12: #{image_residual_block.1} parent=5 // pred_fallthru
        _
      %p252 = scmp.lt.s32.totalorder %s17, 2
      // Predicated region
      $region41: #{image_residual_block.1} parent=5 // pred_check
        %p253 = pneg %p252
      $region42: #{image_residual_block.1} parent=5 // pred_check_branch
        %255 = sbr.rel (%p253) target = $region44
      $region43: #{image_residual_block.1} parent=5 // pred_region
        // Predicated region
        $region45: #{image_residual_block.1} parent=43 // pred_check
          %p256 = pneg %p37
        $region46: #{image_residual_block.1} parent=43 // pred_check_branch
          %258 = sbr.rel (%p256) target = $region48
        $region47: #{image_residual_block.1} parent=43 // pred_region
          %p259 = scmp.lt.s32.totalorder %s17, 1
          %s260 = scalar_select %p259, %s17, 1
          %s261 = smul.addr %s260, 37
          %s262 = smul.addr %s261, 8
          %s263 = scalar_lea.vmem %s0, %s262
        $region48: #{image_residual_block.1} parent=43 // pred_fallthru
          _
      $region44: #{image_residual_block.1} parent=5 // pred_fallthru
        _
      %p264 = scmp.le.s32.totalorder 1, %s17
      %p265 = scmp.lt.s32.totalorder %s17, 3
      %p266 = pnand %p264, %p265
      %p267 = pneg %p266
      // Predicated region
      $region49: #{image_residual_block.1} parent=5 // pred_check
        _
      $region50: #{image_residual_block.1} parent=5 // pred_check_branch
        %269 = sbr.rel (%p266) target = $region52
      $region51: #{image_residual_block.1} parent=5 // pred_region
        %s270 = ssub.s32 %s17, 1
        %p271 = scmp.lt.s32.totalorder %s22, 1
        %s272 = scalar_select %p271, %s22, 1
        %s273 = smul.addr %s272, 37
        %s274 = smul.addr %s273, 8
        %s275 = scalar_lea.vmem %s0, %s274
        %p276 = pneg %p43
        %p277 = pneg %p40
        %p278 = pneg %p64
        %p279 = pneg %p61
        %p280 = pneg %p85
        %p281 = pneg %p82
        %p282 = pneg %p106
        %p283 = pneg %p103
        %p284 = pneg %p127
        %p285 = pneg %p124
        %p286 = pneg %p148
        %p287 = pneg %p145
        %p288 = pneg %p169
        %p289 = pneg %p166
        %p290 = pneg %p190
        %p291 = pneg %p187
        %p292 = pneg %p216
        %p293 = pneg %p213
        %s294 = sand.u32 %s203, 1
        %s295 = scalar_lea.sflag [#allocation4], %s294
        %s296 = sand.u32 %s203, 1
        %s297 = smul.addr %s296, 256
        %s298 = scalar_lea.vmem [#allocation3], %s297
        %p299 = scmp.lt.s32.totalorder %s22, 1
        %s300 = scalar_select %p299, %s22, 1
        %s301 = smul.addr %s300, 37
        %s302 = smul.addr %s301, 8
        %s303 = scalar_lea.vmem %s0, %s302
        %v305 = vld [vmem:[%s303] sm:$0xff]
        %v306 = vld [vmem:[%s303 + $0x8] sm:$0xff]
        %v307 = vld [vmem:[%s303 + $0x10] sm:$0xff]
        %v308 = vld [vmem:[%s303 + $0x18] sm:$0xff]
        %v309 = vld [vmem:[%s303 + $0x20] sm:$0xff]
        %v310 = vld [vmem:[%s303 + $0x28] sm:$0xff]
        %v311 = vld [vmem:[%s303 + $0x30] sm:$0xff]
        %v312 = vld [vmem:[%s303 + $0x38] sm:$0xff]
        %v313 = vld [vmem:[%s303 + $0x40] sm:$0xff]
        %v314 = vld [vmem:[%s303 + $0x48] sm:$0xff]
        %v315 = vld [vmem:[%s303 + $0x50] sm:$0xff]
        %v316 = vld [vmem:[%s303 + $0x58] sm:$0xff]
        %v317 = vld [vmem:[%s303 + $0x60] sm:$0xff]
        %v318 = vld [vmem:[%s303 + $0x68] sm:$0xff]
        %v319 = vld [vmem:[%s303 + $0x70] sm:$0xff]
        %v320 = vld [vmem:[%s303 + $0x78] sm:$0xff]
        %v321 = vld [vmem:[%s303 + $0x80] sm:$0xff]
        %v322 = vld [vmem:[%s303 + $0x88] sm:$0xff]
        %v323 = vld [vmem:[%s303 + $0x90] sm:$0xff]
        %v324 = vld [vmem:[%s303 + $0x98] sm:$0xff]
        %v325 = vld [vmem:[%s303 + $0xa0] sm:$0xff]
        %v326 = vld [vmem:[%s303 + $0xa8] sm:$0xff]
        %v327 = vld [vmem:[%s303 + $0xb0] sm:$0xff]
        %v328 = vld [vmem:[%s303 + $0xb8] sm:$0xff]
        %v329 = vld [vmem:[%s303 + $0xc0] sm:$0xff]
        %v330 = vld [vmem:[%s303 + $0xc8] sm:$0xff]
        %v331 = vld [vmem:[%s303 + $0xd0] sm:$0xff]
        %v332 = vld [vmem:[%s303 + $0xd8] sm:$0xff]
        %v333 = vld [vmem:[%s303 + $0xe0] sm:$0xff]
        %v334 = vld [vmem:[%s303 + $0xe8] sm:$0xff]
        %v335 = vld [vmem:[%s303 + $0xf0] sm:$0xff]
        %v336 = vld [vmem:[%s303 + $0xf8] sm:$0xff]
        %v337 = vld [vmem:[%s3] sm:$0xff]
        %v338 = vld [vmem:[%s3 + $0x8] sm:$0xff]
        %v339 = vld [vmem:[%s3 + $0x10] sm:$0xff]
        %v340 = vld [vmem:[%s3 + $0x18] sm:$0xff]
        %v341 = vld [vmem:[%s3 + $0x20] sm:$0xff]
        %v342 = vld [vmem:[%s3 + $0x28] sm:$0xff]
        %v343 = vld [vmem:[%s3 + $0x30] sm:$0xff]
        %v344 = vld [vmem:[%s3 + $0x38] sm:$0xff]
        %v345 = vld [vmem:[%s3 + $0x40] sm:$0xff]
        %v346 = vld [vmem:[%s3 + $0x48] sm:$0xff]
        %v347 = vld [vmem:[%s3 + $0x50] sm:$0xff]
        %v348 = vld [vmem:[%s3 + $0x58] sm:$0xff]
        %v349 = vld [vmem:[%s3 + $0x60] sm:$0xff]
        %v350 = vld [vmem:[%s3 + $0x68] sm:$0xff]
        %v351 = vld [vmem:[%s3 + $0x70] sm:$0xff]
        %v352 = vld [vmem:[%s3 + $0x78] sm:$0xff]
        %v353 = vld [vmem:[%s3 + $0x80] sm:$0xff]
        %v354 = vld [vmem:[%s3 + $0x88] sm:$0xff]
        %v355 = vld [vmem:[%s3 + $0x90] sm:$0xff]
        %v356 = vld [vmem:[%s3 + $0x98] sm:$0xff]
        %v357 = vld [vmem:[%s3 + $0xa0] sm:$0xff]
        %v358 = vld [vmem:[%s3 + $0xa8] sm:$0xff]
        %v359 = vld [vmem:[%s3 + $0xb0] sm:$0xff]
        %v360 = vld [vmem:[%s3 + $0xb8] sm:$0xff]
        %v361 = vld [vmem:[%s3 + $0xc0] sm:$0xff]
        %v362 = vld [vmem:[%s3 + $0xc8] sm:$0xff]
        %v363 = vld [vmem:[%s3 + $0xd0] sm:$0xff]
        %v364 = vld [vmem:[%s3 + $0xd8] sm:$0xff]
        %v365 = vld [vmem:[%s3 + $0xe0] sm:$0xff]
        %v366 = vld [vmem:[%s3 + $0xe8] sm:$0xff]
        %v367 = vld [vmem:[%s3 + $0xf0] sm:$0xff]
        %v368 = vld [vmem:[%s3 + $0xf8] sm:$0xff]
        %370 = vset.pattern.permute.xlu0 0
        %371 = vperm.xlu0 %370, %v337
        %v372 = vpop.permute.xlu0 %371
        %375 = vset.pattern.permute.xlu0 0
        %376 = vperm.xlu0 %375, %v338
        %v377 = vpop.permute.xlu0 %376
        %380 = vset.pattern.permute.xlu0 0
        %381 = vperm.xlu0 %380, %v339
        %v382 = vpop.permute.xlu0 %381
        %385 = vset.pattern.permute.xlu0 0
        %386 = vperm.xlu0 %385, %v340
        %v387 = vpop.permute.xlu0 %386
        %390 = vset.pattern.permute.xlu0 0
        %391 = vperm.xlu0 %390, %v341
        %v392 = vpop.permute.xlu0 %391
        %395 = vset.pattern.permute.xlu0 0
        %396 = vperm.xlu0 %395, %v342
        %v397 = vpop.permute.xlu0 %396
        %400 = vset.pattern.permute.xlu0 0
        %401 = vperm.xlu0 %400, %v343
        %v402 = vpop.permute.xlu0 %401
        %405 = vset.pattern.permute.xlu0 0
        %406 = vperm.xlu0 %405, %v344
        %v407 = vpop.permute.xlu0 %406
        %410 = vset.pattern.permute.xlu0 0
        %411 = vperm.xlu0 %410, %v345
        %v412 = vpop.permute.xlu0 %411
        %415 = vset.pattern.permute.xlu0 0
        %416 = vperm.xlu0 %415, %v346
        %v417 = vpop.permute.xlu0 %416
        %420 = vset.pattern.permute.xlu0 0
        %421 = vperm.xlu0 %420, %v347
        %v422 = vpop.permute.xlu0 %421
        %425 = vset.pattern.permute.xlu0 0
        %426 = vperm.xlu0 %425, %v348
        %v427 = vpop.permute.xlu0 %426
        %430 = vset.pattern.permute.xlu0 0
        %431 = vperm.xlu0 %430, %v349
        %v432 = vpop.permute.xlu0 %431
        %435 = vset.pattern.permute.xlu0 0
        %436 = vperm.xlu0 %435, %v350
        %v437 = vpop.permute.xlu0 %436
        %440 = vset.pattern.permute.xlu0 0
        %441 = vperm.xlu0 %440, %v351
        %v442 = vpop.permute.xlu0 %441
        %445 = vset.pattern.permute.xlu0 0
        %446 = vperm.xlu0 %445, %v352
        %v447 = vpop.permute.xlu0 %446
        %450 = vset.pattern.permute.xlu0 0
        %451 = vperm.xlu0 %450, %v353
        %v452 = vpop.permute.xlu0 %451
        %455 = vset.pattern.permute.xlu0 0
        %456 = vperm.xlu0 %455, %v354
        %v457 = vpop.permute.xlu0 %456
        %460 = vset.pattern.permute.xlu0 0
        %461 = vperm.xlu0 %460, %v355
        %v462 = vpop.permute.xlu0 %461
        %465 = vset.pattern.permute.xlu0 0
        %466 = vperm.xlu0 %465, %v356
        %v467 = vpop.permute.xlu0 %466
        %470 = vset.pattern.permute.xlu0 0
        %471 = vperm.xlu0 %470, %v357
        %v472 = vpop.permute.xlu0 %471
        %475 = vset.pattern.permute.xlu0 0
        %476 = vperm.xlu0 %475, %v358
        %v477 = vpop.permute.xlu0 %476
        %480 = vset.pattern.permute.xlu0 0
        %481 = vperm.xlu0 %480, %v359
        %v482 = vpop.permute.xlu0 %481
        %485 = vset.pattern.permute.xlu0 0
        %486 = vperm.xlu0 %485, %v360
        %v487 = vpop.permute.xlu0 %486
        %490 = vset.pattern.permute.xlu0 0
        %491 = vperm.xlu0 %490, %v361
        %v492 = vpop.permute.xlu0 %491
        %495 = vset.pattern.permute.xlu0 0
        %496 = vperm.xlu0 %495, %v362
        %v497 = vpop.permute.xlu0 %496
        %500 = vset.pattern.permute.xlu0 0
        %501 = vperm.xlu0 %500, %v363
        %v502 = vpop.permute.xlu0 %501
        %505 = vset.pattern.permute.xlu0 0
        %506 = vperm.xlu0 %505, %v364
        %v507 = vpop.permute.xlu0 %506
        %510 = vset.pattern.permute.xlu0 0
        %511 = vperm.xlu0 %510, %v365
        %v512 = vpop.permute.xlu0 %511
        %515 = vset.pattern.permute.xlu0 0
        %516 = vperm.xlu0 %515, %v366
        %v517 = vpop.permute.xlu0 %516
        %520 = vset.pattern.permute.xlu0 0
        %521 = vperm.xlu0 %520, %v367
        %v522 = vpop.permute.xlu0 %521
        %525 = vset.pattern.permute.xlu0 0
        %526 = vperm.xlu0 %525, %v368
        %v527 = vpop.permute.xlu0 %526
        %v529 = vmul.f32 %v305, %v372
        %v530 = vmul.f32 %v306, %v377
        %v531 = vmul.f32 %v307, %v382
        %v532 = vmul.f32 %v308, %v387
        %v533 = vmul.f32 %v309, %v392
        %v534 = vmul.f32 %v310, %v397
        %v535 = vmul.f32 %v311, %v402
        %v536 = vmul.f32 %v312, %v407
        %v537 = vmul.f32 %v313, %v412
        %v538 = vmul.f32 %v314, %v417
        %v539 = vmul.f32 %v315, %v422
        %v540 = vmul.f32 %v316, %v427
        %v541 = vmul.f32 %v317, %v432
        %v542 = vmul.f32 %v318, %v437
        %v543 = vmul.f32 %v319, %v442
        %v544 = vmul.f32 %v320, %v447
        %v545 = vmul.f32 %v321, %v452
        %v546 = vmul.f32 %v322, %v457
        %v547 = vmul.f32 %v323, %v462
        %v548 = vmul.f32 %v324, %v467
        %v549 = vmul.f32 %v325, %v472
        %v550 = vmul.f32 %v326, %v477
        %v551 = vmul.f32 %v327, %v482
        %v552 = vmul.f32 %v328, %v487
        %v553 = vmul.f32 %v329, %v492
        %v554 = vmul.f32 %v330, %v497
        %v555 = vmul.f32 %v331, %v502
        %v556 = vmul.f32 %v332, %v507
        %v557 = vmul.f32 %v333, %v512
        %v558 = vmul.f32 %v334, %v517
        %v559 = vmul.f32 %v335, %v522
        %v560 = vmul.f32 %v336, %v527
        %v561 = vpack.c.bf16 %v530, %v529
        %v562 = vpack.c.bf16 %v532, %v531
        %v563 = vpack.c.bf16 %v534, %v533
        %v564 = vpack.c.bf16 %v536, %v535
        %v565 = vpack.c.bf16 %v538, %v537
        %v566 = vpack.c.bf16 %v540, %v539
        %v567 = vpack.c.bf16 %v542, %v541
        %v568 = vpack.c.bf16 %v544, %v543
        %v569 = vpack.c.bf16 %v546, %v545
        %v570 = vpack.c.bf16 %v548, %v547
        %v571 = vpack.c.bf16 %v550, %v549
        %v572 = vpack.c.bf16 %v552, %v551
        %v573 = vpack.c.bf16 %v554, %v553
        %v574 = vpack.c.bf16 %v556, %v555
        %v575 = vpack.c.bf16 %v558, %v557
        %v576 = vpack.c.bf16 %v560, %v559
        %v577 = vld [vmem:[%s1] sm:$0xf]
        %v578 = vld [vmem:[%s1 + $0x4] sm:$0xf]
        %v579 = vld [vmem:[%s1 + $0x8] sm:$0xf]
        %v580 = vld [vmem:[%s1 + $0xc] sm:$0xf]
        %v581 = vld [vmem:[%s1 + $0x10] sm:$0xf]
        %v582 = vld [vmem:[%s1 + $0x14] sm:$0xf]
        %v583 = vld [vmem:[%s1 + $0x18] sm:$0xf]
        %v584 = vld [vmem:[%s1 + $0x1c] sm:$0xf]
        %v585 = vld [vmem:[%s1 + $0x20] sm:$0xf]
        %v586 = vld [vmem:[%s1 + $0x24] sm:$0xf]
        %v587 = vld [vmem:[%s1 + $0x28] sm:$0xf]
        %v588 = vld [vmem:[%s1 + $0x2c] sm:$0xf]
        %v589 = vld [vmem:[%s1 + $0x30] sm:$0xf]
        %v590 = vld [vmem:[%s1 + $0x34] sm:$0xf]
        %v591 = vld [vmem:[%s1 + $0x38] sm:$0xf]
        %v592 = vld [vmem:[%s1 + $0x3c] sm:$0xf]
        %v593 = vld [vmem:[%s303 + $0x1] sm:$0xff]
        %v594 = vld [vmem:[%s303 + $0x9] sm:$0xff]
        %v595 = vld [vmem:[%s303 + $0x11] sm:$0xff]
        %v596 = vld [vmem:[%s303 + $0x19] sm:$0xff]
        %v597 = vld [vmem:[%s303 + $0x21] sm:$0xff]
        %v598 = vld [vmem:[%s303 + $0x29] sm:$0xff]
        %v599 = vld [vmem:[%s303 + $0x31] sm:$0xff]
        %v600 = vld [vmem:[%s303 + $0x39] sm:$0xff]
        %v601 = vld [vmem:[%s303 + $0x41] sm:$0xff]
        %v602 = vld [vmem:[%s303 + $0x49] sm:$0xff]
        %v603 = vld [vmem:[%s303 + $0x51] sm:$0xff]
        %v604 = vld [vmem:[%s303 + $0x59] sm:$0xff]
        %v605 = vld [vmem:[%s303 + $0x61] sm:$0xff]
        %v606 = vld [vmem:[%s303 + $0x69] sm:$0xff]
        %v607 = vld [vmem:[%s303 + $0x71] sm:$0xff]
        %v608 = vld [vmem:[%s303 + $0x79] sm:$0xff]
        %v609 = vld [vmem:[%s303 + $0x81] sm:$0xff]
        %v610 = vld [vmem:[%s303 + $0x89] sm:$0xff]
        %v611 = vld [vmem:[%s303 + $0x91] sm:$0xff]
        %v612 = vld [vmem:[%s303 + $0x99] sm:$0xff]
        %v613 = vld [vmem:[%s303 + $0xa1] sm:$0xff]
        %v614 = vld [vmem:[%s303 + $0xa9] sm:$0xff]
        %v615 = vld [vmem:[%s303 + $0xb1] sm:$0xff]
        %v616 = vld [vmem:[%s303 + $0xb9] sm:$0xff]
        %v617 = vld [vmem:[%s303 + $0xc1] sm:$0xff]
        %v618 = vld [vmem:[%s303 + $0xc9] sm:$0xff]
        %v619 = vld [vmem:[%s303 + $0xd1] sm:$0xff]
        %v620 = vld [vmem:[%s303 + $0xd9] sm:$0xff]
        %v621 = vld [vmem:[%s303 + $0xe1] sm:$0xff]
        %v622 = vld [vmem:[%s303 + $0xe9] sm:$0xff]
        %v623 = vld [vmem:[%s303 + $0xf1] sm:$0xff]
        %v624 = vld [vmem:[%s303 + $0xf9] sm:$0xff]
        %v625 = vpack.c.bf16 %v594, %v593
        %v626 = vpack.c.bf16 %v596, %v595
        %v627 = vpack.c.bf16 %v598, %v597
        %v628 = vpack.c.bf16 %v600, %v599
        %v629 = vpack.c.bf16 %v602, %v601
        %v630 = vpack.c.bf16 %v604, %v603
        %v631 = vpack.c.bf16 %v606, %v605
        %v632 = vpack.c.bf16 %v608, %v607
        %v633 = vpack.c.bf16 %v610, %v609
        %v634 = vpack.c.bf16 %v612, %v611
        %v635 = vpack.c.bf16 %v614, %v613
        %v636 = vpack.c.bf16 %v616, %v615
        %v637 = vpack.c.bf16 %v618, %v617
        %v638 = vpack.c.bf16 %v620, %v619
        %v639 = vpack.c.bf16 %v622, %v621
        %v640 = vpack.c.bf16 %v624, %v623
        %s641 = scalar_lea.vmem %s1, 64
        %v642 = vld [vmem:[%s641] sm:$0xf]
        %v643 = vld [vmem:[%s641 + $0x4] sm:$0xf]
        %v644 = vld [vmem:[%s641 + $0x8] sm:$0xf]
        %v645 = vld [vmem:[%s641 + $0xc] sm:$0xf]
        %v646 = vld [vmem:[%s641 + $0x10] sm:$0xf]
        %v647 = vld [vmem:[%s641 + $0x14] sm:$0xf]
        %v648 = vld [vmem:[%s641 + $0x18] sm:$0xf]
        %v649 = vld [vmem:[%s641 + $0x1c] sm:$0xf]
        %v650 = vld [vmem:[%s641 + $0x20] sm:$0xf]
        %v651 = vld [vmem:[%s641 + $0x24] sm:$0xf]
        %v652 = vld [vmem:[%s641 + $0x28] sm:$0xf]
        %v653 = vld [vmem:[%s641 + $0x2c] sm:$0xf]
        %v654 = vld [vmem:[%s641 + $0x30] sm:$0xf]
        %v655 = vld [vmem:[%s641 + $0x34] sm:$0xf]
        %v656 = vld [vmem:[%s641 + $0x38] sm:$0xf]
        %v657 = vld [vmem:[%s641 + $0x3c] sm:$0xf]
        %v674 = vunpack.c.l.b16 %v642
        %v675 = vunpack.c.l.b16 %v643
        %v676 = vunpack.c.l.b16 %v644
        %v677 = vunpack.c.l.b16 %v645
        %v678 = vunpack.c.l.b16 %v646
        %v679 = vunpack.c.l.b16 %v647
        %v680 = vunpack.c.l.b16 %v648
        %v681 = vunpack.c.l.b16 %v649
        %v682 = vunpack.c.l.b16 %v650
        %v683 = vunpack.c.l.b16 %v651
        %v684 = vunpack.c.l.b16 %v652
        %v685 = vunpack.c.l.b16 %v653
        %v686 = vunpack.c.l.b16 %v654
        %v687 = vunpack.c.l.b16 %v655
        %v688 = vunpack.c.l.b16 %v656
        %v689 = vunpack.c.l.b16 %v657
        %v690 = vpack.c.b16 %v675, %v674
        %v691 = vpack.c.b16 %v677, %v676
        %v692 = vpack.c.b16 %v679, %v678
        %v693 = vpack.c.b16 %v681, %v680
        %v694 = vpack.c.b16 %v683, %v682
        %v695 = vpack.c.b16 %v685, %v684
        %v696 = vpack.c.b16 %v687, %v686
        %v697 = vpack.c.b16 %v689, %v688
        %706 = vmatprep.subr.bf16.mxu0 0
        %707 = vmatpush1.bf16.msra.mxu0 %v690
        %708 = vmatprep.subr.bf16.mxu0 0
        %709 = vmatpush1.bf16.msra.mxu0 %v691
        %710 = vmatprep.subr.bf16.mxu0 0
        %711 = vmatpush1.bf16.msra.mxu0 %v692
        %712 = vmatprep.subr.bf16.mxu0 0
        %713 = vmatpush1.bf16.msra.mxu0 %v693
        %714 = vmatprep.subr.bf16.mxu0 0
        %715 = vmatpush1.bf16.msra.mxu0 %v694
        %716 = vmatprep.subr.bf16.mxu0 0
        %717 = vmatpush1.bf16.msra.mxu0 %v695
        %718 = vmatprep.subr.bf16.mxu0 0
        %719 = vmatpush1.bf16.msra.mxu0 %v696
        %720 = vmatprep.subr.bf16.mxu0 0
        %721 = vmatpush1.bf16.msra.mxu0 %v697
        %722 = vmatprep.subr.bf16.mxu0 0
        %723 = vmatpush1.bf16.msra.mxu0 0
        %724 = vmatprep.subr.bf16.mxu0 0
        %725 = vmatpush1.bf16.msra.mxu0 0
        %726 = vmatprep.subr.bf16.mxu0 0
        %727 = vmatpush1.bf16.msra.mxu0 0
        %728 = vmatprep.subr.bf16.mxu0 0
        %729 = vmatpush1.bf16.msra.mxu0 0
        %730 = vmatprep.subr.bf16.mxu0 0
        %731 = vmatpush1.bf16.msra.mxu0 0
        %732 = vmatprep.subr.bf16.mxu0 0
        %733 = vmatpush1.bf16.msra.mxu0 0
        %734 = vmatprep.subr.bf16.mxu0 0
        %735 = vmatpush1.bf16.msra.mxu0 0
        %736 = vmatprep.subr.bf16.mxu0 0
        %737 = vmatpush1.bf16.msra.mxu0 0
        %738 = vmatprep.mubr.bf16.mxu0 0
        %739 = vmatmul.mubr.bf16.gmra.mrb[0].mxu0 %v625
        %v740 = vpop.f32.mrb[0].mxu0
        %v741 = vadd.f32 0.0, %v740
        %v742 = vpop.f32.mrb[0].mxu0
        %v743 = vpop.f32.mrb[0].mxu0
        %v744 = vadd.f32 0.0, %v743
        %v745 = vpop.f32.mrb[0].mxu0
        %746 = vmatprep.mubr.bf16.mxu0 0
        %747 = vmatmul.mubr.bf16.gmra.mrb[0].mxu0 %v626
        %v748 = vpop.f32.mrb[0].mxu0
        %v749 = vadd.f32 0.0, %v748
        %v750 = vpop.f32.mrb[0].mxu0
        %v751 = vpop.f32.mrb[0].mxu0
        %v752 = vadd.f32 0.0, %v751
        %v753 = vpop.f32.mrb[0].mxu0
        %754 = vmatprep.mubr.bf16.mxu0 0
        %755 = vmatmul.mubr.bf16.gmra.mrb[0].mxu0 %v627
        %v756 = vpop.f32.mrb[0].mxu0
        %v757 = vadd.f32 0.0, %v756
        %v758 = vpop.f32.mrb[0].mxu0
        %v759 = vpop.f32.mrb[0].mxu0
        %v760 = vadd.f32 0.0, %v759
        %v761 = vpop.f32.mrb[0].mxu0
        %762 = vmatprep.mubr.bf16.mxu0 0
        %763 = vmatmul.mubr.bf16.gmra.mrb[0].mxu0 %v628
        %v764 = vpop.f32.mrb[0].mxu0
        %v765 = vadd.f32 0.0, %v764
        %v766 = vpop.f32.mrb[0].mxu0
        %v767 = vpop.f32.mrb[0].mxu0
        %v768 = vadd.f32 0.0, %v767
        %v769 = vpop.f32.mrb[0].mxu0
        %770 = vmatprep.mubr.bf16.mxu0 0
        %771 = vmatmul.mubr.bf16.gmra.mrb[0].mxu0 %v629
        %v772 = vpop.f32.mrb[0].mxu0
        %v773 = vadd.f32 0.0, %v772
        %v774 = vpop.f32.mrb[0].mxu0
        %v775 = vpop.f32.mrb[0].mxu0
        %v776 = vadd.f32 0.0, %v775
        %v777 = vpop.f32.mrb[0].mxu0
        %778 = vmatprep.mubr.bf16.mxu0 0
        %779 = vmatmul.mubr.bf16.gmra.mrb[0].mxu0 %v630
        %v780 = vpop.f32.mrb[0].mxu0
        %v781 = vadd.f32 0.0, %v780
        %v782 = vpop.f32.mrb[0].mxu0
        %v783 = vpop.f32.mrb[0].mxu0
        %v784 = vadd.f32 0.0, %v783
        %v785 = vpop.f32.mrb[0].mxu0
        %786 = vmatprep.mubr.bf16.mxu0 0
        %787 = vmatmul.mubr.bf16.gmra.mrb[0].mxu0 %v631
        %v788 = vpop.f32.mrb[0].mxu0
        %v789 = vadd.f32 0.0, %v788
        %v790 = vpop.f32.mrb[0].mxu0
        %v791 = vpop.f32.mrb[0].mxu0
        %v792 = vadd.f32 0.0, %v791
        %v793 = vpop.f32.mrb[0].mxu0
        %794 = vmatprep.mubr.bf16.mxu0 0
        %795 = vmatmul.mubr.bf16.gmra.mrb[0].mxu0 %v632
        %v796 = vpop.f32.mrb[0].mxu0
        %v797 = vadd.f32 0.0, %v796
        %v798 = vpop.f32.mrb[0].mxu0
        %v799 = vpop.f32.mrb[0].mxu0
        %v800 = vadd.f32 0.0, %v799
        %v801 = vpop.f32.mrb[0].mxu0
        %802 = vmatprep.mubr.bf16.mxu0 0
        %803 = vmatmul.mubr.bf16.gmra.mrb[0].mxu0 %v633
        %v804 = vpop.f32.mrb[0].mxu0
        %v805 = vadd.f32 0.0, %v804
        %v806 = vpop.f32.mrb[0].mxu0
        %v807 = vpop.f32.mrb[0].mxu0
        %v808 = vadd.f32 0.0, %v807
        %v809 = vpop.f32.mrb[0].mxu0
        %810 = vmatprep.mubr.bf16.mxu0 0
        %811 = vmatmul.mubr.bf16.gmra.mrb[0].mxu0 %v634
        %v812 = vpop.f32.mrb[0].mxu0
        %v813 = vadd.f32 0.0, %v812
        %v814 = vpop.f32.mrb[0].mxu0
        %v815 = vpop.f32.mrb[0].mxu0
        %v816 = vadd.f32 0.0, %v815
        %v817 = vpop.f32.mrb[0].mxu0
        %818 = vmatprep.mubr.bf16.mxu0 0
        %819 = vmatmul.mubr.bf16.gmra.mrb[0].mxu0 %v635
        %v820 = vpop.f32.mrb[0].mxu0
        %v821 = vadd.f32 0.0, %v820
        %v822 = vpop.f32.mrb[0].mxu0
        %v823 = vpop.f32.mrb[0].mxu0
        %v824 = vadd.f32 0.0, %v823
        %v825 = vpop.f32.mrb[0].mxu0
        %826 = vmatprep.mubr.bf16.mxu0 0
        %827 = vmatmul.mubr.bf16.gmra.mrb[0].mxu0 %v636
        %v828 = vpop.f32.mrb[0].mxu0
        %v829 = vadd.f32 0.0, %v828
        %v830 = vpop.f32.mrb[0].mxu0
        %v831 = vpop.f32.mrb[0].mxu0
        %v832 = vadd.f32 0.0, %v831
        %v833 = vpop.f32.mrb[0].mxu0
        %834 = vmatprep.mubr.bf16.mxu0 0
        %835 = vmatmul.mubr.bf16.gmra.mrb[0].mxu0 %v637
        %v836 = vpop.f32.mrb[0].mxu0
        %v837 = vadd.f32 0.0, %v836
        %v838 = vpop.f32.mrb[0].mxu0
        %v839 = vpop.f32.mrb[0].mxu0
        %v840 = vadd.f32 0.0, %v839
        %v841 = vpop.f32.mrb[0].mxu0
        %842 = vmatprep.mubr.bf16.mxu0 0
        %843 = vmatmul.mubr.bf16.gmra.mrb[0].mxu0 %v638
        %v844 = vpop.f32.mrb[0].mxu0
        %v845 = vadd.f32 0.0, %v844
        %v846 = vpop.f32.mrb[0].mxu0
        %v847 = vpop.f32.mrb[0].mxu0
        %v848 = vadd.f32 0.0, %v847
        %v849 = vpop.f32.mrb[0].mxu0
        %850 = vmatprep.mubr.bf16.mxu0 0
        %851 = vmatmul.mubr.bf16.gmra.mrb[0].mxu0 %v639
        %v852 = vpop.f32.mrb[0].mxu0
        %v853 = vadd.f32 0.0, %v852
        %v854 = vpop.f32.mrb[0].mxu0
        %v855 = vpop.f32.mrb[0].mxu0
        %v856 = vadd.f32 0.0, %v855
        %v857 = vpop.f32.mrb[0].mxu0
        %858 = vmatprep.mubr.bf16.mxu0 0
        %859 = vmatmul.mubr.bf16.gmra.mrb[0].mxu0 %v640
        %v860 = vpop.f32.mrb[0].mxu0
        %v861 = vadd.f32 0.0, %v860
        %v862 = vpop.f32.mrb[0].mxu0
        %v863 = vpop.f32.mrb[0].mxu0
        %v864 = vadd.f32 0.0, %v863
        %v865 = vpop.f32.mrb[0].mxu0
        %866 = vdwg.mxu0
        %v883 = vunpack.c.l.b16 %v577
        %v884 = vunpack.c.l.b16 %v578
        %v885 = vunpack.c.l.b16 %v579
        %v886 = vunpack.c.l.b16 %v580
        %v887 = vunpack.c.l.b16 %v581
        %v888 = vunpack.c.l.b16 %v582
        %v889 = vunpack.c.l.b16 %v583
        %v890 = vunpack.c.l.b16 %v584
        %v891 = vunpack.c.l.b16 %v585
        %v892 = vunpack.c.l.b16 %v586
        %v893 = vunpack.c.l.b16 %v587
        %v894 = vunpack.c.l.b16 %v588
        %v895 = vunpack.c.l.b16 %v589
        %v896 = vunpack.c.l.b16 %v590
        %v897 = vunpack.c.l.b16 %v591
        %v898 = vunpack.c.l.b16 %v592
        %v899 = vpack.c.b16 %v884, %v883
        %v900 = vpack.c.b16 %v886, %v885
        %v901 = vpack.c.b16 %v888, %v887
        %v902 = vpack.c.b16 %v890, %v889
        %v903 = vpack.c.b16 %v892, %v891
        %v904 = vpack.c.b16 %v894, %v893
        %v905 = vpack.c.b16 %v896, %v895
        %v906 = vpack.c.b16 %v898, %v897
        %915 = vmatprep.subr.bf16.mxu0 0
        %916 = vmatpush1.bf16.msra.mxu0 %v899
        %917 = vmatprep.subr.bf16.mxu0 0
        %918 = vmatpush1.bf16.msra.mxu0 %v900
        %919 = vmatprep.subr.bf16.mxu0 0
        %920 = vmatpush1.bf16.msra.mxu0 %v901
        %921 = vmatprep.subr.bf16.mxu0 0
        %922 = vmatpush1.bf16.msra.mxu0 %v902
        %923 = vmatprep.subr.bf16.mxu0 0
        %924 = vmatpush1.bf16.msra.mxu0 %v903
        %925 = vmatprep.subr.bf16.mxu0 0
        %926 = vmatpush1.bf16.msra.mxu0 %v904
        %927 = vmatprep.subr.bf16.mxu0 0
        %928 = vmatpush1.bf16.msra.mxu0 %v905
        %929 = vmatprep.subr.bf16.mxu0 0
        %930 = vmatpush1.bf16.msra.mxu0 %v906
        %931 = vmatprep.subr.bf16.mxu0 0
        %932 = vmatpush1.bf16.msra.mxu0 0
        %933 = vmatprep.subr.bf16.mxu0 0
        %934 = vmatpush1.bf16.msra.mxu0 0
        %935 = vmatprep.subr.bf16.mxu0 0
        %936 = vmatpush1.bf16.msra.mxu0 0
        %937 = vmatprep.subr.bf16.mxu0 0
        %938 = vmatpush1.bf16.msra.mxu0 0
        %939 = vmatprep.subr.bf16.mxu0 0
        %940 = vmatpush1.bf16.msra.mxu0 0
        %941 = vmatprep.subr.bf16.mxu0 0
        %942 = vmatpush1.bf16.msra.mxu0 0
        %943 = vmatprep.subr.bf16.mxu0 0
        %944 = vmatpush1.bf16.msra.mxu0 0
        %945 = vmatprep.subr.bf16.mxu0 0
        %946 = vmatpush1.bf16.msra.mxu0 0
        %947 = vmatprep.mubr.bf16.mxu0 0
        %948 = vmatmul.mubr.bf16.gmra.mrb[0].mxu0 %v561
        %v949 = vpop.f32.mrb[0].mxu0
        %v950 = vadd.f32 %v741, %v949
        %v951 = vpop.f32.mrb[0].mxu0
        %v952 = vpop.f32.mrb[0].mxu0
        %v953 = vadd.f32 %v744, %v952
        %v954 = vpop.f32.mrb[0].mxu0
        %955 = vmatprep.mubr.bf16.mxu0 0
        %956 = vmatmul.mubr.bf16.gmra.mrb[0].mxu0 %v562
        %v957 = vpop.f32.mrb[0].mxu0
        %v958 = vadd.f32 %v749, %v957
        %v959 = vpop.f32.mrb[0].mxu0
        %v960 = vpop.f32.mrb[0].mxu0
        %v961 = vadd.f32 %v752, %v960
        %v962 = vpop.f32.mrb[0].mxu0
        %963 = vmatprep.mubr.bf16.mxu0 0
        %964 = vmatmul.mubr.bf16.gmra.mrb[0].mxu0 %v563
        %v965 = vpop.f32.mrb[0].mxu0
        %v966 = vadd.f32 %v757, %v965
        %v967 = vpop.f32.mrb[0].mxu0
        %v968 = vpop.f32.mrb[0].mxu0
        %v969 = vadd.f32 %v760, %v968
        %v970 = vpop.f32.mrb[0].mxu0
        %971 = vmatprep.mubr.bf16.mxu0 0
        %972 = vmatmul.mubr.bf16.gmra.mrb[0].mxu0 %v564
        %v973 = vpop.f32.mrb[0].mxu0
        %v974 = vadd.f32 %v765, %v973
        %v975 = vpop.f32.mrb[0].mxu0
        %v976 = vpop.f32.mrb[0].mxu0
        %v977 = vadd.f32 %v768, %v976
        %v978 = vpop.f32.mrb[0].mxu0
        %979 = vmatprep.mubr.bf16.mxu0 0
        %980 = vmatmul.mubr.bf16.gmra.mrb[0].mxu0 %v565
        %v981 = vpop.f32.mrb[0].mxu0
        %v982 = vadd.f32 %v773, %v981
        %v983 = vpop.f32.mrb[0].mxu0
        %v984 = vpop.f32.mrb[0].mxu0
        %v985 = vadd.f32 %v776, %v984
        %v986 = vpop.f32.mrb[0].mxu0
        %987 = vmatprep.mubr.bf16.mxu0 0
        %988 = vmatmul.mubr.bf16.gmra.mrb[0].mxu0 %v566
        %v989 = vpop.f32.mrb[0].mxu0
        %v990 = vadd.f32 %v781, %v989
        %v991 = vpop.f32.mrb[0].mxu0
        %v992 = vpop.f32.mrb[0].mxu0
        %v993 = vadd.f32 %v784, %v992
        %v994 = vpop.f32.mrb[0].mxu0
        %995 = vmatprep.mubr.bf16.mxu0 0
        %996 = vmatmul.mubr.bf16.gmra.mrb[0].mxu0 %v567
        %v997 = vpop.f32.mrb[0].mxu0
        %v998 = vadd.f32 %v789, %v997
        %v999 = vpop.f32.mrb[0].mxu0
        %v1000 = vpop.f32.mrb[0].mxu0
        %v1001 = vadd.f32 %v792, %v1000
        %v1002 = vpop.f32.mrb[0].mxu0
        %1003 = vmatprep.mubr.bf16.mxu0 0
        %1004 = vmatmul.mubr.bf16.gmra.mrb[0].mxu0 %v568
        %v1005 = vpop.f32.mrb[0].mxu0
        %v1006 = vadd.f32 %v797, %v1005
        %v1007 = vpop.f32.mrb[0].mxu0
        %v1008 = vpop.f32.mrb[0].mxu0
        %v1009 = vadd.f32 %v800, %v1008
        %v1010 = vpop.f32.mrb[0].mxu0
        %1011 = vmatprep.mubr.bf16.mxu0 0
        %1012 = vmatmul.mubr.bf16.gmra.mrb[0].mxu0 %v569
        %v1013 = vpop.f32.mrb[0].mxu0
        %v1014 = vadd.f32 %v805, %v1013
        %v1015 = vpop.f32.mrb[0].mxu0
        %v1016 = vpop.f32.mrb[0].mxu0
        %v1017 = vadd.f32 %v808, %v1016
        %v1018 = vpop.f32.mrb[0].mxu0
        %1019 = vmatprep.mubr.bf16.mxu0 0
        %1020 = vmatmul.mubr.bf16.gmra.mrb[0].mxu0 %v570
        %v1021 = vpop.f32.mrb[0].mxu0
        %v1022 = vadd.f32 %v813, %v1021
        %v1023 = vpop.f32.mrb[0].mxu0
        %v1024 = vpop.f32.mrb[0].mxu0
        %v1025 = vadd.f32 %v816, %v1024
        %v1026 = vpop.f32.mrb[0].mxu0
        %1027 = vmatprep.mubr.bf16.mxu0 0
        %1028 = vmatmul.mubr.bf16.gmra.mrb[0].mxu0 %v571
        %v1029 = vpop.f32.mrb[0].mxu0
        %v1030 = vadd.f32 %v821, %v1029
        %v1031 = vpop.f32.mrb[0].mxu0
        %v1032 = vpop.f32.mrb[0].mxu0
        %v1033 = vadd.f32 %v824, %v1032
        %v1034 = vpop.f32.mrb[0].mxu0
        %1035 = vmatprep.mubr.bf16.mxu0 0
        %1036 = vmatmul.mubr.bf16.gmra.mrb[0].mxu0 %v572
        %v1037 = vpop.f32.mrb[0].mxu0
        %v1038 = vadd.f32 %v829, %v1037
        %v1039 = vpop.f32.mrb[0].mxu0
        %v1040 = vpop.f32.mrb[0].mxu0
        %v1041 = vadd.f32 %v832, %v1040
        %v1042 = vpop.f32.mrb[0].mxu0
        %1043 = vmatprep.mubr.bf16.mxu0 0
        %1044 = vmatmul.mubr.bf16.gmra.mrb[0].mxu0 %v573
        %v1045 = vpop.f32.mrb[0].mxu0
        %v1046 = vadd.f32 %v837, %v1045
        %v1047 = vpop.f32.mrb[0].mxu0
        %v1048 = vpop.f32.mrb[0].mxu0
        %v1049 = vadd.f32 %v840, %v1048
        %v1050 = vpop.f32.mrb[0].mxu0
        %1051 = vmatprep.mubr.bf16.mxu0 0
        %1052 = vmatmul.mubr.bf16.gmra.mrb[0].mxu0 %v574
        %v1053 = vpop.f32.mrb[0].mxu0
        %v1054 = vadd.f32 %v845, %v1053
        %v1055 = vpop.f32.mrb[0].mxu0
        %v1056 = vpop.f32.mrb[0].mxu0
        %v1057 = vadd.f32 %v848, %v1056
        %v1058 = vpop.f32.mrb[0].mxu0
        %1059 = vmatprep.mubr.bf16.mxu0 0
        %1060 = vmatmul.mubr.bf16.gmra.mrb[0].mxu0 %v575
        %v1061 = vpop.f32.mrb[0].mxu0
        %v1062 = vadd.f32 %v853, %v1061
        %v1063 = vpop.f32.mrb[0].mxu0
        %v1064 = vpop.f32.mrb[0].mxu0
        %v1065 = vadd.f32 %v856, %v1064
        %v1066 = vpop.f32.mrb[0].mxu0
        %1067 = vmatprep.mubr.bf16.mxu0 0
        %1068 = vmatmul.mubr.bf16.gmra.mrb[0].mxu0 %v576
        %v1069 = vpop.f32.mrb[0].mxu0
        %v1070 = vadd.f32 %v861, %v1069
        %v1071 = vpop.f32.mrb[0].mxu0
        %v1072 = vpop.f32.mrb[0].mxu0
        %v1073 = vadd.f32 %v864, %v1072
        %v1074 = vpop.f32.mrb[0].mxu0
        %1075 = vdwg.mxu0
        %v1076 = vld [vmem:[%s303 + $0x2] sm:$0xff]
        %v1077 = vld [vmem:[%s303 + $0xa] sm:$0xff]
        %v1078 = vld [vmem:[%s303 + $0x12] sm:$0xff]
        %v1079 = vld [vmem:[%s303 + $0x1a] sm:$0xff]
        %v1080 = vld [vmem:[%s303 + $0x22] sm:$0xff]
        %v1081 = vld [vmem:[%s303 + $0x2a] sm:$0xff]
        %v1082 = vld [vmem:[%s303 + $0x32] sm:$0xff]
        %v1083 = vld [vmem:[%s303 + $0x3a] sm:$0xff]
        %v1084 = vld [vmem:[%s303 + $0x42] sm:$0xff]
        %v1085 = vld [vmem:[%s303 + $0x4a] sm:$0xff]
        %v1086 = vld [vmem:[%s303 + $0x52] sm:$0xff]
        %v1087 = vld [vmem:[%s303 + $0x5a] sm:$0xff]
        %v1088 = vld [vmem:[%s303 + $0x62] sm:$0xff]
        %v1089 = vld [vmem:[%s303 + $0x6a] sm:$0xff]
        %v1090 = vld [vmem:[%s303 + $0x72] sm:$0xff]
        %v1091 = vld [vmem:[%s303 + $0x7a] sm:$0xff]
        %v1092 = vld [vmem:[%s303 + $0x82] sm:$0xff]
        %v1093 = vld [vmem:[%s303 + $0x8a] sm:$0xff]
        %v1094 = vld [vmem:[%s303 + $0x92] sm:$0xff]
        %v1095 = vld [vmem:[%s303 + $0x9a] sm:$0xff]
        %v1096 = vld [vmem:[%s303 + $0xa2] sm:$0xff]
        %v1097 = vld [vmem:[%s303 + $0xaa] sm:$0xff]
        %v1098 = vld [vmem:[%s303 + $0xb2] sm:$0xff]
        %v1099 = vld [vmem:[%s303 + $0xba] sm:$0xff]
        %v1100 = vld [vmem:[%s303 + $0xc2] sm:$0xff]
        %v1101 = vld [vmem:[%s303 + $0xca] sm:$0xff]
        %v1102 = vld [vmem:[%s303 + $0xd2] sm:$0xff]
        %v1103 = vld [vmem:[%s303 + $0xda] sm:$0xff]
        %v1104 = vld [vmem:[%s303 + $0xe2] sm:$0xff]
        %v1105 = vld [vmem:[%s303 + $0xea] sm:$0xff]
        %v1106 = vld [vmem:[%s303 + $0xf2] sm:$0xff]
        %v1107 = vld [vmem:[%s303 + $0xfa] sm:$0xff]
        %s1108 = scalar_lea.vmem %s3, 512
        %v1109 = vld [vmem:[%s1108] sm:$0xff]
        %v1110 = vld [vmem:[%s1108 + $0x8] sm:$0xff]
        %v1111 = vld [vmem:[%s1108 + $0x10] sm:$0xff]
        %v1112 = vld [vmem:[%s1108 + $0x18] sm:$0xff]
        %v1113 = vld [vmem:[%s1108 + $0x20] sm:$0xff]
        %v1114 = vld [vmem:[%s1108 + $0x28] sm:$0xff]
        %v1115 = vld [vmem:[%s1108 + $0x30] sm:$0xff]
        %v1116 = vld [vmem:[%s1108 + $0x38] sm:$0xff]
        %v1117 = vld [vmem:[%s1108 + $0x40] sm:$0xff]
        %v1118 = vld [vmem:[%s1108 + $0x48] sm:$0xff]
        %v1119 = vld [vmem:[%s1108 + $0x50] sm:$0xff]
        %v1120 = vld [vmem:[%s1108 + $0x58] sm:$0xff]
        %v1121 = vld [vmem:[%s1108 + $0x60] sm:$0xff]
        %v1122 = vld [vmem:[%s1108 + $0x68] sm:$0xff]
        %v1123 = vld [vmem:[%s1108 + $0x70] sm:$0xff]
        %v1124 = vld [vmem:[%s1108 + $0x78] sm:$0xff]
        %v1125 = vld [vmem:[%s1108 + $0x80] sm:$0xff]
        %v1126 = vld [vmem:[%s1108 + $0x88] sm:$0xff]
        %v1127 = vld [vmem:[%s1108 + $0x90] sm:$0xff]
        %v1128 = vld [vmem:[%s1108 + $0x98] sm:$0xff]
        %v1129 = vld [vmem:[%s1108 + $0xa0] sm:$0xff]
        %v1130 = vld [vmem:[%s1108 + $0xa8] sm:$0xff]
        %v1131 = vld [vmem:[%s1108 + $0xb0] sm:$0xff]
        %v1132 = vld [vmem:[%s1108 + $0xb8] sm:$0xff]
        %v1133 = vld [vmem:[%s1108 + $0xc0] sm:$0xff]
        %v1134 = vld [vmem:[%s1108 + $0xc8] sm:$0xff]
        %v1135 = vld [vmem:[%s1108 + $0xd0] sm:$0xff]
        %v1136 = vld [vmem:[%s1108 + $0xd8] sm:$0xff]
        %v1137 = vld [vmem:[%s1108 + $0xe0] sm:$0xff]
        %v1138 = vld [vmem:[%s1108 + $0xe8] sm:$0xff]
        %v1139 = vld [vmem:[%s1108 + $0xf0] sm:$0xff]
        %v1140 = vld [vmem:[%s1108 + $0xf8] sm:$0xff]
        %1142 = vset.pattern.permute.xlu0 0
        %1143 = vperm.xlu0 %1142, %v1109
        %v1144 = vpop.permute.xlu0 %1143
        %1147 = vset.pattern.permute.xlu0 0
        %1148 = vperm.xlu0 %1147, %v1110
        %v1149 = vpop.permute.xlu0 %1148
        %1152 = vset.pattern.permute.xlu0 0
        %1153 = vperm.xlu0 %1152, %v1111
        %v1154 = vpop.permute.xlu0 %1153
        %1157 = vset.pattern.permute.xlu0 0
        %1158 = vperm.xlu0 %1157, %v1112
        %v1159 = vpop.permute.xlu0 %1158
        %1162 = vset.pattern.permute.xlu0 0
        %1163 = vperm.xlu0 %1162, %v1113
        %v1164 = vpop.permute.xlu0 %1163
        %1167 = vset.pattern.permute.xlu0 0
        %1168 = vperm.xlu0 %1167, %v1114
        %v1169 = vpop.permute.xlu0 %1168
        %1172 = vset.pattern.permute.xlu0 0
        %1173 = vperm.xlu0 %1172, %v1115
        %v1174 = vpop.permute.xlu0 %1173
        %1177 = vset.pattern.permute.xlu0 0
        %1178 = vperm.xlu0 %1177, %v1116
        %v1179 = vpop.permute.xlu0 %1178
        %1182 = vset.pattern.permute.xlu0 0
        %1183 = vperm.xlu0 %1182, %v1117
        %v1184 = vpop.permute.xlu0 %1183
        %1187 = vset.pattern.permute.xlu0 0
        %1188 = vperm.xlu0 %1187, %v1118
        %v1189 = vpop.permute.xlu0 %1188
        %1192 = vset.pattern.permute.xlu0 0
        %1193 = vperm.xlu0 %1192, %v1119
        %v1194 = vpop.permute.xlu0 %1193
        %1197 = vset.pattern.permute.xlu0 0
        %1198 = vperm.xlu0 %1197, %v1120
        %v1199 = vpop.permute.xlu0 %1198
        %1202 = vset.pattern.permute.xlu0 0
        %1203 = vperm.xlu0 %1202, %v1121
        %v1204 = vpop.permute.xlu0 %1203
        %1207 = vset.pattern.permute.xlu0 0
        %1208 = vperm.xlu0 %1207, %v1122
        %v1209 = vpop.permute.xlu0 %1208
        %1212 = vset.pattern.permute.xlu0 0
        %1213 = vperm.xlu0 %1212, %v1123
        %v1214 = vpop.permute.xlu0 %1213
        %1217 = vset.pattern.permute.xlu0 0
        %1218 = vperm.xlu0 %1217, %v1124
        %v1219 = vpop.permute.xlu0 %1218
        %1222 = vset.pattern.permute.xlu0 0
        %1223 = vperm.xlu0 %1222, %v1125
        %v1224 = vpop.permute.xlu0 %1223
        %1227 = vset.pattern.permute.xlu0 0
        %1228 = vperm.xlu0 %1227, %v1126
        %v1229 = vpop.permute.xlu0 %1228
        %1232 = vset.pattern.permute.xlu0 0
        %1233 = vperm.xlu0 %1232, %v1127
        %v1234 = vpop.permute.xlu0 %1233
        %1237 = vset.pattern.permute.xlu0 0
        %1238 = vperm.xlu0 %1237, %v1128
        %v1239 = vpop.permute.xlu0 %1238
        %1242 = vset.pattern.permute.xlu0 0
        %1243 = vperm.xlu0 %1242, %v1129
        %v1244 = vpop.permute.xlu0 %1243
        %1247 = vset.pattern.permute.xlu0 0
        %1248 = vperm.xlu0 %1247, %v1130
        %v1249 = vpop.permute.xlu0 %1248
        %1252 = vset.pattern.permute.xlu0 0
        %1253 = vperm.xlu0 %1252, %v1131
        %v1254 = vpop.permute.xlu0 %1253
        %1257 = vset.pattern.permute.xlu0 0
        %1258 = vperm.xlu0 %1257, %v1132
        %v1259 = vpop.permute.xlu0 %1258
        %1262 = vset.pattern.permute.xlu0 0
        %1263 = vperm.xlu0 %1262, %v1133
        %v1264 = vpop.permute.xlu0 %1263
        %1267 = vset.pattern.permute.xlu0 0
        %1268 = vperm.xlu0 %1267, %v1134
        %v1269 = vpop.permute.xlu0 %1268
        %1272 = vset.pattern.permute.xlu0 0
        %1273 = vperm.xlu0 %1272, %v1135
        %v1274 = vpop.permute.xlu0 %1273
        %1277 = vset.pattern.permute.xlu0 0
        %1278 = vperm.xlu0 %1277, %v1136
        %v1279 = vpop.permute.xlu0 %1278
        %1282 = vset.pattern.permute.xlu0 0
        %1283 = vperm.xlu0 %1282, %v1137
        %v1284 = vpop.permute.xlu0 %1283
        %1287 = vset.pattern.permute.xlu0 0
        %1288 = vperm.xlu0 %1287, %v1138
        %v1289 = vpop.permute.xlu0 %1288
        %1292 = vset.pattern.permute.xlu0 0
        %1293 = vperm.xlu0 %1292, %v1139
        %v1294 = vpop.permute.xlu0 %1293
        %1297 = vset.pattern.permute.xlu0 0
        %1298 = vperm.xlu0 %1297, %v1140
        %v1299 = vpop.permute.xlu0 %1298
        %v1301 = vmul.f32 %v1076, %v1144
        %v1302 = vmul.f32 %v1077, %v1149
        %v1303 = vmul.f32 %v1078, %v1154
        %v1304 = vmul.f32 %v1079, %v1159
        %v1305 = vmul.f32 %v1080, %v1164
        %v1306 = vmul.f32 %v1081, %v1169
        %v1307 = vmul.f32 %v1082, %v1174
        %v1308 = vmul.f32 %v1083, %v1179
        %v1309 = vmul.f32 %v1084, %v1184
        %v1310 = vmul.f32 %v1085, %v1189
        %v1311 = vmul.f32 %v1086, %v1194
        %v1312 = vmul.f32 %v1087, %v1199
        %v1313 = vmul.f32 %v1088, %v1204
        %v1314 = vmul.f32 %v1089, %v1209
        %v1315 = vmul.f32 %v1090, %v1214
        %v1316 = vmul.f32 %v1091, %v1219
        %v1317 = vmul.f32 %v1092, %v1224
        %v1318 = vmul.f32 %v1093, %v1229
        %v1319 = vmul.f32 %v1094, %v1234
        %v1320 = vmul.f32 %v1095, %v1239
        %v1321 = vmul.f32 %v1096, %v1244
        %v1322 = vmul.f32 %v1097, %v1249
        %v1323 = vmul.f32 %v1098, %v1254
        %v1324 = vmul.f32 %v1099, %v1259
        %v1325 = vmul.f32 %v1100, %v1264
        %v1326 = vmul.f32 %v1101, %v1269
        %v1327 = vmul.f32 %v1102, %v1274
        %v1328 = vmul.f32 %v1103, %v1279
        %v1329 = vmul.f32 %v1104, %v1284
        %v1330 = vmul.f32 %v1105, %v1289
        %v1331 = vmul.f32 %v1106, %v1294
        %v1332 = vmul.f32 %v1107, %v1299
        %v1333 = vpack.c.bf16 %v1302, %v1301
        %v1334 = vpack.c.bf16 %v1304, %v1303
        %v1335 = vpack.c.bf16 %v1306, %v1305
        %v1336 = vpack.c.bf16 %v1308, %v1307
        %v1337 = vpack.c.bf16 %v1310, %v1309
        %v1338 = vpack.c.bf16 %v1312, %v1311
        %v1339 = vpack.c.bf16 %v1314, %v1313
        %v1340 = vpack.c.bf16 %v1316, %v1315
        %v1341 = vpack.c.bf16 %v1318, %v1317
        %v1342 = vpack.c.bf16 %v1320, %v1319
        %v1343 = vpack.c.bf16 %v1322, %v1321
        %v1344 = vpack.c.bf16 %v1324, %v1323
        %v1345 = vpack.c.bf16 %v1326, %v1325
        %v1346 = vpack.c.bf16 %v1328, %v1327
        %v1347 = vpack.c.bf16 %v1330, %v1329
        %v1348 = vpack.c.bf16 %v1332, %v1331
        %s1349 = scalar_lea.vmem %s1, 128
        %v1350 = vld [vmem:[%s1349] sm:$0xf]
        %v1351 = vld [vmem:[%s1349 + $0x4] sm:$0xf]
        %v1352 = vld [vmem:[%s1349 + $0x8] sm:$0xf]
        %v1353 = vld [vmem:[%s1349 + $0xc] sm:$0xf]
        %v1354 = vld [vmem:[%s1349 + $0x10] sm:$0xf]
        %v1355 = vld [vmem:[%s1349 + $0x14] sm:$0xf]
        %v1356 = vld [vmem:[%s1349 + $0x18] sm:$0xf]
        %v1357 = vld [vmem:[%s1349 + $0x1c] sm:$0xf]
        %v1358 = vld [vmem:[%s1349 + $0x20] sm:$0xf]
        %v1359 = vld [vmem:[%s1349 + $0x24] sm:$0xf]
        %v1360 = vld [vmem:[%s1349 + $0x28] sm:$0xf]
        %v1361 = vld [vmem:[%s1349 + $0x2c] sm:$0xf]
        %v1362 = vld [vmem:[%s1349 + $0x30] sm:$0xf]
        %v1363 = vld [vmem:[%s1349 + $0x34] sm:$0xf]
        %v1364 = vld [vmem:[%s1349 + $0x38] sm:$0xf]
        %v1365 = vld [vmem:[%s1349 + $0x3c] sm:$0xf]
        %v1382 = vunpack.c.l.b16 %v1350
        %v1383 = vunpack.c.l.b16 %v1351
        %v1384 = vunpack.c.l.b16 %v1352
        %v1385 = vunpack.c.l.b16 %v1353
        %v1386 = vunpack.c.l.b16 %v1354
        %v1387 = vunpack.c.l.b16 %v1355
        %v1388 = vunpack.c.l.b16 %v1356
        %v1389 = vunpack.c.l.b16 %v1357
        %v1390 = vunpack.c.l.b16 %v1358
        %v1391 = vunpack.c.l.b16 %v1359
        %v1392 = vunpack.c.l.b16 %v1360
        %v1393 = vunpack.c.l.b16 %v1361
        %v1394 = vunpack.c.l.b16 %v1362
        %v1395 = vunpack.c.l.b16 %v1363
        %v1396 = vunpack.c.l.b16 %v1364
        %v1397 = vunpack.c.l.b16 %v1365
        %v1398 = vpack.c.b16 %v1383, %v1382
        %v1399 = vpack.c.b16 %v1385, %v1384
        %v1400 = vpack.c.b16 %v1387, %v1386
        %v1401 = vpack.c.b16 %v1389, %v1388
        %v1402 = vpack.c.b16 %v1391, %v1390
        %v1403 = vpack.c.b16 %v1393, %v1392
        %v1404 = vpack.c.b16 %v1395, %v1394
        %v1405 = vpack.c.b16 %v1397, %v1396
        %1414 = vmatprep.subr.bf16.mxu0 0
        %1415 = vmatpush1.bf16.msra.mxu0 %v1398
        %1416 = vmatprep.subr.bf16.mxu0 0
        %1417 = vmatpush1.bf16.msra.mxu0 %v1399
        %1418 = vmatprep.subr.bf16.mxu0 0
        %1419 = vmatpush1.bf16.msra.mxu0 %v1400
        %1420 = vmatprep.subr.bf16.mxu0 0
        %1421 = vmatpush1.bf16.msra.mxu0 %v1401
        %1422 = vmatprep.subr.bf16.mxu0 0
        %1423 = vmatpush1.bf16.msra.mxu0 %v1402
        %1424 = vmatprep.subr.bf16.mxu0 0
        %1425 = vmatpush1.bf16.msra.mxu0 %v1403
        %1426 = vmatprep.subr.bf16.mxu0 0
        %1427 = vmatpush1.bf16.msra.mxu0 %v1404
        %1428 = vmatprep.subr.bf16.mxu0 0
        %1429 = vmatpush1.bf16.msra.mxu0 %v1405
        %1430 = vmatprep.subr.bf16.mxu0 0
        %1431 = vmatpush1.bf16.msra.mxu0 0
        %1432 = vmatprep.subr.bf16.mxu0 0
        %1433 = vmatpush1.bf16.msra.mxu0 0
        %1434 = vmatprep.subr.bf16.mxu0 0
        %1435 = vmatpush1.bf16.msra.mxu0 0
        %1436 = vmatprep.subr.bf16.mxu0 0
        %1437 = vmatpush1.bf16.msra.mxu0 0
        %1438 = vmatprep.subr.bf16.mxu0 0
        %1439 = vmatpush1.bf16.msra.mxu0 0
        %1440 = vmatprep.subr.bf16.mxu0 0
        %1441 = vmatpush1.bf16.msra.mxu0 0
        %1442 = vmatprep.subr.bf16.mxu0 0
        %1443 = vmatpush1.bf16.msra.mxu0 0
        %1444 = vmatprep.subr.bf16.mxu0 0
        %1445 = vmatpush1.bf16.msra.mxu0 0
        %1446 = vmatprep.mubr.bf16.mxu0 0
        %1447 = vmatmul.mubr.bf16.gmra.mrb[0].mxu0 %v1333
        %v1448 = vpop.f32.mrb[0].mxu0
        %v1449 = vadd.f32 0.0, %v1448
        %v1450 = vpop.f32.mrb[0].mxu0
        %v1451 = vpop.f32.mrb[0].mxu0
        %v1452 = vadd.f32 0.0, %v1451
        %v1453 = vpop.f32.mrb[0].mxu0
        %1454 = vmatprep.mubr.bf16.mxu0 0
        %1455 = vmatmul.mubr.bf16.gmra.mrb[0].mxu0 %v1334
        %v1456 = vpop.f32.mrb[0].mxu0
        %v1457 = vadd.f32 0.0, %v1456
        %v1458 = vpop.f32.mrb[0].mxu0
        %v1459 = vpop.f32.mrb[0].mxu0
        %v1460 = vadd.f32 0.0, %v1459
        %v1461 = vpop.f32.mrb[0].mxu0
        %1462 = vmatprep.mubr.bf16.mxu0 0
        %1463 = vmatmul.mubr.bf16.gmra.mrb[0].mxu0 %v1335
        %v1464 = vpop.f32.mrb[0].mxu0
        %v1465 = vadd.f32 0.0, %v1464
        %v1466 = vpop.f32.mrb[0].mxu0
        %v1467 = vpop.f32.mrb[0].mxu0
        %v1468 = vadd.f32 0.0, %v1467
        %v1469 = vpop.f32.mrb[0].mxu0
        %1470 = vmatprep.mubr.bf16.mxu0 0
        %1471 = vmatmul.mubr.bf16.gmra.mrb[0].mxu0 %v1336
        %v1472 = vpop.f32.mrb[0].mxu0
        %v1473 = vadd.f32 0.0, %v1472
        %v1474 = vpop.f32.mrb[0].mxu0
        %v1475 = vpop.f32.mrb[0].mxu0
        %v1476 = vadd.f32 0.0, %v1475
        %v1477 = vpop.f32.mrb[0].mxu0
        %1478 = vmatprep.mubr.bf16.mxu0 0
        %1479 = vmatmul.mubr.bf16.gmra.mrb[0].mxu0 %v1337
        %v1480 = vpop.f32.mrb[0].mxu0
        %v1481 = vadd.f32 0.0, %v1480
        %v1482 = vpop.f32.mrb[0].mxu0
        %v1483 = vpop.f32.mrb[0].mxu0
        %v1484 = vadd.f32 0.0, %v1483
        %v1485 = vpop.f32.mrb[0].mxu0
        %1486 = vmatprep.mubr.bf16.mxu0 0
        %1487 = vmatmul.mubr.bf16.gmra.mrb[0].mxu0 %v1338
        %v1488 = vpop.f32.mrb[0].mxu0
        %v1489 = vadd.f32 0.0, %v1488
        %v1490 = vpop.f32.mrb[0].mxu0
        %v1491 = vpop.f32.mrb[0].mxu0
        %v1492 = vadd.f32 0.0, %v1491
        %v1493 = vpop.f32.mrb[0].mxu0
        %1494 = vmatprep.mubr.bf16.mxu0 0
        %1495 = vmatmul.mubr.bf16.gmra.mrb[0].mxu0 %v1339
        %v1496 = vpop.f32.mrb[0].mxu0
        %v1497 = vadd.f32 0.0, %v1496
        %v1498 = vpop.f32.mrb[0].mxu0
        %v1499 = vpop.f32.mrb[0].mxu0
        %v1500 = vadd.f32 0.0, %v1499
        %v1501 = vpop.f32.mrb[0].mxu0
        %1502 = vmatprep.mubr.bf16.mxu0 0
        %1503 = vmatmul.mubr.bf16.gmra.mrb[0].mxu0 %v1340
        %v1504 = vpop.f32.mrb[0].mxu0
        %v1505 = vadd.f32 0.0, %v1504
        %v1506 = vpop.f32.mrb[0].mxu0
        %v1507 = vpop.f32.mrb[0].mxu0
        %v1508 = vadd.f32 0.0, %v1507
        %v1509 = vpop.f32.mrb[0].mxu0
        %1510 = vmatprep.mubr.bf16.mxu0 0
        %1511 = vmatmul.mubr.bf16.gmra.mrb[0].mxu0 %v1341
        %v1512 = vpop.f32.mrb[0].mxu0
        %v1513 = vadd.f32 0.0, %v1512
        %v1514 = vpop.f32.mrb[0].mxu0
        %v1515 = vpop.f32.mrb[0].mxu0
        %v1516 = vadd.f32 0.0, %v1515
        %v1517 = vpop.f32.mrb[0].mxu0
        %1518 = vmatprep.mubr.bf16.mxu0 0
        %1519 = vmatmul.mubr.bf16.gmra.mrb[0].mxu0 %v1342
        %v1520 = vpop.f32.mrb[0].mxu0
        %v1521 = vadd.f32 0.0, %v1520
        %v1522 = vpop.f32.mrb[0].mxu0
        %v1523 = vpop.f32.mrb[0].mxu0
        %v1524 = vadd.f32 0.0, %v1523
        %v1525 = vpop.f32.mrb[0].mxu0
        %1526 = vmatprep.mubr.bf16.mxu0 0
        %1527 = vmatmul.mubr.bf16.gmra.mrb[0].mxu0 %v1343
        %v1528 = vpop.f32.mrb[0].mxu0
        %v1529 = vadd.f32 0.0, %v1528
        %v1530 = vpop.f32.mrb[0].mxu0
        %v1531 = vpop.f32.mrb[0].mxu0
        %v1532 = vadd.f32 0.0, %v1531
        %v1533 = vpop.f32.mrb[0].mxu0
        %1534 = vmatprep.mubr.bf16.mxu0 0
        %1535 = vmatmul.mubr.bf16.gmra.mrb[0].mxu0 %v1344
        %v1536 = vpop.f32.mrb[0].mxu0
        %v1537 = vadd.f32 0.0, %v1536
        %v1538 = vpop.f32.mrb[0].mxu0
        %v1539 = vpop.f32.mrb[0].mxu0
        %v1540 = vadd.f32 0.0, %v1539
        %v1541 = vpop.f32.mrb[0].mxu0
        %1542 = vmatprep.mubr.bf16.mxu0 0
        %1543 = vmatmul.mubr.bf16.gmra.mrb[0].mxu0 %v1345
        %v1544 = vpop.f32.mrb[0].mxu0
        %v1545 = vadd.f32 0.0, %v1544
        %v1546 = vpop.f32.mrb[0].mxu0
        %v1547 = vpop.f32.mrb[0].mxu0
        %v1548 = vadd.f32 0.0, %v1547
        %v1549 = vpop.f32.mrb[0].mxu0
        %1550 = vmatprep.mubr.bf16.mxu0 0
        %1551 = vmatmul.mubr.bf16.gmra.mrb[0].mxu0 %v1346
        %v1552 = vpop.f32.mrb[0].mxu0
        %v1553 = vadd.f32 0.0, %v1552
        %v1554 = vpop.f32.mrb[0].mxu0
        %v1555 = vpop.f32.mrb[0].mxu0
        %v1556 = vadd.f32 0.0, %v1555
        %v1557 = vpop.f32.mrb[0].mxu0
        %1558 = vmatprep.mubr.bf16.mxu0 0
        %1559 = vmatmul.mubr.bf16.gmra.mrb[0].mxu0 %v1347
        %v1560 = vpop.f32.mrb[0].mxu0
        %v1561 = vadd.f32 0.0, %v1560
        %v1562 = vpop.f32.mrb[0].mxu0
        %v1563 = vpop.f32.mrb[0].mxu0
        %v1564 = vadd.f32 0.0, %v1563
        %v1565 = vpop.f32.mrb[0].mxu0
        %1566 = vmatprep.mubr.bf16.mxu0 0
        %1567 = vmatmul.mubr.bf16.gmra.mrb[0].mxu0 %v1348
        %v1568 = vpop.f32.mrb[0].mxu0
        %v1569 = vadd.f32 0.0, %v1568
        %v1570 = vpop.f32.mrb[0].mxu0
        %v1571 = vpop.f32.mrb[0].mxu0
        %v1572 = vadd.f32 0.0, %v1571
        %v1573 = vpop.f32.mrb[0].mxu0
        %1574 = vdwg.mxu0
        %v1575 = vadd.f32 %v950, %v1449
        %v1576 = vadd.f32 %v953, %v1452
        %v1577 = vadd.f32 %v958, %v1457
        %v1578 = vadd.f32 %v961, %v1460
        %v1579 = vadd.f32 %v966, %v1465
        %v1580 = vadd.f32 %v969, %v1468
        %v1581 = vadd.f32 %v974, %v1473
        %v1582 = vadd.f32 %v977, %v1476
        %v1583 = vadd.f32 %v982, %v1481
        %v1584 = vadd.f32 %v985, %v1484
        %v1585 = vadd.f32 %v990, %v1489
        %v1586 = vadd.f32 %v993, %v1492
        %v1587 = vadd.f32 %v998, %v1497
        %v1588 = vadd.f32 %v1001, %v1500
        %v1589 = vadd.f32 %v1006, %v1505
        %v1590 = vadd.f32 %v1009, %v1508
        %v1591 = vadd.f32 %v1014, %v1513
        %v1592 = vadd.f32 %v1017, %v1516
        %v1593 = vadd.f32 %v1022, %v1521
        %v1594 = vadd.f32 %v1025, %v1524
        %v1595 = vadd.f32 %v1030, %v1529
        %v1596 = vadd.f32 %v1033, %v1532
        %v1597 = vadd.f32 %v1038, %v1537
        %v1598 = vadd.f32 %v1041, %v1540
        %v1599 = vadd.f32 %v1046, %v1545
        %v1600 = vadd.f32 %v1049, %v1548
        %v1601 = vadd.f32 %v1054, %v1553
        %v1602 = vadd.f32 %v1057, %v1556
        %v1603 = vadd.f32 %v1062, %v1561
        %v1604 = vadd.f32 %v1065, %v1564
        %v1605 = vadd.f32 %v1070, %v1569
        %v1606 = vadd.f32 %v1073, %v1572
        %v1607 = vld [vmem:[%s303 + $0x10] sm:$0xff]
        %v1608 = vld [vmem:[%s303 + $0x18] sm:$0xff]
        %v1609 = vld [vmem:[%s303 + $0x20] sm:$0xff]
        %v1610 = vld [vmem:[%s303 + $0x28] sm:$0xff]
        %v1611 = vld [vmem:[%s303 + $0x30] sm:$0xff]
        %v1612 = vld [vmem:[%s303 + $0x38] sm:$0xff]
        %v1613 = vld [vmem:[%s303 + $0x40] sm:$0xff]
        %v1614 = vld [vmem:[%s303 + $0x48] sm:$0xff]
        %v1615 = vld [vmem:[%s303 + $0x50] sm:$0xff]
        %v1616 = vld [vmem:[%s303 + $0x58] sm:$0xff]
        %v1617 = vld [vmem:[%s303 + $0x60] sm:$0xff]
        %v1618 = vld [vmem:[%s303 + $0x68] sm:$0xff]
        %v1619 = vld [vmem:[%s303 + $0x70] sm:$0xff]
        %v1620 = vld [vmem:[%s303 + $0x78] sm:$0xff]
        %v1621 = vld [vmem:[%s303 + $0x80] sm:$0xff]
        %v1622 = vld [vmem:[%s303 + $0x88] sm:$0xff]
        %v1623 = vld [vmem:[%s303 + $0x90] sm:$0xff]
        %v1624 = vld [vmem:[%s303 + $0x98] sm:$0xff]
        %v1625 = vld [vmem:[%s303 + $0xa0] sm:$0xff]
        %v1626 = vld [vmem:[%s303 + $0xa8] sm:$0xff]
        %v1627 = vld [vmem:[%s303 + $0xb0] sm:$0xff]
        %v1628 = vld [vmem:[%s303 + $0xb8] sm:$0xff]
        %v1629 = vld [vmem:[%s303 + $0xc0] sm:$0xff]
        %v1630 = vld [vmem:[%s303 + $0xc8] sm:$0xff]
        %v1631 = vld [vmem:[%s303 + $0xd0] sm:$0xff]
        %v1632 = vld [vmem:[%s303 + $0xd8] sm:$0xff]
        %v1633 = vld [vmem:[%s303 + $0xe0] sm:$0xff]
        %v1634 = vld [vmem:[%s303 + $0xe8] sm:$0xff]
        %v1635 = vld [vmem:[%s303 + $0xf0] sm:$0xff]
        %v1636 = vld [vmem:[%s303 + $0xf8] sm:$0xff]
        %v1637 = vld [vmem:[%s303 + $0x100] sm:$0xff]
        %v1638 = vld [vmem:[%s303 + $0x108] sm:$0xff]
        %v1639 = vmul.f32 %v1607, %v372
        %v1640 = vmul.f32 %v1608, %v377
        %v1641 = vmul.f32 %v1609, %v382
        %v1642 = vmul.f32 %v1610, %v387
        %v1643 = vmul.f32 %v1611, %v392
        %v1644 = vmul.f32 %v1612, %v397
        %v1645 = vmul.f32 %v1613, %v402
        %v1646 = vmul.f32 %v1614, %v407
        %v1647 = vmul.f32 %v1615, %v412
        %v1648 = vmul.f32 %v1616, %v417
        %v1649 = vmul.f32 %v1617, %v422
        %v1650 = vmul.f32 %v1618, %v427
        %v1651 = vmul.f32 %v1619, %v432
        %v1652 = vmul.f32 %v1620, %v437
        %v1653 = vmul.f32 %v1621, %v442
        %v1654 = vmul.f32 %v1622, %v447
        %v1655 = vmul.f32 %v1623, %v452
        %v1656 = vmul.f32 %v1624, %v457
        %v1657 = vmul.f32 %v1625, %v462
        %v1658 = vmul.f32 %v1626, %v467
        %v1659 = vmul.f32 %v1627, %v472
        %v1660 = vmul.f32 %v1628, %v477
        %v1661 = vmul.f32 %v1629, %v482
        %v1662 = vmul.f32 %v1630, %v487
        %v1663 = vmul.f32 %v1631, %v492
        %v1664 = vmul.f32 %v1632, %v497
        %v1665 = vmul.f32 %v1633, %v502
        %v1666 = vmul.f32 %v1634, %v507
        %v1667 = vmul.f32 %v1635, %v512
        %v1668 = vmul.f32 %v1636, %v517
        %v1669 = vmul.f32 %v1637, %v522
        %v1670 = vmul.f32 %v1638, %v527
        %v1671 = vpack.c.bf16 %v1640, %v1639
        %v1672 = vpack.c.bf16 %v1642, %v1641
        %v1673 = vpack.c.bf16 %v1644, %v1643
        %v1674 = vpack.c.bf16 %v1646, %v1645
        %v1675 = vpack.c.bf16 %v1648, %v1647
        %v1676 = vpack.c.bf16 %v1650, %v1649
        %v1677 = vpack.c.bf16 %v1652, %v1651
        %v1678 = vpack.c.bf16 %v1654, %v1653
        %v1679 = vpack.c.bf16 %v1656, %v1655
        %v1680 = vpack.c.bf16 %v1658, %v1657
        %v1681 = vpack.c.bf16 %v1660, %v1659
        %v1682 = vpack.c.bf16 %v1662, %v1661
        %v1683 = vpack.c.bf16 %v1664, %v1663
        %v1684 = vpack.c.bf16 %v1666, %v1665
        %v1685 = vpack.c.bf16 %v1668, %v1667
        %v1686 = vpack.c.bf16 %v1670, %v1669
        %s1687 = scalar_lea.vmem %s1, 192
        %v1688 = vld [vmem:[%s1687] sm:$0xf]
        %v1689 = vld [vmem:[%s1687 + $0x4] sm:$0xf]
        %v1690 = vld [vmem:[%s1687 + $0x8] sm:$0xf]
        %v1691 = vld [vmem:[%s1687 + $0xc] sm:$0xf]
        %v1692 = vld [vmem:[%s1687 + $0x10] sm:$0xf]
        %v1693 = vld [vmem:[%s1687 + $0x14] sm:$0xf]
        %v1694 = vld [vmem:[%s1687 + $0x18] sm:$0xf]
        %v1695 = vld [vmem:[%s1687 + $0x1c] sm:$0xf]
        %v1696 = vld [vmem:[%s1687 + $0x20] sm:$0xf]
        %v1697 = vld [vmem:[%s1687 + $0x24] sm:$0xf]
        %v1698 = vld [vmem:[%s1687 + $0x28] sm:$0xf]
        %v1699 = vld [vmem:[%s1687 + $0x2c] sm:$0xf]
        %v1700 = vld [vmem:[%s1687 + $0x30] sm:$0xf]
        %v1701 = vld [vmem:[%s1687 + $0x34] sm:$0xf]
        %v1702 = vld [vmem:[%s1687 + $0x38] sm:$0xf]
        %v1703 = vld [vmem:[%s1687 + $0x3c] sm:$0xf]
        %v1720 = vunpack.c.l.b16 %v1688
        %v1721 = vunpack.c.l.b16 %v1689
        %v1722 = vunpack.c.l.b16 %v1690
        %v1723 = vunpack.c.l.b16 %v1691
        %v1724 = vunpack.c.l.b16 %v1692
        %v1725 = vunpack.c.l.b16 %v1693
        %v1726 = vunpack.c.l.b16 %v1694
        %v1727 = vunpack.c.l.b16 %v1695
        %v1728 = vunpack.c.l.b16 %v1696
        %v1729 = vunpack.c.l.b16 %v1697
        %v1730 = vunpack.c.l.b16 %v1698
        %v1731 = vunpack.c.l.b16 %v1699
        %v1732 = vunpack.c.l.b16 %v1700
        %v1733 = vunpack.c.l.b16 %v1701
        %v1734 = vunpack.c.l.b16 %v1702
        %v1735 = vunpack.c.l.b16 %v1703
        %v1736 = vpack.c.b16 %v1721, %v1720
        %v1737 = vpack.c.b16 %v1723, %v1722
        %v1738 = vpack.c.b16 %v1725, %v1724
        %v1739 = vpack.c.b16 %v1727, %v1726
        %v1740 = vpack.c.b16 %v1729, %v1728
        %v1741 = vpack.c.b16 %v1731, %v1730
        %v1742 = vpack.c.b16 %v1733, %v1732
        %v1743 = vpack.c.b16 %v1735, %v1734
        %1752 = vmatprep.subr.bf16.mxu0 0
        %1753 = vmatpush1.bf16.msra.mxu0 %v1736
        %1754 = vmatprep.subr.bf16.mxu0 0
        %1755 = vmatpush1.bf16.msra.mxu0 %v1737
        %1756 = vmatprep.subr.bf16.mxu0 0
        %1757 = vmatpush1.bf16.msra.mxu0 %v1738
        %1758 = vmatprep.subr.bf16.mxu0 0
        %1759 = vmatpush1.bf16.msra.mxu0 %v1739
        %1760 = vmatprep.subr.bf16.mxu0 0
        %1761 = vmatpush1.bf16.msra.mxu0 %v1740
        %1762 = vmatprep.subr.bf16.mxu0 0
        %1763 = vmatpush1.bf16.msra.mxu0 %v1741
        %1764 = vmatprep.subr.bf16.mxu0 0
        %1765 = vmatpush1.bf16.msra.mxu0 %v1742
        %1766 = vmatprep.subr.bf16.mxu0 0
        %1767 = vmatpush1.bf16.msra.mxu0 %v1743
        %1768 = vmatprep.subr.bf16.mxu0 0
        %1769 = vmatpush1.bf16.msra.mxu0 0
        %1770 = vmatprep.subr.bf16.mxu0 0
        %1771 = vmatpush1.bf16.msra.mxu0 0
        %1772 = vmatprep.subr.bf16.mxu0 0
        %1773 = vmatpush1.bf16.msra.mxu0 0
        %1774 = vmatprep.subr.bf16.mxu0 0
        %1775 = vmatpush1.bf16.msra.mxu0 0
        %1776 = vmatprep.subr.bf16.mxu0 0
        %1777 = vmatpush1.bf16.msra.mxu0 0
        %1778 = vmatprep.subr.bf16.mxu0 0
        %1779 = vmatpush1.bf16.msra.mxu0 0
        %1780 = vmatprep.subr.bf16.mxu0 0
        %1781 = vmatpush1.bf16.msra.mxu0 0
        %1782 = vmatprep.subr.bf16.mxu0 0
        %1783 = vmatpush1.bf16.msra.mxu0 0
        %1784 = vmatprep.mubr.bf16.mxu0 0
        %1785 = vmatmul.mubr.bf16.gmra.mrb[0].mxu0 %v1671
        %v1786 = vpop.f32.mrb[0].mxu0
        %v1787 = vadd.f32 0.0, %v1786
        %v1788 = vpop.f32.mrb[0].mxu0
        %v1789 = vpop.f32.mrb[0].mxu0
        %v1790 = vadd.f32 0.0, %v1789
        %v1791 = vpop.f32.mrb[0].mxu0
        %1792 = vmatprep.mubr.bf16.mxu0 0
        %1793 = vmatmul.mubr.bf16.gmra.mrb[0].mxu0 %v1672
        %v1794 = vpop.f32.mrb[0].mxu0
        %v1795 = vadd.f32 0.0, %v1794
        %v1796 = vpop.f32.mrb[0].mxu0
        %v1797 = vpop.f32.mrb[0].mxu0
        %v1798 = vadd.f32 0.0, %v1797
        %v1799 = vpop.f32.mrb[0].mxu0
        %1800 = vmatprep.mubr.bf16.mxu0 0
        %1801 = vmatmul.mubr.bf16.gmra.mrb[0].mxu0 %v1673
        %v1802 = vpop.f32.mrb[0].mxu0
        %v1803 = vadd.f32 0.0, %v1802
        %v1804 = vpop.f32.mrb[0].mxu0
        %v1805 = vpop.f32.mrb[0].mxu0
        %v1806 = vadd.f32 0.0, %v1805
        %v1807 = vpop.f32.mrb[0].mxu0
        %1808 = vmatprep.mubr.bf16.mxu0 0
        %1809 = vmatmul.mubr.bf16.gmra.mrb[0].mxu0 %v1674
        %v1810 = vpop.f32.mrb[0].mxu0
        %v1811 = vadd.f32 0.0, %v1810
        %v1812 = vpop.f32.mrb[0].mxu0
        %v1813 = vpop.f32.mrb[0].mxu0
        %v1814 = vadd.f32 0.0, %v1813
        %v1815 = vpop.f32.mrb[0].mxu0
        %1816 = vmatprep.mubr.bf16.mxu0 0
        %1817 = vmatmul.mubr.bf16.gmra.mrb[0].mxu0 %v1675
        %v1818 = vpop.f32.mrb[0].mxu0
        %v1819 = vadd.f32 0.0, %v1818
        %v1820 = vpop.f32.mrb[0].mxu0
        %v1821 = vpop.f32.mrb[0].mxu0
        %v1822 = vadd.f32 0.0, %v1821
        %v1823 = vpop.f32.mrb[0].mxu0
        %1824 = vmatprep.mubr.bf16.mxu0 0
        %1825 = vmatmul.mubr.bf16.gmra.mrb[0].mxu0 %v1676
        %v1826 = vpop.f32.mrb[0].mxu0
        %v1827 = vadd.f32 0.0, %v1826
        %v1828 = vpop.f32.mrb[0].mxu0
        %v1829 = vpop.f32.mrb[0].mxu0
        %v1830 = vadd.f32 0.0, %v1829
        %v1831 = vpop.f32.mrb[0].mxu0
        %1832 = vmatprep.mubr.bf16.mxu0 0
        %1833 = vmatmul.mubr.bf16.gmra.mrb[0].mxu0 %v1677
        %v1834 = vpop.f32.mrb[0].mxu0
        %v1835 = vadd.f32 0.0, %v1834
        %v1836 = vpop.f32.mrb[0].mxu0
        %v1837 = vpop.f32.mrb[0].mxu0
        %v1838 = vadd.f32 0.0, %v1837
        %v1839 = vpop.f32.mrb[0].mxu0
        %1840 = vmatprep.mubr.bf16.mxu0 0
        %1841 = vmatmul.mubr.bf16.gmra.mrb[0].mxu0 %v1678
        %v1842 = vpop.f32.mrb[0].mxu0
        %v1843 = vadd.f32 0.0, %v1842
        %v1844 = vpop.f32.mrb[0].mxu0
        %v1845 = vpop.f32.mrb[0].mxu0
        %v1846 = vadd.f32 0.0, %v1845
        %v1847 = vpop.f32.mrb[0].mxu0
        %1848 = vmatprep.mubr.bf16.mxu0 0
        %1849 = vmatmul.mubr.bf16.gmra.mrb[0].mxu0 %v1679
        %v1850 = vpop.f32.mrb[0].mxu0
        %v1851 = vadd.f32 0.0, %v1850
        %v1852 = vpop.f32.mrb[0].mxu0
        %v1853 = vpop.f32.mrb[0].mxu0
        %v1854 = vadd.f32 0.0, %v1853
        %v1855 = vpop.f32.mrb[0].mxu0
        %1856 = vmatprep.mubr.bf16.mxu0 0
        %1857 = vmatmul.mubr.bf16.gmra.mrb[0].mxu0 %v1680
        %v1858 = vpop.f32.mrb[0].mxu0
        %v1859 = vadd.f32 0.0, %v1858
        %v1860 = vpop.f32.mrb[0].mxu0
        %v1861 = vpop.f32.mrb[0].mxu0
        %v1862 = vadd.f32 0.0, %v1861
        %v1863 = vpop.f32.mrb[0].mxu0
        %1864 = vmatprep.mubr.bf16.mxu0 0
        %1865 = vmatmul.mubr.bf16.gmra.mrb[0].mxu0 %v1681
        %v1866 = vpop.f32.mrb[0].mxu0
        %v1867 = vadd.f32 0.0, %v1866
        %v1868 = vpop.f32.mrb[0].mxu0
        %v1869 = vpop.f32.mrb[0].mxu0
        %v1870 = vadd.f32 0.0, %v1869
        %v1871 = vpop.f32.mrb[0].mxu0
        %1872 = vmatprep.mubr.bf16.mxu0 0
        %1873 = vmatmul.mubr.bf16.gmra.mrb[0].mxu0 %v1682
        %v1874 = vpop.f32.mrb[0].mxu0
        %v1875 = vadd.f32 0.0, %v1874
        %v1876 = vpop.f32.mrb[0].mxu0
        %v1877 = vpop.f32.mrb[0].mxu0
        %v1878 = vadd.f32 0.0, %v1877
        %v1879 = vpop.f32.mrb[0].mxu0
        %1880 = vmatprep.mubr.bf16.mxu0 0
        %1881 = vmatmul.mubr.bf16.gmra.mrb[0].mxu0 %v1683
        %v1882 = vpop.f32.mrb[0].mxu0
        %v1883 = vadd.f32 0.0, %v1882
        %v1884 = vpop.f32.mrb[0].mxu0
        %v1885 = vpop.f32.mrb[0].mxu0
        %v1886 = vadd.f32 0.0, %v1885
        %v1887 = vpop.f32.mrb[0].mxu0
        %1888 = vmatprep.mubr.bf16.mxu0 0
        %1889 = vmatmul.mubr.bf16.gmra.mrb[0].mxu0 %v1684
        %v1890 = vpop.f32.mrb[0].mxu0
        %v1891 = vadd.f32 0.0, %v1890
        %v1892 = vpop.f32.mrb[0].mxu0
        %v1893 = vpop.f32.mrb[0].mxu0
        %v1894 = vadd.f32 0.0, %v1893
        %v1895 = vpop.f32.mrb[0].mxu0
        %1896 = vmatprep.mubr.bf16.mxu0 0
        %1897 = vmatmul.mubr.bf16.gmra.mrb[0].mxu0 %v1685
        %v1898 = vpop.f32.mrb[0].mxu0
        %v1899 = vadd.f32 0.0, %v1898
        %v1900 = vpop.f32.mrb[0].mxu0
        %v1901 = vpop.f32.mrb[0].mxu0
        %v1902 = vadd.f32 0.0, %v1901
        %v1903 = vpop.f32.mrb[0].mxu0
        %1904 = vmatprep.mubr.bf16.mxu0 0
        %1905 = vmatmul.mubr.bf16.gmra.mrb[0].mxu0 %v1686
        %v1906 = vpop.f32.mrb[0].mxu0
        %v1907 = vadd.f32 0.0, %v1906
        %v1908 = vpop.f32.mrb[0].mxu0
        %v1909 = vpop.f32.mrb[0].mxu0
        %v1910 = vadd.f32 0.0, %v1909
        %v1911 = vpop.f32.mrb[0].mxu0
        %1912 = vdwg.mxu0
        %v1913 = vadd.f32 %v1575, %v1787
        %v1914 = vadd.f32 %v1576, %v1790
        %v1915 = vadd.f32 %v1577, %v1795
        %v1916 = vadd.f32 %v1578, %v1798
        %v1917 = vadd.f32 %v1579, %v1803
        %v1918 = vadd.f32 %v1580, %v1806
        %v1919 = vadd.f32 %v1581, %v1811
        %v1920 = vadd.f32 %v1582, %v1814
        %v1921 = vadd.f32 %v1583, %v1819
        %v1922 = vadd.f32 %v1584, %v1822
        %v1923 = vadd.f32 %v1585, %v1827
        %v1924 = vadd.f32 %v1586, %v1830
        %v1925 = vadd.f32 %v1587, %v1835
        %v1926 = vadd.f32 %v1588, %v1838
        %v1927 = vadd.f32 %v1589, %v1843
        %v1928 = vadd.f32 %v1590, %v1846
        %v1929 = vadd.f32 %v1591, %v1851
        %v1930 = vadd.f32 %v1592, %v1854
        %v1931 = vadd.f32 %v1593, %v1859
        %v1932 = vadd.f32 %v1594, %v1862
        %v1933 = vadd.f32 %v1595, %v1867
        %v1934 = vadd.f32 %v1596, %v1870
        %v1935 = vadd.f32 %v1597, %v1875
        %v1936 = vadd.f32 %v1598, %v1878
        %v1937 = vadd.f32 %v1599, %v1883
        %v1938 = vadd.f32 %v1600, %v1886
        %v1939 = vadd.f32 %v1601, %v1891
        %v1940 = vadd.f32 %v1602, %v1894
        %v1941 = vadd.f32 %v1603, %v1899
        %v1942 = vadd.f32 %v1604, %v1902
        %v1943 = vadd.f32 %v1605, %v1907
        %v1944 = vadd.f32 %v1606, %v1910
        %v1945 = vld [vmem:[%s303 + $0x11] sm:$0xff]
        %v1946 = vld [vmem:[%s303 + $0x19] sm:$0xff]
        %v1947 = vld [vmem:[%s303 + $0x21] sm:$0xff]
        %v1948 = vld [vmem:[%s303 + $0x29] sm:$0xff]
        %v1949 = vld [vmem:[%s303 + $0x31] sm:$0xff]
        %v1950 = vld [vmem:[%s303 + $0x39] sm:$0xff]
        %v1951 = vld [vmem:[%s303 + $0x41] sm:$0xff]
        %v1952 = vld [vmem:[%s303 + $0x49] sm:$0xff]
        %v1953 = vld [vmem:[%s303 + $0x51] sm:$0xff]
        %v1954 = vld [vmem:[%s303 + $0x59] sm:$0xff]
        %v1955 = vld [vmem:[%s303 + $0x61] sm:$0xff]
        %v1956 = vld [vmem:[%s303 + $0x69] sm:$0xff]
        %v1957 = vld [vmem:[%s303 + $0x71] sm:$0xff]
        %v1958 = vld [vmem:[%s303 + $0x79] sm:$0xff]
        %v1959 = vld [vmem:[%s303 + $0x81] sm:$0xff]
        %v1960 = vld [vmem:[%s303 + $0x89] sm:$0xff]
        %v1961 = vld [vmem:[%s303 + $0x91] sm:$0xff]
        %v1962 = vld [vmem:[%s303 + $0x99] sm:$0xff]
        %v1963 = vld [vmem:[%s303 + $0xa1] sm:$0xff]
        %v1964 = vld [vmem:[%s303 + $0xa9] sm:$0xff]
        %v1965 = vld [vmem:[%s303 + $0xb1] sm:$0xff]
        %v1966 = vld [vmem:[%s303 + $0xb9] sm:$0xff]
        %v1967 = vld [vmem:[%s303 + $0xc1] sm:$0xff]
        %v1968 = vld [vmem:[%s303 + $0xc9] sm:$0xff]
        %v1969 = vld [vmem:[%s303 + $0xd1] sm:$0xff]
        %v1970 = vld [vmem:[%s303 + $0xd9] sm:$0xff]
        %v1971 = vld [vmem:[%s303 + $0xe1] sm:$0xff]
        %v1972 = vld [vmem:[%s303 + $0xe9] sm:$0xff]
        %v1973 = vld [vmem:[%s303 + $0xf1] sm:$0xff]
        %v1974 = vld [vmem:[%s303 + $0xf9] sm:$0xff]
        %v1975 = vld [vmem:[%s303 + $0x101] sm:$0xff]
        %v1976 = vld [vmem:[%s303 + $0x109] sm:$0xff]
        %v1977 = vpack.c.bf16 %v1946, %v1945
        %v1978 = vpack.c.bf16 %v1948, %v1947
        %v1979 = vpack.c.bf16 %v1950, %v1949
        %v1980 = vpack.c.bf16 %v1952, %v1951
        %v1981 = vpack.c.bf16 %v1954, %v1953
        %v1982 = vpack.c.bf16 %v1956, %v1955
        %v1983 = vpack.c.bf16 %v1958, %v1957
        %v1984 = vpack.c.bf16 %v1960, %v1959
        %v1985 = vpack.c.bf16 %v1962, %v1961
        %v1986 = vpack.c.bf16 %v1964, %v1963
        %v1987 = vpack.c.bf16 %v1966, %v1965
        %v1988 = vpack.c.bf16 %v1968, %v1967
        %v1989 = vpack.c.bf16 %v1970, %v1969
        %v1990 = vpack.c.bf16 %v1972, %v1971
        %v1991 = vpack.c.bf16 %v1974, %v1973
        %v1992 = vpack.c.bf16 %v1976, %v1975
        %s1993 = scalar_lea.vmem %s1, 256
        %v1994 = vld [vmem:[%s1993] sm:$0xf]
        %v1995 = vld [vmem:[%s1993 + $0x4] sm:$0xf]
        %v1996 = vld [vmem:[%s1993 + $0x8] sm:$0xf]
        %v1997 = vld [vmem:[%s1993 + $0xc] sm:$0xf]
        %v1998 = vld [vmem:[%s1993 + $0x10] sm:$0xf]
        %v1999 = vld [vmem:[%s1993 + $0x14] sm:$0xf]
        %v2000 = vld [vmem:[%s1993 + $0x18] sm:$0xf]
        %v2001 = vld [vmem:[%s1993 + $0x1c] sm:$0xf]
        %v2002 = vld [vmem:[%s1993 + $0x20] sm:$0xf]
        %v2003 = vld [vmem:[%s1993 + $0x24] sm:$0xf]
        %v2004 = vld [vmem:[%s1993 + $0x28] sm:$0xf]
        %v2005 = vld [vmem:[%s1993 + $0x2c] sm:$0xf]
        %v2006 = vld [vmem:[%s1993 + $0x30] sm:$0xf]
        %v2007 = vld [vmem:[%s1993 + $0x34] sm:$0xf]
        %v2008 = vld [vmem:[%s1993 + $0x38] sm:$0xf]
        %v2009 = vld [vmem:[%s1993 + $0x3c] sm:$0xf]
        %v2026 = vunpack.c.l.b16 %v1994
        %v2027 = vunpack.c.l.b16 %v1995
        %v2028 = vunpack.c.l.b16 %v1996
        %v2029 = vunpack.c.l.b16 %v1997
        %v2030 = vunpack.c.l.b16 %v1998
        %v2031 = vunpack.c.l.b16 %v1999
        %v2032 = vunpack.c.l.b16 %v2000
        %v2033 = vunpack.c.l.b16 %v2001
        %v2034 = vunpack.c.l.b16 %v2002
        %v2035 = vunpack.c.l.b16 %v2003
        %v2036 = vunpack.c.l.b16 %v2004
        %v2037 = vunpack.c.l.b16 %v2005
        %v2038 = vunpack.c.l.b16 %v2006
        %v2039 = vunpack.c.l.b16 %v2007
        %v2040 = vunpack.c.l.b16 %v2008
        %v2041 = vunpack.c.l.b16 %v2009
        %v2042 = vpack.c.b16 %v2027, %v2026
        %v2043 = vpack.c.b16 %v2029, %v2028
        %v2044 = vpack.c.b16 %v2031, %v2030
        %v2045 = vpack.c.b16 %v2033, %v2032
        %v2046 = vpack.c.b16 %v2035, %v2034
        %v2047 = vpack.c.b16 %v2037, %v2036
        %v2048 = vpack.c.b16 %v2039, %v2038
        %v2049 = vpack.c.b16 %v2041, %v2040
        %2058 = vmatprep.subr.bf16.mxu0 0
        %2059 = vmatpush1.bf16.msra.mxu0 %v2042
        %2060 = vmatprep.subr.bf16.mxu0 0
        %2061 = vmatpush1.bf16.msra.mxu0 %v2043
        %2062 = vmatprep.subr.bf16.mxu0 0
        %2063 = vmatpush1.bf16.msra.mxu0 %v2044
        %2064 = vmatprep.subr.bf16.mxu0 0
        %2065 = vmatpush1.bf16.msra.mxu0 %v2045
        %2066 = vmatprep.subr.bf16.mxu0 0
        %2067 = vmatpush1.bf16.msra.mxu0 %v2046
        %2068 = vmatprep.subr.bf16.mxu0 0
        %2069 = vmatpush1.bf16.msra.mxu0 %v2047
        %2070 = vmatprep.subr.bf16.mxu0 0
        %2071 = vmatpush1.bf16.msra.mxu0 %v2048
        %2072 = vmatprep.subr.bf16.mxu0 0
        %2073 = vmatpush1.bf16.msra.mxu0 %v2049
        %2074 = vmatprep.subr.bf16.mxu0 0
        %2075 = vmatpush1.bf16.msra.mxu0 0
        %2076 = vmatprep.subr.bf16.mxu0 0
        %2077 = vmatpush1.bf16.msra.mxu0 0
        %2078 = vmatprep.subr.bf16.mxu0 0
        %2079 = vmatpush1.bf16.msra.mxu0 0
        %2080 = vmatprep.subr.bf16.mxu0 0
        %2081 = vmatpush1.bf16.msra.mxu0 0
        %2082 = vmatprep.subr.bf16.mxu0 0
        %2083 = vmatpush1.bf16.msra.mxu0 0
        %2084 = vmatprep.subr.bf16.mxu0 0
        %2085 = vmatpush1.bf16.msra.mxu0 0
        %2086 = vmatprep.subr.bf16.mxu0 0
        %2087 = vmatpush1.bf16.msra.mxu0 0
        %2088 = vmatprep.subr.bf16.mxu0 0
        %2089 = vmatpush1.bf16.msra.mxu0 0
        %2090 = vmatprep.mubr.bf16.mxu0 0
        %2091 = vmatmul.mubr.bf16.gmra.mrb[0].mxu0 %v1977
        %v2092 = vpop.f32.mrb[0].mxu0
        %v2093 = vadd.f32 0.0, %v2092
        %v2094 = vpop.f32.mrb[0].mxu0
        %v2095 = vpop.f32.mrb[0].mxu0
        %v2096 = vadd.f32 0.0, %v2095
        %v2097 = vpop.f32.mrb[0].mxu0
        %2098 = vmatprep.mubr.bf16.mxu0 0
        %2099 = vmatmul.mubr.bf16.gmra.mrb[0].mxu0 %v1978
        %v2100 = vpop.f32.mrb[0].mxu0
        %v2101 = vadd.f32 0.0, %v2100
        %v2102 = vpop.f32.mrb[0].mxu0
        %v2103 = vpop.f32.mrb[0].mxu0
        %v2104 = vadd.f32 0.0, %v2103
        %v2105 = vpop.f32.mrb[0].mxu0
        %2106 = vmatprep.mubr.bf16.mxu0 0
        %2107 = vmatmul.mubr.bf16.gmra.mrb[0].mxu0 %v1979
        %v2108 = vpop.f32.mrb[0].mxu0
        %v2109 = vadd.f32 0.0, %v2108
        %v2110 = vpop.f32.mrb[0].mxu0
        %v2111 = vpop.f32.mrb[0].mxu0
        %v2112 = vadd.f32 0.0, %v2111
        %v2113 = vpop.f32.mrb[0].mxu0
        %2114 = vmatprep.mubr.bf16.mxu0 0
        %2115 = vmatmul.mubr.bf16.gmra.mrb[0].mxu0 %v1980
        %v2116 = vpop.f32.mrb[0].mxu0
        %v2117 = vadd.f32 0.0, %v2116
        %v2118 = vpop.f32.mrb[0].mxu0
        %v2119 = vpop.f32.mrb[0].mxu0
        %v2120 = vadd.f32 0.0, %v2119
        %v2121 = vpop.f32.mrb[0].mxu0
        %2122 = vmatprep.mubr.bf16.mxu0 0
        %2123 = vmatmul.mubr.bf16.gmra.mrb[0].mxu0 %v1981
        %v2124 = vpop.f32.mrb[0].mxu0
        %v2125 = vadd.f32 0.0, %v2124
        %v2126 = vpop.f32.mrb[0].mxu0
        %v2127 = vpop.f32.mrb[0].mxu0
        %v2128 = vadd.f32 0.0, %v2127
        %v2129 = vpop.f32.mrb[0].mxu0
        %2130 = vmatprep.mubr.bf16.mxu0 0
        %2131 = vmatmul.mubr.bf16.gmra.mrb[0].mxu0 %v1982
        %v2132 = vpop.f32.mrb[0].mxu0
        %v2133 = vadd.f32 0.0, %v2132
        %v2134 = vpop.f32.mrb[0].mxu0
        %v2135 = vpop.f32.mrb[0].mxu0
        %v2136 = vadd.f32 0.0, %v2135
        %v2137 = vpop.f32.mrb[0].mxu0
        %2138 = vmatprep.mubr.bf16.mxu0 0
        %2139 = vmatmul.mubr.bf16.gmra.mrb[0].mxu0 %v1983
        %v2140 = vpop.f32.mrb[0].mxu0
        %v2141 = vadd.f32 0.0, %v2140
        %v2142 = vpop.f32.mrb[0].mxu0
        %v2143 = vpop.f32.mrb[0].mxu0
        %v2144 = vadd.f32 0.0, %v2143
        %v2145 = vpop.f32.mrb[0].mxu0
        %2146 = vmatprep.mubr.bf16.mxu0 0
        %2147 = vmatmul.mubr.bf16.gmra.mrb[0].mxu0 %v1984
        %v2148 = vpop.f32.mrb[0].mxu0
        %v2149 = vadd.f32 0.0, %v2148
        %v2150 = vpop.f32.mrb[0].mxu0
        %v2151 = vpop.f32.mrb[0].mxu0
        %v2152 = vadd.f32 0.0, %v2151
        %v2153 = vpop.f32.mrb[0].mxu0
        %2154 = vmatprep.mubr.bf16.mxu0 0
        %2155 = vmatmul.mubr.bf16.gmra.mrb[0].mxu0 %v1985
        %v2156 = vpop.f32.mrb[0].mxu0
        %v2157 = vadd.f32 0.0, %v2156
        %v2158 = vpop.f32.mrb[0].mxu0
        %v2159 = vpop.f32.mrb[0].mxu0
        %v2160 = vadd.f32 0.0, %v2159
        %v2161 = vpop.f32.mrb[0].mxu0
        %2162 = vmatprep.mubr.bf16.mxu0 0
        %2163 = vmatmul.mubr.bf16.gmra.mrb[0].mxu0 %v1986
        %v2164 = vpop.f32.mrb[0].mxu0
        %v2165 = vadd.f32 0.0, %v2164
        %v2166 = vpop.f32.mrb[0].mxu0
        %v2167 = vpop.f32.mrb[0].mxu0
        %v2168 = vadd.f32 0.0, %v2167
        %v2169 = vpop.f32.mrb[0].mxu0
        %2170 = vmatprep.mubr.bf16.mxu0 0
        %2171 = vmatmul.mubr.bf16.gmra.mrb[0].mxu0 %v1987
        %v2172 = vpop.f32.mrb[0].mxu0
        %v2173 = vadd.f32 0.0, %v2172
        %v2174 = vpop.f32.mrb[0].mxu0
        %v2175 = vpop.f32.mrb[0].mxu0
        %v2176 = vadd.f32 0.0, %v2175
        %v2177 = vpop.f32.mrb[0].mxu0
        %2178 = vmatprep.mubr.bf16.mxu0 0
        %2179 = vmatmul.mubr.bf16.gmra.mrb[0].mxu0 %v1988
        %v2180 = vpop.f32.mrb[0].mxu0
        %v2181 = vadd.f32 0.0, %v2180
        %v2182 = vpop.f32.mrb[0].mxu0
        %v2183 = vpop.f32.mrb[0].mxu0
        %v2184 = vadd.f32 0.0, %v2183
        %v2185 = vpop.f32.mrb[0].mxu0
        %2186 = vmatprep.mubr.bf16.mxu0 0
        %2187 = vmatmul.mubr.bf16.gmra.mrb[0].mxu0 %v1989
        %v2188 = vpop.f32.mrb[0].mxu0
        %v2189 = vadd.f32 0.0, %v2188
        %v2190 = vpop.f32.mrb[0].mxu0
        %v2191 = vpop.f32.mrb[0].mxu0
        %v2192 = vadd.f32 0.0, %v2191
        %v2193 = vpop.f32.mrb[0].mxu0
        %2194 = vmatprep.mubr.bf16.mxu0 0
        %2195 = vmatmul.mubr.bf16.gmra.mrb[0].mxu0 %v1990
        %v2196 = vpop.f32.mrb[0].mxu0
        %v2197 = vadd.f32 0.0, %v2196
        %v2198 = vpop.f32.mrb[0].mxu0
        %v2199 = vpop.f32.mrb[0].mxu0
        %v2200 = vadd.f32 0.0, %v2199
        %v2201 = vpop.f32.mrb[0].mxu0
        %2202 = vmatprep.mubr.bf16.mxu0 0
        %2203 = vmatmul.mubr.bf16.gmra.mrb[0].mxu0 %v1991
        %v2204 = vpop.f32.mrb[0].mxu0
        %v2205 = vadd.f32 0.0, %v2204
        %v2206 = vpop.f32.mrb[0].mxu0
        %v2207 = vpop.f32.mrb[0].mxu0
        %v2208 = vadd.f32 0.0, %v2207
        %v2209 = vpop.f32.mrb[0].mxu0
        %2210 = vmatprep.mubr.bf16.mxu0 0
        %2211 = vmatmul.mubr.bf16.gmra.mrb[0].mxu0 %v1992
        %v2212 = vpop.f32.mrb[0].mxu0
        %v2213 = vadd.f32 0.0, %v2212
        %v2214 = vpop.f32.mrb[0].mxu0
        %v2215 = vpop.f32.mrb[0].mxu0
        %v2216 = vadd.f32 0.0, %v2215
        %v2217 = vpop.f32.mrb[0].mxu0
        %2218 = vdwg.mxu0
        %v2219 = vadd.f32 %v1913, %v2093
        %v2220 = vadd.f32 %v1914, %v2096
        %v2221 = vadd.f32 %v1915, %v2101
        %v2222 = vadd.f32 %v1916, %v2104
        %v2223 = vadd.f32 %v1917, %v2109
        %v2224 = vadd.f32 %v1918, %v2112
        %v2225 = vadd.f32 %v1919, %v2117
        %v2226 = vadd.f32 %v1920, %v2120
        %v2227 = vadd.f32 %v1921, %v2125
        %v2228 = vadd.f32 %v1922, %v2128
        %v2229 = vadd.f32 %v1923, %v2133
        %v2230 = vadd.f32 %v1924, %v2136
        %v2231 = vadd.f32 %v1925, %v2141
        %v2232 = vadd.f32 %v1926, %v2144
        %v2233 = vadd.f32 %v1927, %v2149
        %v2234 = vadd.f32 %v1928, %v2152
        %v2235 = vadd.f32 %v1929, %v2157
        %v2236 = vadd.f32 %v1930, %v2160
        %v2237 = vadd.f32 %v1931, %v2165
        %v2238 = vadd.f32 %v1932, %v2168
        %v2239 = vadd.f32 %v1933, %v2173
        %v2240 = vadd.f32 %v1934, %v2176
        %v2241 = vadd.f32 %v1935, %v2181
        %v2242 = vadd.f32 %v1936, %v2184
        %v2243 = vadd.f32 %v1937, %v2189
        %v2244 = vadd.f32 %v1938, %v2192
        %v2245 = vadd.f32 %v1939, %v2197
        %v2246 = vadd.f32 %v1940, %v2200
        %v2247 = vadd.f32 %v1941, %v2205
        %v2248 = vadd.f32 %v1942, %v2208
        %v2249 = vadd.f32 %v1943, %v2213
        %v2250 = vadd.f32 %v1944, %v2216
        %v2251 = vld [vmem:[%s303 + $0x12] sm:$0xff]
        %v2252 = vld [vmem:[%s303 + $0x1a] sm:$0xff]
        %v2253 = vld [vmem:[%s303 + $0x22] sm:$0xff]
        %v2254 = vld [vmem:[%s303 + $0x2a] sm:$0xff]
        %v2255 = vld [vmem:[%s303 + $0x32] sm:$0xff]
        %v2256 = vld [vmem:[%s303 + $0x3a] sm:$0xff]
        %v2257 = vld [vmem:[%s303 + $0x42] sm:$0xff]
        %v2258 = vld [vmem:[%s303 + $0x4a] sm:$0xff]
        %v2259 = vld [vmem:[%s303 + $0x52] sm:$0xff]
        %v2260 = vld [vmem:[%s303 + $0x5a] sm:$0xff]
        %v2261 = vld [vmem:[%s303 + $0x62] sm:$0xff]
        %v2262 = vld [vmem:[%s303 + $0x6a] sm:$0xff]
        %v2263 = vld [vmem:[%s303 + $0x72] sm:$0xff]
        %v2264 = vld [vmem:[%s303 + $0x7a] sm:$0xff]
        %v2265 = vld [vmem:[%s303 + $0x82] sm:$0xff]
        %v2266 = vld [vmem:[%s303 + $0x8a] sm:$0xff]
        %v2267 = vld [vmem:[%s303 + $0x92] sm:$0xff]
        %v2268 = vld [vmem:[%s303 + $0x9a] sm:$0xff]
        %v2269 = vld [vmem:[%s303 + $0xa2] sm:$0xff]
        %v2270 = vld [vmem:[%s303 + $0xaa] sm:$0xff]
        %v2271 = vld [vmem:[%s303 + $0xb2] sm:$0xff]
        %v2272 = vld [vmem:[%s303 + $0xba] sm:$0xff]
        %v2273 = vld [vmem:[%s303 + $0xc2] sm:$0xff]
        %v2274 = vld [vmem:[%s303 + $0xca] sm:$0xff]
        %v2275 = vld [vmem:[%s303 + $0xd2] sm:$0xff]
        %v2276 = vld [vmem:[%s303 + $0xda] sm:$0xff]
        %v2277 = vld [vmem:[%s303 + $0xe2] sm:$0xff]
        %v2278 = vld [vmem:[%s303 + $0xea] sm:$0xff]
        %v2279 = vld [vmem:[%s303 + $0xf2] sm:$0xff]
        %v2280 = vld [vmem:[%s303 + $0xfa] sm:$0xff]
        %v2281 = vld [vmem:[%s303 + $0x102] sm:$0xff]
        %v2282 = vld [vmem:[%s303 + $0x10a] sm:$0xff]
        %v2283 = vmul.f32 %v2251, %v1144
        %v2284 = vmul.f32 %v2252, %v1149
        %v2285 = vmul.f32 %v2253, %v1154
        %v2286 = vmul.f32 %v2254, %v1159
        %v2287 = vmul.f32 %v2255, %v1164
        %v2288 = vmul.f32 %v2256, %v1169
        %v2289 = vmul.f32 %v2257, %v1174
        %v2290 = vmul.f32 %v2258, %v1179
        %v2291 = vmul.f32 %v2259, %v1184
        %v2292 = vmul.f32 %v2260, %v1189
        %v2293 = vmul.f32 %v2261, %v1194
        %v2294 = vmul.f32 %v2262, %v1199
        %v2295 = vmul.f32 %v2263, %v1204
        %v2296 = vmul.f32 %v2264, %v1209
        %v2297 = vmul.f32 %v2265, %v1214
        %v2298 = vmul.f32 %v2266, %v1219
        %v2299 = vmul.f32 %v2267, %v1224
        %v2300 = vmul.f32 %v2268, %v1229
        %v2301 = vmul.f32 %v2269, %v1234
        %v2302 = vmul.f32 %v2270, %v1239
        %v2303 = vmul.f32 %v2271, %v1244
        %v2304 = vmul.f32 %v2272, %v1249
        %v2305 = vmul.f32 %v2273, %v1254
        %v2306 = vmul.f32 %v2274, %v1259
        %v2307 = vmul.f32 %v2275, %v1264
        %v2308 = vmul.f32 %v2276, %v1269
        %v2309 = vmul.f32 %v2277, %v1274
        %v2310 = vmul.f32 %v2278, %v1279
        %v2311 = vmul.f32 %v2279, %v1284
        %v2312 = vmul.f32 %v2280, %v1289
        %v2313 = vmul.f32 %v2281, %v1294
        %v2314 = vmul.f32 %v2282, %v1299
        %v2315 = vpack.c.bf16 %v2284, %v2283
        %v2316 = vpack.c.bf16 %v2286, %v2285
        %v2317 = vpack.c.bf16 %v2288, %v2287
        %v2318 = vpack.c.bf16 %v2290, %v2289
        %v2319 = vpack.c.bf16 %v2292, %v2291
        %v2320 = vpack.c.bf16 %v2294, %v2293
        %v2321 = vpack.c.bf16 %v2296, %v2295
        %v2322 = vpack.c.bf16 %v2298, %v2297
        %v2323 = vpack.c.bf16 %v2300, %v2299
        %v2324 = vpack.c.bf16 %v2302, %v2301
        %v2325 = vpack.c.bf16 %v2304, %v2303
        %v2326 = vpack.c.bf16 %v2306, %v2305
        %v2327 = vpack.c.bf16 %v2308, %v2307
        %v2328 = vpack.c.bf16 %v2310, %v2309
        %v2329 = vpack.c.bf16 %v2312, %v2311
        %v2330 = vpack.c.bf16 %v2314, %v2313
        %s2331 = scalar_lea.vmem %s1, 320
        %v2332 = vld [vmem:[%s2331] sm:$0xf]
        %v2333 = vld [vmem:[%s2331 + $0x4] sm:$0xf]
        %v2334 = vld [vmem:[%s2331 + $0x8] sm:$0xf]
        %v2335 = vld [vmem:[%s2331 + $0xc] sm:$0xf]
        %v2336 = vld [vmem:[%s2331 + $0x10] sm:$0xf]
        %v2337 = vld [vmem:[%s2331 + $0x14] sm:$0xf]
        %v2338 = vld [vmem:[%s2331 + $0x18] sm:$0xf]
        %v2339 = vld [vmem:[%s2331 + $0x1c] sm:$0xf]
        %v2340 = vld [vmem:[%s2331 + $0x20] sm:$0xf]
        %v2341 = vld [vmem:[%s2331 + $0x24] sm:$0xf]
        %v2342 = vld [vmem:[%s2331 + $0x28] sm:$0xf]
        %v2343 = vld [vmem:[%s2331 + $0x2c] sm:$0xf]
        %v2344 = vld [vmem:[%s2331 + $0x30] sm:$0xf]
        %v2345 = vld [vmem:[%s2331 + $0x34] sm:$0xf]
        %v2346 = vld [vmem:[%s2331 + $0x38] sm:$0xf]
        %v2347 = vld [vmem:[%s2331 + $0x3c] sm:$0xf]
        %v2364 = vunpack.c.l.b16 %v2332
        %v2365 = vunpack.c.l.b16 %v2333
        %v2366 = vunpack.c.l.b16 %v2334
        %v2367 = vunpack.c.l.b16 %v2335
        %v2368 = vunpack.c.l.b16 %v2336
        %v2369 = vunpack.c.l.b16 %v2337
        %v2370 = vunpack.c.l.b16 %v2338
        %v2371 = vunpack.c.l.b16 %v2339
        %v2372 = vunpack.c.l.b16 %v2340
        %v2373 = vunpack.c.l.b16 %v2341
        %v2374 = vunpack.c.l.b16 %v2342
        %v2375 = vunpack.c.l.b16 %v2343
        %v2376 = vunpack.c.l.b16 %v2344
        %v2377 = vunpack.c.l.b16 %v2345
        %v2378 = vunpack.c.l.b16 %v2346
        %v2379 = vunpack.c.l.b16 %v2347
        %v2380 = vpack.c.b16 %v2365, %v2364
        %v2381 = vpack.c.b16 %v2367, %v2366
        %v2382 = vpack.c.b16 %v2369, %v2368
        %v2383 = vpack.c.b16 %v2371, %v2370
        %v2384 = vpack.c.b16 %v2373, %v2372
        %v2385 = vpack.c.b16 %v2375, %v2374
        %v2386 = vpack.c.b16 %v2377, %v2376
        %v2387 = vpack.c.b16 %v2379, %v2378
        %2396 = vmatprep.subr.bf16.mxu0 0
        %2397 = vmatpush1.bf16.msra.mxu0 %v2380
        %2398 = vmatprep.subr.bf16.mxu0 0
        %2399 = vmatpush1.bf16.msra.mxu0 %v2381
        %2400 = vmatprep.subr.bf16.mxu0 0
        %2401 = vmatpush1.bf16.msra.mxu0 %v2382
        %2402 = vmatprep.subr.bf16.mxu0 0
        %2403 = vmatpush1.bf16.msra.mxu0 %v2383
        %2404 = vmatprep.subr.bf16.mxu0 0
        %2405 = vmatpush1.bf16.msra.mxu0 %v2384
        %2406 = vmatprep.subr.bf16.mxu0 0
        %2407 = vmatpush1.bf16.msra.mxu0 %v2385
        %2408 = vmatprep.subr.bf16.mxu0 0
        %2409 = vmatpush1.bf16.msra.mxu0 %v2386
        %2410 = vmatprep.subr.bf16.mxu0 0
        %2411 = vmatpush1.bf16.msra.mxu0 %v2387
        %2412 = vmatprep.subr.bf16.mxu0 0
        %2413 = vmatpush1.bf16.msra.mxu0 0
        %2414 = vmatprep.subr.bf16.mxu0 0
        %2415 = vmatpush1.bf16.msra.mxu0 0
        %2416 = vmatprep.subr.bf16.mxu0 0
        %2417 = vmatpush1.bf16.msra.mxu0 0
        %2418 = vmatprep.subr.bf16.mxu0 0
        %2419 = vmatpush1.bf16.msra.mxu0 0
        %2420 = vmatprep.subr.bf16.mxu0 0
        %2421 = vmatpush1.bf16.msra.mxu0 0
        %2422 = vmatprep.subr.bf16.mxu0 0
        %2423 = vmatpush1.bf16.msra.mxu0 0
        %2424 = vmatprep.subr.bf16.mxu0 0
        %2425 = vmatpush1.bf16.msra.mxu0 0
        %2426 = vmatprep.subr.bf16.mxu0 0
        %2427 = vmatpush1.bf16.msra.mxu0 0
        %2428 = vmatprep.mubr.bf16.mxu0 0
        %2429 = vmatmul.mubr.bf16.gmra.mrb[0].mxu0 %v2315
        %v2430 = vpop.f32.mrb[0].mxu0
        %v2431 = vadd.f32 0.0, %v2430
        %v2432 = vpop.f32.mrb[0].mxu0
        %v2433 = vpop.f32.mrb[0].mxu0
        %v2434 = vadd.f32 0.0, %v2433
        %v2435 = vpop.f32.mrb[0].mxu0
        %2436 = vmatprep.mubr.bf16.mxu0 0
        %2437 = vmatmul.mubr.bf16.gmra.mrb[0].mxu0 %v2316
        %v2438 = vpop.f32.mrb[0].mxu0
        %v2439 = vadd.f32 0.0, %v2438
        %v2440 = vpop.f32.mrb[0].mxu0
        %v2441 = vpop.f32.mrb[0].mxu0
        %v2442 = vadd.f32 0.0, %v2441
        %v2443 = vpop.f32.mrb[0].mxu0
        %2444 = vmatprep.mubr.bf16.mxu0 0
        %2445 = vmatmul.mubr.bf16.gmra.mrb[0].mxu0 %v2317
        %v2446 = vpop.f32.mrb[0].mxu0
        %v2447 = vadd.f32 0.0, %v2446
        %v2448 = vpop.f32.mrb[0].mxu0
        %v2449 = vpop.f32.mrb[0].mxu0
        %v2450 = vadd.f32 0.0, %v2449
        %v2451 = vpop.f32.mrb[0].mxu0
        %2452 = vmatprep.mubr.bf16.mxu0 0
        %2453 = vmatmul.mubr.bf16.gmra.mrb[0].mxu0 %v2318
        %v2454 = vpop.f32.mrb[0].mxu0
        %v2455 = vadd.f32 0.0, %v2454
        %v2456 = vpop.f32.mrb[0].mxu0
        %v2457 = vpop.f32.mrb[0].mxu0
        %v2458 = vadd.f32 0.0, %v2457
        %v2459 = vpop.f32.mrb[0].mxu0
        %2460 = vmatprep.mubr.bf16.mxu0 0
        %2461 = vmatmul.mubr.bf16.gmra.mrb[0].mxu0 %v2319
        %v2462 = vpop.f32.mrb[0].mxu0
        %v2463 = vadd.f32 0.0, %v2462
        %v2464 = vpop.f32.mrb[0].mxu0
        %v2465 = vpop.f32.mrb[0].mxu0
        %v2466 = vadd.f32 0.0, %v2465
        %v2467 = vpop.f32.mrb[0].mxu0
        %2468 = vmatprep.mubr.bf16.mxu0 0
        %2469 = vmatmul.mubr.bf16.gmra.mrb[0].mxu0 %v2320
        %v2470 = vpop.f32.mrb[0].mxu0
        %v2471 = vadd.f32 0.0, %v2470
        %v2472 = vpop.f32.mrb[0].mxu0
        %v2473 = vpop.f32.mrb[0].mxu0
        %v2474 = vadd.f32 0.0, %v2473
        %v2475 = vpop.f32.mrb[0].mxu0
        %2476 = vmatprep.mubr.bf16.mxu0 0
        %2477 = vmatmul.mubr.bf16.gmra.mrb[0].mxu0 %v2321
        %v2478 = vpop.f32.mrb[0].mxu0
        %v2479 = vadd.f32 0.0, %v2478
        %v2480 = vpop.f32.mrb[0].mxu0
        %v2481 = vpop.f32.mrb[0].mxu0
        %v2482 = vadd.f32 0.0, %v2481
        %v2483 = vpop.f32.mrb[0].mxu0
        %2484 = vmatprep.mubr.bf16.mxu0 0
        %2485 = vmatmul.mubr.bf16.gmra.mrb[0].mxu0 %v2322
        %v2486 = vpop.f32.mrb[0].mxu0
        %v2487 = vadd.f32 0.0, %v2486
        %v2488 = vpop.f32.mrb[0].mxu0
        %v2489 = vpop.f32.mrb[0].mxu0
        %v2490 = vadd.f32 0.0, %v2489
        %v2491 = vpop.f32.mrb[0].mxu0
        %2492 = vmatprep.mubr.bf16.mxu0 0
        %2493 = vmatmul.mubr.bf16.gmra.mrb[0].mxu0 %v2323
        %v2494 = vpop.f32.mrb[0].mxu0
        %v2495 = vadd.f32 0.0, %v2494
        %v2496 = vpop.f32.mrb[0].mxu0
        %v2497 = vpop.f32.mrb[0].mxu0
        %v2498 = vadd.f32 0.0, %v2497
        %v2499 = vpop.f32.mrb[0].mxu0
        %2500 = vmatprep.mubr.bf16.mxu0 0
        %2501 = vmatmul.mubr.bf16.gmra.mrb[0].mxu0 %v2324
        %v2502 = vpop.f32.mrb[0].mxu0
        %v2503 = vadd.f32 0.0, %v2502
        %v2504 = vpop.f32.mrb[0].mxu0
        %v2505 = vpop.f32.mrb[0].mxu0
        %v2506 = vadd.f32 0.0, %v2505
        %v2507 = vpop.f32.mrb[0].mxu0
        %2508 = vmatprep.mubr.bf16.mxu0 0
        %2509 = vmatmul.mubr.bf16.gmra.mrb[0].mxu0 %v2325
        %v2510 = vpop.f32.mrb[0].mxu0
        %v2511 = vadd.f32 0.0, %v2510
        %v2512 = vpop.f32.mrb[0].mxu0
        %v2513 = vpop.f32.mrb[0].mxu0
        %v2514 = vadd.f32 0.0, %v2513
        %v2515 = vpop.f32.mrb[0].mxu0
        %2516 = vmatprep.mubr.bf16.mxu0 0
        %2517 = vmatmul.mubr.bf16.gmra.mrb[0].mxu0 %v2326
        %v2518 = vpop.f32.mrb[0].mxu0
        %v2519 = vadd.f32 0.0, %v2518
        %v2520 = vpop.f32.mrb[0].mxu0
        %v2521 = vpop.f32.mrb[0].mxu0
        %v2522 = vadd.f32 0.0, %v2521
        %v2523 = vpop.f32.mrb[0].mxu0
        %2524 = vmatprep.mubr.bf16.mxu0 0
        %2525 = vmatmul.mubr.bf16.gmra.mrb[0].mxu0 %v2327
        %v2526 = vpop.f32.mrb[0].mxu0
        %v2527 = vadd.f32 0.0, %v2526
        %v2528 = vpop.f32.mrb[0].mxu0
        %v2529 = vpop.f32.mrb[0].mxu0
        %v2530 = vadd.f32 0.0, %v2529
        %v2531 = vpop.f32.mrb[0].mxu0
        %2532 = vmatprep.mubr.bf16.mxu0 0
        %2533 = vmatmul.mubr.bf16.gmra.mrb[0].mxu0 %v2328
        %v2534 = vpop.f32.mrb[0].mxu0
        %v2535 = vadd.f32 0.0, %v2534
        %v2536 = vpop.f32.mrb[0].mxu0
        %v2537 = vpop.f32.mrb[0].mxu0
        %v2538 = vadd.f32 0.0, %v2537
        %v2539 = vpop.f32.mrb[0].mxu0
        %2540 = vmatprep.mubr.bf16.mxu0 0
        %2541 = vmatmul.mubr.bf16.gmra.mrb[0].mxu0 %v2329
        %v2542 = vpop.f32.mrb[0].mxu0
        %v2543 = vadd.f32 0.0, %v2542
        %v2544 = vpop.f32.mrb[0].mxu0
        %v2545 = vpop.f32.mrb[0].mxu0
        %v2546 = vadd.f32 0.0, %v2545
        %v2547 = vpop.f32.mrb[0].mxu0
        %2548 = vmatprep.mubr.bf16.mxu0 0
        %2549 = vmatmul.mubr.bf16.gmra.mrb[0].mxu0 %v2330
        %v2550 = vpop.f32.mrb[0].mxu0
        %v2551 = vadd.f32 0.0, %v2550
        %v2552 = vpop.f32.mrb[0].mxu0
        %v2553 = vpop.f32.mrb[0].mxu0
        %v2554 = vadd.f32 0.0, %v2553
        %v2555 = vpop.f32.mrb[0].mxu0
        %2556 = vdwg.mxu0
        %v2557 = vadd.f32 %v2219, %v2431
        %v2558 = vadd.f32 %v2220, %v2434
        %v2559 = vadd.f32 %v2221, %v2439
        %v2560 = vadd.f32 %v2222, %v2442
        %v2561 = vadd.f32 %v2223, %v2447
        %v2562 = vadd.f32 %v2224, %v2450
        %v2563 = vadd.f32 %v2225, %v2455
        %v2564 = vadd.f32 %v2226, %v2458
        %v2565 = vadd.f32 %v2227, %v2463
        %v2566 = vadd.f32 %v2228, %v2466
        %v2567 = vadd.f32 %v2229, %v2471
        %v2568 = vadd.f32 %v2230, %v2474
        %v2569 = vadd.f32 %v2231, %v2479
        %v2570 = vadd.f32 %v2232, %v2482
        %v2571 = vadd.f32 %v2233, %v2487
        %v2572 = vadd.f32 %v2234, %v2490
        %v2573 = vadd.f32 %v2235, %v2495
        %v2574 = vadd.f32 %v2236, %v2498
        %v2575 = vadd.f32 %v2237, %v2503
        %v2576 = vadd.f32 %v2238, %v2506
        %v2577 = vadd.f32 %v2239, %v2511
        %v2578 = vadd.f32 %v2240, %v2514
        %v2579 = vadd.f32 %v2241, %v2519
        %v2580 = vadd.f32 %v2242, %v2522
        %v2581 = vadd.f32 %v2243, %v2527
        %v2582 = vadd.f32 %v2244, %v2530
        %v2583 = vadd.f32 %v2245, %v2535
        %v2584 = vadd.f32 %v2246, %v2538
        %v2585 = vadd.f32 %v2247, %v2543
        %v2586 = vadd.f32 %v2248, %v2546
        %v2587 = vadd.f32 %v2249, %v2551
        %v2588 = vadd.f32 %v2250, %v2554
        %v2589 = vld [vmem:[%s303 + $0x20] sm:$0xff]
        %v2590 = vld [vmem:[%s303 + $0x28] sm:$0xff]
        %v2591 = vld [vmem:[%s303 + $0x30] sm:$0xff]
        %v2592 = vld [vmem:[%s303 + $0x38] sm:$0xff]
        %v2593 = vld [vmem:[%s303 + $0x40] sm:$0xff]
        %v2594 = vld [vmem:[%s303 + $0x48] sm:$0xff]
        %v2595 = vld [vmem:[%s303 + $0x50] sm:$0xff]
        %v2596 = vld [vmem:[%s303 + $0x58] sm:$0xff]
        %v2597 = vld [vmem:[%s303 + $0x60] sm:$0xff]
        %v2598 = vld [vmem:[%s303 + $0x68] sm:$0xff]
        %v2599 = vld [vmem:[%s303 + $0x70] sm:$0xff]
        %v2600 = vld [vmem:[%s303 + $0x78] sm:$0xff]
        %v2601 = vld [vmem:[%s303 + $0x80] sm:$0xff]
        %v2602 = vld [vmem:[%s303 + $0x88] sm:$0xff]
        %v2603 = vld [vmem:[%s303 + $0x90] sm:$0xff]
        %v2604 = vld [vmem:[%s303 + $0x98] sm:$0xff]
        %v2605 = vld [vmem:[%s303 + $0xa0] sm:$0xff]
        %v2606 = vld [vmem:[%s303 + $0xa8] sm:$0xff]
        %v2607 = vld [vmem:[%s303 + $0xb0] sm:$0xff]
        %v2608 = vld [vmem:[%s303 + $0xb8] sm:$0xff]
        %v2609 = vld [vmem:[%s303 + $0xc0] sm:$0xff]
        %v2610 = vld [vmem:[%s303 + $0xc8] sm:$0xff]
        %v2611 = vld [vmem:[%s303 + $0xd0] sm:$0xff]
        %v2612 = vld [vmem:[%s303 + $0xd8] sm:$0xff]
        %v2613 = vld [vmem:[%s303 + $0xe0] sm:$0xff]
        %v2614 = vld [vmem:[%s303 + $0xe8] sm:$0xff]
        %v2615 = vld [vmem:[%s303 + $0xf0] sm:$0xff]
        %v2616 = vld [vmem:[%s303 + $0xf8] sm:$0xff]
        %v2617 = vld [vmem:[%s303 + $0x100] sm:$0xff]
        %v2618 = vld [vmem:[%s303 + $0x108] sm:$0xff]
        %v2619 = vld [vmem:[%s303 + $0x110] sm:$0xff]
        %v2620 = vld [vmem:[%s303 + $0x118] sm:$0xff]
        %v2621 = vmul.f32 %v2589, %v372
        %v2622 = vmul.f32 %v2590, %v377
        %v2623 = vmul.f32 %v2591, %v382
        %v2624 = vmul.f32 %v2592, %v387
        %v2625 = vmul.f32 %v2593, %v392
        %v2626 = vmul.f32 %v2594, %v397
        %v2627 = vmul.f32 %v2595, %v402
        %v2628 = vmul.f32 %v2596, %v407
        %v2629 = vmul.f32 %v2597, %v412
        %v2630 = vmul.f32 %v2598, %v417
        %v2631 = vmul.f32 %v2599, %v422
        %v2632 = vmul.f32 %v2600, %v427
        %v2633 = vmul.f32 %v2601, %v432
        %v2634 = vmul.f32 %v2602, %v437
        %v2635 = vmul.f32 %v2603, %v442
        %v2636 = vmul.f32 %v2604, %v447
        %v2637 = vmul.f32 %v2605, %v452
        %v2638 = vmul.f32 %v2606, %v457
        %v2639 = vmul.f32 %v2607, %v462
        %v2640 = vmul.f32 %v2608, %v467
        %v2641 = vmul.f32 %v2609, %v472
        %v2642 = vmul.f32 %v2610, %v477
        %v2643 = vmul.f32 %v2611, %v482
        %v2644 = vmul.f32 %v2612, %v487
        %v2645 = vmul.f32 %v2613, %v492
        %v2646 = vmul.f32 %v2614, %v497
        %v2647 = vmul.f32 %v2615, %v502
        %v2648 = vmul.f32 %v2616, %v507
        %v2649 = vmul.f32 %v2617, %v512
        %v2650 = vmul.f32 %v2618, %v517
        %v2651 = vmul.f32 %v2619, %v522
        %v2652 = vmul.f32 %v2620, %v527
        %v2653 = vpack.c.bf16 %v2622, %v2621
        %v2654 = vpack.c.bf16 %v2624, %v2623
        %v2655 = vpack.c.bf16 %v2626, %v2625
        %v2656 = vpack.c.bf16 %v2628, %v2627
        %v2657 = vpack.c.bf16 %v2630, %v2629
        %v2658 = vpack.c.bf16 %v2632, %v2631
        %v2659 = vpack.c.bf16 %v2634, %v2633
        %v2660 = vpack.c.bf16 %v2636, %v2635
        %v2661 = vpack.c.bf16 %v2638, %v2637
        %v2662 = vpack.c.bf16 %v2640, %v2639
        %v2663 = vpack.c.bf16 %v2642, %v2641
        %v2664 = vpack.c.bf16 %v2644, %v2643
        %v2665 = vpack.c.bf16 %v2646, %v2645
        %v2666 = vpack.c.bf16 %v2648, %v2647
        %v2667 = vpack.c.bf16 %v2650, %v2649
        %v2668 = vpack.c.bf16 %v2652, %v2651
        %s2669 = scalar_lea.vmem %s1, 384
        %v2670 = vld [vmem:[%s2669] sm:$0xf]
        %v2671 = vld [vmem:[%s2669 + $0x4] sm:$0xf]
        %v2672 = vld [vmem:[%s2669 + $0x8] sm:$0xf]
        %v2673 = vld [vmem:[%s2669 + $0xc] sm:$0xf]
        %v2674 = vld [vmem:[%s2669 + $0x10] sm:$0xf]
        %v2675 = vld [vmem:[%s2669 + $0x14] sm:$0xf]
        %v2676 = vld [vmem:[%s2669 + $0x18] sm:$0xf]
        %v2677 = vld [vmem:[%s2669 + $0x1c] sm:$0xf]
        %v2678 = vld [vmem:[%s2669 + $0x20] sm:$0xf]
        %v2679 = vld [vmem:[%s2669 + $0x24] sm:$0xf]
        %v2680 = vld [vmem:[%s2669 + $0x28] sm:$0xf]
        %v2681 = vld [vmem:[%s2669 + $0x2c] sm:$0xf]
        %v2682 = vld [vmem:[%s2669 + $0x30] sm:$0xf]
        %v2683 = vld [vmem:[%s2669 + $0x34] sm:$0xf]
        %v2684 = vld [vmem:[%s2669 + $0x38] sm:$0xf]
        %v2685 = vld [vmem:[%s2669 + $0x3c] sm:$0xf]
        %v2702 = vunpack.c.l.b16 %v2670
        %v2703 = vunpack.c.l.b16 %v2671
        %v2704 = vunpack.c.l.b16 %v2672
        %v2705 = vunpack.c.l.b16 %v2673
        %v2706 = vunpack.c.l.b16 %v2674
        %v2707 = vunpack.c.l.b16 %v2675
        %v2708 = vunpack.c.l.b16 %v2676
        %v2709 = vunpack.c.l.b16 %v2677
        %v2710 = vunpack.c.l.b16 %v2678
        %v2711 = vunpack.c.l.b16 %v2679
        %v2712 = vunpack.c.l.b16 %v2680
        %v2713 = vunpack.c.l.b16 %v2681
        %v2714 = vunpack.c.l.b16 %v2682
        %v2715 = vunpack.c.l.b16 %v2683
        %v2716 = vunpack.c.l.b16 %v2684
        %v2717 = vunpack.c.l.b16 %v2685
        %v2718 = vpack.c.b16 %v2703, %v2702
        %v2719 = vpack.c.b16 %v2705, %v2704
        %v2720 = vpack.c.b16 %v2707, %v2706
        %v2721 = vpack.c.b16 %v2709, %v2708
        %v2722 = vpack.c.b16 %v2711, %v2710
        %v2723 = vpack.c.b16 %v2713, %v2712
        %v2724 = vpack.c.b16 %v2715, %v2714
        %v2725 = vpack.c.b16 %v2717, %v2716
        %2734 = vmatprep.subr.bf16.mxu0 0
        %2735 = vmatpush1.bf16.msra.mxu0 %v2718
        %2736 = vmatprep.subr.bf16.mxu0 0
        %2737 = vmatpush1.bf16.msra.mxu0 %v2719
        %2738 = vmatprep.subr.bf16.mxu0 0
        %2739 = vmatpush1.bf16.msra.mxu0 %v2720
        %2740 = vmatprep.subr.bf16.mxu0 0
        %2741 = vmatpush1.bf16.msra.mxu0 %v2721
        %2742 = vmatprep.subr.bf16.mxu0 0
        %2743 = vmatpush1.bf16.msra.mxu0 %v2722
        %2744 = vmatprep.subr.bf16.mxu0 0
        %2745 = vmatpush1.bf16.msra.mxu0 %v2723
        %2746 = vmatprep.subr.bf16.mxu0 0
        %2747 = vmatpush1.bf16.msra.mxu0 %v2724
        %2748 = vmatprep.subr.bf16.mxu0 0
        %2749 = vmatpush1.bf16.msra.mxu0 %v2725
        %2750 = vmatprep.subr.bf16.mxu0 0
        %2751 = vmatpush1.bf16.msra.mxu0 0
        %2752 = vmatprep.subr.bf16.mxu0 0
        %2753 = vmatpush1.bf16.msra.mxu0 0
        %2754 = vmatprep.subr.bf16.mxu0 0
        %2755 = vmatpush1.bf16.msra.mxu0 0
        %2756 = vmatprep.subr.bf16.mxu0 0
        %2757 = vmatpush1.bf16.msra.mxu0 0
        %2758 = vmatprep.subr.bf16.mxu0 0
        %2759 = vmatpush1.bf16.msra.mxu0 0
        %2760 = vmatprep.subr.bf16.mxu0 0
        %2761 = vmatpush1.bf16.msra.mxu0 0
        %2762 = vmatprep.subr.bf16.mxu0 0
        %2763 = vmatpush1.bf16.msra.mxu0 0
        %2764 = vmatprep.subr.bf16.mxu0 0
        %2765 = vmatpush1.bf16.msra.mxu0 0
        %2766 = vmatprep.mubr.bf16.mxu0 0
        %2767 = vmatmul.mubr.bf16.gmra.mrb[0].mxu0 %v2653
        %v2768 = vpop.f32.mrb[0].mxu0
        %v2769 = vadd.f32 0.0, %v2768
        %v2770 = vpop.f32.mrb[0].mxu0
        %v2771 = vpop.f32.mrb[0].mxu0
        %v2772 = vadd.f32 0.0, %v2771
        %v2773 = vpop.f32.mrb[0].mxu0
        %2774 = vmatprep.mubr.bf16.mxu0 0
        %2775 = vmatmul.mubr.bf16.gmra.mrb[0].mxu0 %v2654
        %v2776 = vpop.f32.mrb[0].mxu0
        %v2777 = vadd.f32 0.0, %v2776
        %v2778 = vpop.f32.mrb[0].mxu0
        %v2779 = vpop.f32.mrb[0].mxu0
        %v2780 = vadd.f32 0.0, %v2779
        %v2781 = vpop.f32.mrb[0].mxu0
        %2782 = vmatprep.mubr.bf16.mxu0 0
        %2783 = vmatmul.mubr.bf16.gmra.mrb[0].mxu0 %v2655
        %v2784 = vpop.f32.mrb[0].mxu0
        %v2785 = vadd.f32 0.0, %v2784
        %v2786 = vpop.f32.mrb[0].mxu0
        %v2787 = vpop.f32.mrb[0].mxu0
        %v2788 = vadd.f32 0.0, %v2787
        %v2789 = vpop.f32.mrb[0].mxu0
        %2790 = vmatprep.mubr.bf16.mxu0 0
        %2791 = vmatmul.mubr.bf16.gmra.mrb[0].mxu0 %v2656
        %v2792 = vpop.f32.mrb[0].mxu0
        %v2793 = vadd.f32 0.0, %v2792
        %v2794 = vpop.f32.mrb[0].mxu0
        %v2795 = vpop.f32.mrb[0].mxu0
        %v2796 = vadd.f32 0.0, %v2795
        %v2797 = vpop.f32.mrb[0].mxu0
        %2798 = vmatprep.mubr.bf16.mxu0 0
        %2799 = vmatmul.mubr.bf16.gmra.mrb[0].mxu0 %v2657
        %v2800 = vpop.f32.mrb[0].mxu0
        %v2801 = vadd.f32 0.0, %v2800
        %v2802 = vpop.f32.mrb[0].mxu0
        %v2803 = vpop.f32.mrb[0].mxu0
        %v2804 = vadd.f32 0.0, %v2803
        %v2805 = vpop.f32.mrb[0].mxu0
        %2806 = vmatprep.mubr.bf16.mxu0 0
        %2807 = vmatmul.mubr.bf16.gmra.mrb[0].mxu0 %v2658
        %v2808 = vpop.f32.mrb[0].mxu0
        %v2809 = vadd.f32 0.0, %v2808
        %v2810 = vpop.f32.mrb[0].mxu0
        %v2811 = vpop.f32.mrb[0].mxu0
        %v2812 = vadd.f32 0.0, %v2811
        %v2813 = vpop.f32.mrb[0].mxu0
        %2814 = vmatprep.mubr.bf16.mxu0 0
        %2815 = vmatmul.mubr.bf16.gmra.mrb[0].mxu0 %v2659
        %v2816 = vpop.f32.mrb[0].mxu0
        %v2817 = vadd.f32 0.0, %v2816
        %v2818 = vpop.f32.mrb[0].mxu0
        %v2819 = vpop.f32.mrb[0].mxu0
        %v2820 = vadd.f32 0.0, %v2819
        %v2821 = vpop.f32.mrb[0].mxu0
        %2822 = vmatprep.mubr.bf16.mxu0 0
        %2823 = vmatmul.mubr.bf16.gmra.mrb[0].mxu0 %v2660
        %v2824 = vpop.f32.mrb[0].mxu0
        %v2825 = vadd.f32 0.0, %v2824
        %v2826 = vpop.f32.mrb[0].mxu0
        %v2827 = vpop.f32.mrb[0].mxu0
        %v2828 = vadd.f32 0.0, %v2827
        %v2829 = vpop.f32.mrb[0].mxu0
        %2830 = vmatprep.mubr.bf16.mxu0 0
        %2831 = vmatmul.mubr.bf16.gmra.mrb[0].mxu0 %v2661
        %v2832 = vpop.f32.mrb[0].mxu0
        %v2833 = vadd.f32 0.0, %v2832
        %v2834 = vpop.f32.mrb[0].mxu0
        %v2835 = vpop.f32.mrb[0].mxu0
        %v2836 = vadd.f32 0.0, %v2835
        %v2837 = vpop.f32.mrb[0].mxu0
        %2838 = vmatprep.mubr.bf16.mxu0 0
        %2839 = vmatmul.mubr.bf16.gmra.mrb[0].mxu0 %v2662
        %v2840 = vpop.f32.mrb[0].mxu0
        %v2841 = vadd.f32 0.0, %v2840
        %v2842 = vpop.f32.mrb[0].mxu0
        %v2843 = vpop.f32.mrb[0].mxu0
        %v2844 = vadd.f32 0.0, %v2843
        %v2845 = vpop.f32.mrb[0].mxu0
        %2846 = vmatprep.mubr.bf16.mxu0 0
        %2847 = vmatmul.mubr.bf16.gmra.mrb[0].mxu0 %v2663
        %v2848 = vpop.f32.mrb[0].mxu0
        %v2849 = vadd.f32 0.0, %v2848
        %v2850 = vpop.f32.mrb[0].mxu0
        %v2851 = vpop.f32.mrb[0].mxu0
        %v2852 = vadd.f32 0.0, %v2851
        %v2853 = vpop.f32.mrb[0].mxu0
        %2854 = vmatprep.mubr.bf16.mxu0 0
        %2855 = vmatmul.mubr.bf16.gmra.mrb[0].mxu0 %v2664
        %v2856 = vpop.f32.mrb[0].mxu0
        %v2857 = vadd.f32 0.0, %v2856
        %v2858 = vpop.f32.mrb[0].mxu0
        %v2859 = vpop.f32.mrb[0].mxu0
        %v2860 = vadd.f32 0.0, %v2859
        %v2861 = vpop.f32.mrb[0].mxu0
        %2862 = vmatprep.mubr.bf16.mxu0 0
        %2863 = vmatmul.mubr.bf16.gmra.mrb[0].mxu0 %v2665
        %v2864 = vpop.f32.mrb[0].mxu0
        %v2865 = vadd.f32 0.0, %v2864
        %v2866 = vpop.f32.mrb[0].mxu0
        %v2867 = vpop.f32.mrb[0].mxu0
        %v2868 = vadd.f32 0.0, %v2867
        %v2869 = vpop.f32.mrb[0].mxu0
        %2870 = vmatprep.mubr.bf16.mxu0 0
        %2871 = vmatmul.mubr.bf16.gmra.mrb[0].mxu0 %v2666
        %v2872 = vpop.f32.mrb[0].mxu0
        %v2873 = vadd.f32 0.0, %v2872
        %v2874 = vpop.f32.mrb[0].mxu0
        %v2875 = vpop.f32.mrb[0].mxu0
        %v2876 = vadd.f32 0.0, %v2875
        %v2877 = vpop.f32.mrb[0].mxu0
        %2878 = vmatprep.mubr.bf16.mxu0 0
        %2879 = vmatmul.mubr.bf16.gmra.mrb[0].mxu0 %v2667
        %v2880 = vpop.f32.mrb[0].mxu0
        %v2881 = vadd.f32 0.0, %v2880
        %v2882 = vpop.f32.mrb[0].mxu0
        %v2883 = vpop.f32.mrb[0].mxu0
        %v2884 = vadd.f32 0.0, %v2883
        %v2885 = vpop.f32.mrb[0].mxu0
        %2886 = vmatprep.mubr.bf16.mxu0 0
        %2887 = vmatmul.mubr.bf16.gmra.mrb[0].mxu0 %v2668
        %v2888 = vpop.f32.mrb[0].mxu0
        %v2889 = vadd.f32 0.0, %v2888
        %v2890 = vpop.f32.mrb[0].mxu0
        %v2891 = vpop.f32.mrb[0].mxu0
        %v2892 = vadd.f32 0.0, %v2891
        %v2893 = vpop.f32.mrb[0].mxu0
        %2894 = vdwg.mxu0
        %v2895 = vadd.f32 %v2557, %v2769
        %v2896 = vadd.f32 %v2558, %v2772
        %v2897 = vadd.f32 %v2559, %v2777
        %v2898 = vadd.f32 %v2560, %v2780
        %v2899 = vadd.f32 %v2561, %v2785
        %v2900 = vadd.f32 %v2562, %v2788
        %v2901 = vadd.f32 %v2563, %v2793
        %v2902 = vadd.f32 %v2564, %v2796
        %v2903 = vadd.f32 %v2565, %v2801
        %v2904 = vadd.f32 %v2566, %v2804
        %v2905 = vadd.f32 %v2567, %v2809
        %v2906 = vadd.f32 %v2568, %v2812
        %v2907 = vadd.f32 %v2569, %v2817
        %v2908 = vadd.f32 %v2570, %v2820
        %v2909 = vadd.f32 %v2571, %v2825
        %v2910 = vadd.f32 %v2572, %v2828
        %v2911 = vadd.f32 %v2573, %v2833
        %v2912 = vadd.f32 %v2574, %v2836
        %v2913 = vadd.f32 %v2575, %v2841
        %v2914 = vadd.f32 %v2576, %v2844
        %v2915 = vadd.f32 %v2577, %v2849
        %v2916 = vadd.f32 %v2578, %v2852
        %v2917 = vadd.f32 %v2579, %v2857
        %v2918 = vadd.f32 %v2580, %v2860
        %v2919 = vadd.f32 %v2581, %v2865
        %v2920 = vadd.f32 %v2582, %v2868
        %v2921 = vadd.f32 %v2583, %v2873
        %v2922 = vadd.f32 %v2584, %v2876
        %v2923 = vadd.f32 %v2585, %v2881
        %v2924 = vadd.f32 %v2586, %v2884
        %v2925 = vadd.f32 %v2587, %v2889
        %v2926 = vadd.f32 %v2588, %v2892
        %v2927 = vld [vmem:[%s303 + $0x21] sm:$0xff]
        %v2928 = vld [vmem:[%s303 + $0x29] sm:$0xff]
        %v2929 = vld [vmem:[%s303 + $0x31] sm:$0xff]
        %v2930 = vld [vmem:[%s303 + $0x39] sm:$0xff]
        %v2931 = vld [vmem:[%s303 + $0x41] sm:$0xff]
        %v2932 = vld [vmem:[%s303 + $0x49] sm:$0xff]
        %v2933 = vld [vmem:[%s303 + $0x51] sm:$0xff]
        %v2934 = vld [vmem:[%s303 + $0x59] sm:$0xff]
        %v2935 = vld [vmem:[%s303 + $0x61] sm:$0xff]
        %v2936 = vld [vmem:[%s303 + $0x69] sm:$0xff]
        %v2937 = vld [vmem:[%s303 + $0x71] sm:$0xff]
        %v2938 = vld [vmem:[%s303 + $0x79] sm:$0xff]
        %v2939 = vld [vmem:[%s303 + $0x81] sm:$0xff]
        %v2940 = vld [vmem:[%s303 + $0x89] sm:$0xff]
        %v2941 = vld [vmem:[%s303 + $0x91] sm:$0xff]
        %v2942 = vld [vmem:[%s303 + $0x99] sm:$0xff]
        %v2943 = vld [vmem:[%s303 + $0xa1] sm:$0xff]
        %v2944 = vld [vmem:[%s303 + $0xa9] sm:$0xff]
        %v2945 = vld [vmem:[%s303 + $0xb1] sm:$0xff]
        %v2946 = vld [vmem:[%s303 + $0xb9] sm:$0xff]
        %v2947 = vld [vmem:[%s303 + $0xc1] sm:$0xff]
        %v2948 = vld [vmem:[%s303 + $0xc9] sm:$0xff]
        %v2949 = vld [vmem:[%s303 + $0xd1] sm:$0xff]
        %v2950 = vld [vmem:[%s303 + $0xd9] sm:$0xff]
        %v2951 = vld [vmem:[%s303 + $0xe1] sm:$0xff]
        %v2952 = vld [vmem:[%s303 + $0xe9] sm:$0xff]
        %v2953 = vld [vmem:[%s303 + $0xf1] sm:$0xff]
        %v2954 = vld [vmem:[%s303 + $0xf9] sm:$0xff]
        %v2955 = vld [vmem:[%s303 + $0x101] sm:$0xff]
        %v2956 = vld [vmem:[%s303 + $0x109] sm:$0xff]
        %v2957 = vld [vmem:[%s303 + $0x111] sm:$0xff]
        %v2958 = vld [vmem:[%s303 + $0x119] sm:$0xff]
        %v2959 = vpack.c.bf16 %v2928, %v2927
        %v2960 = vpack.c.bf16 %v2930, %v2929
        %v2961 = vpack.c.bf16 %v2932, %v2931
        %v2962 = vpack.c.bf16 %v2934, %v2933
        %v2963 = vpack.c.bf16 %v2936, %v2935
        %v2964 = vpack.c.bf16 %v2938, %v2937
        %v2965 = vpack.c.bf16 %v2940, %v2939
        %v2966 = vpack.c.bf16 %v2942, %v2941
        %v2967 = vpack.c.bf16 %v2944, %v2943
        %v2968 = vpack.c.bf16 %v2946, %v2945
        %v2969 = vpack.c.bf16 %v2948, %v2947
        %v2970 = vpack.c.bf16 %v2950, %v2949
        %v2971 = vpack.c.bf16 %v2952, %v2951
        %v2972 = vpack.c.bf16 %v2954, %v2953
        %v2973 = vpack.c.bf16 %v2956, %v2955
        %v2974 = vpack.c.bf16 %v2958, %v2957
        %s2975 = scalar_lea.vmem %s1, 448
        %v2976 = vld [vmem:[%s2975] sm:$0xf]
        %v2977 = vld [vmem:[%s2975 + $0x4] sm:$0xf]
        %v2978 = vld [vmem:[%s2975 + $0x8] sm:$0xf]
        %v2979 = vld [vmem:[%s2975 + $0xc] sm:$0xf]
        %v2980 = vld [vmem:[%s2975 + $0x10] sm:$0xf]
        %v2981 = vld [vmem:[%s2975 + $0x14] sm:$0xf]
        %v2982 = vld [vmem:[%s2975 + $0x18] sm:$0xf]
        %v2983 = vld [vmem:[%s2975 + $0x1c] sm:$0xf]
        %v2984 = vld [vmem:[%s2975 + $0x20] sm:$0xf]
        %v2985 = vld [vmem:[%s2975 + $0x24] sm:$0xf]
        %v2986 = vld [vmem:[%s2975 + $0x28] sm:$0xf]
        %v2987 = vld [vmem:[%s2975 + $0x2c] sm:$0xf]
        %v2988 = vld [vmem:[%s2975 + $0x30] sm:$0xf]
        %v2989 = vld [vmem:[%s2975 + $0x34] sm:$0xf]
        %v2990 = vld [vmem:[%s2975 + $0x38] sm:$0xf]
        %v2991 = vld [vmem:[%s2975 + $0x3c] sm:$0xf]
        %v3008 = vunpack.c.l.b16 %v2976
        %v3009 = vunpack.c.l.b16 %v2977
        %v3010 = vunpack.c.l.b16 %v2978
        %v3011 = vunpack.c.l.b16 %v2979
        %v3012 = vunpack.c.l.b16 %v2980
        %v3013 = vunpack.c.l.b16 %v2981
        %v3014 = vunpack.c.l.b16 %v2982
        %v3015 = vunpack.c.l.b16 %v2983
        %v3016 = vunpack.c.l.b16 %v2984
        %v3017 = vunpack.c.l.b16 %v2985
        %v3018 = vunpack.c.l.b16 %v2986
        %v3019 = vunpack.c.l.b16 %v2987
        %v3020 = vunpack.c.l.b16 %v2988
        %v3021 = vunpack.c.l.b16 %v2989
        %v3022 = vunpack.c.l.b16 %v2990
        %v3023 = vunpack.c.l.b16 %v2991
        %v3024 = vpack.c.b16 %v3009, %v3008
        %v3025 = vpack.c.b16 %v3011, %v3010
        %v3026 = vpack.c.b16 %v3013, %v3012
        %v3027 = vpack.c.b16 %v3015, %v3014
        %v3028 = vpack.c.b16 %v3017, %v3016
        %v3029 = vpack.c.b16 %v3019, %v3018
        %v3030 = vpack.c.b16 %v3021, %v3020
        %v3031 = vpack.c.b16 %v3023, %v3022
        %3040 = vmatprep.subr.bf16.mxu0 0
        %3041 = vmatpush1.bf16.msra.mxu0 %v3024
        %3042 = vmatprep.subr.bf16.mxu0 0
        %3043 = vmatpush1.bf16.msra.mxu0 %v3025
        %3044 = vmatprep.subr.bf16.mxu0 0
        %3045 = vmatpush1.bf16.msra.mxu0 %v3026
        %3046 = vmatprep.subr.bf16.mxu0 0
        %3047 = vmatpush1.bf16.msra.mxu0 %v3027
        %3048 = vmatprep.subr.bf16.mxu0 0
        %3049 = vmatpush1.bf16.msra.mxu0 %v3028
        %3050 = vmatprep.subr.bf16.mxu0 0
        %3051 = vmatpush1.bf16.msra.mxu0 %v3029
        %3052 = vmatprep.subr.bf16.mxu0 0
        %3053 = vmatpush1.bf16.msra.mxu0 %v3030
        %3054 = vmatprep.subr.bf16.mxu0 0
        %3055 = vmatpush1.bf16.msra.mxu0 %v3031
        %3056 = vmatprep.subr.bf16.mxu0 0
        %3057 = vmatpush1.bf16.msra.mxu0 0
        %3058 = vmatprep.subr.bf16.mxu0 0
        %3059 = vmatpush1.bf16.msra.mxu0 0
        %3060 = vmatprep.subr.bf16.mxu0 0
        %3061 = vmatpush1.bf16.msra.mxu0 0
        %3062 = vmatprep.subr.bf16.mxu0 0
        %3063 = vmatpush1.bf16.msra.mxu0 0
        %3064 = vmatprep.subr.bf16.mxu0 0
        %3065 = vmatpush1.bf16.msra.mxu0 0
        %3066 = vmatprep.subr.bf16.mxu0 0
        %3067 = vmatpush1.bf16.msra.mxu0 0
        %3068 = vmatprep.subr.bf16.mxu0 0
        %3069 = vmatpush1.bf16.msra.mxu0 0
        %3070 = vmatprep.subr.bf16.mxu0 0
        %3071 = vmatpush1.bf16.msra.mxu0 0
        %3072 = vmatprep.mubr.bf16.mxu0 0
        %3073 = vmatmul.mubr.bf16.gmra.mrb[0].mxu0 %v2959
        %v3074 = vpop.f32.mrb[0].mxu0
        %v3075 = vadd.f32 0.0, %v3074
        %v3076 = vpop.f32.mrb[0].mxu0
        %v3077 = vpop.f32.mrb[0].mxu0
        %v3078 = vadd.f32 0.0, %v3077
        %v3079 = vpop.f32.mrb[0].mxu0
        %3080 = vmatprep.mubr.bf16.mxu0 0
        %3081 = vmatmul.mubr.bf16.gmra.mrb[0].mxu0 %v2960
        %v3082 = vpop.f32.mrb[0].mxu0
        %v3083 = vadd.f32 0.0, %v3082
        %v3084 = vpop.f32.mrb[0].mxu0
        %v3085 = vpop.f32.mrb[0].mxu0
        %v3086 = vadd.f32 0.0, %v3085
        %v3087 = vpop.f32.mrb[0].mxu0
        %3088 = vmatprep.mubr.bf16.mxu0 0
        %3089 = vmatmul.mubr.bf16.gmra.mrb[0].mxu0 %v2961
        %v3090 = vpop.f32.mrb[0].mxu0
        %v3091 = vadd.f32 0.0, %v3090
        %v3092 = vpop.f32.mrb[0].mxu0
        %v3093 = vpop.f32.mrb[0].mxu0
        %v3094 = vadd.f32 0.0, %v3093
        %v3095 = vpop.f32.mrb[0].mxu0
        %3096 = vmatprep.mubr.bf16.mxu0 0
        %3097 = vmatmul.mubr.bf16.gmra.mrb[0].mxu0 %v2962
        %v3098 = vpop.f32.mrb[0].mxu0
        %v3099 = vadd.f32 0.0, %v3098
        %v3100 = vpop.f32.mrb[0].mxu0
        %v3101 = vpop.f32.mrb[0].mxu0
        %v3102 = vadd.f32 0.0, %v3101
        %v3103 = vpop.f32.mrb[0].mxu0
        %3104 = vmatprep.mubr.bf16.mxu0 0
        %3105 = vmatmul.mubr.bf16.gmra.mrb[0].mxu0 %v2963
        %v3106 = vpop.f32.mrb[0].mxu0
        %v3107 = vadd.f32 0.0, %v3106
        %v3108 = vpop.f32.mrb[0].mxu0
        %v3109 = vpop.f32.mrb[0].mxu0
        %v3110 = vadd.f32 0.0, %v3109
        %v3111 = vpop.f32.mrb[0].mxu0
        %3112 = vmatprep.mubr.bf16.mxu0 0
        %3113 = vmatmul.mubr.bf16.gmra.mrb[0].mxu0 %v2964
        %v3114 = vpop.f32.mrb[0].mxu0
        %v3115 = vadd.f32 0.0, %v3114
        %v3116 = vpop.f32.mrb[0].mxu0
        %v3117 = vpop.f32.mrb[0].mxu0
        %v3118 = vadd.f32 0.0, %v3117
        %v3119 = vpop.f32.mrb[0].mxu0
        %3120 = vmatprep.mubr.bf16.mxu0 0
        %3121 = vmatmul.mubr.bf16.gmra.mrb[0].mxu0 %v2965
        %v3122 = vpop.f32.mrb[0].mxu0
        %v3123 = vadd.f32 0.0, %v3122
        %v3124 = vpop.f32.mrb[0].mxu0
        %v3125 = vpop.f32.mrb[0].mxu0
        %v3126 = vadd.f32 0.0, %v3125
        %v3127 = vpop.f32.mrb[0].mxu0
        %3128 = vmatprep.mubr.bf16.mxu0 0
        %3129 = vmatmul.mubr.bf16.gmra.mrb[0].mxu0 %v2966
        %v3130 = vpop.f32.mrb[0].mxu0
        %v3131 = vadd.f32 0.0, %v3130
        %v3132 = vpop.f32.mrb[0].mxu0
        %v3133 = vpop.f32.mrb[0].mxu0
        %v3134 = vadd.f32 0.0, %v3133
        %v3135 = vpop.f32.mrb[0].mxu0
        %3136 = vmatprep.mubr.bf16.mxu0 0
        %3137 = vmatmul.mubr.bf16.gmra.mrb[0].mxu0 %v2967
        %v3138 = vpop.f32.mrb[0].mxu0
        %v3139 = vadd.f32 0.0, %v3138
        %v3140 = vpop.f32.mrb[0].mxu0
        %v3141 = vpop.f32.mrb[0].mxu0
        %v3142 = vadd.f32 0.0, %v3141
        %v3143 = vpop.f32.mrb[0].mxu0
        %3144 = vmatprep.mubr.bf16.mxu0 0
        %3145 = vmatmul.mubr.bf16.gmra.mrb[0].mxu0 %v2968
        %v3146 = vpop.f32.mrb[0].mxu0
        %v3147 = vadd.f32 0.0, %v3146
        %v3148 = vpop.f32.mrb[0].mxu0
        %v3149 = vpop.f32.mrb[0].mxu0
        %v3150 = vadd.f32 0.0, %v3149
        %v3151 = vpop.f32.mrb[0].mxu0
        %3152 = vmatprep.mubr.bf16.mxu0 0
        %3153 = vmatmul.mubr.bf16.gmra.mrb[0].mxu0 %v2969
        %v3154 = vpop.f32.mrb[0].mxu0
        %v3155 = vadd.f32 0.0, %v3154
        %v3156 = vpop.f32.mrb[0].mxu0
        %v3157 = vpop.f32.mrb[0].mxu0
        %v3158 = vadd.f32 0.0, %v3157
        %v3159 = vpop.f32.mrb[0].mxu0
        %3160 = vmatprep.mubr.bf16.mxu0 0
        %3161 = vmatmul.mubr.bf16.gmra.mrb[0].mxu0 %v2970
        %v3162 = vpop.f32.mrb[0].mxu0
        %v3163 = vadd.f32 0.0, %v3162
        %v3164 = vpop.f32.mrb[0].mxu0
        %v3165 = vpop.f32.mrb[0].mxu0
        %v3166 = vadd.f32 0.0, %v3165
        %v3167 = vpop.f32.mrb[0].mxu0
        %3168 = vmatprep.mubr.bf16.mxu0 0
        %3169 = vmatmul.mubr.bf16.gmra.mrb[0].mxu0 %v2971
        %v3170 = vpop.f32.mrb[0].mxu0
        %v3171 = vadd.f32 0.0, %v3170
        %v3172 = vpop.f32.mrb[0].mxu0
        %v3173 = vpop.f32.mrb[0].mxu0
        %v3174 = vadd.f32 0.0, %v3173
        %v3175 = vpop.f32.mrb[0].mxu0
        %3176 = vmatprep.mubr.bf16.mxu0 0
        %3177 = vmatmul.mubr.bf16.gmra.mrb[0].mxu0 %v2972
        %v3178 = vpop.f32.mrb[0].mxu0
        %v3179 = vadd.f32 0.0, %v3178
        %v3180 = vpop.f32.mrb[0].mxu0
        %v3181 = vpop.f32.mrb[0].mxu0
        %v3182 = vadd.f32 0.0, %v3181
        %v3183 = vpop.f32.mrb[0].mxu0
        %3184 = vmatprep.mubr.bf16.mxu0 0
        %3185 = vmatmul.mubr.bf16.gmra.mrb[0].mxu0 %v2973
        %v3186 = vpop.f32.mrb[0].mxu0
        %v3187 = vadd.f32 0.0, %v3186
        %v3188 = vpop.f32.mrb[0].mxu0
        %v3189 = vpop.f32.mrb[0].mxu0
        %v3190 = vadd.f32 0.0, %v3189
        %v3191 = vpop.f32.mrb[0].mxu0
        %3192 = vmatprep.mubr.bf16.mxu0 0
        %3193 = vmatmul.mubr.bf16.gmra.mrb[0].mxu0 %v2974
        %v3194 = vpop.f32.mrb[0].mxu0
        %v3195 = vadd.f32 0.0, %v3194
        %v3196 = vpop.f32.mrb[0].mxu0
        %v3197 = vpop.f32.mrb[0].mxu0
        %v3198 = vadd.f32 0.0, %v3197
        %v3199 = vpop.f32.mrb[0].mxu0
        %3200 = vdwg.mxu0
        %v3201 = vadd.f32 %v2895, %v3075
        %v3202 = vadd.f32 %v2896, %v3078
        %v3203 = vadd.f32 %v2897, %v3083
        %v3204 = vadd.f32 %v2898, %v3086
        %v3205 = vadd.f32 %v2899, %v3091
        %v3206 = vadd.f32 %v2900, %v3094
        %v3207 = vadd.f32 %v2901, %v3099
        %v3208 = vadd.f32 %v2902, %v3102
        %v3209 = vadd.f32 %v2903, %v3107
        %v3210 = vadd.f32 %v2904, %v3110
        %v3211 = vadd.f32 %v2905, %v3115
        %v3212 = vadd.f32 %v2906, %v3118
        %v3213 = vadd.f32 %v2907, %v3123
        %v3214 = vadd.f32 %v2908, %v3126
        %v3215 = vadd.f32 %v2909, %v3131
        %v3216 = vadd.f32 %v2910, %v3134
        %v3217 = vadd.f32 %v2911, %v3139
        %v3218 = vadd.f32 %v2912, %v3142
        %v3219 = vadd.f32 %v2913, %v3147
        %v3220 = vadd.f32 %v2914, %v3150
        %v3221 = vadd.f32 %v2915, %v3155
        %v3222 = vadd.f32 %v2916, %v3158
        %v3223 = vadd.f32 %v2917, %v3163
        %v3224 = vadd.f32 %v2918, %v3166
        %v3225 = vadd.f32 %v2919, %v3171
        %v3226 = vadd.f32 %v2920, %v3174
        %v3227 = vadd.f32 %v2921, %v3179
        %v3228 = vadd.f32 %v2922, %v3182
        %v3229 = vadd.f32 %v2923, %v3187
        %v3230 = vadd.f32 %v2924, %v3190
        %v3231 = vadd.f32 %v2925, %v3195
        %v3232 = vadd.f32 %v2926, %v3198
        %v3233 = vld [vmem:[%s303 + $0x22] sm:$0xff]
        %v3234 = vld [vmem:[%s303 + $0x2a] sm:$0xff]
        %v3235 = vld [vmem:[%s303 + $0x32] sm:$0xff]
        %v3236 = vld [vmem:[%s303 + $0x3a] sm:$0xff]
        %v3237 = vld [vmem:[%s303 + $0x42] sm:$0xff]
        %v3238 = vld [vmem:[%s303 + $0x4a] sm:$0xff]
        %v3239 = vld [vmem:[%s303 + $0x52] sm:$0xff]
        %v3240 = vld [vmem:[%s303 + $0x5a] sm:$0xff]
        %v3241 = vld [vmem:[%s303 + $0x62] sm:$0xff]
        %v3242 = vld [vmem:[%s303 + $0x6a] sm:$0xff]
        %v3243 = vld [vmem:[%s303 + $0x72] sm:$0xff]
        %v3244 = vld [vmem:[%s303 + $0x7a] sm:$0xff]
        %v3245 = vld [vmem:[%s303 + $0x82] sm:$0xff]
        %v3246 = vld [vmem:[%s303 + $0x8a] sm:$0xff]
        %v3247 = vld [vmem:[%s303 + $0x92] sm:$0xff]
        %v3248 = vld [vmem:[%s303 + $0x9a] sm:$0xff]
        %v3249 = vld [vmem:[%s303 + $0xa2] sm:$0xff]
        %v3250 = vld [vmem:[%s303 + $0xaa] sm:$0xff]
        %v3251 = vld [vmem:[%s303 + $0xb2] sm:$0xff]
        %v3252 = vld [vmem:[%s303 + $0xba] sm:$0xff]
        %v3253 = vld [vmem:[%s303 + $0xc2] sm:$0xff]
        %v3254 = vld [vmem:[%s303 + $0xca] sm:$0xff]
        %v3255 = vld [vmem:[%s303 + $0xd2] sm:$0xff]
        %v3256 = vld [vmem:[%s303 + $0xda] sm:$0xff]
        %v3257 = vld [vmem:[%s303 + $0xe2] sm:$0xff]
        %v3258 = vld [vmem:[%s303 + $0xea] sm:$0xff]
        %v3259 = vld [vmem:[%s303 + $0xf2] sm:$0xff]
        %v3260 = vld [vmem:[%s303 + $0xfa] sm:$0xff]
        %v3261 = vld [vmem:[%s303 + $0x102] sm:$0xff]
        %v3262 = vld [vmem:[%s303 + $0x10a] sm:$0xff]
        %v3263 = vld [vmem:[%s303 + $0x112] sm:$0xff]
        %v3264 = vld [vmem:[%s303 + $0x11a] sm:$0xff]
        %v3265 = vmul.f32 %v3233, %v1144
        %v3266 = vmul.f32 %v3234, %v1149
        %v3267 = vmul.f32 %v3235, %v1154
        %v3268 = vmul.f32 %v3236, %v1159
        %v3269 = vmul.f32 %v3237, %v1164
        %v3270 = vmul.f32 %v3238, %v1169
        %v3271 = vmul.f32 %v3239, %v1174
        %v3272 = vmul.f32 %v3240, %v1179
        %v3273 = vmul.f32 %v3241, %v1184
        %v3274 = vmul.f32 %v3242, %v1189
        %v3275 = vmul.f32 %v3243, %v1194
        %v3276 = vmul.f32 %v3244, %v1199
        %v3277 = vmul.f32 %v3245, %v1204
        %v3278 = vmul.f32 %v3246, %v1209
        %v3279 = vmul.f32 %v3247, %v1214
        %v3280 = vmul.f32 %v3248, %v1219
        %v3281 = vmul.f32 %v3249, %v1224
        %v3282 = vmul.f32 %v3250, %v1229
        %v3283 = vmul.f32 %v3251, %v1234
        %v3284 = vmul.f32 %v3252, %v1239
        %v3285 = vmul.f32 %v3253, %v1244
        %v3286 = vmul.f32 %v3254, %v1249
        %v3287 = vmul.f32 %v3255, %v1254
        %v3288 = vmul.f32 %v3256, %v1259
        %v3289 = vmul.f32 %v3257, %v1264
        %v3290 = vmul.f32 %v3258, %v1269
        %v3291 = vmul.f32 %v3259, %v1274
        %v3292 = vmul.f32 %v3260, %v1279
        %v3293 = vmul.f32 %v3261, %v1284
        %v3294 = vmul.f32 %v3262, %v1289
        %v3295 = vmul.f32 %v3263, %v1294
        %v3296 = vmul.f32 %v3264, %v1299
        %v3297 = vpack.c.bf16 %v3266, %v3265
        %v3298 = vpack.c.bf16 %v3268, %v3267
        %v3299 = vpack.c.bf16 %v3270, %v3269
        %v3300 = vpack.c.bf16 %v3272, %v3271
        %v3301 = vpack.c.bf16 %v3274, %v3273
        %v3302 = vpack.c.bf16 %v3276, %v3275
        %v3303 = vpack.c.bf16 %v3278, %v3277
        %v3304 = vpack.c.bf16 %v3280, %v3279
        %v3305 = vpack.c.bf16 %v3282, %v3281
        %v3306 = vpack.c.bf16 %v3284, %v3283
        %v3307 = vpack.c.bf16 %v3286, %v3285
        %v3308 = vpack.c.bf16 %v3288, %v3287
        %v3309 = vpack.c.bf16 %v3290, %v3289
        %v3310 = vpack.c.bf16 %v3292, %v3291
        %v3311 = vpack.c.bf16 %v3294, %v3293
        %v3312 = vpack.c.bf16 %v3296, %v3295
        %s3313 = scalar_lea.vmem %s1, 512
        %v3314 = vld [vmem:[%s3313] sm:$0xf]
        %v3315 = vld [vmem:[%s3313 + $0x4] sm:$0xf]
        %v3316 = vld [vmem:[%s3313 + $0x8] sm:$0xf]
        %v3317 = vld [vmem:[%s3313 + $0xc] sm:$0xf]
        %v3318 = vld [vmem:[%s3313 + $0x10] sm:$0xf]
        %v3319 = vld [vmem:[%s3313 + $0x14] sm:$0xf]
        %v3320 = vld [vmem:[%s3313 + $0x18] sm:$0xf]
        %v3321 = vld [vmem:[%s3313 + $0x1c] sm:$0xf]
        %v3322 = vld [vmem:[%s3313 + $0x20] sm:$0xf]
        %v3323 = vld [vmem:[%s3313 + $0x24] sm:$0xf]
        %v3324 = vld [vmem:[%s3313 + $0x28] sm:$0xf]
        %v3325 = vld [vmem:[%s3313 + $0x2c] sm:$0xf]
        %v3326 = vld [vmem:[%s3313 + $0x30] sm:$0xf]
        %v3327 = vld [vmem:[%s3313 + $0x34] sm:$0xf]
        %v3328 = vld [vmem:[%s3313 + $0x38] sm:$0xf]
        %v3329 = vld [vmem:[%s3313 + $0x3c] sm:$0xf]
        %v3346 = vunpack.c.l.b16 %v3314
        %v3347 = vunpack.c.l.b16 %v3315
        %v3348 = vunpack.c.l.b16 %v3316
        %v3349 = vunpack.c.l.b16 %v3317
        %v3350 = vunpack.c.l.b16 %v3318
        %v3351 = vunpack.c.l.b16 %v3319
        %v3352 = vunpack.c.l.b16 %v3320
        %v3353 = vunpack.c.l.b16 %v3321
        %v3354 = vunpack.c.l.b16 %v3322
        %v3355 = vunpack.c.l.b16 %v3323
        %v3356 = vunpack.c.l.b16 %v3324
        %v3357 = vunpack.c.l.b16 %v3325
        %v3358 = vunpack.c.l.b16 %v3326
        %v3359 = vunpack.c.l.b16 %v3327
        %v3360 = vunpack.c.l.b16 %v3328
        %v3361 = vunpack.c.l.b16 %v3329
        %v3362 = vpack.c.b16 %v3347, %v3346
        %v3363 = vpack.c.b16 %v3349, %v3348
        %v3364 = vpack.c.b16 %v3351, %v3350
        %v3365 = vpack.c.b16 %v3353, %v3352
        %v3366 = vpack.c.b16 %v3355, %v3354
        %v3367 = vpack.c.b16 %v3357, %v3356
        %v3368 = vpack.c.b16 %v3359, %v3358
        %v3369 = vpack.c.b16 %v3361, %v3360
        %3378 = vmatprep.subr.bf16.mxu0 0
        %3379 = vmatpush1.bf16.msra.mxu0 %v3362
        %3380 = vmatprep.subr.bf16.mxu0 0
        %3381 = vmatpush1.bf16.msra.mxu0 %v3363
        %3382 = vmatprep.subr.bf16.mxu0 0
        %3383 = vmatpush1.bf16.msra.mxu0 %v3364
        %3384 = vmatprep.subr.bf16.mxu0 0
        %3385 = vmatpush1.bf16.msra.mxu0 %v3365
        %3386 = vmatprep.subr.bf16.mxu0 0
        %3387 = vmatpush1.bf16.msra.mxu0 %v3366
        %3388 = vmatprep.subr.bf16.mxu0 0
        %3389 = vmatpush1.bf16.msra.mxu0 %v3367
        %3390 = vmatprep.subr.bf16.mxu0 0
        %3391 = vmatpush1.bf16.msra.mxu0 %v3368
        %3392 = vmatprep.subr.bf16.mxu0 0
        %3393 = vmatpush1.bf16.msra.mxu0 %v3369
        %3394 = vmatprep.subr.bf16.mxu0 0
        %3395 = vmatpush1.bf16.msra.mxu0 0
        %3396 = vmatprep.subr.bf16.mxu0 0
        %3397 = vmatpush1.bf16.msra.mxu0 0
        %3398 = vmatprep.subr.bf16.mxu0 0
        %3399 = vmatpush1.bf16.msra.mxu0 0
        %3400 = vmatprep.subr.bf16.mxu0 0
        %3401 = vmatpush1.bf16.msra.mxu0 0
        %3402 = vmatprep.subr.bf16.mxu0 0
        %3403 = vmatpush1.bf16.msra.mxu0 0
        %3404 = vmatprep.subr.bf16.mxu0 0
        %3405 = vmatpush1.bf16.msra.mxu0 0
        %3406 = vmatprep.subr.bf16.mxu0 0
        %3407 = vmatpush1.bf16.msra.mxu0 0
        %3408 = vmatprep.subr.bf16.mxu0 0
        %3409 = vmatpush1.bf16.msra.mxu0 0
        %3410 = vmatprep.mubr.bf16.mxu0 0
        %3411 = vmatmul.mubr.bf16.gmra.mrb[0].mxu0 %v3297
        %v3412 = vpop.f32.mrb[0].mxu0
        %v3413 = vadd.f32 0.0, %v3412
        %v3414 = vpop.f32.mrb[0].mxu0
        %v3415 = vpop.f32.mrb[0].mxu0
        %v3416 = vadd.f32 0.0, %v3415
        %v3417 = vpop.f32.mrb[0].mxu0
        %3418 = vmatprep.mubr.bf16.mxu0 0
        %3419 = vmatmul.mubr.bf16.gmra.mrb[0].mxu0 %v3298
        %v3420 = vpop.f32.mrb[0].mxu0
        %v3421 = vadd.f32 0.0, %v3420
        %v3422 = vpop.f32.mrb[0].mxu0
        %v3423 = vpop.f32.mrb[0].mxu0
        %v3424 = vadd.f32 0.0, %v3423
        %v3425 = vpop.f32.mrb[0].mxu0
        %3426 = vmatprep.mubr.bf16.mxu0 0
        %3427 = vmatmul.mubr.bf16.gmra.mrb[0].mxu0 %v3299
        %v3428 = vpop.f32.mrb[0].mxu0
        %v3429 = vadd.f32 0.0, %v3428
        %v3430 = vpop.f32.mrb[0].mxu0
        %v3431 = vpop.f32.mrb[0].mxu0
        %v3432 = vadd.f32 0.0, %v3431
        %v3433 = vpop.f32.mrb[0].mxu0
        %3434 = vmatprep.mubr.bf16.mxu0 0
        %3435 = vmatmul.mubr.bf16.gmra.mrb[0].mxu0 %v3300
        %v3436 = vpop.f32.mrb[0].mxu0
        %v3437 = vadd.f32 0.0, %v3436
        %v3438 = vpop.f32.mrb[0].mxu0
        %v3439 = vpop.f32.mrb[0].mxu0
        %v3440 = vadd.f32 0.0, %v3439
        %v3441 = vpop.f32.mrb[0].mxu0
        %3442 = vmatprep.mubr.bf16.mxu0 0
        %3443 = vmatmul.mubr.bf16.gmra.mrb[0].mxu0 %v3301
        %v3444 = vpop.f32.mrb[0].mxu0
        %v3445 = vadd.f32 0.0, %v3444
        %v3446 = vpop.f32.mrb[0].mxu0
        %v3447 = vpop.f32.mrb[0].mxu0
        %v3448 = vadd.f32 0.0, %v3447
        %v3449 = vpop.f32.mrb[0].mxu0
        %3450 = vmatprep.mubr.bf16.mxu0 0
        %3451 = vmatmul.mubr.bf16.gmra.mrb[0].mxu0 %v3302
        %v3452 = vpop.f32.mrb[0].mxu0
        %v3453 = vadd.f32 0.0, %v3452
        %v3454 = vpop.f32.mrb[0].mxu0
        %v3455 = vpop.f32.mrb[0].mxu0
        %v3456 = vadd.f32 0.0, %v3455
        %v3457 = vpop.f32.mrb[0].mxu0
        %3458 = vmatprep.mubr.bf16.mxu0 0
        %3459 = vmatmul.mubr.bf16.gmra.mrb[0].mxu0 %v3303
        %v3460 = vpop.f32.mrb[0].mxu0
        %v3461 = vadd.f32 0.0, %v3460
        %v3462 = vpop.f32.mrb[0].mxu0
        %v3463 = vpop.f32.mrb[0].mxu0
        %v3464 = vadd.f32 0.0, %v3463
        %v3465 = vpop.f32.mrb[0].mxu0
        %3466 = vmatprep.mubr.bf16.mxu0 0
        %3467 = vmatmul.mubr.bf16.gmra.mrb[0].mxu0 %v3304
        %v3468 = vpop.f32.mrb[0].mxu0
        %v3469 = vadd.f32 0.0, %v3468
        %v3470 = vpop.f32.mrb[0].mxu0
        %v3471 = vpop.f32.mrb[0].mxu0
        %v3472 = vadd.f32 0.0, %v3471
        %v3473 = vpop.f32.mrb[0].mxu0
        %3474 = vmatprep.mubr.bf16.mxu0 0
        %3475 = vmatmul.mubr.bf16.gmra.mrb[0].mxu0 %v3305
        %v3476 = vpop.f32.mrb[0].mxu0
        %v3477 = vadd.f32 0.0, %v3476
        %v3478 = vpop.f32.mrb[0].mxu0
        %v3479 = vpop.f32.mrb[0].mxu0
        %v3480 = vadd.f32 0.0, %v3479
        %v3481 = vpop.f32.mrb[0].mxu0
        %3482 = vmatprep.mubr.bf16.mxu0 0
        %3483 = vmatmul.mubr.bf16.gmra.mrb[0].mxu0 %v3306
        %v3484 = vpop.f32.mrb[0].mxu0
        %v3485 = vadd.f32 0.0, %v3484
        %v3486 = vpop.f32.mrb[0].mxu0
        %v3487 = vpop.f32.mrb[0].mxu0
        %v3488 = vadd.f32 0.0, %v3487
        %v3489 = vpop.f32.mrb[0].mxu0
        %3490 = vmatprep.mubr.bf16.mxu0 0
        %3491 = vmatmul.mubr.bf16.gmra.mrb[0].mxu0 %v3307
        %v3492 = vpop.f32.mrb[0].mxu0
        %v3493 = vadd.f32 0.0, %v3492
        %v3494 = vpop.f32.mrb[0].mxu0
        %v3495 = vpop.f32.mrb[0].mxu0
        %v3496 = vadd.f32 0.0, %v3495
        %v3497 = vpop.f32.mrb[0].mxu0
        %3498 = vmatprep.mubr.bf16.mxu0 0
        %3499 = vmatmul.mubr.bf16.gmra.mrb[0].mxu0 %v3308
        %v3500 = vpop.f32.mrb[0].mxu0
        %v3501 = vadd.f32 0.0, %v3500
        %v3502 = vpop.f32.mrb[0].mxu0
        %v3503 = vpop.f32.mrb[0].mxu0
        %v3504 = vadd.f32 0.0, %v3503
        %v3505 = vpop.f32.mrb[0].mxu0
        %3506 = vmatprep.mubr.bf16.mxu0 0
        %3507 = vmatmul.mubr.bf16.gmra.mrb[0].mxu0 %v3309
        %v3508 = vpop.f32.mrb[0].mxu0
        %v3509 = vadd.f32 0.0, %v3508
        %v3510 = vpop.f32.mrb[0].mxu0
        %v3511 = vpop.f32.mrb[0].mxu0
        %v3512 = vadd.f32 0.0, %v3511
        %v3513 = vpop.f32.mrb[0].mxu0
        %3514 = vmatprep.mubr.bf16.mxu0 0
        %3515 = vmatmul.mubr.bf16.gmra.mrb[0].mxu0 %v3310
        %v3516 = vpop.f32.mrb[0].mxu0
        %v3517 = vadd.f32 0.0, %v3516
        %v3518 = vpop.f32.mrb[0].mxu0
        %v3519 = vpop.f32.mrb[0].mxu0
        %v3520 = vadd.f32 0.0, %v3519
        %v3521 = vpop.f32.mrb[0].mxu0
        %3522 = vmatprep.mubr.bf16.mxu0 0
        %3523 = vmatmul.mubr.bf16.gmra.mrb[0].mxu0 %v3311
        %v3524 = vpop.f32.mrb[0].mxu0
        %v3525 = vadd.f32 0.0, %v3524
        %v3526 = vpop.f32.mrb[0].mxu0
        %v3527 = vpop.f32.mrb[0].mxu0
        %v3528 = vadd.f32 0.0, %v3527
        %v3529 = vpop.f32.mrb[0].mxu0
        %3530 = vmatprep.mubr.bf16.mxu0 0
        %3531 = vmatmul.mubr.bf16.gmra.mrb[0].mxu0 %v3312
        %v3532 = vpop.f32.mrb[0].mxu0
        %v3533 = vadd.f32 0.0, %v3532
        %v3534 = vpop.f32.mrb[0].mxu0
        %v3535 = vpop.f32.mrb[0].mxu0
        %v3536 = vadd.f32 0.0, %v3535
        %v3537 = vpop.f32.mrb[0].mxu0
        %3538 = vdwg.mxu0
        %v3539 = vadd.f32 %v3201, %v3413
        %v3540 = vadd.f32 %v3202, %v3416
        %v3541 = vadd.f32 %v3203, %v3421
        %v3542 = vadd.f32 %v3204, %v3424
        %v3543 = vadd.f32 %v3205, %v3429
        %v3544 = vadd.f32 %v3206, %v3432
        %v3545 = vadd.f32 %v3207, %v3437
        %v3546 = vadd.f32 %v3208, %v3440
        %v3547 = vadd.f32 %v3209, %v3445
        %v3548 = vadd.f32 %v3210, %v3448
        %v3549 = vadd.f32 %v3211, %v3453
        %v3550 = vadd.f32 %v3212, %v3456
        %v3551 = vadd.f32 %v3213, %v3461
        %v3552 = vadd.f32 %v3214, %v3464
        %v3553 = vadd.f32 %v3215, %v3469
        %v3554 = vadd.f32 %v3216, %v3472
        %v3555 = vadd.f32 %v3217, %v3477
        %v3556 = vadd.f32 %v3218, %v3480
        %v3557 = vadd.f32 %v3219, %v3485
        %v3558 = vadd.f32 %v3220, %v3488
        %v3559 = vadd.f32 %v3221, %v3493
        %v3560 = vadd.f32 %v3222, %v3496
        %v3561 = vadd.f32 %v3223, %v3501
        %v3562 = vadd.f32 %v3224, %v3504
        %v3563 = vadd.f32 %v3225, %v3509
        %v3564 = vadd.f32 %v3226, %v3512
        %v3565 = vadd.f32 %v3227, %v3517
        %v3566 = vadd.f32 %v3228, %v3520
        %v3567 = vadd.f32 %v3229, %v3525
        %v3568 = vadd.f32 %v3230, %v3528
        %v3569 = vadd.f32 %v3231, %v3533
        %v3570 = vadd.f32 %v3232, %v3536
        %v3571 = vadd.f32 %v3539, %v3540
        %v3572 = vadd.f32 %v3571, %v3541
        %v3573 = vadd.f32 %v3572, %v3542
        %v3574 = vadd.f32 %v3573, %v3543
        %v3575 = vadd.f32 %v3574, %v3544
        %v3576 = vadd.f32 %v3575, %v3545
        %v3577 = vadd.f32 %v3576, %v3546
        %v3578 = vadd.f32 %v3577, %v3547
        %v3579 = vadd.f32 %v3578, %v3548
        %v3580 = vadd.f32 %v3579, %v3549
        %v3581 = vadd.f32 %v3580, %v3550
        %v3582 = vadd.f32 %v3581, %v3551
        %v3583 = vadd.f32 %v3582, %v3552
        %v3584 = vadd.f32 %v3583, %v3553
        %v3585 = vadd.f32 %v3584, %v3554
        %v3586 = vadd.f32 %v3585, %v3555
        %v3587 = vadd.f32 %v3586, %v3556
        %v3588 = vadd.f32 %v3587, %v3557
        %v3589 = vadd.f32 %v3588, %v3558
        %v3590 = vadd.f32 %v3589, %v3559
        %v3591 = vadd.f32 %v3590, %v3560
        %v3592 = vadd.f32 %v3591, %v3561
        %v3593 = vadd.f32 %v3592, %v3562
        %v3594 = vadd.f32 %v3593, %v3563
        %v3595 = vadd.f32 %v3594, %v3564
        %v3596 = vadd.f32 %v3595, %v3565
        %v3597 = vadd.f32 %v3596, %v3566
        %v3598 = vadd.f32 %v3597, %v3567
        %v3599 = vadd.f32 %v3598, %v3568
        %v3600 = vadd.f32 %v3599, %v3569
        %v3601 = vadd.f32 %v3600, %v3570
        %v3602 = vrot.slane %v3601, 4
        %v3603 = vadd.f32 %v3601, %v3602
        %v3604 = vrot.slane %v3603, 2
        %v3605 = vadd.f32 %v3603, %v3604
        %v3606 = vrot.slane %v3605, 1
        %v3607 = vadd.f32 %v3605, %v3606
        %v3608 = vrcp.pop 256.0
        %v3609 = vmul.f32 %v3607, %v3608
        %v3610 = vsub.f32 %v3539, %v3609
        %v3611 = vsub.f32 %v3540, %v3609
        %v3612 = vsub.f32 %v3541, %v3609
        %v3613 = vsub.f32 %v3542, %v3609
        %v3614 = vsub.f32 %v3543, %v3609
        %v3615 = vsub.f32 %v3544, %v3609
        %v3616 = vsub.f32 %v3545, %v3609
        %v3617 = vsub.f32 %v3546, %v3609
        %v3618 = vsub.f32 %v3547, %v3609
        %v3619 = vsub.f32 %v3548, %v3609
        %v3620 = vsub.f32 %v3549, %v3609
        %v3621 = vsub.f32 %v3550, %v3609
        %v3622 = vsub.f32 %v3551, %v3609
        %v3623 = vsub.f32 %v3552, %v3609
        %v3624 = vsub.f32 %v3553, %v3609
        %v3625 = vsub.f32 %v3554, %v3609
        %v3626 = vsub.f32 %v3555, %v3609
        %v3627 = vsub.f32 %v3556, %v3609
        %v3628 = vsub.f32 %v3557, %v3609
        %v3629 = vsub.f32 %v3558, %v3609
        %v3630 = vsub.f32 %v3559, %v3609
        %v3631 = vsub.f32 %v3560, %v3609
        %v3632 = vsub.f32 %v3561, %v3609
        %v3633 = vsub.f32 %v3562, %v3609
        %v3634 = vsub.f32 %v3563, %v3609
        %v3635 = vsub.f32 %v3564, %v3609
        %v3636 = vsub.f32 %v3565, %v3609
        %v3637 = vsub.f32 %v3566, %v3609
        %v3638 = vsub.f32 %v3567, %v3609
        %v3639 = vsub.f32 %v3568, %v3609
        %v3640 = vsub.f32 %v3569, %v3609
        %v3641 = vsub.f32 %v3570, %v3609
        %v3642 = vmul.f32 %v3610, %v3610
        %v3643 = vmul.f32 %v3611, %v3611
        %v3644 = vmul.f32 %v3612, %v3612
        %v3645 = vmul.f32 %v3613, %v3613
        %v3646 = vmul.f32 %v3614, %v3614
        %v3647 = vmul.f32 %v3615, %v3615
        %v3648 = vmul.f32 %v3616, %v3616
        %v3649 = vmul.f32 %v3617, %v3617
        %v3650 = vmul.f32 %v3618, %v3618
        %v3651 = vmul.f32 %v3619, %v3619
        %v3652 = vmul.f32 %v3620, %v3620
        %v3653 = vmul.f32 %v3621, %v3621
        %v3654 = vmul.f32 %v3622, %v3622
        %v3655 = vmul.f32 %v3623, %v3623
        %v3656 = vmul.f32 %v3624, %v3624
        %v3657 = vmul.f32 %v3625, %v3625
        %v3658 = vmul.f32 %v3626, %v3626
        %v3659 = vmul.f32 %v3627, %v3627
        %v3660 = vmul.f32 %v3628, %v3628
        %v3661 = vmul.f32 %v3629, %v3629
        %v3662 = vmul.f32 %v3630, %v3630
        %v3663 = vmul.f32 %v3631, %v3631
        %v3664 = vmul.f32 %v3632, %v3632
        %v3665 = vmul.f32 %v3633, %v3633
        %v3666 = vmul.f32 %v3634, %v3634
        %v3667 = vmul.f32 %v3635, %v3635
        %v3668 = vmul.f32 %v3636, %v3636
        %v3669 = vmul.f32 %v3637, %v3637
        %v3670 = vmul.f32 %v3638, %v3638
        %v3671 = vmul.f32 %v3639, %v3639
        %v3672 = vmul.f32 %v3640, %v3640
        %v3673 = vmul.f32 %v3641, %v3641
        %v3674 = vadd.f32 %v3642, %v3643
        %v3675 = vadd.f32 %v3674, %v3644
        %v3676 = vadd.f32 %v3675, %v3645
        %v3677 = vadd.f32 %v3676, %v3646
        %v3678 = vadd.f32 %v3677, %v3647
        %v3679 = vadd.f32 %v3678, %v3648
        %v3680 = vadd.f32 %v3679, %v3649
        %v3681 = vadd.f32 %v3680, %v3650
        %v3682 = vadd.f32 %v3681, %v3651
        %v3683 = vadd.f32 %v3682, %v3652
        %v3684 = vadd.f32 %v3683, %v3653
        %v3685 = vadd.f32 %v3684, %v3654
        %v3686 = vadd.f32 %v3685, %v3655
        %v3687 = vadd.f32 %v3686, %v3656
        %v3688 = vadd.f32 %v3687, %v3657
        %v3689 = vadd.f32 %v3688, %v3658
        %v3690 = vadd.f32 %v3689, %v3659
        %v3691 = vadd.f32 %v3690, %v3660
        %v3692 = vadd.f32 %v3691, %v3661
        %v3693 = vadd.f32 %v3692, %v3662
        %v3694 = vadd.f32 %v3693, %v3663
        %v3695 = vadd.f32 %v3694, %v3664
        %v3696 = vadd.f32 %v3695, %v3665
        %v3697 = vadd.f32 %v3696, %v3666
        %v3698 = vadd.f32 %v3697, %v3667
        %v3699 = vadd.f32 %v3698, %v3668
        %v3700 = vadd.f32 %v3699, %v3669
        %v3701 = vadd.f32 %v3700, %v3670
        %v3702 = vadd.f32 %v3701, %v3671
        %v3703 = vadd.f32 %v3702, %v3672
        %v3704 = vadd.f32 %v3703, %v3673
        %v3705 = vrot.slane %v3704, 4
        %v3706 = vadd.f32 %v3704, %v3705
        %v3707 = vrot.slane %v3706, 2
        %v3708 = vadd.f32 %v3706, %v3707
        %v3709 = vrot.slane %v3708, 1
        %v3710 = vadd.f32 %v3708, %v3709
        %v3711 = vmul.f32 %v3710, %v3608
        %v3712 = vadd.f32 %v3711, 1e-05
        %v3713 = vrsqrt.pop %v3712
        %v3714 = vmul.f32 %v3610, %v3713
        %v3715 = vmul.f32 %v3611, %v3713
        %v3716 = vmul.f32 %v3612, %v3713
        %v3717 = vmul.f32 %v3613, %v3713
        %v3718 = vmul.f32 %v3614, %v3713
        %v3719 = vmul.f32 %v3615, %v3713
        %v3720 = vmul.f32 %v3616, %v3713
        %v3721 = vmul.f32 %v3617, %v3713
        %v3722 = vmul.f32 %v3618, %v3713
        %v3723 = vmul.f32 %v3619, %v3713
        %v3724 = vmul.f32 %v3620, %v3713
        %v3725 = vmul.f32 %v3621, %v3713
        %v3726 = vmul.f32 %v3622, %v3713
        %v3727 = vmul.f32 %v3623, %v3713
        %v3728 = vmul.f32 %v3624, %v3713
        %v3729 = vmul.f32 %v3625, %v3713
        %v3730 = vmul.f32 %v3626, %v3713
        %v3731 = vmul.f32 %v3627, %v3713
        %v3732 = vmul.f32 %v3628, %v3713
        %v3733 = vmul.f32 %v3629, %v3713
        %v3734 = vmul.f32 %v3630, %v3713
        %v3735 = vmul.f32 %v3631, %v3713
        %v3736 = vmul.f32 %v3632, %v3713
        %v3737 = vmul.f32 %v3633, %v3713
        %v3738 = vmul.f32 %v3634, %v3713
        %v3739 = vmul.f32 %v3635, %v3713
        %v3740 = vmul.f32 %v3636, %v3713
        %v3741 = vmul.f32 %v3637, %v3713
        %v3742 = vmul.f32 %v3638, %v3713
        %v3743 = vmul.f32 %v3639, %v3713
        %v3744 = vmul.f32 %v3640, %v3713
        %v3745 = vmul.f32 %v3641, %v3713
        %v3746 = vld [vmem:[%s4] sm:$0x1]
        %v3748 = vlaneseq
        %v3749 = vshrl.u32 %v3748, 7
        %v3750 = vsub.s32 0, %v3749
        %v3751 = vrot.slane %v3746, %v3750
        %v3753 = vmul.f32 %v3714, %v3751
        %v3754 = vmul.f32 %v3715, %v3751
        %v3755 = vmul.f32 %v3716, %v3751
        %v3756 = vmul.f32 %v3717, %v3751
        %v3757 = vmul.f32 %v3718, %v3751
        %v3758 = vmul.f32 %v3719, %v3751
        %v3759 = vmul.f32 %v3720, %v3751
        %v3760 = vmul.f32 %v3721, %v3751
        %v3761 = vmul.f32 %v3722, %v3751
        %v3762 = vmul.f32 %v3723, %v3751
        %v3763 = vmul.f32 %v3724, %v3751
        %v3764 = vmul.f32 %v3725, %v3751
        %v3765 = vmul.f32 %v3726, %v3751
        %v3766 = vmul.f32 %v3727, %v3751
        %v3767 = vmul.f32 %v3728, %v3751
        %v3768 = vmul.f32 %v3729, %v3751
        %v3769 = vmul.f32 %v3730, %v3751
        %v3770 = vmul.f32 %v3731, %v3751
        %v3771 = vmul.f32 %v3732, %v3751
        %v3772 = vmul.f32 %v3733, %v3751
        %v3773 = vmul.f32 %v3734, %v3751
        %v3774 = vmul.f32 %v3735, %v3751
        %v3775 = vmul.f32 %v3736, %v3751
        %v3776 = vmul.f32 %v3737, %v3751
        %v3777 = vmul.f32 %v3738, %v3751
        %v3778 = vmul.f32 %v3739, %v3751
        %v3779 = vmul.f32 %v3740, %v3751
        %v3780 = vmul.f32 %v3741, %v3751
        %v3781 = vmul.f32 %v3742, %v3751
        %v3782 = vmul.f32 %v3743, %v3751
        %v3783 = vmul.f32 %v3744, %v3751
        %v3784 = vmul.f32 %v3745, %v3751
        %v3785 = vld [vmem:[%s5] sm:$0x1]
        %v3787 = vlaneseq
        %v3788 = vshrl.u32 %v3787, 7
        %v3789 = vsub.s32 0, %v3788
        %v3790 = vrot.slane %v3785, %v3789
        %v3792 = vadd.f32 %v3753, %v3790
        %v3793 = vadd.f32 %v3754, %v3790
        %v3794 = vadd.f32 %v3755, %v3790
        %v3795 = vadd.f32 %v3756, %v3790
        %v3796 = vadd.f32 %v3757, %v3790
        %v3797 = vadd.f32 %v3758, %v3790
        %v3798 = vadd.f32 %v3759, %v3790
        %v3799 = vadd.f32 %v3760, %v3790
        %v3800 = vadd.f32 %v3761, %v3790
        %v3801 = vadd.f32 %v3762, %v3790
        %v3802 = vadd.f32 %v3763, %v3790
        %v3803 = vadd.f32 %v3764, %v3790
        %v3804 = vadd.f32 %v3765, %v3790
        %v3805 = vadd.f32 %v3766, %v3790
        %v3806 = vadd.f32 %v3767, %v3790
        %v3807 = vadd.f32 %v3768, %v3790
        %v3808 = vadd.f32 %v3769, %v3790
        %v3809 = vadd.f32 %v3770, %v3790
        %v3810 = vadd.f32 %v3771, %v3790
        %v3811 = vadd.f32 %v3772, %v3790
        %v3812 = vadd.f32 %v3773, %v3790
        %v3813 = vadd.f32 %v3774, %v3790
        %v3814 = vadd.f32 %v3775, %v3790
        %v3815 = vadd.f32 %v3776, %v3790
        %v3816 = vadd.f32 %v3777, %v3790
        %v3817 = vadd.f32 %v3778, %v3790
        %v3818 = vadd.f32 %v3779, %v3790
        %v3819 = vadd.f32 %v3780, %v3790
        %v3820 = vadd.f32 %v3781, %v3790
        %v3821 = vadd.f32 %v3782, %v3790
        %v3822 = vadd.f32 %v3783, %v3790
        %v3823 = vadd.f32 %v3784, %v3790
        %v3824 = vmax.f32 %v3792, 0.0
        %v3825 = vmax.f32 %v3793, 0.0
        %v3826 = vmax.f32 %v3794, 0.0
        %v3827 = vmax.f32 %v3795, 0.0
        %v3828 = vmax.f32 %v3796, 0.0
        %v3829 = vmax.f32 %v3797, 0.0
        %v3830 = vmax.f32 %v3798, 0.0
        %v3831 = vmax.f32 %v3799, 0.0
        %v3832 = vmax.f32 %v3800, 0.0
        %v3833 = vmax.f32 %v3801, 0.0
        %v3834 = vmax.f32 %v3802, 0.0
        %v3835 = vmax.f32 %v3803, 0.0
        %v3836 = vmax.f32 %v3804, 0.0
        %v3837 = vmax.f32 %v3805, 0.0
        %v3838 = vmax.f32 %v3806, 0.0
        %v3839 = vmax.f32 %v3807, 0.0
        %v3840 = vmax.f32 %v3808, 0.0
        %v3841 = vmax.f32 %v3809, 0.0
        %v3842 = vmax.f32 %v3810, 0.0
        %v3843 = vmax.f32 %v3811, 0.0
        %v3844 = vmax.f32 %v3812, 0.0
        %v3845 = vmax.f32 %v3813, 0.0
        %v3846 = vmax.f32 %v3814, 0.0
        %v3847 = vmax.f32 %v3815, 0.0
        %v3848 = vmax.f32 %v3816, 0.0
        %v3849 = vmax.f32 %v3817, 0.0
        %v3850 = vmax.f32 %v3818, 0.0
        %v3851 = vmax.f32 %v3819, 0.0
        %v3852 = vmax.f32 %v3820, 0.0
        %v3853 = vmax.f32 %v3821, 0.0
        %v3854 = vmax.f32 %v3822, 0.0
        %v3855 = vmax.f32 %v3823, 0.0
        %3856 = vst [vmem:[#allocation2] sm:$0xff] 0.0
        %3857 = vst [vmem:[#allocation2 + $0x8] sm:$0xff] 0.0
        %3858 = vst [vmem:[#allocation2 + $0x10] sm:$0x1] 0.0
        %3859 = vst [vmem:[#allocation2 + $0x111] sm:$0xff] 0.0
        %3860 = vst [vmem:[#allocation2 + $0x119] sm:$0xff] 0.0
        %3861 = vst [vmem:[#allocation2 + $0x121] sm:$0x1] 0.0
        %3862 = vst [vmem:[#allocation2 + $0x11] sm:$0xff] %v3824
        %3863 = vst [vmem:[#allocation2 + $0x19] sm:$0xff] %v3825
        %3864 = vst [vmem:[#allocation2 + $0x21] sm:$0xff] %v3826
        %3865 = vst [vmem:[#allocation2 + $0x29] sm:$0xff] %v3827
        %3866 = vst [vmem:[#allocation2 + $0x31] sm:$0xff] %v3828
        %3867 = vst [vmem:[#allocation2 + $0x39] sm:$0xff] %v3829
        %3868 = vst [vmem:[#allocation2 + $0x41] sm:$0xff] %v3830
        %3869 = vst [vmem:[#allocation2 + $0x49] sm:$0xff] %v3831
        %3870 = vst [vmem:[#allocation2 + $0x51] sm:$0xff] %v3832
        %3871 = vst [vmem:[#allocation2 + $0x59] sm:$0xff] %v3833
        %3872 = vst [vmem:[#allocation2 + $0x61] sm:$0xff] %v3834
        %3873 = vst [vmem:[#allocation2 + $0x69] sm:$0xff] %v3835
        %3874 = vst [vmem:[#allocation2 + $0x71] sm:$0xff] %v3836
        %3875 = vst [vmem:[#allocation2 + $0x79] sm:$0xff] %v3837
        %3876 = vst [vmem:[#allocation2 + $0x81] sm:$0xff] %v3838
        %3877 = vst [vmem:[#allocation2 + $0x89] sm:$0xff] %v3839
        %3878 = vst [vmem:[#allocation2 + $0x91] sm:$0xff] %v3840
        %3879 = vst [vmem:[#allocation2 + $0x99] sm:$0xff] %v3841
        %3880 = vst [vmem:[#allocation2 + $0xa1] sm:$0xff] %v3842
        %3881 = vst [vmem:[#allocation2 + $0xa9] sm:$0xff] %v3843
        %3882 = vst [vmem:[#allocation2 + $0xb1] sm:$0xff] %v3844
        %3883 = vst [vmem:[#allocation2 + $0xb9] sm:$0xff] %v3845
        %3884 = vst [vmem:[#allocation2 + $0xc1] sm:$0xff] %v3846
        %3885 = vst [vmem:[#allocation2 + $0xc9] sm:$0xff] %v3847
        %3886 = vst [vmem:[#allocation2 + $0xd1] sm:$0xff] %v3848
        %3887 = vst [vmem:[#allocation2 + $0xd9] sm:$0xff] %v3849
        %3888 = vst [vmem:[#allocation2 + $0xe1] sm:$0xff] %v3850
        %3889 = vst [vmem:[#allocation2 + $0xe9] sm:$0xff] %v3851
        %3890 = vst [vmem:[#allocation2 + $0xf1] sm:$0xff] %v3852
        %3891 = vst [vmem:[#allocation2 + $0xf9] sm:$0xff] %v3853
        %3892 = vst [vmem:[#allocation2 + $0x101] sm:$0xff] %v3854
        %3893 = vst [vmem:[#allocation2 + $0x109] sm:$0xff] %v3855
        %v3894 = vld [vmem:[#allocation2] sm:$0xff]
        %v3895 = vld [vmem:[#allocation2 + $0x8] sm:$0xff]
        %v3896 = vld [vmem:[#allocation2 + $0x10] sm:$0xff]
        %v3897 = vld [vmem:[#allocation2 + $0x18] sm:$0xff]
        %v3898 = vld [vmem:[#allocation2 + $0x20] sm:$0xff]
        %v3899 = vld [vmem:[#allocation2 + $0x28] sm:$0xff]
        %v3900 = vld [vmem:[#allocation2 + $0x30] sm:$0xff]
        %v3901 = vld [vmem:[#allocation2 + $0x38] sm:$0xff]
        %v3902 = vld [vmem:[#allocation2 + $0x40] sm:$0xff]
        %v3903 = vld [vmem:[#allocation2 + $0x48] sm:$0xff]
        %v3904 = vld [vmem:[#allocation2 + $0x50] sm:$0xff]
        %v3905 = vld [vmem:[#allocation2 + $0x58] sm:$0xff]
        %v3906 = vld [vmem:[#allocation2 + $0x60] sm:$0xff]
        %v3907 = vld [vmem:[#allocation2 + $0x68] sm:$0xff]
        %v3908 = vld [vmem:[#allocation2 + $0x70] sm:$0xff]
        %v3909 = vld [vmem:[#allocation2 + $0x78] sm:$0xff]
        %v3910 = vld [vmem:[#allocation2 + $0x80] sm:$0xff]
        %v3911 = vld [vmem:[#allocation2 + $0x88] sm:$0xff]
        %v3912 = vld [vmem:[#allocation2 + $0x90] sm:$0xff]
        %v3913 = vld [vmem:[#allocation2 + $0x98] sm:$0xff]
        %v3914 = vld [vmem:[#allocation2 + $0xa0] sm:$0xff]
        %v3915 = vld [vmem:[#allocation2 + $0xa8] sm:$0xff]
        %v3916 = vld [vmem:[#allocation2 + $0xb0] sm:$0xff]
        %v3917 = vld [vmem:[#allocation2 + $0xb8] sm:$0xff]
        %v3918 = vld [vmem:[#allocation2 + $0xc0] sm:$0xff]
        %v3919 = vld [vmem:[#allocation2 + $0xc8] sm:$0xff]
        %v3920 = vld [vmem:[#allocation2 + $0xd0] sm:$0xff]
        %v3921 = vld [vmem:[#allocation2 + $0xd8] sm:$0xff]
        %v3922 = vld [vmem:[#allocation2 + $0xe0] sm:$0xff]
        %v3923 = vld [vmem:[#allocation2 + $0xe8] sm:$0xff]
        %v3924 = vld [vmem:[#allocation2 + $0xf0] sm:$0xff]
        %v3925 = vld [vmem:[#allocation2 + $0xf8] sm:$0xff]
        %v3926 = vld [vmem:[%s3] sm:$0xff]
        %v3927 = vld [vmem:[%s3 + $0x8] sm:$0xff]
        %v3928 = vld [vmem:[%s3 + $0x10] sm:$0xff]
        %v3929 = vld [vmem:[%s3 + $0x18] sm:$0xff]
        %v3930 = vld [vmem:[%s3 + $0x20] sm:$0xff]
        %v3931 = vld [vmem:[%s3 + $0x28] sm:$0xff]
        %v3932 = vld [vmem:[%s3 + $0x30] sm:$0xff]
        %v3933 = vld [vmem:[%s3 + $0x38] sm:$0xff]
        %v3934 = vld [vmem:[%s3 + $0x40] sm:$0xff]
        %v3935 = vld [vmem:[%s3 + $0x48] sm:$0xff]
        %v3936 = vld [vmem:[%s3 + $0x50] sm:$0xff]
        %v3937 = vld [vmem:[%s3 + $0x58] sm:$0xff]
        %v3938 = vld [vmem:[%s3 + $0x60] sm:$0xff]
        %v3939 = vld [vmem:[%s3 + $0x68] sm:$0xff]
        %v3940 = vld [vmem:[%s3 + $0x70] sm:$0xff]
        %v3941 = vld [vmem:[%s3 + $0x78] sm:$0xff]
        %v3942 = vld [vmem:[%s3 + $0x80] sm:$0xff]
        %v3943 = vld [vmem:[%s3 + $0x88] sm:$0xff]
        %v3944 = vld [vmem:[%s3 + $0x90] sm:$0xff]
        %v3945 = vld [vmem:[%s3 + $0x98] sm:$0xff]
        %v3946 = vld [vmem:[%s3 + $0xa0] sm:$0xff]
        %v3947 = vld [vmem:[%s3 + $0xa8] sm:$0xff]
        %v3948 = vld [vmem:[%s3 + $0xb0] sm:$0xff]
        %v3949 = vld [vmem:[%s3 + $0xb8] sm:$0xff]
        %v3950 = vld [vmem:[%s3 + $0xc0] sm:$0xff]
        %v3951 = vld [vmem:[%s3 + $0xc8] sm:$0xff]
        %v3952 = vld [vmem:[%s3 + $0xd0] sm:$0xff]
        %v3953 = vld [vmem:[%s3 + $0xd8] sm:$0xff]
        %v3954 = vld [vmem:[%s3 + $0xe0] sm:$0xff]
        %v3955 = vld [vmem:[%s3 + $0xe8] sm:$0xff]
        %v3956 = vld [vmem:[%s3 + $0xf0] sm:$0xff]
        %v3957 = vld [vmem:[%s3 + $0xf8] sm:$0xff]
        %3959 = vset.pattern.permute.xlu0 0
        %3960 = vperm.xlu0 %3959, %v3926
        %v3961 = vpop.permute.xlu0 %3960
        %3964 = vset.pattern.permute.xlu0 0
        %3965 = vperm.xlu0 %3964, %v3927
        %v3966 = vpop.permute.xlu0 %3965
        %3969 = vset.pattern.permute.xlu0 0
        %3970 = vperm.xlu0 %3969, %v3928
        %v3971 = vpop.permute.xlu0 %3970
        %3974 = vset.pattern.permute.xlu0 0
        %3975 = vperm.xlu0 %3974, %v3929
        %v3976 = vpop.permute.xlu0 %3975
        %3979 = vset.pattern.permute.xlu0 0
        %3980 = vperm.xlu0 %3979, %v3930
        %v3981 = vpop.permute.xlu0 %3980
        %3984 = vset.pattern.permute.xlu0 0
        %3985 = vperm.xlu0 %3984, %v3931
        %v3986 = vpop.permute.xlu0 %3985
        %3989 = vset.pattern.permute.xlu0 0
        %3990 = vperm.xlu0 %3989, %v3932
        %v3991 = vpop.permute.xlu0 %3990
        %3994 = vset.pattern.permute.xlu0 0
        %3995 = vperm.xlu0 %3994, %v3933
        %v3996 = vpop.permute.xlu0 %3995
        %3999 = vset.pattern.permute.xlu0 0
        %4000 = vperm.xlu0 %3999, %v3934
        %v4001 = vpop.permute.xlu0 %4000
        %4004 = vset.pattern.permute.xlu0 0
        %4005 = vperm.xlu0 %4004, %v3935
        %v4006 = vpop.permute.xlu0 %4005
        %4009 = vset.pattern.permute.xlu0 0
        %4010 = vperm.xlu0 %4009, %v3936
        %v4011 = vpop.permute.xlu0 %4010
        %4014 = vset.pattern.permute.xlu0 0
        %4015 = vperm.xlu0 %4014, %v3937
        %v4016 = vpop.permute.xlu0 %4015
        %4019 = vset.pattern.permute.xlu0 0
        %4020 = vperm.xlu0 %4019, %v3938
        %v4021 = vpop.permute.xlu0 %4020
        %4024 = vset.pattern.permute.xlu0 0
        %4025 = vperm.xlu0 %4024, %v3939
        %v4026 = vpop.permute.xlu0 %4025
        %4029 = vset.pattern.permute.xlu0 0
        %4030 = vperm.xlu0 %4029, %v3940
        %v4031 = vpop.permute.xlu0 %4030
        %4034 = vset.pattern.permute.xlu0 0
        %4035 = vperm.xlu0 %4034, %v3941
        %v4036 = vpop.permute.xlu0 %4035
        %4039 = vset.pattern.permute.xlu0 0
        %4040 = vperm.xlu0 %4039, %v3942
        %v4041 = vpop.permute.xlu0 %4040
        %4044 = vset.pattern.permute.xlu0 0
        %4045 = vperm.xlu0 %4044, %v3943
        %v4046 = vpop.permute.xlu0 %4045
        %4049 = vset.pattern.permute.xlu0 0
        %4050 = vperm.xlu0 %4049, %v3944
        %v4051 = vpop.permute.xlu0 %4050
        %4054 = vset.pattern.permute.xlu0 0
        %4055 = vperm.xlu0 %4054, %v3945
        %v4056 = vpop.permute.xlu0 %4055
        %4059 = vset.pattern.permute.xlu0 0
        %4060 = vperm.xlu0 %4059, %v3946
        %v4061 = vpop.permute.xlu0 %4060
        %4064 = vset.pattern.permute.xlu0 0
        %4065 = vperm.xlu0 %4064, %v3947
        %v4066 = vpop.permute.xlu0 %4065
        %4069 = vset.pattern.permute.xlu0 0
        %4070 = vperm.xlu0 %4069, %v3948
        %v4071 = vpop.permute.xlu0 %4070
        %4074 = vset.pattern.permute.xlu0 0
        %4075 = vperm.xlu0 %4074, %v3949
        %v4076 = vpop.permute.xlu0 %4075
        %4079 = vset.pattern.permute.xlu0 0
        %4080 = vperm.xlu0 %4079, %v3950
        %v4081 = vpop.permute.xlu0 %4080
        %4084 = vset.pattern.permute.xlu0 0
        %4085 = vperm.xlu0 %4084, %v3951
        %v4086 = vpop.permute.xlu0 %4085
        %4089 = vset.pattern.permute.xlu0 0
        %4090 = vperm.xlu0 %4089, %v3952
        %v4091 = vpop.permute.xlu0 %4090
        %4094 = vset.pattern.permute.xlu0 0
        %4095 = vperm.xlu0 %4094, %v3953
        %v4096 = vpop.permute.xlu0 %4095
        %4099 = vset.pattern.permute.xlu0 0
        %4100 = vperm.xlu0 %4099, %v3954
        %v4101 = vpop.permute.xlu0 %4100
        %4104 = vset.pattern.permute.xlu0 0
        %4105 = vperm.xlu0 %4104, %v3955
        %v4106 = vpop.permute.xlu0 %4105
        %4109 = vset.pattern.permute.xlu0 0
        %4110 = vperm.xlu0 %4109, %v3956
        %v4111 = vpop.permute.xlu0 %4110
        %4114 = vset.pattern.permute.xlu0 0
        %4115 = vperm.xlu0 %4114, %v3957
        %v4116 = vpop.permute.xlu0 %4115
        %v4118 = vmul.f32 %v3894, %v3961
        %v4119 = vmul.f32 %v3895, %v3966
        %v4120 = vmul.f32 %v3896, %v3971
        %v4121 = vmul.f32 %v3897, %v3976
        %v4122 = vmul.f32 %v3898, %v3981
        %v4123 = vmul.f32 %v3899, %v3986
        %v4124 = vmul.f32 %v3900, %v3991
        %v4125 = vmul.f32 %v3901, %v3996
        %v4126 = vmul.f32 %v3902, %v4001
        %v4127 = vmul.f32 %v3903, %v4006
        %v4128 = vmul.f32 %v3904, %v4011
        %v4129 = vmul.f32 %v3905, %v4016
        %v4130 = vmul.f32 %v3906, %v4021
        %v4131 = vmul.f32 %v3907, %v4026
        %v4132 = vmul.f32 %v3908, %v4031
        %v4133 = vmul.f32 %v3909, %v4036
        %v4134 = vmul.f32 %v3910, %v4041
        %v4135 = vmul.f32 %v3911, %v4046
        %v4136 = vmul.f32 %v3912, %v4051
        %v4137 = vmul.f32 %v3913, %v4056
        %v4138 = vmul.f32 %v3914, %v4061
        %v4139 = vmul.f32 %v3915, %v4066
        %v4140 = vmul.f32 %v3916, %v4071
        %v4141 = vmul.f32 %v3917, %v4076
        %v4142 = vmul.f32 %v3918, %v4081
        %v4143 = vmul.f32 %v3919, %v4086
        %v4144 = vmul.f32 %v3920, %v4091
        %v4145 = vmul.f32 %v3921, %v4096
        %v4146 = vmul.f32 %v3922, %v4101
        %v4147 = vmul.f32 %v3923, %v4106
        %v4148 = vmul.f32 %v3924, %v4111
        %v4149 = vmul.f32 %v3925, %v4116
        %v4150 = vpack.c.bf16 %v4119, %v4118
        %v4151 = vpack.c.bf16 %v4121, %v4120
        %v4152 = vpack.c.bf16 %v4123, %v4122
        %v4153 = vpack.c.bf16 %v4125, %v4124
        %v4154 = vpack.c.bf16 %v4127, %v4126
        %v4155 = vpack.c.bf16 %v4129, %v4128
        %v4156 = vpack.c.bf16 %v4131, %v4130
        %v4157 = vpack.c.bf16 %v4133, %v4132
        %v4158 = vpack.c.bf16 %v4135, %v4134
        %v4159 = vpack.c.bf16 %v4137, %v4136
        %v4160 = vpack.c.bf16 %v4139, %v4138
        %v4161 = vpack.c.bf16 %v4141, %v4140
        %v4162 = vpack.c.bf16 %v4143, %v4142
        %v4163 = vpack.c.bf16 %v4145, %v4144
        %v4164 = vpack.c.bf16 %v4147, %v4146
        %v4165 = vpack.c.bf16 %v4149, %v4148
        %v4166 = vld [vmem:[%s2] sm:$0xf]
        %v4167 = vld [vmem:[%s2 + $0x4] sm:$0xf]
        %v4168 = vld [vmem:[%s2 + $0x8] sm:$0xf]
        %v4169 = vld [vmem:[%s2 + $0xc] sm:$0xf]
        %v4170 = vld [vmem:[%s2 + $0x10] sm:$0xf]
        %v4171 = vld [vmem:[%s2 + $0x14] sm:$0xf]
        %v4172 = vld [vmem:[%s2 + $0x18] sm:$0xf]
        %v4173 = vld [vmem:[%s2 + $0x1c] sm:$0xf]
        %v4174 = vld [vmem:[%s2 + $0x20] sm:$0xf]
        %v4175 = vld [vmem:[%s2 + $0x24] sm:$0xf]
        %v4176 = vld [vmem:[%s2 + $0x28] sm:$0xf]
        %v4177 = vld [vmem:[%s2 + $0x2c] sm:$0xf]
        %v4178 = vld [vmem:[%s2 + $0x30] sm:$0xf]
        %v4179 = vld [vmem:[%s2 + $0x34] sm:$0xf]
        %v4180 = vld [vmem:[%s2 + $0x38] sm:$0xf]
        %v4181 = vld [vmem:[%s2 + $0x3c] sm:$0xf]
        %v4182 = vld [vmem:[#allocation2 + $0x1] sm:$0xff]
        %v4183 = vld [vmem:[#allocation2 + $0x9] sm:$0xff]
        %v4184 = vld [vmem:[#allocation2 + $0x11] sm:$0xff]
        %v4185 = vld [vmem:[#allocation2 + $0x19] sm:$0xff]
        %v4186 = vld [vmem:[#allocation2 + $0x21] sm:$0xff]
        %v4187 = vld [vmem:[#allocation2 + $0x29] sm:$0xff]
        %v4188 = vld [vmem:[#allocation2 + $0x31] sm:$0xff]
        %v4189 = vld [vmem:[#allocation2 + $0x39] sm:$0xff]
        %v4190 = vld [vmem:[#allocation2 + $0x41] sm:$0xff]
        %v4191 = vld [vmem:[#allocation2 + $0x49] sm:$0xff]
        %v4192 = vld [vmem:[#allocation2 + $0x51] sm:$0xff]
        %v4193 = vld [vmem:[#allocation2 + $0x59] sm:$0xff]
        %v4194 = vld [vmem:[#allocation2 + $0x61] sm:$0xff]
        %v4195 = vld [vmem:[#allocation2 + $0x69] sm:$0xff]
        %v4196 = vld [vmem:[#allocation2 + $0x71] sm:$0xff]
        %v4197 = vld [vmem:[#allocation2 + $0x79] sm:$0xff]
        %v4198 = vld [vmem:[#allocation2 + $0x81] sm:$0xff]
        %v4199 = vld [vmem:[#allocation2 + $0x89] sm:$0xff]
        %v4200 = vld [vmem:[#allocation2 + $0x91] sm:$0xff]
        %v4201 = vld [vmem:[#allocation2 + $0x99] sm:$0xff]
        %v4202 = vld [vmem:[#allocation2 + $0xa1] sm:$0xff]
        %v4203 = vld [vmem:[#allocation2 + $0xa9] sm:$0xff]
        %v4204 = vld [vmem:[#allocation2 + $0xb1] sm:$0xff]
        %v4205 = vld [vmem:[#allocation2 + $0xb9] sm:$0xff]
        %v4206 = vld [vmem:[#allocation2 + $0xc1] sm:$0xff]
        %v4207 = vld [vmem:[#allocation2 + $0xc9] sm:$0xff]
        %v4208 = vld [vmem:[#allocation2 + $0xd1] sm:$0xff]
        %v4209 = vld [vmem:[#allocation2 + $0xd9] sm:$0xff]
        %v4210 = vld [vmem:[#allocation2 + $0xe1] sm:$0xff]
        %v4211 = vld [vmem:[#allocation2 + $0xe9] sm:$0xff]
        %v4212 = vld [vmem:[#allocation2 + $0xf1] sm:$0xff]
        %v4213 = vld [vmem:[#allocation2 + $0xf9] sm:$0xff]
        %v4214 = vpack.c.bf16 %v4183, %v4182
        %v4215 = vpack.c.bf16 %v4185, %v4184
        %v4216 = vpack.c.bf16 %v4187, %v4186
        %v4217 = vpack.c.bf16 %v4189, %v4188
        %v4218 = vpack.c.bf16 %v4191, %v4190
        %v4219 = vpack.c.bf16 %v4193, %v4192
        %v4220 = vpack.c.bf16 %v4195, %v4194
        %v4221 = vpack.c.bf16 %v4197, %v4196
        %v4222 = vpack.c.bf16 %v4199, %v4198
        %v4223 = vpack.c.bf16 %v4201, %v4200
        %v4224 = vpack.c.bf16 %v4203, %v4202
        %v4225 = vpack.c.bf16 %v4205, %v4204
        %v4226 = vpack.c.bf16 %v4207, %v4206
        %v4227 = vpack.c.bf16 %v4209, %v4208
        %v4228 = vpack.c.bf16 %v4211, %v4210
        %v4229 = vpack.c.bf16 %v4213, %v4212
        %s4230 = scalar_lea.vmem %s2, 64
        %v4231 = vld [vmem:[%s4230] sm:$0xf]
        %v4232 = vld [vmem:[%s4230 + $0x4] sm:$0xf]
        %v4233 = vld [vmem:[%s4230 + $0x8] sm:$0xf]
        %v4234 = vld [vmem:[%s4230 + $0xc] sm:$0xf]
        %v4235 = vld [vmem:[%s4230 + $0x10] sm:$0xf]
        %v4236 = vld [vmem:[%s4230 + $0x14] sm:$0xf]
        %v4237 = vld [vmem:[%s4230 + $0x18] sm:$0xf]
        %v4238 = vld [vmem:[%s4230 + $0x1c] sm:$0xf]
        %v4239 = vld [vmem:[%s4230 + $0x20] sm:$0xf]
        %v4240 = vld [vmem:[%s4230 + $0x24] sm:$0xf]
        %v4241 = vld [vmem:[%s4230 + $0x28] sm:$0xf]
        %v4242 = vld [vmem:[%s4230 + $0x2c] sm:$0xf]
        %v4243 = vld [vmem:[%s4230 + $0x30] sm:$0xf]
        %v4244 = vld [vmem:[%s4230 + $0x34] sm:$0xf]
        %v4245 = vld [vmem:[%s4230 + $0x38] sm:$0xf]
        %v4246 = vld [vmem:[%s4230 + $0x3c] sm:$0xf]
        %v4263 = vunpack.c.l.b16 %v4231
        %v4264 = vunpack.c.l.b16 %v4232
        %v4265 = vunpack.c.l.b16 %v4233
        %v4266 = vunpack.c.l.b16 %v4234
        %v4267 = vunpack.c.l.b16 %v4235
        %v4268 = vunpack.c.l.b16 %v4236
        %v4269 = vunpack.c.l.b16 %v4237
        %v4270 = vunpack.c.l.b16 %v4238
        %v4271 = vunpack.c.l.b16 %v4239
        %v4272 = vunpack.c.l.b16 %v4240
        %v4273 = vunpack.c.l.b16 %v4241
        %v4274 = vunpack.c.l.b16 %v4242
        %v4275 = vunpack.c.l.b16 %v4243
        %v4276 = vunpack.c.l.b16 %v4244
        %v4277 = vunpack.c.l.b16 %v4245
        %v4278 = vunpack.c.l.b16 %v4246
        %v4279 = vpack.c.b16 %v4264, %v4263
        %v4280 = vpack.c.b16 %v4266, %v4265
        %v4281 = vpack.c.b16 %v4268, %v4267
        %v4282 = vpack.c.b16 %v4270, %v4269
        %v4283 = vpack.c.b16 %v4272, %v4271
        %v4284 = vpack.c.b16 %v4274, %v4273
        %v4285 = vpack.c.b16 %v4276, %v4275
        %v4286 = vpack.c.b16 %v4278, %v4277
        %4295 = vmatprep.subr.bf16.mxu0 0
        %4296 = vmatpush1.bf16.msra.mxu0 %v4279
        %4297 = vmatprep.subr.bf16.mxu0 0
        %4298 = vmatpush1.bf16.msra.mxu0 %v4280
        %4299 = vmatprep.subr.bf16.mxu0 0
        %4300 = vmatpush1.bf16.msra.mxu0 %v4281
        %4301 = vmatprep.subr.bf16.mxu0 0
        %4302 = vmatpush1.bf16.msra.mxu0 %v4282
        %4303 = vmatprep.subr.bf16.mxu0 0
        %4304 = vmatpush1.bf16.msra.mxu0 %v4283
        %4305 = vmatprep.subr.bf16.mxu0 0
        %4306 = vmatpush1.bf16.msra.mxu0 %v4284
        %4307 = vmatprep.subr.bf16.mxu0 0
        %4308 = vmatpush1.bf16.msra.mxu0 %v4285
        %4309 = vmatprep.subr.bf16.mxu0 0
        %4310 = vmatpush1.bf16.msra.mxu0 %v4286
        %4311 = vmatprep.subr.bf16.mxu0 0
        %4312 = vmatpush1.bf16.msra.mxu0 0
        %4313 = vmatprep.subr.bf16.mxu0 0
        %4314 = vmatpush1.bf16.msra.mxu0 0
        %4315 = vmatprep.subr.bf16.mxu0 0
        %4316 = vmatpush1.bf16.msra.mxu0 0
        %4317 = vmatprep.subr.bf16.mxu0 0
        %4318 = vmatpush1.bf16.msra.mxu0 0
        %4319 = vmatprep.subr.bf16.mxu0 0
        %4320 = vmatpush1.bf16.msra.mxu0 0
        %4321 = vmatprep.subr.bf16.mxu0 0
        %4322 = vmatpush1.bf16.msra.mxu0 0
        %4323 = vmatprep.subr.bf16.mxu0 0
        %4324 = vmatpush1.bf16.msra.mxu0 0
        %4325 = vmatprep.subr.bf16.mxu0 0
        %4326 = vmatpush1.bf16.msra.mxu0 0
        %4327 = vmatprep.mubr.bf16.mxu0 0
        %4328 = vmatmul.mubr.bf16.gmra.mrb[0].mxu0 %v4214
        %v4329 = vpop.f32.mrb[0].mxu0
        %v4330 = vadd.f32 0.0, %v4329
        %v4331 = vpop.f32.mrb[0].mxu0
        %v4332 = vpop.f32.mrb[0].mxu0
        %v4333 = vadd.f32 0.0, %v4332
        %v4334 = vpop.f32.mrb[0].mxu0
        %4335 = vmatprep.mubr.bf16.mxu0 0
        %4336 = vmatmul.mubr.bf16.gmra.mrb[0].mxu0 %v4215
        %v4337 = vpop.f32.mrb[0].mxu0
        %v4338 = vadd.f32 0.0, %v4337
        %v4339 = vpop.f32.mrb[0].mxu0
        %v4340 = vpop.f32.mrb[0].mxu0
        %v4341 = vadd.f32 0.0, %v4340
        %v4342 = vpop.f32.mrb[0].mxu0
        %4343 = vmatprep.mubr.bf16.mxu0 0
        %4344 = vmatmul.mubr.bf16.gmra.mrb[0].mxu0 %v4216
        %v4345 = vpop.f32.mrb[0].mxu0
        %v4346 = vadd.f32 0.0, %v4345
        %v4347 = vpop.f32.mrb[0].mxu0
        %v4348 = vpop.f32.mrb[0].mxu0
        %v4349 = vadd.f32 0.0, %v4348
        %v4350 = vpop.f32.mrb[0].mxu0
        %4351 = vmatprep.mubr.bf16.mxu0 0
        %4352 = vmatmul.mubr.bf16.gmra.mrb[0].mxu0 %v4217
        %v4353 = vpop.f32.mrb[0].mxu0
        %v4354 = vadd.f32 0.0, %v4353
        %v4355 = vpop.f32.mrb[0].mxu0
        %v4356 = vpop.f32.mrb[0].mxu0
        %v4357 = vadd.f32 0.0, %v4356
        %v4358 = vpop.f32.mrb[0].mxu0
        %4359 = vmatprep.mubr.bf16.mxu0 0
        %4360 = vmatmul.mubr.bf16.gmra.mrb[0].mxu0 %v4218
        %v4361 = vpop.f32.mrb[0].mxu0
        %v4362 = vadd.f32 0.0, %v4361
        %v4363 = vpop.f32.mrb[0].mxu0
        %v4364 = vpop.f32.mrb[0].mxu0
        %v4365 = vadd.f32 0.0, %v4364
        %v4366 = vpop.f32.mrb[0].mxu0
        %4367 = vmatprep.mubr.bf16.mxu0 0
        %4368 = vmatmul.mubr.bf16.gmra.mrb[0].mxu0 %v4219
        %v4369 = vpop.f32.mrb[0].mxu0
        %v4370 = vadd.f32 0.0, %v4369
        %v4371 = vpop.f32.mrb[0].mxu0
        %v4372 = vpop.f32.mrb[0].mxu0
        %v4373 = vadd.f32 0.0, %v4372
        %v4374 = vpop.f32.mrb[0].mxu0
        %4375 = vmatprep.mubr.bf16.mxu0 0
        %4376 = vmatmul.mubr.bf16.gmra.mrb[0].mxu0 %v4220
        %v4377 = vpop.f32.mrb[0].mxu0
        %v4378 = vadd.f32 0.0, %v4377
        %v4379 = vpop.f32.mrb[0].mxu0
        %v4380 = vpop.f32.mrb[0].mxu0
        %v4381 = vadd.f32 0.0, %v4380
        %v4382 = vpop.f32.mrb[0].mxu0
        %4383 = vmatprep.mubr.bf16.mxu0 0
        %4384 = vmatmul.mubr.bf16.gmra.mrb[0].mxu0 %v4221
        %v4385 = vpop.f32.mrb[0].mxu0
        %v4386 = vadd.f32 0.0, %v4385
        %v4387 = vpop.f32.mrb[0].mxu0
        %v4388 = vpop.f32.mrb[0].mxu0
        %v4389 = vadd.f32 0.0, %v4388
        %v4390 = vpop.f32.mrb[0].mxu0
        %4391 = vmatprep.mubr.bf16.mxu0 0
        %4392 = vmatmul.mubr.bf16.gmra.mrb[0].mxu0 %v4222
        %v4393 = vpop.f32.mrb[0].mxu0
        %v4394 = vadd.f32 0.0, %v4393
        %v4395 = vpop.f32.mrb[0].mxu0
        %v4396 = vpop.f32.mrb[0].mxu0
        %v4397 = vadd.f32 0.0, %v4396
        %v4398 = vpop.f32.mrb[0].mxu0
        %4399 = vmatprep.mubr.bf16.mxu0 0
        %4400 = vmatmul.mubr.bf16.gmra.mrb[0].mxu0 %v4223
        %v4401 = vpop.f32.mrb[0].mxu0
        %v4402 = vadd.f32 0.0, %v4401
        %v4403 = vpop.f32.mrb[0].mxu0
        %v4404 = vpop.f32.mrb[0].mxu0
        %v4405 = vadd.f32 0.0, %v4404
        %v4406 = vpop.f32.mrb[0].mxu0
        %4407 = vmatprep.mubr.bf16.mxu0 0
        %4408 = vmatmul.mubr.bf16.gmra.mrb[0].mxu0 %v4224
        %v4409 = vpop.f32.mrb[0].mxu0
        %v4410 = vadd.f32 0.0, %v4409
        %v4411 = vpop.f32.mrb[0].mxu0
        %v4412 = vpop.f32.mrb[0].mxu0
        %v4413 = vadd.f32 0.0, %v4412
        %v4414 = vpop.f32.mrb[0].mxu0
        %4415 = vmatprep.mubr.bf16.mxu0 0
        %4416 = vmatmul.mubr.bf16.gmra.mrb[0].mxu0 %v4225
        %v4417 = vpop.f32.mrb[0].mxu0
        %v4418 = vadd.f32 0.0, %v4417
        %v4419 = vpop.f32.mrb[0].mxu0
        %v4420 = vpop.f32.mrb[0].mxu0
        %v4421 = vadd.f32 0.0, %v4420
        %v4422 = vpop.f32.mrb[0].mxu0
        %4423 = vmatprep.mubr.bf16.mxu0 0
        %4424 = vmatmul.mubr.bf16.gmra.mrb[0].mxu0 %v4226
        %v4425 = vpop.f32.mrb[0].mxu0
        %v4426 = vadd.f32 0.0, %v4425
        %v4427 = vpop.f32.mrb[0].mxu0
        %v4428 = vpop.f32.mrb[0].mxu0
        %v4429 = vadd.f32 0.0, %v4428
        %v4430 = vpop.f32.mrb[0].mxu0
        %4431 = vmatprep.mubr.bf16.mxu0 0
        %4432 = vmatmul.mubr.bf16.gmra.mrb[0].mxu0 %v4227
        %v4433 = vpop.f32.mrb[0].mxu0
        %v4434 = vadd.f32 0.0, %v4433
        %v4435 = vpop.f32.mrb[0].mxu0
        %v4436 = vpop.f32.mrb[0].mxu0
        %v4437 = vadd.f32 0.0, %v4436
        %v4438 = vpop.f32.mrb[0].mxu0
        %4439 = vmatprep.mubr.bf16.mxu0 0
        %4440 = vmatmul.mubr.bf16.gmra.mrb[0].mxu0 %v4228
        %v4441 = vpop.f32.mrb[0].mxu0
        %v4442 = vadd.f32 0.0, %v4441
        %v4443 = vpop.f32.mrb[0].mxu0
        %v4444 = vpop.f32.mrb[0].mxu0
        %v4445 = vadd.f32 0.0, %v4444
        %v4446 = vpop.f32.mrb[0].mxu0
        %4447 = vmatprep.mubr.bf16.mxu0 0
        %4448 = vmatmul.mubr.bf16.gmra.mrb[0].mxu0 %v4229
        %v4449 = vpop.f32.mrb[0].mxu0
        %v4450 = vadd.f32 0.0, %v4449
        %v4451 = vpop.f32.mrb[0].mxu0
        %v4452 = vpop.f32.mrb[0].mxu0
        %v4453 = vadd.f32 0.0, %v4452
        %v4454 = vpop.f32.mrb[0].mxu0
        %4455 = vdwg.mxu0
        %v4472 = vunpack.c.l.b16 %v4166
        %v4473 = vunpack.c.l.b16 %v4167
        %v4474 = vunpack.c.l.b16 %v4168
        %v4475 = vunpack.c.l.b16 %v4169
        %v4476 = vunpack.c.l.b16 %v4170
        %v4477 = vunpack.c.l.b16 %v4171
        %v4478 = vunpack.c.l.b16 %v4172
        %v4479 = vunpack.c.l.b16 %v4173
        %v4480 = vunpack.c.l.b16 %v4174
        %v4481 = vunpack.c.l.b16 %v4175
        %v4482 = vunpack.c.l.b16 %v4176
        %v4483 = vunpack.c.l.b16 %v4177
        %v4484 = vunpack.c.l.b16 %v4178
        %v4485 = vunpack.c.l.b16 %v4179
        %v4486 = vunpack.c.l.b16 %v4180
        %v4487 = vunpack.c.l.b16 %v4181
        %v4488 = vpack.c.b16 %v4473, %v4472
        %v4489 = vpack.c.b16 %v4475, %v4474
        %v4490 = vpack.c.b16 %v4477, %v4476
        %v4491 = vpack.c.b16 %v4479, %v4478
        %v4492 = vpack.c.b16 %v4481, %v4480
        %v4493 = vpack.c.b16 %v4483, %v4482
        %v4494 = vpack.c.b16 %v4485, %v4484
        %v4495 = vpack.c.b16 %v4487, %v4486
        %4504 = vmatprep.subr.bf16.mxu0 0
        %4505 = vmatpush1.bf16.msra.mxu0 %v4488
        %4506 = vmatprep.subr.bf16.mxu0 0
        %4507 = vmatpush1.bf16.msra.mxu0 %v4489
        %4508 = vmatprep.subr.bf16.mxu0 0
        %4509 = vmatpush1.bf16.msra.mxu0 %v4490
        %4510 = vmatprep.subr.bf16.mxu0 0
        %4511 = vmatpush1.bf16.msra.mxu0 %v4491
        %4512 = vmatprep.subr.bf16.mxu0 0
        %4513 = vmatpush1.bf16.msra.mxu0 %v4492
        %4514 = vmatprep.subr.bf16.mxu0 0
        %4515 = vmatpush1.bf16.msra.mxu0 %v4493
        %4516 = vmatprep.subr.bf16.mxu0 0
        %4517 = vmatpush1.bf16.msra.mxu0 %v4494
        %4518 = vmatprep.subr.bf16.mxu0 0
        %4519 = vmatpush1.bf16.msra.mxu0 %v4495
        %4520 = vmatprep.subr.bf16.mxu0 0
        %4521 = vmatpush1.bf16.msra.mxu0 0
        %4522 = vmatprep.subr.bf16.mxu0 0
        %4523 = vmatpush1.bf16.msra.mxu0 0
        %4524 = vmatprep.subr.bf16.mxu0 0
        %4525 = vmatpush1.bf16.msra.mxu0 0
        %4526 = vmatprep.subr.bf16.mxu0 0
        %4527 = vmatpush1.bf16.msra.mxu0 0
        %4528 = vmatprep.subr.bf16.mxu0 0
        %4529 = vmatpush1.bf16.msra.mxu0 0
        %4530 = vmatprep.subr.bf16.mxu0 0
        %4531 = vmatpush1.bf16.msra.mxu0 0
        %4532 = vmatprep.subr.bf16.mxu0 0
        %4533 = vmatpush1.bf16.msra.mxu0 0
        %4534 = vmatprep.subr.bf16.mxu0 0
        %4535 = vmatpush1.bf16.msra.mxu0 0
        %4536 = vmatprep.mubr.bf16.mxu0 0
        %4537 = vmatmul.mubr.bf16.gmra.mrb[0].mxu0 %v4150
        %v4538 = vpop.f32.mrb[0].mxu0
        %v4539 = vadd.f32 %v4330, %v4538
        %v4540 = vpop.f32.mrb[0].mxu0
        %v4541 = vpop.f32.mrb[0].mxu0
        %v4542 = vadd.f32 %v4333, %v4541
        %v4543 = vpop.f32.mrb[0].mxu0
        %4544 = vmatprep.mubr.bf16.mxu0 0
        %4545 = vmatmul.mubr.bf16.gmra.mrb[0].mxu0 %v4151
        %v4546 = vpop.f32.mrb[0].mxu0
        %v4547 = vadd.f32 %v4338, %v4546
        %v4548 = vpop.f32.mrb[0].mxu0
        %v4549 = vpop.f32.mrb[0].mxu0
        %v4550 = vadd.f32 %v4341, %v4549
        %v4551 = vpop.f32.mrb[0].mxu0
        %4552 = vmatprep.mubr.bf16.mxu0 0
        %4553 = vmatmul.mubr.bf16.gmra.mrb[0].mxu0 %v4152
        %v4554 = vpop.f32.mrb[0].mxu0
        %v4555 = vadd.f32 %v4346, %v4554
        %v4556 = vpop.f32.mrb[0].mxu0
        %v4557 = vpop.f32.mrb[0].mxu0
        %v4558 = vadd.f32 %v4349, %v4557
        %v4559 = vpop.f32.mrb[0].mxu0
        %4560 = vmatprep.mubr.bf16.mxu0 0
        %4561 = vmatmul.mubr.bf16.gmra.mrb[0].mxu0 %v4153
        %v4562 = vpop.f32.mrb[0].mxu0
        %v4563 = vadd.f32 %v4354, %v4562
        %v4564 = vpop.f32.mrb[0].mxu0
        %v4565 = vpop.f32.mrb[0].mxu0
        %v4566 = vadd.f32 %v4357, %v4565
        %v4567 = vpop.f32.mrb[0].mxu0
        %4568 = vmatprep.mubr.bf16.mxu0 0
        %4569 = vmatmul.mubr.bf16.gmra.mrb[0].mxu0 %v4154
        %v4570 = vpop.f32.mrb[0].mxu0
        %v4571 = vadd.f32 %v4362, %v4570
        %v4572 = vpop.f32.mrb[0].mxu0
        %v4573 = vpop.f32.mrb[0].mxu0
        %v4574 = vadd.f32 %v4365, %v4573
        %v4575 = vpop.f32.mrb[0].mxu0
        %4576 = vmatprep.mubr.bf16.mxu0 0
        %4577 = vmatmul.mubr.bf16.gmra.mrb[0].mxu0 %v4155
        %v4578 = vpop.f32.mrb[0].mxu0
        %v4579 = vadd.f32 %v4370, %v4578
        %v4580 = vpop.f32.mrb[0].mxu0
        %v4581 = vpop.f32.mrb[0].mxu0
        %v4582 = vadd.f32 %v4373, %v4581
        %v4583 = vpop.f32.mrb[0].mxu0
        %4584 = vmatprep.mubr.bf16.mxu0 0
        %4585 = vmatmul.mubr.bf16.gmra.mrb[0].mxu0 %v4156
        %v4586 = vpop.f32.mrb[0].mxu0
        %v4587 = vadd.f32 %v4378, %v4586
        %v4588 = vpop.f32.mrb[0].mxu0
        %v4589 = vpop.f32.mrb[0].mxu0
        %v4590 = vadd.f32 %v4381, %v4589
        %v4591 = vpop.f32.mrb[0].mxu0
        %4592 = vmatprep.mubr.bf16.mxu0 0
        %4593 = vmatmul.mubr.bf16.gmra.mrb[0].mxu0 %v4157
        %v4594 = vpop.f32.mrb[0].mxu0
        %v4595 = vadd.f32 %v4386, %v4594
        %v4596 = vpop.f32.mrb[0].mxu0
        %v4597 = vpop.f32.mrb[0].mxu0
        %v4598 = vadd.f32 %v4389, %v4597
        %v4599 = vpop.f32.mrb[0].mxu0
        %4600 = vmatprep.mubr.bf16.mxu0 0
        %4601 = vmatmul.mubr.bf16.gmra.mrb[0].mxu0 %v4158
        %v4602 = vpop.f32.mrb[0].mxu0
        %v4603 = vadd.f32 %v4394, %v4602
        %v4604 = vpop.f32.mrb[0].mxu0
        %v4605 = vpop.f32.mrb[0].mxu0
        %v4606 = vadd.f32 %v4397, %v4605
        %v4607 = vpop.f32.mrb[0].mxu0
        %4608 = vmatprep.mubr.bf16.mxu0 0
        %4609 = vmatmul.mubr.bf16.gmra.mrb[0].mxu0 %v4159
        %v4610 = vpop.f32.mrb[0].mxu0
        %v4611 = vadd.f32 %v4402, %v4610
        %v4612 = vpop.f32.mrb[0].mxu0
        %v4613 = vpop.f32.mrb[0].mxu0
        %v4614 = vadd.f32 %v4405, %v4613
        %v4615 = vpop.f32.mrb[0].mxu0
        %4616 = vmatprep.mubr.bf16.mxu0 0
        %4617 = vmatmul.mubr.bf16.gmra.mrb[0].mxu0 %v4160
        %v4618 = vpop.f32.mrb[0].mxu0
        %v4619 = vadd.f32 %v4410, %v4618
        %v4620 = vpop.f32.mrb[0].mxu0
        %v4621 = vpop.f32.mrb[0].mxu0
        %v4622 = vadd.f32 %v4413, %v4621
        %v4623 = vpop.f32.mrb[0].mxu0
        %4624 = vmatprep.mubr.bf16.mxu0 0
        %4625 = vmatmul.mubr.bf16.gmra.mrb[0].mxu0 %v4161
        %v4626 = vpop.f32.mrb[0].mxu0
        %v4627 = vadd.f32 %v4418, %v4626
        %v4628 = vpop.f32.mrb[0].mxu0
        %v4629 = vpop.f32.mrb[0].mxu0
        %v4630 = vadd.f32 %v4421, %v4629
        %v4631 = vpop.f32.mrb[0].mxu0
        %4632 = vmatprep.mubr.bf16.mxu0 0
        %4633 = vmatmul.mubr.bf16.gmra.mrb[0].mxu0 %v4162
        %v4634 = vpop.f32.mrb[0].mxu0
        %v4635 = vadd.f32 %v4426, %v4634
        %v4636 = vpop.f32.mrb[0].mxu0
        %v4637 = vpop.f32.mrb[0].mxu0
        %v4638 = vadd.f32 %v4429, %v4637
        %v4639 = vpop.f32.mrb[0].mxu0
        %4640 = vmatprep.mubr.bf16.mxu0 0
        %4641 = vmatmul.mubr.bf16.gmra.mrb[0].mxu0 %v4163
        %v4642 = vpop.f32.mrb[0].mxu0
        %v4643 = vadd.f32 %v4434, %v4642
        %v4644 = vpop.f32.mrb[0].mxu0
        %v4645 = vpop.f32.mrb[0].mxu0
        %v4646 = vadd.f32 %v4437, %v4645
        %v4647 = vpop.f32.mrb[0].mxu0
        %4648 = vmatprep.mubr.bf16.mxu0 0
        %4649 = vmatmul.mubr.bf16.gmra.mrb[0].mxu0 %v4164
        %v4650 = vpop.f32.mrb[0].mxu0
        %v4651 = vadd.f32 %v4442, %v4650
        %v4652 = vpop.f32.mrb[0].mxu0
        %v4653 = vpop.f32.mrb[0].mxu0
        %v4654 = vadd.f32 %v4445, %v4653
        %v4655 = vpop.f32.mrb[0].mxu0
        %4656 = vmatprep.mubr.bf16.mxu0 0
        %4657 = vmatmul.mubr.bf16.gmra.mrb[0].mxu0 %v4165
        %v4658 = vpop.f32.mrb[0].mxu0
        %v4659 = vadd.f32 %v4450, %v4658
        %v4660 = vpop.f32.mrb[0].mxu0
        %v4661 = vpop.f32.mrb[0].mxu0
        %v4662 = vadd.f32 %v4453, %v4661
        %v4663 = vpop.f32.mrb[0].mxu0
        %4664 = vdwg.mxu0
        %v4665 = vld [vmem:[#allocation2 + $0x2] sm:$0xff]
        %v4666 = vld [vmem:[#allocation2 + $0xa] sm:$0xff]
        %v4667 = vld [vmem:[#allocation2 + $0x12] sm:$0xff]
        %v4668 = vld [vmem:[#allocation2 + $0x1a] sm:$0xff]
        %v4669 = vld [vmem:[#allocation2 + $0x22] sm:$0xff]
        %v4670 = vld [vmem:[#allocation2 + $0x2a] sm:$0xff]
        %v4671 = vld [vmem:[#allocation2 + $0x32] sm:$0xff]
        %v4672 = vld [vmem:[#allocation2 + $0x3a] sm:$0xff]
        %v4673 = vld [vmem:[#allocation2 + $0x42] sm:$0xff]
        %v4674 = vld [vmem:[#allocation2 + $0x4a] sm:$0xff]
        %v4675 = vld [vmem:[#allocation2 + $0x52] sm:$0xff]
        %v4676 = vld [vmem:[#allocation2 + $0x5a] sm:$0xff]
        %v4677 = vld [vmem:[#allocation2 + $0x62] sm:$0xff]
        %v4678 = vld [vmem:[#allocation2 + $0x6a] sm:$0xff]
        %v4679 = vld [vmem:[#allocation2 + $0x72] sm:$0xff]
        %v4680 = vld [vmem:[#allocation2 + $0x7a] sm:$0xff]
        %v4681 = vld [vmem:[#allocation2 + $0x82] sm:$0xff]
        %v4682 = vld [vmem:[#allocation2 + $0x8a] sm:$0xff]
        %v4683 = vld [vmem:[#allocation2 + $0x92] sm:$0xff]
        %v4684 = vld [vmem:[#allocation2 + $0x9a] sm:$0xff]
        %v4685 = vld [vmem:[#allocation2 + $0xa2] sm:$0xff]
        %v4686 = vld [vmem:[#allocation2 + $0xaa] sm:$0xff]
        %v4687 = vld [vmem:[#allocation2 + $0xb2] sm:$0xff]
        %v4688 = vld [vmem:[#allocation2 + $0xba] sm:$0xff]
        %v4689 = vld [vmem:[#allocation2 + $0xc2] sm:$0xff]
        %v4690 = vld [vmem:[#allocation2 + $0xca] sm:$0xff]
        %v4691 = vld [vmem:[#allocation2 + $0xd2] sm:$0xff]
        %v4692 = vld [vmem:[#allocation2 + $0xda] sm:$0xff]
        %v4693 = vld [vmem:[#allocation2 + $0xe2] sm:$0xff]
        %v4694 = vld [vmem:[#allocation2 + $0xea] sm:$0xff]
        %v4695 = vld [vmem:[#allocation2 + $0xf2] sm:$0xff]
        %v4696 = vld [vmem:[#allocation2 + $0xfa] sm:$0xff]
        %v4697 = vld [vmem:[%s1108] sm:$0xff]
        %v4698 = vld [vmem:[%s1108 + $0x8] sm:$0xff]
        %v4699 = vld [vmem:[%s1108 + $0x10] sm:$0xff]
        %v4700 = vld [vmem:[%s1108 + $0x18] sm:$0xff]
        %v4701 = vld [vmem:[%s1108 + $0x20] sm:$0xff]
        %v4702 = vld [vmem:[%s1108 + $0x28] sm:$0xff]
        %v4703 = vld [vmem:[%s1108 + $0x30] sm:$0xff]
        %v4704 = vld [vmem:[%s1108 + $0x38] sm:$0xff]
        %v4705 = vld [vmem:[%s1108 + $0x40] sm:$0xff]
        %v4706 = vld [vmem:[%s1108 + $0x48] sm:$0xff]
        %v4707 = vld [vmem:[%s1108 + $0x50] sm:$0xff]
        %v4708 = vld [vmem:[%s1108 + $0x58] sm:$0xff]
        %v4709 = vld [vmem:[%s1108 + $0x60] sm:$0xff]
        %v4710 = vld [vmem:[%s1108 + $0x68] sm:$0xff]
        %v4711 = vld [vmem:[%s1108 + $0x70] sm:$0xff]
        %v4712 = vld [vmem:[%s1108 + $0x78] sm:$0xff]
        %v4713 = vld [vmem:[%s1108 + $0x80] sm:$0xff]
        %v4714 = vld [vmem:[%s1108 + $0x88] sm:$0xff]
        %v4715 = vld [vmem:[%s1108 + $0x90] sm:$0xff]
        %v4716 = vld [vmem:[%s1108 + $0x98] sm:$0xff]
        %v4717 = vld [vmem:[%s1108 + $0xa0] sm:$0xff]
        %v4718 = vld [vmem:[%s1108 + $0xa8] sm:$0xff]
        %v4719 = vld [vmem:[%s1108 + $0xb0] sm:$0xff]
        %v4720 = vld [vmem:[%s1108 + $0xb8] sm:$0xff]
        %v4721 = vld [vmem:[%s1108 + $0xc0] sm:$0xff]
        %v4722 = vld [vmem:[%s1108 + $0xc8] sm:$0xff]
        %v4723 = vld [vmem:[%s1108 + $0xd0] sm:$0xff]
        %v4724 = vld [vmem:[%s1108 + $0xd8] sm:$0xff]
        %v4725 = vld [vmem:[%s1108 + $0xe0] sm:$0xff]
        %v4726 = vld [vmem:[%s1108 + $0xe8] sm:$0xff]
        %v4727 = vld [vmem:[%s1108 + $0xf0] sm:$0xff]
        %v4728 = vld [vmem:[%s1108 + $0xf8] sm:$0xff]
        %4730 = vset.pattern.permute.xlu0 0
        %4731 = vperm.xlu0 %4730, %v4697
        %v4732 = vpop.permute.xlu0 %4731
        %4735 = vset.pattern.permute.xlu0 0
        %4736 = vperm.xlu0 %4735, %v4698
        %v4737 = vpop.permute.xlu0 %4736
        %4740 = vset.pattern.permute.xlu0 0
        %4741 = vperm.xlu0 %4740, %v4699
        %v4742 = vpop.permute.xlu0 %4741
        %4745 = vset.pattern.permute.xlu0 0
        %4746 = vperm.xlu0 %4745, %v4700
        %v4747 = vpop.permute.xlu0 %4746
        %4750 = vset.pattern.permute.xlu0 0
        %4751 = vperm.xlu0 %4750, %v4701
        %v4752 = vpop.permute.xlu0 %4751
        %4755 = vset.pattern.permute.xlu0 0
        %4756 = vperm.xlu0 %4755, %v4702
        %v4757 = vpop.permute.xlu0 %4756
        %4760 = vset.pattern.permute.xlu0 0
        %4761 = vperm.xlu0 %4760, %v4703
        %v4762 = vpop.permute.xlu0 %4761
        %4765 = vset.pattern.permute.xlu0 0
        %4766 = vperm.xlu0 %4765, %v4704
        %v4767 = vpop.permute.xlu0 %4766
        %4770 = vset.pattern.permute.xlu0 0
        %4771 = vperm.xlu0 %4770, %v4705
        %v4772 = vpop.permute.xlu0 %4771
        %4775 = vset.pattern.permute.xlu0 0
        %4776 = vperm.xlu0 %4775, %v4706
        %v4777 = vpop.permute.xlu0 %4776
        %4780 = vset.pattern.permute.xlu0 0
        %4781 = vperm.xlu0 %4780, %v4707
        %v4782 = vpop.permute.xlu0 %4781
        %4785 = vset.pattern.permute.xlu0 0
        %4786 = vperm.xlu0 %4785, %v4708
        %v4787 = vpop.permute.xlu0 %4786
        %4790 = vset.pattern.permute.xlu0 0
        %4791 = vperm.xlu0 %4790, %v4709
        %v4792 = vpop.permute.xlu0 %4791
        %4795 = vset.pattern.permute.xlu0 0
        %4796 = vperm.xlu0 %4795, %v4710
        %v4797 = vpop.permute.xlu0 %4796
        %4800 = vset.pattern.permute.xlu0 0
        %4801 = vperm.xlu0 %4800, %v4711
        %v4802 = vpop.permute.xlu0 %4801
        %4805 = vset.pattern.permute.xlu0 0
        %4806 = vperm.xlu0 %4805, %v4712
        %v4807 = vpop.permute.xlu0 %4806
        %4810 = vset.pattern.permute.xlu0 0
        %4811 = vperm.xlu0 %4810, %v4713
        %v4812 = vpop.permute.xlu0 %4811
        %4815 = vset.pattern.permute.xlu0 0
        %4816 = vperm.xlu0 %4815, %v4714
        %v4817 = vpop.permute.xlu0 %4816
        %4820 = vset.pattern.permute.xlu0 0
        %4821 = vperm.xlu0 %4820, %v4715
        %v4822 = vpop.permute.xlu0 %4821
        %4825 = vset.pattern.permute.xlu0 0
        %4826 = vperm.xlu0 %4825, %v4716
        %v4827 = vpop.permute.xlu0 %4826
        %4830 = vset.pattern.permute.xlu0 0
        %4831 = vperm.xlu0 %4830, %v4717
        %v4832 = vpop.permute.xlu0 %4831
        %4835 = vset.pattern.permute.xlu0 0
        %4836 = vperm.xlu0 %4835, %v4718
        %v4837 = vpop.permute.xlu0 %4836
        %4840 = vset.pattern.permute.xlu0 0
        %4841 = vperm.xlu0 %4840, %v4719
        %v4842 = vpop.permute.xlu0 %4841
        %4845 = vset.pattern.permute.xlu0 0
        %4846 = vperm.xlu0 %4845, %v4720
        %v4847 = vpop.permute.xlu0 %4846
        %4850 = vset.pattern.permute.xlu0 0
        %4851 = vperm.xlu0 %4850, %v4721
        %v4852 = vpop.permute.xlu0 %4851
        %4855 = vset.pattern.permute.xlu0 0
        %4856 = vperm.xlu0 %4855, %v4722
        %v4857 = vpop.permute.xlu0 %4856
        %4860 = vset.pattern.permute.xlu0 0
        %4861 = vperm.xlu0 %4860, %v4723
        %v4862 = vpop.permute.xlu0 %4861
        %4865 = vset.pattern.permute.xlu0 0
        %4866 = vperm.xlu0 %4865, %v4724
        %v4867 = vpop.permute.xlu0 %4866
        %4870 = vset.pattern.permute.xlu0 0
        %4871 = vperm.xlu0 %4870, %v4725
        %v4872 = vpop.permute.xlu0 %4871
        %4875 = vset.pattern.permute.xlu0 0
        %4876 = vperm.xlu0 %4875, %v4726
        %v4877 = vpop.permute.xlu0 %4876
        %4880 = vset.pattern.permute.xlu0 0
        %4881 = vperm.xlu0 %4880, %v4727
        %v4882 = vpop.permute.xlu0 %4881
        %4885 = vset.pattern.permute.xlu0 0
        %4886 = vperm.xlu0 %4885, %v4728
        %v4887 = vpop.permute.xlu0 %4886
        %v4889 = vmul.f32 %v4665, %v4732
        %v4890 = vmul.f32 %v4666, %v4737
        %v4891 = vmul.f32 %v4667, %v4742
        %v4892 = vmul.f32 %v4668, %v4747
        %v4893 = vmul.f32 %v4669, %v4752
        %v4894 = vmul.f32 %v4670, %v4757
        %v4895 = vmul.f32 %v4671, %v4762
        %v4896 = vmul.f32 %v4672, %v4767
        %v4897 = vmul.f32 %v4673, %v4772
        %v4898 = vmul.f32 %v4674, %v4777
        %v4899 = vmul.f32 %v4675, %v4782
        %v4900 = vmul.f32 %v4676, %v4787
        %v4901 = vmul.f32 %v4677, %v4792
        %v4902 = vmul.f32 %v4678, %v4797
        %v4903 = vmul.f32 %v4679, %v4802
        %v4904 = vmul.f32 %v4680, %v4807
        %v4905 = vmul.f32 %v4681, %v4812
        %v4906 = vmul.f32 %v4682, %v4817
        %v4907 = vmul.f32 %v4683, %v4822
        %v4908 = vmul.f32 %v4684, %v4827
        %v4909 = vmul.f32 %v4685, %v4832
        %v4910 = vmul.f32 %v4686, %v4837
        %v4911 = vmul.f32 %v4687, %v4842
        %v4912 = vmul.f32 %v4688, %v4847
        %v4913 = vmul.f32 %v4689, %v4852
        %v4914 = vmul.f32 %v4690, %v4857
        %v4915 = vmul.f32 %v4691, %v4862
        %v4916 = vmul.f32 %v4692, %v4867
        %v4917 = vmul.f32 %v4693, %v4872
        %v4918 = vmul.f32 %v4694, %v4877
        %v4919 = vmul.f32 %v4695, %v4882
        %v4920 = vmul.f32 %v4696, %v4887
        %v4921 = vpack.c.bf16 %v4890, %v4889
        %v4922 = vpack.c.bf16 %v4892, %v4891
        %v4923 = vpack.c.bf16 %v4894, %v4893
        %v4924 = vpack.c.bf16 %v4896, %v4895
        %v4925 = vpack.c.bf16 %v4898, %v4897
        %v4926 = vpack.c.bf16 %v4900, %v4899
        %v4927 = vpack.c.bf16 %v4902, %v4901
        %v4928 = vpack.c.bf16 %v4904, %v4903
        %v4929 = vpack.c.bf16 %v4906, %v4905
        %v4930 = vpack.c.bf16 %v4908, %v4907
        %v4931 = vpack.c.bf16 %v4910, %v4909
        %v4932 = vpack.c.bf16 %v4912, %v4911
        %v4933 = vpack.c.bf16 %v4914, %v4913
        %v4934 = vpack.c.bf16 %v4916, %v4915
        %v4935 = vpack.c.bf16 %v4918, %v4917
        %v4936 = vpack.c.bf16 %v4920, %v4919
        %s4937 = scalar_lea.vmem %s2, 128
        %v4938 = vld [vmem:[%s4937] sm:$0xf]
        %v4939 = vld [vmem:[%s4937 + $0x4] sm:$0xf]
        %v4940 = vld [vmem:[%s4937 + $0x8] sm:$0xf]
        %v4941 = vld [vmem:[%s4937 + $0xc] sm:$0xf]
        %v4942 = vld [vmem:[%s4937 + $0x10] sm:$0xf]
        %v4943 = vld [vmem:[%s4937 + $0x14] sm:$0xf]
        %v4944 = vld [vmem:[%s4937 + $0x18] sm:$0xf]
        %v4945 = vld [vmem:[%s4937 + $0x1c] sm:$0xf]
        %v4946 = vld [vmem:[%s4937 + $0x20] sm:$0xf]
        %v4947 = vld [vmem:[%s4937 + $0x24] sm:$0xf]
        %v4948 = vld [vmem:[%s4937 + $0x28] sm:$0xf]
        %v4949 = vld [vmem:[%s4937 + $0x2c] sm:$0xf]
        %v4950 = vld [vmem:[%s4937 + $0x30] sm:$0xf]
        %v4951 = vld [vmem:[%s4937 + $0x34] sm:$0xf]
        %v4952 = vld [vmem:[%s4937 + $0x38] sm:$0xf]
        %v4953 = vld [vmem:[%s4937 + $0x3c] sm:$0xf]
        %v4970 = vunpack.c.l.b16 %v4938
        %v4971 = vunpack.c.l.b16 %v4939
        %v4972 = vunpack.c.l.b16 %v4940
        %v4973 = vunpack.c.l.b16 %v4941
        %v4974 = vunpack.c.l.b16 %v4942
        %v4975 = vunpack.c.l.b16 %v4943
        %v4976 = vunpack.c.l.b16 %v4944
        %v4977 = vunpack.c.l.b16 %v4945
        %v4978 = vunpack.c.l.b16 %v4946
        %v4979 = vunpack.c.l.b16 %v4947
        %v4980 = vunpack.c.l.b16 %v4948
        %v4981 = vunpack.c.l.b16 %v4949
        %v4982 = vunpack.c.l.b16 %v4950
        %v4983 = vunpack.c.l.b16 %v4951
        %v4984 = vunpack.c.l.b16 %v4952
        %v4985 = vunpack.c.l.b16 %v4953
        %v4986 = vpack.c.b16 %v4971, %v4970
        %v4987 = vpack.c.b16 %v4973, %v4972
        %v4988 = vpack.c.b16 %v4975, %v4974
        %v4989 = vpack.c.b16 %v4977, %v4976
        %v4990 = vpack.c.b16 %v4979, %v4978
        %v4991 = vpack.c.b16 %v4981, %v4980
        %v4992 = vpack.c.b16 %v4983, %v4982
        %v4993 = vpack.c.b16 %v4985, %v4984
        %5002 = vmatprep.subr.bf16.mxu0 0
        %5003 = vmatpush1.bf16.msra.mxu0 %v4986
        %5004 = vmatprep.subr.bf16.mxu0 0
        %5005 = vmatpush1.bf16.msra.mxu0 %v4987
        %5006 = vmatprep.subr.bf16.mxu0 0
        %5007 = vmatpush1.bf16.msra.mxu0 %v4988
        %5008 = vmatprep.subr.bf16.mxu0 0
        %5009 = vmatpush1.bf16.msra.mxu0 %v4989
        %5010 = vmatprep.subr.bf16.mxu0 0
        %5011 = vmatpush1.bf16.msra.mxu0 %v4990
        %5012 = vmatprep.subr.bf16.mxu0 0
        %5013 = vmatpush1.bf16.msra.mxu0 %v4991
        %5014 = vmatprep.subr.bf16.mxu0 0
        %5015 = vmatpush1.bf16.msra.mxu0 %v4992
        %5016 = vmatprep.subr.bf16.mxu0 0
        %5017 = vmatpush1.bf16.msra.mxu0 %v4993
        %5018 = vmatprep.subr.bf16.mxu0 0
        %5019 = vmatpush1.bf16.msra.mxu0 0
        %5020 = vmatprep.subr.bf16.mxu0 0
        %5021 = vmatpush1.bf16.msra.mxu0 0
        %5022 = vmatprep.subr.bf16.mxu0 0
        %5023 = vmatpush1.bf16.msra.mxu0 0
        %5024 = vmatprep.subr.bf16.mxu0 0
        %5025 = vmatpush1.bf16.msra.mxu0 0
        %5026 = vmatprep.subr.bf16.mxu0 0
        %5027 = vmatpush1.bf16.msra.mxu0 0
        %5028 = vmatprep.subr.bf16.mxu0 0
        %5029 = vmatpush1.bf16.msra.mxu0 0
        %5030 = vmatprep.subr.bf16.mxu0 0
        %5031 = vmatpush1.bf16.msra.mxu0 0
        %5032 = vmatprep.subr.bf16.mxu0 0
        %5033 = vmatpush1.bf16.msra.mxu0 0
        %5034 = vmatprep.mubr.bf16.mxu0 0
        %5035 = vmatmul.mubr.bf16.gmra.mrb[0].mxu0 %v4921
        %v5036 = vpop.f32.mrb[0].mxu0
        %v5037 = vadd.f32 0.0, %v5036
        %v5038 = vpop.f32.mrb[0].mxu0
        %v5039 = vpop.f32.mrb[0].mxu0
        %v5040 = vadd.f32 0.0, %v5039
        %v5041 = vpop.f32.mrb[0].mxu0
        %5042 = vmatprep.mubr.bf16.mxu0 0
        %5043 = vmatmul.mubr.bf16.gmra.mrb[0].mxu0 %v4922
        %v5044 = vpop.f32.mrb[0].mxu0
        %v5045 = vadd.f32 0.0, %v5044
        %v5046 = vpop.f32.mrb[0].mxu0
        %v5047 = vpop.f32.mrb[0].mxu0
        %v5048 = vadd.f32 0.0, %v5047
        %v5049 = vpop.f32.mrb[0].mxu0
        %5050 = vmatprep.mubr.bf16.mxu0 0
        %5051 = vmatmul.mubr.bf16.gmra.mrb[0].mxu0 %v4923
        %v5052 = vpop.f32.mrb[0].mxu0
        %v5053 = vadd.f32 0.0, %v5052
        %v5054 = vpop.f32.mrb[0].mxu0
        %v5055 = vpop.f32.mrb[0].mxu0
        %v5056 = vadd.f32 0.0, %v5055
        %v5057 = vpop.f32.mrb[0].mxu0
        %5058 = vmatprep.mubr.bf16.mxu0 0
        %5059 = vmatmul.mubr.bf16.gmra.mrb[0].mxu0 %v4924
        %v5060 = vpop.f32.mrb[0].mxu0
        %v5061 = vadd.f32 0.0, %v5060
        %v5062 = vpop.f32.mrb[0].mxu0
        %v5063 = vpop.f32.mrb[0].mxu0
        %v5064 = vadd.f32 0.0, %v5063
        %v5065 = vpop.f32.mrb[0].mxu0
        %5066 = vmatprep.mubr.bf16.mxu0 0
        %5067 = vmatmul.mubr.bf16.gmra.mrb[0].mxu0 %v4925
        %v5068 = vpop.f32.mrb[0].mxu0
        %v5069 = vadd.f32 0.0, %v5068
        %v5070 = vpop.f32.mrb[0].mxu0
        %v5071 = vpop.f32.mrb[0].mxu0
        %v5072 = vadd.f32 0.0, %v5071
        %v5073 = vpop.f32.mrb[0].mxu0
        %5074 = vmatprep.mubr.bf16.mxu0 0
        %5075 = vmatmul.mubr.bf16.gmra.mrb[0].mxu0 %v4926
        %v5076 = vpop.f32.mrb[0].mxu0
        %v5077 = vadd.f32 0.0, %v5076
        %v5078 = vpop.f32.mrb[0].mxu0
        %v5079 = vpop.f32.mrb[0].mxu0
        %v5080 = vadd.f32 0.0, %v5079
        %v5081 = vpop.f32.mrb[0].mxu0
        %5082 = vmatprep.mubr.bf16.mxu0 0
        %5083 = vmatmul.mubr.bf16.gmra.mrb[0].mxu0 %v4927
        %v5084 = vpop.f32.mrb[0].mxu0
        %v5085 = vadd.f32 0.0, %v5084
        %v5086 = vpop.f32.mrb[0].mxu0
        %v5087 = vpop.f32.mrb[0].mxu0
        %v5088 = vadd.f32 0.0, %v5087
        %v5089 = vpop.f32.mrb[0].mxu0
        %5090 = vmatprep.mubr.bf16.mxu0 0
        %5091 = vmatmul.mubr.bf16.gmra.mrb[0].mxu0 %v4928
        %v5092 = vpop.f32.mrb[0].mxu0
        %v5093 = vadd.f32 0.0, %v5092
        %v5094 = vpop.f32.mrb[0].mxu0
        %v5095 = vpop.f32.mrb[0].mxu0
        %v5096 = vadd.f32 0.0, %v5095
        %v5097 = vpop.f32.mrb[0].mxu0
        %5098 = vmatprep.mubr.bf16.mxu0 0
        %5099 = vmatmul.mubr.bf16.gmra.mrb[0].mxu0 %v4929
        %v5100 = vpop.f32.mrb[0].mxu0
        %v5101 = vadd.f32 0.0, %v5100
        %v5102 = vpop.f32.mrb[0].mxu0
        %v5103 = vpop.f32.mrb[0].mxu0
        %v5104 = vadd.f32 0.0, %v5103
        %v5105 = vpop.f32.mrb[0].mxu0
        %5106 = vmatprep.mubr.bf16.mxu0 0
        %5107 = vmatmul.mubr.bf16.gmra.mrb[0].mxu0 %v4930
        %v5108 = vpop.f32.mrb[0].mxu0
        %v5109 = vadd.f32 0.0, %v5108
        %v5110 = vpop.f32.mrb[0].mxu0
        %v5111 = vpop.f32.mrb[0].mxu0
        %v5112 = vadd.f32 0.0, %v5111
        %v5113 = vpop.f32.mrb[0].mxu0
        %5114 = vmatprep.mubr.bf16.mxu0 0
        %5115 = vmatmul.mubr.bf16.gmra.mrb[0].mxu0 %v4931
        %v5116 = vpop.f32.mrb[0].mxu0
        %v5117 = vadd.f32 0.0, %v5116
        %v5118 = vpop.f32.mrb[0].mxu0
        %v5119 = vpop.f32.mrb[0].mxu0
        %v5120 = vadd.f32 0.0, %v5119
        %v5121 = vpop.f32.mrb[0].mxu0
        %5122 = vmatprep.mubr.bf16.mxu0 0
        %5123 = vmatmul.mubr.bf16.gmra.mrb[0].mxu0 %v4932
        %v5124 = vpop.f32.mrb[0].mxu0
        %v5125 = vadd.f32 0.0, %v5124
        %v5126 = vpop.f32.mrb[0].mxu0
        %v5127 = vpop.f32.mrb[0].mxu0
        %v5128 = vadd.f32 0.0, %v5127
        %v5129 = vpop.f32.mrb[0].mxu0
        %5130 = vmatprep.mubr.bf16.mxu0 0
        %5131 = vmatmul.mubr.bf16.gmra.mrb[0].mxu0 %v4933
        %v5132 = vpop.f32.mrb[0].mxu0
        %v5133 = vadd.f32 0.0, %v5132
        %v5134 = vpop.f32.mrb[0].mxu0
        %v5135 = vpop.f32.mrb[0].mxu0
        %v5136 = vadd.f32 0.0, %v5135
        %v5137 = vpop.f32.mrb[0].mxu0
        %5138 = vmatprep.mubr.bf16.mxu0 0
        %5139 = vmatmul.mubr.bf16.gmra.mrb[0].mxu0 %v4934
        %v5140 = vpop.f32.mrb[0].mxu0
        %v5141 = vadd.f32 0.0, %v5140
        %v5142 = vpop.f32.mrb[0].mxu0
        %v5143 = vpop.f32.mrb[0].mxu0
        %v5144 = vadd.f32 0.0, %v5143
        %v5145 = vpop.f32.mrb[0].mxu0
        %5146 = vmatprep.mubr.bf16.mxu0 0
        %5147 = vmatmul.mubr.bf16.gmra.mrb[0].mxu0 %v4935
        %v5148 = vpop.f32.mrb[0].mxu0
        %v5149 = vadd.f32 0.0, %v5148
        %v5150 = vpop.f32.mrb[0].mxu0
        %v5151 = vpop.f32.mrb[0].mxu0
        %v5152 = vadd.f32 0.0, %v5151
        %v5153 = vpop.f32.mrb[0].mxu0
        %5154 = vmatprep.mubr.bf16.mxu0 0
        %5155 = vmatmul.mubr.bf16.gmra.mrb[0].mxu0 %v4936
        %v5156 = vpop.f32.mrb[0].mxu0
        %v5157 = vadd.f32 0.0, %v5156
        %v5158 = vpop.f32.mrb[0].mxu0
        %v5159 = vpop.f32.mrb[0].mxu0
        %v5160 = vadd.f32 0.0, %v5159
        %v5161 = vpop.f32.mrb[0].mxu0
        %5162 = vdwg.mxu0
        %v5163 = vadd.f32 %v4539, %v5037
        %v5164 = vadd.f32 %v4542, %v5040
        %v5165 = vadd.f32 %v4547, %v5045
        %v5166 = vadd.f32 %v4550, %v5048
        %v5167 = vadd.f32 %v4555, %v5053
        %v5168 = vadd.f32 %v4558, %v5056
        %v5169 = vadd.f32 %v4563, %v5061
        %v5170 = vadd.f32 %v4566, %v5064
        %v5171 = vadd.f32 %v4571, %v5069
        %v5172 = vadd.f32 %v4574, %v5072
        %v5173 = vadd.f32 %v4579, %v5077
        %v5174 = vadd.f32 %v4582, %v5080
        %v5175 = vadd.f32 %v4587, %v5085
        %v5176 = vadd.f32 %v4590, %v5088
        %v5177 = vadd.f32 %v4595, %v5093
        %v5178 = vadd.f32 %v4598, %v5096
        %v5179 = vadd.f32 %v4603, %v5101
        %v5180 = vadd.f32 %v4606, %v5104
        %v5181 = vadd.f32 %v4611, %v5109
        %v5182 = vadd.f32 %v4614, %v5112
        %v5183 = vadd.f32 %v4619, %v5117
        %v5184 = vadd.f32 %v4622, %v5120
        %v5185 = vadd.f32 %v4627, %v5125
        %v5186 = vadd.f32 %v4630, %v5128
        %v5187 = vadd.f32 %v4635, %v5133
        %v5188 = vadd.f32 %v4638, %v5136
        %v5189 = vadd.f32 %v4643, %v5141
        %v5190 = vadd.f32 %v4646, %v5144
        %v5191 = vadd.f32 %v4651, %v5149
        %v5192 = vadd.f32 %v4654, %v5152
        %v5193 = vadd.f32 %v4659, %v5157
        %v5194 = vadd.f32 %v4662, %v5160
        %v5195 = vld [vmem:[#allocation2 + $0x10] sm:$0xff]
        %v5196 = vld [vmem:[#allocation2 + $0x18] sm:$0xff]
        %v5197 = vld [vmem:[#allocation2 + $0x20] sm:$0xff]
        %v5198 = vld [vmem:[#allocation2 + $0x28] sm:$0xff]
        %v5199 = vld [vmem:[#allocation2 + $0x30] sm:$0xff]
        %v5200 = vld [vmem:[#allocation2 + $0x38] sm:$0xff]
        %v5201 = vld [vmem:[#allocation2 + $0x40] sm:$0xff]
        %v5202 = vld [vmem:[#allocation2 + $0x48] sm:$0xff]
        %v5203 = vld [vmem:[#allocation2 + $0x50] sm:$0xff]
        %v5204 = vld [vmem:[#allocation2 + $0x58] sm:$0xff]
        %v5205 = vld [vmem:[#allocation2 + $0x60] sm:$0xff]
        %v5206 = vld [vmem:[#allocation2 + $0x68] sm:$0xff]
        %v5207 = vld [vmem:[#allocation2 + $0x70] sm:$0xff]
        %v5208 = vld [vmem:[#allocation2 + $0x78] sm:$0xff]
        %v5209 = vld [vmem:[#allocation2 + $0x80] sm:$0xff]
        %v5210 = vld [vmem:[#allocation2 + $0x88] sm:$0xff]
        %v5211 = vld [vmem:[#allocation2 + $0x90] sm:$0xff]
        %v5212 = vld [vmem:[#allocation2 + $0x98] sm:$0xff]
        %v5213 = vld [vmem:[#allocation2 + $0xa0] sm:$0xff]
        %v5214 = vld [vmem:[#allocation2 + $0xa8] sm:$0xff]
        %v5215 = vld [vmem:[#allocation2 + $0xb0] sm:$0xff]
        %v5216 = vld [vmem:[#allocation2 + $0xb8] sm:$0xff]
        %v5217 = vld [vmem:[#allocation2 + $0xc0] sm:$0xff]
        %v5218 = vld [vmem:[#allocation2 + $0xc8] sm:$0xff]
        %v5219 = vld [vmem:[#allocation2 + $0xd0] sm:$0xff]
        %v5220 = vld [vmem:[#allocation2 + $0xd8] sm:$0xff]
        %v5221 = vld [vmem:[#allocation2 + $0xe0] sm:$0xff]
        %v5222 = vld [vmem:[#allocation2 + $0xe8] sm:$0xff]
        %v5223 = vld [vmem:[#allocation2 + $0xf0] sm:$0xff]
        %v5224 = vld [vmem:[#allocation2 + $0xf8] sm:$0xff]
        %v5225 = vld [vmem:[#allocation2 + $0x100] sm:$0xff]
        %v5226 = vld [vmem:[#allocation2 + $0x108] sm:$0xff]
        %v5227 = vmul.f32 %v5195, %v3961
        %v5228 = vmul.f32 %v5196, %v3966
        %v5229 = vmul.f32 %v5197, %v3971
        %v5230 = vmul.f32 %v5198, %v3976
        %v5231 = vmul.f32 %v5199, %v3981
        %v5232 = vmul.f32 %v5200, %v3986
        %v5233 = vmul.f32 %v5201, %v3991
        %v5234 = vmul.f32 %v5202, %v3996
        %v5235 = vmul.f32 %v5203, %v4001
        %v5236 = vmul.f32 %v5204, %v4006
        %v5237 = vmul.f32 %v5205, %v4011
        %v5238 = vmul.f32 %v5206, %v4016
        %v5239 = vmul.f32 %v5207, %v4021
        %v5240 = vmul.f32 %v5208, %v4026
        %v5241 = vmul.f32 %v5209, %v4031
        %v5242 = vmul.f32 %v5210, %v4036
        %v5243 = vmul.f32 %v5211, %v4041
        %v5244 = vmul.f32 %v5212, %v4046
        %v5245 = vmul.f32 %v5213, %v4051
        %v5246 = vmul.f32 %v5214, %v4056
        %v5247 = vmul.f32 %v5215, %v4061
        %v5248 = vmul.f32 %v5216, %v4066
        %v5249 = vmul.f32 %v5217, %v4071
        %v5250 = vmul.f32 %v5218, %v4076
        %v5251 = vmul.f32 %v5219, %v4081
        %v5252 = vmul.f32 %v5220, %v4086
        %v5253 = vmul.f32 %v5221, %v4091
        %v5254 = vmul.f32 %v5222, %v4096
        %v5255 = vmul.f32 %v5223, %v4101
        %v5256 = vmul.f32 %v5224, %v4106
        %v5257 = vmul.f32 %v5225, %v4111
        %v5258 = vmul.f32 %v5226, %v4116
        %v5259 = vpack.c.bf16 %v5228, %v5227
        %v5260 = vpack.c.bf16 %v5230, %v5229
        %v5261 = vpack.c.bf16 %v5232, %v5231
        %v5262 = vpack.c.bf16 %v5234, %v5233
        %v5263 = vpack.c.bf16 %v5236, %v5235
        %v5264 = vpack.c.bf16 %v5238, %v5237
        %v5265 = vpack.c.bf16 %v5240, %v5239
        %v5266 = vpack.c.bf16 %v5242, %v5241
        %v5267 = vpack.c.bf16 %v5244, %v5243
        %v5268 = vpack.c.bf16 %v5246, %v5245
        %v5269 = vpack.c.bf16 %v5248, %v5247
        %v5270 = vpack.c.bf16 %v5250, %v5249
        %v5271 = vpack.c.bf16 %v5252, %v5251
        %v5272 = vpack.c.bf16 %v5254, %v5253
        %v5273 = vpack.c.bf16 %v5256, %v5255
        %v5274 = vpack.c.bf16 %v5258, %v5257
        %s5275 = scalar_lea.vmem %s2, 192
        %v5276 = vld [vmem:[%s5275] sm:$0xf]
        %v5277 = vld [vmem:[%s5275 + $0x4] sm:$0xf]
        %v5278 = vld [vmem:[%s5275 + $0x8] sm:$0xf]
        %v5279 = vld [vmem:[%s5275 + $0xc] sm:$0xf]
        %v5280 = vld [vmem:[%s5275 + $0x10] sm:$0xf]
        %v5281 = vld [vmem:[%s5275 + $0x14] sm:$0xf]
        %v5282 = vld [vmem:[%s5275 + $0x18] sm:$0xf]
        %v5283 = vld [vmem:[%s5275 + $0x1c] sm:$0xf]
        %v5284 = vld [vmem:[%s5275 + $0x20] sm:$0xf]
        %v5285 = vld [vmem:[%s5275 + $0x24] sm:$0xf]
        %v5286 = vld [vmem:[%s5275 + $0x28] sm:$0xf]
        %v5287 = vld [vmem:[%s5275 + $0x2c] sm:$0xf]
        %v5288 = vld [vmem:[%s5275 + $0x30] sm:$0xf]
        %v5289 = vld [vmem:[%s5275 + $0x34] sm:$0xf]
        %v5290 = vld [vmem:[%s5275 + $0x38] sm:$0xf]
        %v5291 = vld [vmem:[%s5275 + $0x3c] sm:$0xf]
        %v5308 = vunpack.c.l.b16 %v5276
        %v5309 = vunpack.c.l.b16 %v5277
        %v5310 = vunpack.c.l.b16 %v5278
        %v5311 = vunpack.c.l.b16 %v5279
        %v5312 = vunpack.c.l.b16 %v5280
        %v5313 = vunpack.c.l.b16 %v5281
        %v5314 = vunpack.c.l.b16 %v5282
        %v5315 = vunpack.c.l.b16 %v5283
        %v5316 = vunpack.c.l.b16 %v5284
        %v5317 = vunpack.c.l.b16 %v5285
        %v5318 = vunpack.c.l.b16 %v5286
        %v5319 = vunpack.c.l.b16 %v5287
        %v5320 = vunpack.c.l.b16 %v5288
        %v5321 = vunpack.c.l.b16 %v5289
        %v5322 = vunpack.c.l.b16 %v5290
        %v5323 = vunpack.c.l.b16 %v5291
        %v5324 = vpack.c.b16 %v5309, %v5308
        %v5325 = vpack.c.b16 %v5311, %v5310
        %v5326 = vpack.c.b16 %v5313, %v5312
        %v5327 = vpack.c.b16 %v5315, %v5314
        %v5328 = vpack.c.b16 %v5317, %v5316
        %v5329 = vpack.c.b16 %v5319, %v5318
        %v5330 = vpack.c.b16 %v5321, %v5320
        %v5331 = vpack.c.b16 %v5323, %v5322
        %5340 = vmatprep.subr.bf16.mxu0 0
        %5341 = vmatpush1.bf16.msra.mxu0 %v5324
        %5342 = vmatprep.subr.bf16.mxu0 0
        %5343 = vmatpush1.bf16.msra.mxu0 %v5325
        %5344 = vmatprep.subr.bf16.mxu0 0
        %5345 = vmatpush1.bf16.msra.mxu0 %v5326
        %5346 = vmatprep.subr.bf16.mxu0 0
        %5347 = vmatpush1.bf16.msra.mxu0 %v5327
        %5348 = vmatprep.subr.bf16.mxu0 0
        %5349 = vmatpush1.bf16.msra.mxu0 %v5328
        %5350 = vmatprep.subr.bf16.mxu0 0
        %5351 = vmatpush1.bf16.msra.mxu0 %v5329
        %5352 = vmatprep.subr.bf16.mxu0 0
        %5353 = vmatpush1.bf16.msra.mxu0 %v5330
        %5354 = vmatprep.subr.bf16.mxu0 0
        %5355 = vmatpush1.bf16.msra.mxu0 %v5331
        %5356 = vmatprep.subr.bf16.mxu0 0
        %5357 = vmatpush1.bf16.msra.mxu0 0
        %5358 = vmatprep.subr.bf16.mxu0 0
        %5359 = vmatpush1.bf16.msra.mxu0 0
        %5360 = vmatprep.subr.bf16.mxu0 0
        %5361 = vmatpush1.bf16.msra.mxu0 0
        %5362 = vmatprep.subr.bf16.mxu0 0
        %5363 = vmatpush1.bf16.msra.mxu0 0
        %5364 = vmatprep.subr.bf16.mxu0 0
        %5365 = vmatpush1.bf16.msra.mxu0 0
        %5366 = vmatprep.subr.bf16.mxu0 0
        %5367 = vmatpush1.bf16.msra.mxu0 0
        %5368 = vmatprep.subr.bf16.mxu0 0
        %5369 = vmatpush1.bf16.msra.mxu0 0
        %5370 = vmatprep.subr.bf16.mxu0 0
        %5371 = vmatpush1.bf16.msra.mxu0 0
        %5372 = vmatprep.mubr.bf16.mxu0 0
        %5373 = vmatmul.mubr.bf16.gmra.mrb[0].mxu0 %v5259
        %v5374 = vpop.f32.mrb[0].mxu0
        %v5375 = vadd.f32 0.0, %v5374
        %v5376 = vpop.f32.mrb[0].mxu0
        %v5377 = vpop.f32.mrb[0].mxu0
        %v5378 = vadd.f32 0.0, %v5377
        %v5379 = vpop.f32.mrb[0].mxu0
        %5380 = vmatprep.mubr.bf16.mxu0 0
        %5381 = vmatmul.mubr.bf16.gmra.mrb[0].mxu0 %v5260
        %v5382 = vpop.f32.mrb[0].mxu0
        %v5383 = vadd.f32 0.0, %v5382
        %v5384 = vpop.f32.mrb[0].mxu0
        %v5385 = vpop.f32.mrb[0].mxu0
        %v5386 = vadd.f32 0.0, %v5385
        %v5387 = vpop.f32.mrb[0].mxu0
        %5388 = vmatprep.mubr.bf16.mxu0 0
        %5389 = vmatmul.mubr.bf16.gmra.mrb[0].mxu0 %v5261
        %v5390 = vpop.f32.mrb[0].mxu0
        %v5391 = vadd.f32 0.0, %v5390
        %v5392 = vpop.f32.mrb[0].mxu0
        %v5393 = vpop.f32.mrb[0].mxu0
        %v5394 = vadd.f32 0.0, %v5393
        %v5395 = vpop.f32.mrb[0].mxu0
        %5396 = vmatprep.mubr.bf16.mxu0 0
        %5397 = vmatmul.mubr.bf16.gmra.mrb[0].mxu0 %v5262
        %v5398 = vpop.f32.mrb[0].mxu0
        %v5399 = vadd.f32 0.0, %v5398
        %v5400 = vpop.f32.mrb[0].mxu0
        %v5401 = vpop.f32.mrb[0].mxu0
        %v5402 = vadd.f32 0.0, %v5401
        %v5403 = vpop.f32.mrb[0].mxu0
        %5404 = vmatprep.mubr.bf16.mxu0 0
        %5405 = vmatmul.mubr.bf16.gmra.mrb[0].mxu0 %v5263
        %v5406 = vpop.f32.mrb[0].mxu0
        %v5407 = vadd.f32 0.0, %v5406
        %v5408 = vpop.f32.mrb[0].mxu0
        %v5409 = vpop.f32.mrb[0].mxu0
        %v5410 = vadd.f32 0.0, %v5409
        %v5411 = vpop.f32.mrb[0].mxu0
        %5412 = vmatprep.mubr.bf16.mxu0 0
        %5413 = vmatmul.mubr.bf16.gmra.mrb[0].mxu0 %v5264
        %v5414 = vpop.f32.mrb[0].mxu0
        %v5415 = vadd.f32 0.0, %v5414
        %v5416 = vpop.f32.mrb[0].mxu0
        %v5417 = vpop.f32.mrb[0].mxu0
        %v5418 = vadd.f32 0.0, %v5417
        %v5419 = vpop.f32.mrb[0].mxu0
        %5420 = vmatprep.mubr.bf16.mxu0 0
        %5421 = vmatmul.mubr.bf16.gmra.mrb[0].mxu0 %v5265
        %v5422 = vpop.f32.mrb[0].mxu0
        %v5423 = vadd.f32 0.0, %v5422
        %v5424 = vpop.f32.mrb[0].mxu0
        %v5425 = vpop.f32.mrb[0].mxu0
        %v5426 = vadd.f32 0.0, %v5425
        %v5427 = vpop.f32.mrb[0].mxu0
        %5428 = vmatprep.mubr.bf16.mxu0 0
        %5429 = vmatmul.mubr.bf16.gmra.mrb[0].mxu0 %v5266
        %v5430 = vpop.f32.mrb[0].mxu0
        %v5431 = vadd.f32 0.0, %v5430
        %v5432 = vpop.f32.mrb[0].mxu0
        %v5433 = vpop.f32.mrb[0].mxu0
        %v5434 = vadd.f32 0.0, %v5433
        %v5435 = vpop.f32.mrb[0].mxu0
        %5436 = vmatprep.mubr.bf16.mxu0 0
        %5437 = vmatmul.mubr.bf16.gmra.mrb[0].mxu0 %v5267
        %v5438 = vpop.f32.mrb[0].mxu0
        %v5439 = vadd.f32 0.0, %v5438
        %v5440 = vpop.f32.mrb[0].mxu0
        %v5441 = vpop.f32.mrb[0].mxu0
        %v5442 = vadd.f32 0.0, %v5441
        %v5443 = vpop.f32.mrb[0].mxu0
        %5444 = vmatprep.mubr.bf16.mxu0 0
        %5445 = vmatmul.mubr.bf16.gmra.mrb[0].mxu0 %v5268
        %v5446 = vpop.f32.mrb[0].mxu0
        %v5447 = vadd.f32 0.0, %v5446
        %v5448 = vpop.f32.mrb[0].mxu0
        %v5449 = vpop.f32.mrb[0].mxu0
        %v5450 = vadd.f32 0.0, %v5449
        %v5451 = vpop.f32.mrb[0].mxu0
        %5452 = vmatprep.mubr.bf16.mxu0 0
        %5453 = vmatmul.mubr.bf16.gmra.mrb[0].mxu0 %v5269
        %v5454 = vpop.f32.mrb[0].mxu0
        %v5455 = vadd.f32 0.0, %v5454
        %v5456 = vpop.f32.mrb[0].mxu0
        %v5457 = vpop.f32.mrb[0].mxu0
        %v5458 = vadd.f32 0.0, %v5457
        %v5459 = vpop.f32.mrb[0].mxu0
        %5460 = vmatprep.mubr.bf16.mxu0 0
        %5461 = vmatmul.mubr.bf16.gmra.mrb[0].mxu0 %v5270
        %v5462 = vpop.f32.mrb[0].mxu0
        %v5463 = vadd.f32 0.0, %v5462
        %v5464 = vpop.f32.mrb[0].mxu0
        %v5465 = vpop.f32.mrb[0].mxu0
        %v5466 = vadd.f32 0.0, %v5465
        %v5467 = vpop.f32.mrb[0].mxu0
        %5468 = vmatprep.mubr.bf16.mxu0 0
        %5469 = vmatmul.mubr.bf16.gmra.mrb[0].mxu0 %v5271
        %v5470 = vpop.f32.mrb[0].mxu0
        %v5471 = vadd.f32 0.0, %v5470
        %v5472 = vpop.f32.mrb[0].mxu0
        %v5473 = vpop.f32.mrb[0].mxu0
        %v5474 = vadd.f32 0.0, %v5473
        %v5475 = vpop.f32.mrb[0].mxu0
        %5476 = vmatprep.mubr.bf16.mxu0 0
        %5477 = vmatmul.mubr.bf16.gmra.mrb[0].mxu0 %v5272
        %v5478 = vpop.f32.mrb[0].mxu0
        %v5479 = vadd.f32 0.0, %v5478
        %v5480 = vpop.f32.mrb[0].mxu0
        %v5481 = vpop.f32.mrb[0].mxu0
        %v5482 = vadd.f32 0.0, %v5481
        %v5483 = vpop.f32.mrb[0].mxu0
        %5484 = vmatprep.mubr.bf16.mxu0 0
        %5485 = vmatmul.mubr.bf16.gmra.mrb[0].mxu0 %v5273
        %v5486 = vpop.f32.mrb[0].mxu0
        %v5487 = vadd.f32 0.0, %v5486
        %v5488 = vpop.f32.mrb[0].mxu0
        %v5489 = vpop.f32.mrb[0].mxu0
        %v5490 = vadd.f32 0.0, %v5489
        %v5491 = vpop.f32.mrb[0].mxu0
        %5492 = vmatprep.mubr.bf16.mxu0 0
        %5493 = vmatmul.mubr.bf16.gmra.mrb[0].mxu0 %v5274
        %v5494 = vpop.f32.mrb[0].mxu0
        %v5495 = vadd.f32 0.0, %v5494
        %v5496 = vpop.f32.mrb[0].mxu0
        %v5497 = vpop.f32.mrb[0].mxu0
        %v5498 = vadd.f32 0.0, %v5497
        %v5499 = vpop.f32.mrb[0].mxu0
        %5500 = vdwg.mxu0
        %v5501 = vadd.f32 %v5163, %v5375
        %v5502 = vadd.f32 %v5164, %v5378
        %v5503 = vadd.f32 %v5165, %v5383
        %v5504 = vadd.f32 %v5166, %v5386
        %v5505 = vadd.f32 %v5167, %v5391
        %v5506 = vadd.f32 %v5168, %v5394
        %v5507 = vadd.f32 %v5169, %v5399
        %v5508 = vadd.f32 %v5170, %v5402
        %v5509 = vadd.f32 %v5171, %v5407
        %v5510 = vadd.f32 %v5172, %v5410
        %v5511 = vadd.f32 %v5173, %v5415
        %v5512 = vadd.f32 %v5174, %v5418
        %v5513 = vadd.f32 %v5175, %v5423
        %v5514 = vadd.f32 %v5176, %v5426
        %v5515 = vadd.f32 %v5177, %v5431
        %v5516 = vadd.f32 %v5178, %v5434
        %v5517 = vadd.f32 %v5179, %v5439
        %v5518 = vadd.f32 %v5180, %v5442
        %v5519 = vadd.f32 %v5181, %v5447
        %v5520 = vadd.f32 %v5182, %v5450
        %v5521 = vadd.f32 %v5183, %v5455
        %v5522 = vadd.f32 %v5184, %v5458
        %v5523 = vadd.f32 %v5185, %v5463
        %v5524 = vadd.f32 %v5186, %v5466
        %v5525 = vadd.f32 %v5187, %v5471
        %v5526 = vadd.f32 %v5188, %v5474
        %v5527 = vadd.f32 %v5189, %v5479
        %v5528 = vadd.f32 %v5190, %v5482
        %v5529 = vadd.f32 %v5191, %v5487
        %v5530 = vadd.f32 %v5192, %v5490
        %v5531 = vadd.f32 %v5193, %v5495
        %v5532 = vadd.f32 %v5194, %v5498
        %v5533 = vld [vmem:[#allocation2 + $0x11] sm:$0xff]
        %v5534 = vld [vmem:[#allocation2 + $0x19] sm:$0xff]
        %v5535 = vld [vmem:[#allocation2 + $0x21] sm:$0xff]
        %v5536 = vld [vmem:[#allocation2 + $0x29] sm:$0xff]
        %v5537 = vld [vmem:[#allocation2 + $0x31] sm:$0xff]
        %v5538 = vld [vmem:[#allocation2 + $0x39] sm:$0xff]
        %v5539 = vld [vmem:[#allocation2 + $0x41] sm:$0xff]
        %v5540 = vld [vmem:[#allocation2 + $0x49] sm:$0xff]
        %v5541 = vld [vmem:[#allocation2 + $0x51] sm:$0xff]
        %v5542 = vld [vmem:[#allocation2 + $0x59] sm:$0xff]
        %v5543 = vld [vmem:[#allocation2 + $0x61] sm:$0xff]
        %v5544 = vld [vmem:[#allocation2 + $0x69] sm:$0xff]
        %v5545 = vld [vmem:[#allocation2 + $0x71] sm:$0xff]
        %v5546 = vld [vmem:[#allocation2 + $0x79] sm:$0xff]
        %v5547 = vld [vmem:[#allocation2 + $0x81] sm:$0xff]
        %v5548 = vld [vmem:[#allocation2 + $0x89] sm:$0xff]
        %v5549 = vld [vmem:[#allocation2 + $0x91] sm:$0xff]
        %v5550 = vld [vmem:[#allocation2 + $0x99] sm:$0xff]
        %v5551 = vld [vmem:[#allocation2 + $0xa1] sm:$0xff]
        %v5552 = vld [vmem:[#allocation2 + $0xa9] sm:$0xff]
        %v5553 = vld [vmem:[#allocation2 + $0xb1] sm:$0xff]
        %v5554 = vld [vmem:[#allocation2 + $0xb9] sm:$0xff]
        %v5555 = vld [vmem:[#allocation2 + $0xc1] sm:$0xff]
        %v5556 = vld [vmem:[#allocation2 + $0xc9] sm:$0xff]
        %v5557 = vld [vmem:[#allocation2 + $0xd1] sm:$0xff]
        %v5558 = vld [vmem:[#allocation2 + $0xd9] sm:$0xff]
        %v5559 = vld [vmem:[#allocation2 + $0xe1] sm:$0xff]
        %v5560 = vld [vmem:[#allocation2 + $0xe9] sm:$0xff]
        %v5561 = vld [vmem:[#allocation2 + $0xf1] sm:$0xff]
        %v5562 = vld [vmem:[#allocation2 + $0xf9] sm:$0xff]
        %v5563 = vld [vmem:[#allocation2 + $0x101] sm:$0xff]
        %v5564 = vld [vmem:[#allocation2 + $0x109] sm:$0xff]
        %v5565 = vpack.c.bf16 %v5534, %v5533
        %v5566 = vpack.c.bf16 %v5536, %v5535
        %v5567 = vpack.c.bf16 %v5538, %v5537
        %v5568 = vpack.c.bf16 %v5540, %v5539
        %v5569 = vpack.c.bf16 %v5542, %v5541
        %v5570 = vpack.c.bf16 %v5544, %v5543
        %v5571 = vpack.c.bf16 %v5546, %v5545
        %v5572 = vpack.c.bf16 %v5548, %v5547
        %v5573 = vpack.c.bf16 %v5550, %v5549
        %v5574 = vpack.c.bf16 %v5552, %v5551
        %v5575 = vpack.c.bf16 %v5554, %v5553
        %v5576 = vpack.c.bf16 %v5556, %v5555
        %v5577 = vpack.c.bf16 %v5558, %v5557
        %v5578 = vpack.c.bf16 %v5560, %v5559
        %v5579 = vpack.c.bf16 %v5562, %v5561
        %v5580 = vpack.c.bf16 %v5564, %v5563
        %s5581 = scalar_lea.vmem %s2, 256
        %v5582 = vld [vmem:[%s5581] sm:$0xf]
        %v5583 = vld [vmem:[%s5581 + $0x4] sm:$0xf]
        %v5584 = vld [vmem:[%s5581 + $0x8] sm:$0xf]
        %v5585 = vld [vmem:[%s5581 + $0xc] sm:$0xf]
        %v5586 = vld [vmem:[%s5581 + $0x10] sm:$0xf]
        %v5587 = vld [vmem:[%s5581 + $0x14] sm:$0xf]
        %v5588 = vld [vmem:[%s5581 + $0x18] sm:$0xf]
        %v5589 = vld [vmem:[%s5581 + $0x1c] sm:$0xf]
        %v5590 = vld [vmem:[%s5581 + $0x20] sm:$0xf]
        %v5591 = vld [vmem:[%s5581 + $0x24] sm:$0xf]
        %v5592 = vld [vmem:[%s5581 + $0x28] sm:$0xf]
        %v5593 = vld [vmem:[%s5581 + $0x2c] sm:$0xf]
        %v5594 = vld [vmem:[%s5581 + $0x30] sm:$0xf]
        %v5595 = vld [vmem:[%s5581 + $0x34] sm:$0xf]
        %v5596 = vld [vmem:[%s5581 + $0x38] sm:$0xf]
        %v5597 = vld [vmem:[%s5581 + $0x3c] sm:$0xf]
        %v5614 = vunpack.c.l.b16 %v5582
        %v5615 = vunpack.c.l.b16 %v5583
        %v5616 = vunpack.c.l.b16 %v5584
        %v5617 = vunpack.c.l.b16 %v5585
        %v5618 = vunpack.c.l.b16 %v5586
        %v5619 = vunpack.c.l.b16 %v5587
        %v5620 = vunpack.c.l.b16 %v5588
        %v5621 = vunpack.c.l.b16 %v5589
        %v5622 = vunpack.c.l.b16 %v5590
        %v5623 = vunpack.c.l.b16 %v5591
        %v5624 = vunpack.c.l.b16 %v5592
        %v5625 = vunpack.c.l.b16 %v5593
        %v5626 = vunpack.c.l.b16 %v5594
        %v5627 = vunpack.c.l.b16 %v5595
        %v5628 = vunpack.c.l.b16 %v5596
        %v5629 = vunpack.c.l.b16 %v5597
        %v5630 = vpack.c.b16 %v5615, %v5614
        %v5631 = vpack.c.b16 %v5617, %v5616
        %v5632 = vpack.c.b16 %v5619, %v5618
        %v5633 = vpack.c.b16 %v5621, %v5620
        %v5634 = vpack.c.b16 %v5623, %v5622
        %v5635 = vpack.c.b16 %v5625, %v5624
        %v5636 = vpack.c.b16 %v5627, %v5626
        %v5637 = vpack.c.b16 %v5629, %v5628
        %5646 = vmatprep.subr.bf16.mxu0 0
        %5647 = vmatpush1.bf16.msra.mxu0 %v5630
        %5648 = vmatprep.subr.bf16.mxu0 0
        %5649 = vmatpush1.bf16.msra.mxu0 %v5631
        %5650 = vmatprep.subr.bf16.mxu0 0
        %5651 = vmatpush1.bf16.msra.mxu0 %v5632
        %5652 = vmatprep.subr.bf16.mxu0 0
        %5653 = vmatpush1.bf16.msra.mxu0 %v5633
        %5654 = vmatprep.subr.bf16.mxu0 0
        %5655 = vmatpush1.bf16.msra.mxu0 %v5634
        %5656 = vmatprep.subr.bf16.mxu0 0
        %5657 = vmatpush1.bf16.msra.mxu0 %v5635
        %5658 = vmatprep.subr.bf16.mxu0 0
        %5659 = vmatpush1.bf16.msra.mxu0 %v5636
        %5660 = vmatprep.subr.bf16.mxu0 0
        %5661 = vmatpush1.bf16.msra.mxu0 %v5637
        %5662 = vmatprep.subr.bf16.mxu0 0
        %5663 = vmatpush1.bf16.msra.mxu0 0
        %5664 = vmatprep.subr.bf16.mxu0 0
        %5665 = vmatpush1.bf16.msra.mxu0 0
        %5666 = vmatprep.subr.bf16.mxu0 0
        %5667 = vmatpush1.bf16.msra.mxu0 0
        %5668 = vmatprep.subr.bf16.mxu0 0
        %5669 = vmatpush1.bf16.msra.mxu0 0
        %5670 = vmatprep.subr.bf16.mxu0 0
        %5671 = vmatpush1.bf16.msra.mxu0 0
        %5672 = vmatprep.subr.bf16.mxu0 0
        %5673 = vmatpush1.bf16.msra.mxu0 0
        %5674 = vmatprep.subr.bf16.mxu0 0
        %5675 = vmatpush1.bf16.msra.mxu0 0
        %5676 = vmatprep.subr.bf16.mxu0 0
        %5677 = vmatpush1.bf16.msra.mxu0 0
        %5678 = vmatprep.mubr.bf16.mxu0 0
        %5679 = vmatmul.mubr.bf16.gmra.mrb[0].mxu0 %v5565
        %v5680 = vpop.f32.mrb[0].mxu0
        %v5681 = vadd.f32 0.0, %v5680
        %v5682 = vpop.f32.mrb[0].mxu0
        %v5683 = vpop.f32.mrb[0].mxu0
        %v5684 = vadd.f32 0.0, %v5683
        %v5685 = vpop.f32.mrb[0].mxu0
        %5686 = vmatprep.mubr.bf16.mxu0 0
        %5687 = vmatmul.mubr.bf16.gmra.mrb[0].mxu0 %v5566
        %v5688 = vpop.f32.mrb[0].mxu0
        %v5689 = vadd.f32 0.0, %v5688
        %v5690 = vpop.f32.mrb[0].mxu0
        %v5691 = vpop.f32.mrb[0].mxu0
        %v5692 = vadd.f32 0.0, %v5691
        %v5693 = vpop.f32.mrb[0].mxu0
        %5694 = vmatprep.mubr.bf16.mxu0 0
        %5695 = vmatmul.mubr.bf16.gmra.mrb[0].mxu0 %v5567
        %v5696 = vpop.f32.mrb[0].mxu0
        %v5697 = vadd.f32 0.0, %v5696
        %v5698 = vpop.f32.mrb[0].mxu0
        %v5699 = vpop.f32.mrb[0].mxu0
        %v5700 = vadd.f32 0.0, %v5699
        %v5701 = vpop.f32.mrb[0].mxu0
        %5702 = vmatprep.mubr.bf16.mxu0 0
        %5703 = vmatmul.mubr.bf16.gmra.mrb[0].mxu0 %v5568
        %v5704 = vpop.f32.mrb[0].mxu0
        %v5705 = vadd.f32 0.0, %v5704
        %v5706 = vpop.f32.mrb[0].mxu0
        %v5707 = vpop.f32.mrb[0].mxu0
        %v5708 = vadd.f32 0.0, %v5707
        %v5709 = vpop.f32.mrb[0].mxu0
        %5710 = vmatprep.mubr.bf16.mxu0 0
        %5711 = vmatmul.mubr.bf16.gmra.mrb[0].mxu0 %v5569
        %v5712 = vpop.f32.mrb[0].mxu0
        %v5713 = vadd.f32 0.0, %v5712
        %v5714 = vpop.f32.mrb[0].mxu0
        %v5715 = vpop.f32.mrb[0].mxu0
        %v5716 = vadd.f32 0.0, %v5715
        %v5717 = vpop.f32.mrb[0].mxu0
        %5718 = vmatprep.mubr.bf16.mxu0 0
        %5719 = vmatmul.mubr.bf16.gmra.mrb[0].mxu0 %v5570
        %v5720 = vpop.f32.mrb[0].mxu0
        %v5721 = vadd.f32 0.0, %v5720
        %v5722 = vpop.f32.mrb[0].mxu0
        %v5723 = vpop.f32.mrb[0].mxu0
        %v5724 = vadd.f32 0.0, %v5723
        %v5725 = vpop.f32.mrb[0].mxu0
        %5726 = vmatprep.mubr.bf16.mxu0 0
        %5727 = vmatmul.mubr.bf16.gmra.mrb[0].mxu0 %v5571
        %v5728 = vpop.f32.mrb[0].mxu0
        %v5729 = vadd.f32 0.0, %v5728
        %v5730 = vpop.f32.mrb[0].mxu0
        %v5731 = vpop.f32.mrb[0].mxu0
        %v5732 = vadd.f32 0.0, %v5731
        %v5733 = vpop.f32.mrb[0].mxu0
        %5734 = vmatprep.mubr.bf16.mxu0 0
        %5735 = vmatmul.mubr.bf16.gmra.mrb[0].mxu0 %v5572
        %v5736 = vpop.f32.mrb[0].mxu0
        %v5737 = vadd.f32 0.0, %v5736
        %v5738 = vpop.f32.mrb[0].mxu0
        %v5739 = vpop.f32.mrb[0].mxu0
        %v5740 = vadd.f32 0.0, %v5739
        %v5741 = vpop.f32.mrb[0].mxu0
        %5742 = vmatprep.mubr.bf16.mxu0 0
        %5743 = vmatmul.mubr.bf16.gmra.mrb[0].mxu0 %v5573
        %v5744 = vpop.f32.mrb[0].mxu0
        %v5745 = vadd.f32 0.0, %v5744
        %v5746 = vpop.f32.mrb[0].mxu0
        %v5747 = vpop.f32.mrb[0].mxu0
        %v5748 = vadd.f32 0.0, %v5747
        %v5749 = vpop.f32.mrb[0].mxu0
        %5750 = vmatprep.mubr.bf16.mxu0 0
        %5751 = vmatmul.mubr.bf16.gmra.mrb[0].mxu0 %v5574
        %v5752 = vpop.f32.mrb[0].mxu0
        %v5753 = vadd.f32 0.0, %v5752
        %v5754 = vpop.f32.mrb[0].mxu0
        %v5755 = vpop.f32.mrb[0].mxu0
        %v5756 = vadd.f32 0.0, %v5755
        %v5757 = vpop.f32.mrb[0].mxu0
        %5758 = vmatprep.mubr.bf16.mxu0 0
        %5759 = vmatmul.mubr.bf16.gmra.mrb[0].mxu0 %v5575
        %v5760 = vpop.f32.mrb[0].mxu0
        %v5761 = vadd.f32 0.0, %v5760
        %v5762 = vpop.f32.mrb[0].mxu0
        %v5763 = vpop.f32.mrb[0].mxu0
        %v5764 = vadd.f32 0.0, %v5763
        %v5765 = vpop.f32.mrb[0].mxu0
        %5766 = vmatprep.mubr.bf16.mxu0 0
        %5767 = vmatmul.mubr.bf16.gmra.mrb[0].mxu0 %v5576
        %v5768 = vpop.f32.mrb[0].mxu0
        %v5769 = vadd.f32 0.0, %v5768
        %v5770 = vpop.f32.mrb[0].mxu0
        %v5771 = vpop.f32.mrb[0].mxu0
        %v5772 = vadd.f32 0.0, %v5771
        %v5773 = vpop.f32.mrb[0].mxu0
        %5774 = vmatprep.mubr.bf16.mxu0 0
        %5775 = vmatmul.mubr.bf16.gmra.mrb[0].mxu0 %v5577
        %v5776 = vpop.f32.mrb[0].mxu0
        %v5777 = vadd.f32 0.0, %v5776
        %v5778 = vpop.f32.mrb[0].mxu0
        %v5779 = vpop.f32.mrb[0].mxu0
        %v5780 = vadd.f32 0.0, %v5779
        %v5781 = vpop.f32.mrb[0].mxu0
        %5782 = vmatprep.mubr.bf16.mxu0 0
        %5783 = vmatmul.mubr.bf16.gmra.mrb[0].mxu0 %v5578
        %v5784 = vpop.f32.mrb[0].mxu0
        %v5785 = vadd.f32 0.0, %v5784
        %v5786 = vpop.f32.mrb[0].mxu0
        %v5787 = vpop.f32.mrb[0].mxu0
        %v5788 = vadd.f32 0.0, %v5787
        %v5789 = vpop.f32.mrb[0].mxu0
        %5790 = vmatprep.mubr.bf16.mxu0 0
        %5791 = vmatmul.mubr.bf16.gmra.mrb[0].mxu0 %v5579
        %v5792 = vpop.f32.mrb[0].mxu0
        %v5793 = vadd.f32 0.0, %v5792
        %v5794 = vpop.f32.mrb[0].mxu0
        %v5795 = vpop.f32.mrb[0].mxu0
        %v5796 = vadd.f32 0.0, %v5795
        %v5797 = vpop.f32.mrb[0].mxu0
        %5798 = vmatprep.mubr.bf16.mxu0 0
        %5799 = vmatmul.mubr.bf16.gmra.mrb[0].mxu0 %v5580
        %v5800 = vpop.f32.mrb[0].mxu0
        %v5801 = vadd.f32 0.0, %v5800
        %v5802 = vpop.f32.mrb[0].mxu0
        %v5803 = vpop.f32.mrb[0].mxu0
        %v5804 = vadd.f32 0.0, %v5803
        %v5805 = vpop.f32.mrb[0].mxu0
        %5806 = vdwg.mxu0
        %v5807 = vadd.f32 %v5501, %v5681
        %v5808 = vadd.f32 %v5502, %v5684
        %v5809 = vadd.f32 %v5503, %v5689
        %v5810 = vadd.f32 %v5504, %v5692
        %v5811 = vadd.f32 %v5505, %v5697
        %v5812 = vadd.f32 %v5506, %v5700
        %v5813 = vadd.f32 %v5507, %v5705
        %v5814 = vadd.f32 %v5508, %v5708
        %v5815 = vadd.f32 %v5509, %v5713
        %v5816 = vadd.f32 %v5510, %v5716
        %v5817 = vadd.f32 %v5511, %v5721
        %v5818 = vadd.f32 %v5512, %v5724
        %v5819 = vadd.f32 %v5513, %v5729
        %v5820 = vadd.f32 %v5514, %v5732
        %v5821 = vadd.f32 %v5515, %v5737
        %v5822 = vadd.f32 %v5516, %v5740
        %v5823 = vadd.f32 %v5517, %v5745
        %v5824 = vadd.f32 %v5518, %v5748
        %v5825 = vadd.f32 %v5519, %v5753
        %v5826 = vadd.f32 %v5520, %v5756
        %v5827 = vadd.f32 %v5521, %v5761
        %v5828 = vadd.f32 %v5522, %v5764
        %v5829 = vadd.f32 %v5523, %v5769
        %v5830 = vadd.f32 %v5524, %v5772
        %v5831 = vadd.f32 %v5525, %v5777
        %v5832 = vadd.f32 %v5526, %v5780
        %v5833 = vadd.f32 %v5527, %v5785
        %v5834 = vadd.f32 %v5528, %v5788
        %v5835 = vadd.f32 %v5529, %v5793
        %v5836 = vadd.f32 %v5530, %v5796
        %v5837 = vadd.f32 %v5531, %v5801
        %v5838 = vadd.f32 %v5532, %v5804
        %v5839 = vld [vmem:[#allocation2 + $0x12] sm:$0xff]
        %v5840 = vld [vmem:[#allocation2 + $0x1a] sm:$0xff]
        %v5841 = vld [vmem:[#allocation2 + $0x22] sm:$0xff]
        %v5842 = vld [vmem:[#allocation2 + $0x2a] sm:$0xff]
        %v5843 = vld [vmem:[#allocation2 + $0x32] sm:$0xff]
        %v5844 = vld [vmem:[#allocation2 + $0x3a] sm:$0xff]
        %v5845 = vld [vmem:[#allocation2 + $0x42] sm:$0xff]
        %v5846 = vld [vmem:[#allocation2 + $0x4a] sm:$0xff]
        %v5847 = vld [vmem:[#allocation2 + $0x52] sm:$0xff]
        %v5848 = vld [vmem:[#allocation2 + $0x5a] sm:$0xff]
        %v5849 = vld [vmem:[#allocation2 + $0x62] sm:$0xff]
        %v5850 = vld [vmem:[#allocation2 + $0x6a] sm:$0xff]
        %v5851 = vld [vmem:[#allocation2 + $0x72] sm:$0xff]
        %v5852 = vld [vmem:[#allocation2 + $0x7a] sm:$0xff]
        %v5853 = vld [vmem:[#allocation2 + $0x82] sm:$0xff]
        %v5854 = vld [vmem:[#allocation2 + $0x8a] sm:$0xff]
        %v5855 = vld [vmem:[#allocation2 + $0x92] sm:$0xff]
        %v5856 = vld [vmem:[#allocation2 + $0x9a] sm:$0xff]
        %v5857 = vld [vmem:[#allocation2 + $0xa2] sm:$0xff]
        %v5858 = vld [vmem:[#allocation2 + $0xaa] sm:$0xff]
        %v5859 = vld [vmem:[#allocation2 + $0xb2] sm:$0xff]
        %v5860 = vld [vmem:[#allocation2 + $0xba] sm:$0xff]
        %v5861 = vld [vmem:[#allocation2 + $0xc2] sm:$0xff]
        %v5862 = vld [vmem:[#allocation2 + $0xca] sm:$0xff]
        %v5863 = vld [vmem:[#allocation2 + $0xd2] sm:$0xff]
        %v5864 = vld [vmem:[#allocation2 + $0xda] sm:$0xff]
        %v5865 = vld [vmem:[#allocation2 + $0xe2] sm:$0xff]
        %v5866 = vld [vmem:[#allocation2 + $0xea] sm:$0xff]
        %v5867 = vld [vmem:[#allocation2 + $0xf2] sm:$0xff]
        %v5868 = vld [vmem:[#allocation2 + $0xfa] sm:$0xff]
        %v5869 = vld [vmem:[#allocation2 + $0x102] sm:$0xff]
        %v5870 = vld [vmem:[#allocation2 + $0x10a] sm:$0xff]
        %v5871 = vmul.f32 %v5839, %v4732
        %v5872 = vmul.f32 %v5840, %v4737
        %v5873 = vmul.f32 %v5841, %v4742
        %v5874 = vmul.f32 %v5842, %v4747
        %v5875 = vmul.f32 %v5843, %v4752
        %v5876 = vmul.f32 %v5844, %v4757
        %v5877 = vmul.f32 %v5845, %v4762
        %v5878 = vmul.f32 %v5846, %v4767
        %v5879 = vmul.f32 %v5847, %v4772
        %v5880 = vmul.f32 %v5848, %v4777
        %v5881 = vmul.f32 %v5849, %v4782
        %v5882 = vmul.f32 %v5850, %v4787
        %v5883 = vmul.f32 %v5851, %v4792
        %v5884 = vmul.f32 %v5852, %v4797
        %v5885 = vmul.f32 %v5853, %v4802
        %v5886 = vmul.f32 %v5854, %v4807
        %v5887 = vmul.f32 %v5855, %v4812
        %v5888 = vmul.f32 %v5856, %v4817
        %v5889 = vmul.f32 %v5857, %v4822
        %v5890 = vmul.f32 %v5858, %v4827
        %v5891 = vmul.f32 %v5859, %v4832
        %v5892 = vmul.f32 %v5860, %v4837
        %v5893 = vmul.f32 %v5861, %v4842
        %v5894 = vmul.f32 %v5862, %v4847
        %v5895 = vmul.f32 %v5863, %v4852
        %v5896 = vmul.f32 %v5864, %v4857
        %v5897 = vmul.f32 %v5865, %v4862
        %v5898 = vmul.f32 %v5866, %v4867
        %v5899 = vmul.f32 %v5867, %v4872
        %v5900 = vmul.f32 %v5868, %v4877
        %v5901 = vmul.f32 %v5869, %v4882
        %v5902 = vmul.f32 %v5870, %v4887
        %v5903 = vpack.c.bf16 %v5872, %v5871
        %v5904 = vpack.c.bf16 %v5874, %v5873
        %v5905 = vpack.c.bf16 %v5876, %v5875
        %v5906 = vpack.c.bf16 %v5878, %v5877
        %v5907 = vpack.c.bf16 %v5880, %v5879
        %v5908 = vpack.c.bf16 %v5882, %v5881
        %v5909 = vpack.c.bf16 %v5884, %v5883
        %v5910 = vpack.c.bf16 %v5886, %v5885
        %v5911 = vpack.c.bf16 %v5888, %v5887
        %v5912 = vpack.c.bf16 %v5890, %v5889
        %v5913 = vpack.c.bf16 %v5892, %v5891
        %v5914 = vpack.c.bf16 %v5894, %v5893
        %v5915 = vpack.c.bf16 %v5896, %v5895
        %v5916 = vpack.c.bf16 %v5898, %v5897
        %v5917 = vpack.c.bf16 %v5900, %v5899
        %v5918 = vpack.c.bf16 %v5902, %v5901
        %s5919 = scalar_lea.vmem %s2, 320
        %v5920 = vld [vmem:[%s5919] sm:$0xf]
        %v5921 = vld [vmem:[%s5919 + $0x4] sm:$0xf]
        %v5922 = vld [vmem:[%s5919 + $0x8] sm:$0xf]
        %v5923 = vld [vmem:[%s5919 + $0xc] sm:$0xf]
        %v5924 = vld [vmem:[%s5919 + $0x10] sm:$0xf]
        %v5925 = vld [vmem:[%s5919 + $0x14] sm:$0xf]
        %v5926 = vld [vmem:[%s5919 + $0x18] sm:$0xf]
        %v5927 = vld [vmem:[%s5919 + $0x1c] sm:$0xf]
        %v5928 = vld [vmem:[%s5919 + $0x20] sm:$0xf]
        %v5929 = vld [vmem:[%s5919 + $0x24] sm:$0xf]
        %v5930 = vld [vmem:[%s5919 + $0x28] sm:$0xf]
        %v5931 = vld [vmem:[%s5919 + $0x2c] sm:$0xf]
        %v5932 = vld [vmem:[%s5919 + $0x30] sm:$0xf]
        %v5933 = vld [vmem:[%s5919 + $0x34] sm:$0xf]
        %v5934 = vld [vmem:[%s5919 + $0x38] sm:$0xf]
        %v5935 = vld [vmem:[%s5919 + $0x3c] sm:$0xf]
        %v5952 = vunpack.c.l.b16 %v5920
        %v5953 = vunpack.c.l.b16 %v5921
        %v5954 = vunpack.c.l.b16 %v5922
        %v5955 = vunpack.c.l.b16 %v5923
        %v5956 = vunpack.c.l.b16 %v5924
        %v5957 = vunpack.c.l.b16 %v5925
        %v5958 = vunpack.c.l.b16 %v5926
        %v5959 = vunpack.c.l.b16 %v5927
        %v5960 = vunpack.c.l.b16 %v5928
        %v5961 = vunpack.c.l.b16 %v5929
        %v5962 = vunpack.c.l.b16 %v5930
        %v5963 = vunpack.c.l.b16 %v5931
        %v5964 = vunpack.c.l.b16 %v5932
        %v5965 = vunpack.c.l.b16 %v5933
        %v5966 = vunpack.c.l.b16 %v5934
        %v5967 = vunpack.c.l.b16 %v5935
        %v5968 = vpack.c.b16 %v5953, %v5952
        %v5969 = vpack.c.b16 %v5955, %v5954
        %v5970 = vpack.c.b16 %v5957, %v5956
        %v5971 = vpack.c.b16 %v5959, %v5958
        %v5972 = vpack.c.b16 %v5961, %v5960
        %v5973 = vpack.c.b16 %v5963, %v5962
        %v5974 = vpack.c.b16 %v5965, %v5964
        %v5975 = vpack.c.b16 %v5967, %v5966
        %5984 = vmatprep.subr.bf16.mxu0 0
        %5985 = vmatpush1.bf16.msra.mxu0 %v5968
        %5986 = vmatprep.subr.bf16.mxu0 0
        %5987 = vmatpush1.bf16.msra.mxu0 %v5969
        %5988 = vmatprep.subr.bf16.mxu0 0
        %5989 = vmatpush1.bf16.msra.mxu0 %v5970
        %5990 = vmatprep.subr.bf16.mxu0 0
        %5991 = vmatpush1.bf16.msra.mxu0 %v5971
        %5992 = vmatprep.subr.bf16.mxu0 0
        %5993 = vmatpush1.bf16.msra.mxu0 %v5972
        %5994 = vmatprep.subr.bf16.mxu0 0
        %5995 = vmatpush1.bf16.msra.mxu0 %v5973
        %5996 = vmatprep.subr.bf16.mxu0 0
        %5997 = vmatpush1.bf16.msra.mxu0 %v5974
        %5998 = vmatprep.subr.bf16.mxu0 0
        %5999 = vmatpush1.bf16.msra.mxu0 %v5975
        %6000 = vmatprep.subr.bf16.mxu0 0
        %6001 = vmatpush1.bf16.msra.mxu0 0
        %6002 = vmatprep.subr.bf16.mxu0 0
        %6003 = vmatpush1.bf16.msra.mxu0 0
        %6004 = vmatprep.subr.bf16.mxu0 0
        %6005 = vmatpush1.bf16.msra.mxu0 0
        %6006 = vmatprep.subr.bf16.mxu0 0
        %6007 = vmatpush1.bf16.msra.mxu0 0
        %6008 = vmatprep.subr.bf16.mxu0 0
        %6009 = vmatpush1.bf16.msra.mxu0 0
        %6010 = vmatprep.subr.bf16.mxu0 0
        %6011 = vmatpush1.bf16.msra.mxu0 0
        %6012 = vmatprep.subr.bf16.mxu0 0
        %6013 = vmatpush1.bf16.msra.mxu0 0
        %6014 = vmatprep.subr.bf16.mxu0 0
        %6015 = vmatpush1.bf16.msra.mxu0 0
        %6016 = vmatprep.mubr.bf16.mxu0 0
        %6017 = vmatmul.mubr.bf16.gmra.mrb[0].mxu0 %v5903
        %v6018 = vpop.f32.mrb[0].mxu0
        %v6019 = vadd.f32 0.0, %v6018
        %v6020 = vpop.f32.mrb[0].mxu0
        %v6021 = vpop.f32.mrb[0].mxu0
        %v6022 = vadd.f32 0.0, %v6021
        %v6023 = vpop.f32.mrb[0].mxu0
        %6024 = vmatprep.mubr.bf16.mxu0 0
        %6025 = vmatmul.mubr.bf16.gmra.mrb[0].mxu0 %v5904
        %v6026 = vpop.f32.mrb[0].mxu0
        %v6027 = vadd.f32 0.0, %v6026
        %v6028 = vpop.f32.mrb[0].mxu0
        %v6029 = vpop.f32.mrb[0].mxu0
        %v6030 = vadd.f32 0.0, %v6029
        %v6031 = vpop.f32.mrb[0].mxu0
        %6032 = vmatprep.mubr.bf16.mxu0 0
        %6033 = vmatmul.mubr.bf16.gmra.mrb[0].mxu0 %v5905
        %v6034 = vpop.f32.mrb[0].mxu0
        %v6035 = vadd.f32 0.0, %v6034
        %v6036 = vpop.f32.mrb[0].mxu0
        %v6037 = vpop.f32.mrb[0].mxu0
        %v6038 = vadd.f32 0.0, %v6037
        %v6039 = vpop.f32.mrb[0].mxu0
        %6040 = vmatprep.mubr.bf16.mxu0 0
        %6041 = vmatmul.mubr.bf16.gmra.mrb[0].mxu0 %v5906
        %v6042 = vpop.f32.mrb[0].mxu0
        %v6043 = vadd.f32 0.0, %v6042
        %v6044 = vpop.f32.mrb[0].mxu0
        %v6045 = vpop.f32.mrb[0].mxu0
        %v6046 = vadd.f32 0.0, %v6045
        %v6047 = vpop.f32.mrb[0].mxu0
        %6048 = vmatprep.mubr.bf16.mxu0 0
        %6049 = vmatmul.mubr.bf16.gmra.mrb[0].mxu0 %v5907
        %v6050 = vpop.f32.mrb[0].mxu0
        %v6051 = vadd.f32 0.0, %v6050
        %v6052 = vpop.f32.mrb[0].mxu0
        %v6053 = vpop.f32.mrb[0].mxu0
        %v6054 = vadd.f32 0.0, %v6053
        %v6055 = vpop.f32.mrb[0].mxu0
        %6056 = vmatprep.mubr.bf16.mxu0 0
        %6057 = vmatmul.mubr.bf16.gmra.mrb[0].mxu0 %v5908
        %v6058 = vpop.f32.mrb[0].mxu0
        %v6059 = vadd.f32 0.0, %v6058
        %v6060 = vpop.f32.mrb[0].mxu0
        %v6061 = vpop.f32.mrb[0].mxu0
        %v6062 = vadd.f32 0.0, %v6061
        %v6063 = vpop.f32.mrb[0].mxu0
        %6064 = vmatprep.mubr.bf16.mxu0 0
        %6065 = vmatmul.mubr.bf16.gmra.mrb[0].mxu0 %v5909
        %v6066 = vpop.f32.mrb[0].mxu0
        %v6067 = vadd.f32 0.0, %v6066
        %v6068 = vpop.f32.mrb[0].mxu0
        %v6069 = vpop.f32.mrb[0].mxu0
        %v6070 = vadd.f32 0.0, %v6069
        %v6071 = vpop.f32.mrb[0].mxu0
        %6072 = vmatprep.mubr.bf16.mxu0 0
        %6073 = vmatmul.mubr.bf16.gmra.mrb[0].mxu0 %v5910
        %v6074 = vpop.f32.mrb[0].mxu0
        %v6075 = vadd.f32 0.0, %v6074
        %v6076 = vpop.f32.mrb[0].mxu0
        %v6077 = vpop.f32.mrb[0].mxu0
        %v6078 = vadd.f32 0.0, %v6077
        %v6079 = vpop.f32.mrb[0].mxu0
        %6080 = vmatprep.mubr.bf16.mxu0 0
        %6081 = vmatmul.mubr.bf16.gmra.mrb[0].mxu0 %v5911
        %v6082 = vpop.f32.mrb[0].mxu0
        %v6083 = vadd.f32 0.0, %v6082
        %v6084 = vpop.f32.mrb[0].mxu0
        %v6085 = vpop.f32.mrb[0].mxu0
        %v6086 = vadd.f32 0.0, %v6085
        %v6087 = vpop.f32.mrb[0].mxu0
        %6088 = vmatprep.mubr.bf16.mxu0 0
        %6089 = vmatmul.mubr.bf16.gmra.mrb[0].mxu0 %v5912
        %v6090 = vpop.f32.mrb[0].mxu0
        %v6091 = vadd.f32 0.0, %v6090
        %v6092 = vpop.f32.mrb[0].mxu0
        %v6093 = vpop.f32.mrb[0].mxu0
        %v6094 = vadd.f32 0.0, %v6093
        %v6095 = vpop.f32.mrb[0].mxu0
        %6096 = vmatprep.mubr.bf16.mxu0 0
        %6097 = vmatmul.mubr.bf16.gmra.mrb[0].mxu0 %v5913
        %v6098 = vpop.f32.mrb[0].mxu0
        %v6099 = vadd.f32 0.0, %v6098
        %v6100 = vpop.f32.mrb[0].mxu0
        %v6101 = vpop.f32.mrb[0].mxu0
        %v6102 = vadd.f32 0.0, %v6101
        %v6103 = vpop.f32.mrb[0].mxu0
        %6104 = vmatprep.mubr.bf16.mxu0 0
        %6105 = vmatmul.mubr.bf16.gmra.mrb[0].mxu0 %v5914
        %v6106 = vpop.f32.mrb[0].mxu0
        %v6107 = vadd.f32 0.0, %v6106
        %v6108 = vpop.f32.mrb[0].mxu0
        %v6109 = vpop.f32.mrb[0].mxu0
        %v6110 = vadd.f32 0.0, %v6109
        %v6111 = vpop.f32.mrb[0].mxu0
        %6112 = vmatprep.mubr.bf16.mxu0 0
        %6113 = vmatmul.mubr.bf16.gmra.mrb[0].mxu0 %v5915
        %v6114 = vpop.f32.mrb[0].mxu0
        %v6115 = vadd.f32 0.0, %v6114
        %v6116 = vpop.f32.mrb[0].mxu0
        %v6117 = vpop.f32.mrb[0].mxu0
        %v6118 = vadd.f32 0.0, %v6117
        %v6119 = vpop.f32.mrb[0].mxu0
        %6120 = vmatprep.mubr.bf16.mxu0 0
        %6121 = vmatmul.mubr.bf16.gmra.mrb[0].mxu0 %v5916
        %v6122 = vpop.f32.mrb[0].mxu0
        %v6123 = vadd.f32 0.0, %v6122
        %v6124 = vpop.f32.mrb[0].mxu0
        %v6125 = vpop.f32.mrb[0].mxu0
        %v6126 = vadd.f32 0.0, %v6125
        %v6127 = vpop.f32.mrb[0].mxu0
        %6128 = vmatprep.mubr.bf16.mxu0 0
        %6129 = vmatmul.mubr.bf16.gmra.mrb[0].mxu0 %v5917
        %v6130 = vpop.f32.mrb[0].mxu0
        %v6131 = vadd.f32 0.0, %v6130
        %v6132 = vpop.f32.mrb[0].mxu0
        %v6133 = vpop.f32.mrb[0].mxu0
        %v6134 = vadd.f32 0.0, %v6133
        %v6135 = vpop.f32.mrb[0].mxu0
        %6136 = vmatprep.mubr.bf16.mxu0 0
        %6137 = vmatmul.mubr.bf16.gmra.mrb[0].mxu0 %v5918
        %v6138 = vpop.f32.mrb[0].mxu0
        %v6139 = vadd.f32 0.0, %v6138
        %v6140 = vpop.f32.mrb[0].mxu0
        %v6141 = vpop.f32.mrb[0].mxu0
        %v6142 = vadd.f32 0.0, %v6141
        %v6143 = vpop.f32.mrb[0].mxu0
        %6144 = vdwg.mxu0
        %v6145 = vadd.f32 %v5807, %v6019
        %v6146 = vadd.f32 %v5808, %v6022
        %v6147 = vadd.f32 %v5809, %v6027
        %v6148 = vadd.f32 %v5810, %v6030
        %v6149 = vadd.f32 %v5811, %v6035
        %v6150 = vadd.f32 %v5812, %v6038
        %v6151 = vadd.f32 %v5813, %v6043
        %v6152 = vadd.f32 %v5814, %v6046
        %v6153 = vadd.f32 %v5815, %v6051
        %v6154 = vadd.f32 %v5816, %v6054
        %v6155 = vadd.f32 %v5817, %v6059
        %v6156 = vadd.f32 %v5818, %v6062
        %v6157 = vadd.f32 %v5819, %v6067
        %v6158 = vadd.f32 %v5820, %v6070
        %v6159 = vadd.f32 %v5821, %v6075
        %v6160 = vadd.f32 %v5822, %v6078
        %v6161 = vadd.f32 %v5823, %v6083
        %v6162 = vadd.f32 %v5824, %v6086
        %v6163 = vadd.f32 %v5825, %v6091
        %v6164 = vadd.f32 %v5826, %v6094
        %v6165 = vadd.f32 %v5827, %v6099
        %v6166 = vadd.f32 %v5828, %v6102
        %v6167 = vadd.f32 %v5829, %v6107
        %v6168 = vadd.f32 %v5830, %v6110
        %v6169 = vadd.f32 %v5831, %v6115
        %v6170 = vadd.f32 %v5832, %v6118
        %v6171 = vadd.f32 %v5833, %v6123
        %v6172 = vadd.f32 %v5834, %v6126
        %v6173 = vadd.f32 %v5835, %v6131
        %v6174 = vadd.f32 %v5836, %v6134
        %v6175 = vadd.f32 %v5837, %v6139
        %v6176 = vadd.f32 %v5838, %v6142
        %v6177 = vld [vmem:[#allocation2 + $0x20] sm:$0xff]
        %v6178 = vld [vmem:[#allocation2 + $0x28] sm:$0xff]
        %v6179 = vld [vmem:[#allocation2 + $0x30] sm:$0xff]
        %v6180 = vld [vmem:[#allocation2 + $0x38] sm:$0xff]
        %v6181 = vld [vmem:[#allocation2 + $0x40] sm:$0xff]
        %v6182 = vld [vmem:[#allocation2 + $0x48] sm:$0xff]
        %v6183 = vld [vmem:[#allocation2 + $0x50] sm:$0xff]
        %v6184 = vld [vmem:[#allocation2 + $0x58] sm:$0xff]
        %v6185 = vld [vmem:[#allocation2 + $0x60] sm:$0xff]
        %v6186 = vld [vmem:[#allocation2 + $0x68] sm:$0xff]
        %v6187 = vld [vmem:[#allocation2 + $0x70] sm:$0xff]
        %v6188 = vld [vmem:[#allocation2 + $0x78] sm:$0xff]
        %v6189 = vld [vmem:[#allocation2 + $0x80] sm:$0xff]
        %v6190 = vld [vmem:[#allocation2 + $0x88] sm:$0xff]
        %v6191 = vld [vmem:[#allocation2 + $0x90] sm:$0xff]
        %v6192 = vld [vmem:[#allocation2 + $0x98] sm:$0xff]
        %v6193 = vld [vmem:[#allocation2 + $0xa0] sm:$0xff]
        %v6194 = vld [vmem:[#allocation2 + $0xa8] sm:$0xff]
        %v6195 = vld [vmem:[#allocation2 + $0xb0] sm:$0xff]
        %v6196 = vld [vmem:[#allocation2 + $0xb8] sm:$0xff]
        %v6197 = vld [vmem:[#allocation2 + $0xc0] sm:$0xff]
        %v6198 = vld [vmem:[#allocation2 + $0xc8] sm:$0xff]
        %v6199 = vld [vmem:[#allocation2 + $0xd0] sm:$0xff]
        %v6200 = vld [vmem:[#allocation2 + $0xd8] sm:$0xff]
        %v6201 = vld [vmem:[#allocation2 + $0xe0] sm:$0xff]
        %v6202 = vld [vmem:[#allocation2 + $0xe8] sm:$0xff]
        %v6203 = vld [vmem:[#allocation2 + $0xf0] sm:$0xff]
        %v6204 = vld [vmem:[#allocation2 + $0xf8] sm:$0xff]
        %v6205 = vld [vmem:[#allocation2 + $0x100] sm:$0xff]
        %v6206 = vld [vmem:[#allocation2 + $0x108] sm:$0xff]
        %v6207 = vld [vmem:[#allocation2 + $0x110] sm:$0xff]
        %v6208 = vld [vmem:[#allocation2 + $0x118] sm:$0xff]
        %v6209 = vmul.f32 %v6177, %v3961
        %v6210 = vmul.f32 %v6178, %v3966
        %v6211 = vmul.f32 %v6179, %v3971
        %v6212 = vmul.f32 %v6180, %v3976
        %v6213 = vmul.f32 %v6181, %v3981
        %v6214 = vmul.f32 %v6182, %v3986
        %v6215 = vmul.f32 %v6183, %v3991
        %v6216 = vmul.f32 %v6184, %v3996
        %v6217 = vmul.f32 %v6185, %v4001
        %v6218 = vmul.f32 %v6186, %v4006
        %v6219 = vmul.f32 %v6187, %v4011
        %v6220 = vmul.f32 %v6188, %v4016
        %v6221 = vmul.f32 %v6189, %v4021
        %v6222 = vmul.f32 %v6190, %v4026
        %v6223 = vmul.f32 %v6191, %v4031
        %v6224 = vmul.f32 %v6192, %v4036
        %v6225 = vmul.f32 %v6193, %v4041
        %v6226 = vmul.f32 %v6194, %v4046
        %v6227 = vmul.f32 %v6195, %v4051
        %v6228 = vmul.f32 %v6196, %v4056
        %v6229 = vmul.f32 %v6197, %v4061
        %v6230 = vmul.f32 %v6198, %v4066
        %v6231 = vmul.f32 %v6199, %v4071
        %v6232 = vmul.f32 %v6200, %v4076
        %v6233 = vmul.f32 %v6201, %v4081
        %v6234 = vmul.f32 %v6202, %v4086
        %v6235 = vmul.f32 %v6203, %v4091
        %v6236 = vmul.f32 %v6204, %v4096
        %v6237 = vmul.f32 %v6205, %v4101
        %v6238 = vmul.f32 %v6206, %v4106
        %v6239 = vmul.f32 %v6207, %v4111
        %v6240 = vmul.f32 %v6208, %v4116
        %v6241 = vpack.c.bf16 %v6210, %v6209
        %v6242 = vpack.c.bf16 %v6212, %v6211
        %v6243 = vpack.c.bf16 %v6214, %v6213
        %v6244 = vpack.c.bf16 %v6216, %v6215
        %v6245 = vpack.c.bf16 %v6218, %v6217
        %v6246 = vpack.c.bf16 %v6220, %v6219
        %v6247 = vpack.c.bf16 %v6222, %v6221
        %v6248 = vpack.c.bf16 %v6224, %v6223
        %v6249 = vpack.c.bf16 %v6226, %v6225
        %v6250 = vpack.c.bf16 %v6228, %v6227
        %v6251 = vpack.c.bf16 %v6230, %v6229
        %v6252 = vpack.c.bf16 %v6232, %v6231
        %v6253 = vpack.c.bf16 %v6234, %v6233
        %v6254 = vpack.c.bf16 %v6236, %v6235
        %v6255 = vpack.c.bf16 %v6238, %v6237
        %v6256 = vpack.c.bf16 %v6240, %v6239
        %s6257 = scalar_lea.vmem %s2, 384
        %v6258 = vld [vmem:[%s6257] sm:$0xf]
        %v6259 = vld [vmem:[%s6257 + $0x4] sm:$0xf]
        %v6260 = vld [vmem:[%s6257 + $0x8] sm:$0xf]
        %v6261 = vld [vmem:[%s6257 + $0xc] sm:$0xf]
        %v6262 = vld [vmem:[%s6257 + $0x10] sm:$0xf]
        %v6263 = vld [vmem:[%s6257 + $0x14] sm:$0xf]
        %v6264 = vld [vmem:[%s6257 + $0x18] sm:$0xf]
        %v6265 = vld [vmem:[%s6257 + $0x1c] sm:$0xf]
        %v6266 = vld [vmem:[%s6257 + $0x20] sm:$0xf]
        %v6267 = vld [vmem:[%s6257 + $0x24] sm:$0xf]
        %v6268 = vld [vmem:[%s6257 + $0x28] sm:$0xf]
        %v6269 = vld [vmem:[%s6257 + $0x2c] sm:$0xf]
        %v6270 = vld [vmem:[%s6257 + $0x30] sm:$0xf]
        %v6271 = vld [vmem:[%s6257 + $0x34] sm:$0xf]
        %v6272 = vld [vmem:[%s6257 + $0x38] sm:$0xf]
        %v6273 = vld [vmem:[%s6257 + $0x3c] sm:$0xf]
        %v6290 = vunpack.c.l.b16 %v6258
        %v6291 = vunpack.c.l.b16 %v6259
        %v6292 = vunpack.c.l.b16 %v6260
        %v6293 = vunpack.c.l.b16 %v6261
        %v6294 = vunpack.c.l.b16 %v6262
        %v6295 = vunpack.c.l.b16 %v6263
        %v6296 = vunpack.c.l.b16 %v6264
        %v6297 = vunpack.c.l.b16 %v6265
        %v6298 = vunpack.c.l.b16 %v6266
        %v6299 = vunpack.c.l.b16 %v6267
        %v6300 = vunpack.c.l.b16 %v6268
        %v6301 = vunpack.c.l.b16 %v6269
        %v6302 = vunpack.c.l.b16 %v6270
        %v6303 = vunpack.c.l.b16 %v6271
        %v6304 = vunpack.c.l.b16 %v6272
        %v6305 = vunpack.c.l.b16 %v6273
        %v6306 = vpack.c.b16 %v6291, %v6290
        %v6307 = vpack.c.b16 %v6293, %v6292
        %v6308 = vpack.c.b16 %v6295, %v6294
        %v6309 = vpack.c.b16 %v6297, %v6296
        %v6310 = vpack.c.b16 %v6299, %v6298
        %v6311 = vpack.c.b16 %v6301, %v6300
        %v6312 = vpack.c.b16 %v6303, %v6302
        %v6313 = vpack.c.b16 %v6305, %v6304
        %6322 = vmatprep.subr.bf16.mxu0 0
        %6323 = vmatpush1.bf16.msra.mxu0 %v6306
        %6324 = vmatprep.subr.bf16.mxu0 0
        %6325 = vmatpush1.bf16.msra.mxu0 %v6307
        %6326 = vmatprep.subr.bf16.mxu0 0
        %6327 = vmatpush1.bf16.msra.mxu0 %v6308
        %6328 = vmatprep.subr.bf16.mxu0 0
        %6329 = vmatpush1.bf16.msra.mxu0 %v6309
        %6330 = vmatprep.subr.bf16.mxu0 0
        %6331 = vmatpush1.bf16.msra.mxu0 %v6310
        %6332 = vmatprep.subr.bf16.mxu0 0
        %6333 = vmatpush1.bf16.msra.mxu0 %v6311
        %6334 = vmatprep.subr.bf16.mxu0 0
        %6335 = vmatpush1.bf16.msra.mxu0 %v6312
        %6336 = vmatprep.subr.bf16.mxu0 0
        %6337 = vmatpush1.bf16.msra.mxu0 %v6313
        %6338 = vmatprep.subr.bf16.mxu0 0
        %6339 = vmatpush1.bf16.msra.mxu0 0
        %6340 = vmatprep.subr.bf16.mxu0 0
        %6341 = vmatpush1.bf16.msra.mxu0 0
        %6342 = vmatprep.subr.bf16.mxu0 0
        %6343 = vmatpush1.bf16.msra.mxu0 0
        %6344 = vmatprep.subr.bf16.mxu0 0
        %6345 = vmatpush1.bf16.msra.mxu0 0
        %6346 = vmatprep.subr.bf16.mxu0 0
        %6347 = vmatpush1.bf16.msra.mxu0 0
        %6348 = vmatprep.subr.bf16.mxu0 0
        %6349 = vmatpush1.bf16.msra.mxu0 0
        %6350 = vmatprep.subr.bf16.mxu0 0
        %6351 = vmatpush1.bf16.msra.mxu0 0
        %6352 = vmatprep.subr.bf16.mxu0 0
        %6353 = vmatpush1.bf16.msra.mxu0 0
        %6354 = vmatprep.mubr.bf16.mxu0 0
        %6355 = vmatmul.mubr.bf16.gmra.mrb[0].mxu0 %v6241
        %v6356 = vpop.f32.mrb[0].mxu0
        %v6357 = vadd.f32 0.0, %v6356
        %v6358 = vpop.f32.mrb[0].mxu0
        %v6359 = vpop.f32.mrb[0].mxu0
        %v6360 = vadd.f32 0.0, %v6359
        %v6361 = vpop.f32.mrb[0].mxu0
        %6362 = vmatprep.mubr.bf16.mxu0 0
        %6363 = vmatmul.mubr.bf16.gmra.mrb[0].mxu0 %v6242
        %v6364 = vpop.f32.mrb[0].mxu0
        %v6365 = vadd.f32 0.0, %v6364
        %v6366 = vpop.f32.mrb[0].mxu0
        %v6367 = vpop.f32.mrb[0].mxu0
        %v6368 = vadd.f32 0.0, %v6367
        %v6369 = vpop.f32.mrb[0].mxu0
        %6370 = vmatprep.mubr.bf16.mxu0 0
        %6371 = vmatmul.mubr.bf16.gmra.mrb[0].mxu0 %v6243
        %v6372 = vpop.f32.mrb[0].mxu0
        %v6373 = vadd.f32 0.0, %v6372
        %v6374 = vpop.f32.mrb[0].mxu0
        %v6375 = vpop.f32.mrb[0].mxu0
        %v6376 = vadd.f32 0.0, %v6375
        %v6377 = vpop.f32.mrb[0].mxu0
        %6378 = vmatprep.mubr.bf16.mxu0 0
        %6379 = vmatmul.mubr.bf16.gmra.mrb[0].mxu0 %v6244
        %v6380 = vpop.f32.mrb[0].mxu0
        %v6381 = vadd.f32 0.0, %v6380
        %v6382 = vpop.f32.mrb[0].mxu0
        %v6383 = vpop.f32.mrb[0].mxu0
        %v6384 = vadd.f32 0.0, %v6383
        %v6385 = vpop.f32.mrb[0].mxu0
        %6386 = vmatprep.mubr.bf16.mxu0 0
        %6387 = vmatmul.mubr.bf16.gmra.mrb[0].mxu0 %v6245
        %v6388 = vpop.f32.mrb[0].mxu0
        %v6389 = vadd.f32 0.0, %v6388
        %v6390 = vpop.f32.mrb[0].mxu0
        %v6391 = vpop.f32.mrb[0].mxu0
        %v6392 = vadd.f32 0.0, %v6391
        %v6393 = vpop.f32.mrb[0].mxu0
        %6394 = vmatprep.mubr.bf16.mxu0 0
        %6395 = vmatmul.mubr.bf16.gmra.mrb[0].mxu0 %v6246
        %v6396 = vpop.f32.mrb[0].mxu0
        %v6397 = vadd.f32 0.0, %v6396
        %v6398 = vpop.f32.mrb[0].mxu0
        %v6399 = vpop.f32.mrb[0].mxu0
        %v6400 = vadd.f32 0.0, %v6399
        %v6401 = vpop.f32.mrb[0].mxu0
        %6402 = vmatprep.mubr.bf16.mxu0 0
        %6403 = vmatmul.mubr.bf16.gmra.mrb[0].mxu0 %v6247
        %v6404 = vpop.f32.mrb[0].mxu0
        %v6405 = vadd.f32 0.0, %v6404
        %v6406 = vpop.f32.mrb[0].mxu0
        %v6407 = vpop.f32.mrb[0].mxu0
        %v6408 = vadd.f32 0.0, %v6407
        %v6409 = vpop.f32.mrb[0].mxu0
        %6410 = vmatprep.mubr.bf16.mxu0 0
        %6411 = vmatmul.mubr.bf16.gmra.mrb[0].mxu0 %v6248
        %v6412 = vpop.f32.mrb[0].mxu0
        %v6413 = vadd.f32 0.0, %v6412
        %v6414 = vpop.f32.mrb[0].mxu0
        %v6415 = vpop.f32.mrb[0].mxu0
        %v6416 = vadd.f32 0.0, %v6415
        %v6417 = vpop.f32.mrb[0].mxu0
        %6418 = vmatprep.mubr.bf16.mxu0 0
        %6419 = vmatmul.mubr.bf16.gmra.mrb[0].mxu0 %v6249
        %v6420 = vpop.f32.mrb[0].mxu0
        %v6421 = vadd.f32 0.0, %v6420
        %v6422 = vpop.f32.mrb[0].mxu0
        %v6423 = vpop.f32.mrb[0].mxu0
        %v6424 = vadd.f32 0.0, %v6423
        %v6425 = vpop.f32.mrb[0].mxu0
        %6426 = vmatprep.mubr.bf16.mxu0 0
        %6427 = vmatmul.mubr.bf16.gmra.mrb[0].mxu0 %v6250
        %v6428 = vpop.f32.mrb[0].mxu0
        %v6429 = vadd.f32 0.0, %v6428
        %v6430 = vpop.f32.mrb[0].mxu0
        %v6431 = vpop.f32.mrb[0].mxu0
        %v6432 = vadd.f32 0.0, %v6431
        %v6433 = vpop.f32.mrb[0].mxu0
        %6434 = vmatprep.mubr.bf16.mxu0 0
        %6435 = vmatmul.mubr.bf16.gmra.mrb[0].mxu0 %v6251
        %v6436 = vpop.f32.mrb[0].mxu0
        %v6437 = vadd.f32 0.0, %v6436
        %v6438 = vpop.f32.mrb[0].mxu0
        %v6439 = vpop.f32.mrb[0].mxu0
        %v6440 = vadd.f32 0.0, %v6439
        %v6441 = vpop.f32.mrb[0].mxu0
        %6442 = vmatprep.mubr.bf16.mxu0 0
        %6443 = vmatmul.mubr.bf16.gmra.mrb[0].mxu0 %v6252
        %v6444 = vpop.f32.mrb[0].mxu0
        %v6445 = vadd.f32 0.0, %v6444
        %v6446 = vpop.f32.mrb[0].mxu0
        %v6447 = vpop.f32.mrb[0].mxu0
        %v6448 = vadd.f32 0.0, %v6447
        %v6449 = vpop.f32.mrb[0].mxu0
        %6450 = vmatprep.mubr.bf16.mxu0 0
        %6451 = vmatmul.mubr.bf16.gmra.mrb[0].mxu0 %v6253
        %v6452 = vpop.f32.mrb[0].mxu0
        %v6453 = vadd.f32 0.0, %v6452
        %v6454 = vpop.f32.mrb[0].mxu0
        %v6455 = vpop.f32.mrb[0].mxu0
        %v6456 = vadd.f32 0.0, %v6455
        %v6457 = vpop.f32.mrb[0].mxu0
        %6458 = vmatprep.mubr.bf16.mxu0 0
        %6459 = vmatmul.mubr.bf16.gmra.mrb[0].mxu0 %v6254
        %v6460 = vpop.f32.mrb[0].mxu0
        %v6461 = vadd.f32 0.0, %v6460
        %v6462 = vpop.f32.mrb[0].mxu0
        %v6463 = vpop.f32.mrb[0].mxu0
        %v6464 = vadd.f32 0.0, %v6463
        %v6465 = vpop.f32.mrb[0].mxu0
        %6466 = vmatprep.mubr.bf16.mxu0 0
        %6467 = vmatmul.mubr.bf16.gmra.mrb[0].mxu0 %v6255
        %v6468 = vpop.f32.mrb[0].mxu0
        %v6469 = vadd.f32 0.0, %v6468
        %v6470 = vpop.f32.mrb[0].mxu0
        %v6471 = vpop.f32.mrb[0].mxu0
        %v6472 = vadd.f32 0.0, %v6471
        %v6473 = vpop.f32.mrb[0].mxu0
        %6474 = vmatprep.mubr.bf16.mxu0 0
        %6475 = vmatmul.mubr.bf16.gmra.mrb[0].mxu0 %v6256
        %v6476 = vpop.f32.mrb[0].mxu0
        %v6477 = vadd.f32 0.0, %v6476
        %v6478 = vpop.f32.mrb[0].mxu0
        %v6479 = vpop.f32.mrb[0].mxu0
        %v6480 = vadd.f32 0.0, %v6479
        %v6481 = vpop.f32.mrb[0].mxu0
        %6482 = vdwg.mxu0
        %v6483 = vadd.f32 %v6145, %v6357
        %v6484 = vadd.f32 %v6146, %v6360
        %v6485 = vadd.f32 %v6147, %v6365
        %v6486 = vadd.f32 %v6148, %v6368
        %v6487 = vadd.f32 %v6149, %v6373
        %v6488 = vadd.f32 %v6150, %v6376
        %v6489 = vadd.f32 %v6151, %v6381
        %v6490 = vadd.f32 %v6152, %v6384
        %v6491 = vadd.f32 %v6153, %v6389
        %v6492 = vadd.f32 %v6154, %v6392
        %v6493 = vadd.f32 %v6155, %v6397
        %v6494 = vadd.f32 %v6156, %v6400
        %v6495 = vadd.f32 %v6157, %v6405
        %v6496 = vadd.f32 %v6158, %v6408
        %v6497 = vadd.f32 %v6159, %v6413
        %v6498 = vadd.f32 %v6160, %v6416
        %v6499 = vadd.f32 %v6161, %v6421
        %v6500 = vadd.f32 %v6162, %v6424
        %v6501 = vadd.f32 %v6163, %v6429
        %v6502 = vadd.f32 %v6164, %v6432
        %v6503 = vadd.f32 %v6165, %v6437
        %v6504 = vadd.f32 %v6166, %v6440
        %v6505 = vadd.f32 %v6167, %v6445
        %v6506 = vadd.f32 %v6168, %v6448
        %v6507 = vadd.f32 %v6169, %v6453
        %v6508 = vadd.f32 %v6170, %v6456
        %v6509 = vadd.f32 %v6171, %v6461
        %v6510 = vadd.f32 %v6172, %v6464
        %v6511 = vadd.f32 %v6173, %v6469
        %v6512 = vadd.f32 %v6174, %v6472
        %v6513 = vadd.f32 %v6175, %v6477
        %v6514 = vadd.f32 %v6176, %v6480
        %v6515 = vld [vmem:[#allocation2 + $0x21] sm:$0xff]
        %v6516 = vld [vmem:[#allocation2 + $0x29] sm:$0xff]
        %v6517 = vld [vmem:[#allocation2 + $0x31] sm:$0xff]
        %v6518 = vld [vmem:[#allocation2 + $0x39] sm:$0xff]
        %v6519 = vld [vmem:[#allocation2 + $0x41] sm:$0xff]
        %v6520 = vld [vmem:[#allocation2 + $0x49] sm:$0xff]
        %v6521 = vld [vmem:[#allocation2 + $0x51] sm:$0xff]
        %v6522 = vld [vmem:[#allocation2 + $0x59] sm:$0xff]
        %v6523 = vld [vmem:[#allocation2 + $0x61] sm:$0xff]
        %v6524 = vld [vmem:[#allocation2 + $0x69] sm:$0xff]
        %v6525 = vld [vmem:[#allocation2 + $0x71] sm:$0xff]
        %v6526 = vld [vmem:[#allocation2 + $0x79] sm:$0xff]
        %v6527 = vld [vmem:[#allocation2 + $0x81] sm:$0xff]
        %v6528 = vld [vmem:[#allocation2 + $0x89] sm:$0xff]
        %v6529 = vld [vmem:[#allocation2 + $0x91] sm:$0xff]
        %v6530 = vld [vmem:[#allocation2 + $0x99] sm:$0xff]
        %v6531 = vld [vmem:[#allocation2 + $0xa1] sm:$0xff]
        %v6532 = vld [vmem:[#allocation2 + $0xa9] sm:$0xff]
        %v6533 = vld [vmem:[#allocation2 + $0xb1] sm:$0xff]
        %v6534 = vld [vmem:[#allocation2 + $0xb9] sm:$0xff]
        %v6535 = vld [vmem:[#allocation2 + $0xc1] sm:$0xff]
        %v6536 = vld [vmem:[#allocation2 + $0xc9] sm:$0xff]
        %v6537 = vld [vmem:[#allocation2 + $0xd1] sm:$0xff]
        %v6538 = vld [vmem:[#allocation2 + $0xd9] sm:$0xff]
        %v6539 = vld [vmem:[#allocation2 + $0xe1] sm:$0xff]
        %v6540 = vld [vmem:[#allocation2 + $0xe9] sm:$0xff]
        %v6541 = vld [vmem:[#allocation2 + $0xf1] sm:$0xff]
        %v6542 = vld [vmem:[#allocation2 + $0xf9] sm:$0xff]
        %v6543 = vld [vmem:[#allocation2 + $0x101] sm:$0xff]
        %v6544 = vld [vmem:[#allocation2 + $0x109] sm:$0xff]
        %v6545 = vld [vmem:[#allocation2 + $0x111] sm:$0xff]
        %v6546 = vld [vmem:[#allocation2 + $0x119] sm:$0xff]
        %v6547 = vpack.c.bf16 %v6516, %v6515
        %v6548 = vpack.c.bf16 %v6518, %v6517
        %v6549 = vpack.c.bf16 %v6520, %v6519
        %v6550 = vpack.c.bf16 %v6522, %v6521
        %v6551 = vpack.c.bf16 %v6524, %v6523
        %v6552 = vpack.c.bf16 %v6526, %v6525
        %v6553 = vpack.c.bf16 %v6528, %v6527
        %v6554 = vpack.c.bf16 %v6530, %v6529
        %v6555 = vpack.c.bf16 %v6532, %v6531
        %v6556 = vpack.c.bf16 %v6534, %v6533
        %v6557 = vpack.c.bf16 %v6536, %v6535
        %v6558 = vpack.c.bf16 %v6538, %v6537
        %v6559 = vpack.c.bf16 %v6540, %v6539
        %v6560 = vpack.c.bf16 %v6542, %v6541
        %v6561 = vpack.c.bf16 %v6544, %v6543
        %v6562 = vpack.c.bf16 %v6546, %v6545
        %s6563 = scalar_lea.vmem %s2, 448
        %v6564 = vld [vmem:[%s6563] sm:$0xf]
        %v6565 = vld [vmem:[%s6563 + $0x4] sm:$0xf]
        %v6566 = vld [vmem:[%s6563 + $0x8] sm:$0xf]
        %v6567 = vld [vmem:[%s6563 + $0xc] sm:$0xf]
        %v6568 = vld [vmem:[%s6563 + $0x10] sm:$0xf]
        %v6569 = vld [vmem:[%s6563 + $0x14] sm:$0xf]
        %v6570 = vld [vmem:[%s6563 + $0x18] sm:$0xf]
        %v6571 = vld [vmem:[%s6563 + $0x1c] sm:$0xf]
        %v6572 = vld [vmem:[%s6563 + $0x20] sm:$0xf]
        %v6573 = vld [vmem:[%s6563 + $0x24] sm:$0xf]
        %v6574 = vld [vmem:[%s6563 + $0x28] sm:$0xf]
        %v6575 = vld [vmem:[%s6563 + $0x2c] sm:$0xf]
        %v6576 = vld [vmem:[%s6563 + $0x30] sm:$0xf]
        %v6577 = vld [vmem:[%s6563 + $0x34] sm:$0xf]
        %v6578 = vld [vmem:[%s6563 + $0x38] sm:$0xf]
        %v6579 = vld [vmem:[%s6563 + $0x3c] sm:$0xf]
        %v6596 = vunpack.c.l.b16 %v6564
        %v6597 = vunpack.c.l.b16 %v6565
        %v6598 = vunpack.c.l.b16 %v6566
        %v6599 = vunpack.c.l.b16 %v6567
        %v6600 = vunpack.c.l.b16 %v6568
        %v6601 = vunpack.c.l.b16 %v6569
        %v6602 = vunpack.c.l.b16 %v6570
        %v6603 = vunpack.c.l.b16 %v6571
        %v6604 = vunpack.c.l.b16 %v6572
        %v6605 = vunpack.c.l.b16 %v6573
        %v6606 = vunpack.c.l.b16 %v6574
        %v6607 = vunpack.c.l.b16 %v6575
        %v6608 = vunpack.c.l.b16 %v6576
        %v6609 = vunpack.c.l.b16 %v6577
        %v6610 = vunpack.c.l.b16 %v6578
        %v6611 = vunpack.c.l.b16 %v6579
        %v6612 = vpack.c.b16 %v6597, %v6596
        %v6613 = vpack.c.b16 %v6599, %v6598
        %v6614 = vpack.c.b16 %v6601, %v6600
        %v6615 = vpack.c.b16 %v6603, %v6602
        %v6616 = vpack.c.b16 %v6605, %v6604
        %v6617 = vpack.c.b16 %v6607, %v6606
        %v6618 = vpack.c.b16 %v6609, %v6608
        %v6619 = vpack.c.b16 %v6611, %v6610
        %6628 = vmatprep.subr.bf16.mxu0 0
        %6629 = vmatpush1.bf16.msra.mxu0 %v6612
        %6630 = vmatprep.subr.bf16.mxu0 0
        %6631 = vmatpush1.bf16.msra.mxu0 %v6613
        %6632 = vmatprep.subr.bf16.mxu0 0
        %6633 = vmatpush1.bf16.msra.mxu0 %v6614
        %6634 = vmatprep.subr.bf16.mxu0 0
        %6635 = vmatpush1.bf16.msra.mxu0 %v6615
        %6636 = vmatprep.subr.bf16.mxu0 0
        %6637 = vmatpush1.bf16.msra.mxu0 %v6616
        %6638 = vmatprep.subr.bf16.mxu0 0
        %6639 = vmatpush1.bf16.msra.mxu0 %v6617
        %6640 = vmatprep.subr.bf16.mxu0 0
        %6641 = vmatpush1.bf16.msra.mxu0 %v6618
        %6642 = vmatprep.subr.bf16.mxu0 0
        %6643 = vmatpush1.bf16.msra.mxu0 %v6619
        %6644 = vmatprep.subr.bf16.mxu0 0
        %6645 = vmatpush1.bf16.msra.mxu0 0
        %6646 = vmatprep.subr.bf16.mxu0 0
        %6647 = vmatpush1.bf16.msra.mxu0 0
        %6648 = vmatprep.subr.bf16.mxu0 0
        %6649 = vmatpush1.bf16.msra.mxu0 0
        %6650 = vmatprep.subr.bf16.mxu0 0
        %6651 = vmatpush1.bf16.msra.mxu0 0
        %6652 = vmatprep.subr.bf16.mxu0 0
        %6653 = vmatpush1.bf16.msra.mxu0 0
        %6654 = vmatprep.subr.bf16.mxu0 0
        %6655 = vmatpush1.bf16.msra.mxu0 0
        %6656 = vmatprep.subr.bf16.mxu0 0
        %6657 = vmatpush1.bf16.msra.mxu0 0
        %6658 = vmatprep.subr.bf16.mxu0 0
        %6659 = vmatpush1.bf16.msra.mxu0 0
        %6660 = vmatprep.mubr.bf16.mxu0 0
        %6661 = vmatmul.mubr.bf16.gmra.mrb[0].mxu0 %v6547
        %v6662 = vpop.f32.mrb[0].mxu0
        %v6663 = vadd.f32 0.0, %v6662
        %v6664 = vpop.f32.mrb[0].mxu0
        %v6665 = vpop.f32.mrb[0].mxu0
        %v6666 = vadd.f32 0.0, %v6665
        %v6667 = vpop.f32.mrb[0].mxu0
        %6668 = vmatprep.mubr.bf16.mxu0 0
        %6669 = vmatmul.mubr.bf16.gmra.mrb[0].mxu0 %v6548
        %v6670 = vpop.f32.mrb[0].mxu0
        %v6671 = vadd.f32 0.0, %v6670
        %v6672 = vpop.f32.mrb[0].mxu0
        %v6673 = vpop.f32.mrb[0].mxu0
        %v6674 = vadd.f32 0.0, %v6673
        %v6675 = vpop.f32.mrb[0].mxu0
        %6676 = vmatprep.mubr.bf16.mxu0 0
        %6677 = vmatmul.mubr.bf16.gmra.mrb[0].mxu0 %v6549
        %v6678 = vpop.f32.mrb[0].mxu0
        %v6679 = vadd.f32 0.0, %v6678
        %v6680 = vpop.f32.mrb[0].mxu0
        %v6681 = vpop.f32.mrb[0].mxu0
        %v6682 = vadd.f32 0.0, %v6681
        %v6683 = vpop.f32.mrb[0].mxu0
        %6684 = vmatprep.mubr.bf16.mxu0 0
        %6685 = vmatmul.mubr.bf16.gmra.mrb[0].mxu0 %v6550
        %v6686 = vpop.f32.mrb[0].mxu0
        %v6687 = vadd.f32 0.0, %v6686
        %v6688 = vpop.f32.mrb[0].mxu0
        %v6689 = vpop.f32.mrb[0].mxu0
        %v6690 = vadd.f32 0.0, %v6689
        %v6691 = vpop.f32.mrb[0].mxu0
        %6692 = vmatprep.mubr.bf16.mxu0 0
        %6693 = vmatmul.mubr.bf16.gmra.mrb[0].mxu0 %v6551
        %v6694 = vpop.f32.mrb[0].mxu0
        %v6695 = vadd.f32 0.0, %v6694
        %v6696 = vpop.f32.mrb[0].mxu0
        %v6697 = vpop.f32.mrb[0].mxu0
        %v6698 = vadd.f32 0.0, %v6697
        %v6699 = vpop.f32.mrb[0].mxu0
        %6700 = vmatprep.mubr.bf16.mxu0 0
        %6701 = vmatmul.mubr.bf16.gmra.mrb[0].mxu0 %v6552
        %v6702 = vpop.f32.mrb[0].mxu0
        %v6703 = vadd.f32 0.0, %v6702
        %v6704 = vpop.f32.mrb[0].mxu0
        %v6705 = vpop.f32.mrb[0].mxu0
        %v6706 = vadd.f32 0.0, %v6705
        %v6707 = vpop.f32.mrb[0].mxu0
        %6708 = vmatprep.mubr.bf16.mxu0 0
        %6709 = vmatmul.mubr.bf16.gmra.mrb[0].mxu0 %v6553
        %v6710 = vpop.f32.mrb[0].mxu0
        %v6711 = vadd.f32 0.0, %v6710
        %v6712 = vpop.f32.mrb[0].mxu0
        %v6713 = vpop.f32.mrb[0].mxu0
        %v6714 = vadd.f32 0.0, %v6713
        %v6715 = vpop.f32.mrb[0].mxu0
        %6716 = vmatprep.mubr.bf16.mxu0 0
        %6717 = vmatmul.mubr.bf16.gmra.mrb[0].mxu0 %v6554
        %v6718 = vpop.f32.mrb[0].mxu0
        %v6719 = vadd.f32 0.0, %v6718
        %v6720 = vpop.f32.mrb[0].mxu0
        %v6721 = vpop.f32.mrb[0].mxu0
        %v6722 = vadd.f32 0.0, %v6721
        %v6723 = vpop.f32.mrb[0].mxu0
        %6724 = vmatprep.mubr.bf16.mxu0 0
        %6725 = vmatmul.mubr.bf16.gmra.mrb[0].mxu0 %v6555
        %v6726 = vpop.f32.mrb[0].mxu0
        %v6727 = vadd.f32 0.0, %v6726
        %v6728 = vpop.f32.mrb[0].mxu0
        %v6729 = vpop.f32.mrb[0].mxu0
        %v6730 = vadd.f32 0.0, %v6729
        %v6731 = vpop.f32.mrb[0].mxu0
        %6732 = vmatprep.mubr.bf16.mxu0 0
        %6733 = vmatmul.mubr.bf16.gmra.mrb[0].mxu0 %v6556
        %v6734 = vpop.f32.mrb[0].mxu0
        %v6735 = vadd.f32 0.0, %v6734
        %v6736 = vpop.f32.mrb[0].mxu0
        %v6737 = vpop.f32.mrb[0].mxu0
        %v6738 = vadd.f32 0.0, %v6737
        %v6739 = vpop.f32.mrb[0].mxu0
        %6740 = vmatprep.mubr.bf16.mxu0 0
        %6741 = vmatmul.mubr.bf16.gmra.mrb[0].mxu0 %v6557
        %v6742 = vpop.f32.mrb[0].mxu0
        %v6743 = vadd.f32 0.0, %v6742
        %v6744 = vpop.f32.mrb[0].mxu0
        %v6745 = vpop.f32.mrb[0].mxu0
        %v6746 = vadd.f32 0.0, %v6745
        %v6747 = vpop.f32.mrb[0].mxu0
        %6748 = vmatprep.mubr.bf16.mxu0 0
        %6749 = vmatmul.mubr.bf16.gmra.mrb[0].mxu0 %v6558
        %v6750 = vpop.f32.mrb[0].mxu0
        %v6751 = vadd.f32 0.0, %v6750
        %v6752 = vpop.f32.mrb[0].mxu0
        %v6753 = vpop.f32.mrb[0].mxu0
        %v6754 = vadd.f32 0.0, %v6753
        %v6755 = vpop.f32.mrb[0].mxu0
        %6756 = vmatprep.mubr.bf16.mxu0 0
        %6757 = vmatmul.mubr.bf16.gmra.mrb[0].mxu0 %v6559
        %v6758 = vpop.f32.mrb[0].mxu0
        %v6759 = vadd.f32 0.0, %v6758
        %v6760 = vpop.f32.mrb[0].mxu0
        %v6761 = vpop.f32.mrb[0].mxu0
        %v6762 = vadd.f32 0.0, %v6761
        %v6763 = vpop.f32.mrb[0].mxu0
        %6764 = vmatprep.mubr.bf16.mxu0 0
        %6765 = vmatmul.mubr.bf16.gmra.mrb[0].mxu0 %v6560
        %v6766 = vpop.f32.mrb[0].mxu0
        %v6767 = vadd.f32 0.0, %v6766
        %v6768 = vpop.f32.mrb[0].mxu0
        %v6769 = vpop.f32.mrb[0].mxu0
        %v6770 = vadd.f32 0.0, %v6769
        %v6771 = vpop.f32.mrb[0].mxu0
        %6772 = vmatprep.mubr.bf16.mxu0 0
        %6773 = vmatmul.mubr.bf16.gmra.mrb[0].mxu0 %v6561
        %v6774 = vpop.f32.mrb[0].mxu0
        %v6775 = vadd.f32 0.0, %v6774
        %v6776 = vpop.f32.mrb[0].mxu0
        %v6777 = vpop.f32.mrb[0].mxu0
        %v6778 = vadd.f32 0.0, %v6777
        %v6779 = vpop.f32.mrb[0].mxu0
        %6780 = vmatprep.mubr.bf16.mxu0 0
        %6781 = vmatmul.mubr.bf16.gmra.mrb[0].mxu0 %v6562
        %v6782 = vpop.f32.mrb[0].mxu0
        %v6783 = vadd.f32 0.0, %v6782
        %v6784 = vpop.f32.mrb[0].mxu0
        %v6785 = vpop.f32.mrb[0].mxu0
        %v6786 = vadd.f32 0.0, %v6785
        %v6787 = vpop.f32.mrb[0].mxu0
        %6788 = vdwg.mxu0
        %v6789 = vadd.f32 %v6483, %v6663
        %v6790 = vadd.f32 %v6484, %v6666
        %v6791 = vadd.f32 %v6485, %v6671
        %v6792 = vadd.f32 %v6486, %v6674
        %v6793 = vadd.f32 %v6487, %v6679
        %v6794 = vadd.f32 %v6488, %v6682
        %v6795 = vadd.f32 %v6489, %v6687
        %v6796 = vadd.f32 %v6490, %v6690
        %v6797 = vadd.f32 %v6491, %v6695
        %v6798 = vadd.f32 %v6492, %v6698
        %v6799 = vadd.f32 %v6493, %v6703
        %v6800 = vadd.f32 %v6494, %v6706
        %v6801 = vadd.f32 %v6495, %v6711
        %v6802 = vadd.f32 %v6496, %v6714
        %v6803 = vadd.f32 %v6497, %v6719
        %v6804 = vadd.f32 %v6498, %v6722
        %v6805 = vadd.f32 %v6499, %v6727
        %v6806 = vadd.f32 %v6500, %v6730
        %v6807 = vadd.f32 %v6501, %v6735
        %v6808 = vadd.f32 %v6502, %v6738
        %v6809 = vadd.f32 %v6503, %v6743
        %v6810 = vadd.f32 %v6504, %v6746
        %v6811 = vadd.f32 %v6505, %v6751
        %v6812 = vadd.f32 %v6506, %v6754
        %v6813 = vadd.f32 %v6507, %v6759
        %v6814 = vadd.f32 %v6508, %v6762
        %v6815 = vadd.f32 %v6509, %v6767
        %v6816 = vadd.f32 %v6510, %v6770
        %v6817 = vadd.f32 %v6511, %v6775
        %v6818 = vadd.f32 %v6512, %v6778
        %v6819 = vadd.f32 %v6513, %v6783
        %v6820 = vadd.f32 %v6514, %v6786
        %v6821 = vld [vmem:[#allocation2 + $0x22] sm:$0xff]
        %v6822 = vld [vmem:[#allocation2 + $0x2a] sm:$0xff]
        %v6823 = vld [vmem:[#allocation2 + $0x32] sm:$0xff]
        %v6824 = vld [vmem:[#allocation2 + $0x3a] sm:$0xff]
        %v6825 = vld [vmem:[#allocation2 + $0x42] sm:$0xff]
        %v6826 = vld [vmem:[#allocation2 + $0x4a] sm:$0xff]
        %v6827 = vld [vmem:[#allocation2 + $0x52] sm:$0xff]
        %v6828 = vld [vmem:[#allocation2 + $0x5a] sm:$0xff]
        %v6829 = vld [vmem:[#allocation2 + $0x62] sm:$0xff]
        %v6830 = vld [vmem:[#allocation2 + $0x6a] sm:$0xff]
        %v6831 = vld [vmem:[#allocation2 + $0x72] sm:$0xff]
        %v6832 = vld [vmem:[#allocation2 + $0x7a] sm:$0xff]
        %v6833 = vld [vmem:[#allocation2 + $0x82] sm:$0xff]
        %v6834 = vld [vmem:[#allocation2 + $0x8a] sm:$0xff]
        %v6835 = vld [vmem:[#allocation2 + $0x92] sm:$0xff]
        %v6836 = vld [vmem:[#allocation2 + $0x9a] sm:$0xff]
        %v6837 = vld [vmem:[#allocation2 + $0xa2] sm:$0xff]
        %v6838 = vld [vmem:[#allocation2 + $0xaa] sm:$0xff]
        %v6839 = vld [vmem:[#allocation2 + $0xb2] sm:$0xff]
        %v6840 = vld [vmem:[#allocation2 + $0xba] sm:$0xff]
        %v6841 = vld [vmem:[#allocation2 + $0xc2] sm:$0xff]
        %v6842 = vld [vmem:[#allocation2 + $0xca] sm:$0xff]
        %v6843 = vld [vmem:[#allocation2 + $0xd2] sm:$0xff]
        %v6844 = vld [vmem:[#allocation2 + $0xda] sm:$0xff]
        %v6845 = vld [vmem:[#allocation2 + $0xe2] sm:$0xff]
        %v6846 = vld [vmem:[#allocation2 + $0xea] sm:$0xff]
        %v6847 = vld [vmem:[#allocation2 + $0xf2] sm:$0xff]
        %v6848 = vld [vmem:[#allocation2 + $0xfa] sm:$0xff]
        %v6849 = vld [vmem:[#allocation2 + $0x102] sm:$0xff]
        %v6850 = vld [vmem:[#allocation2 + $0x10a] sm:$0xff]
        %v6851 = vld [vmem:[#allocation2 + $0x112] sm:$0xff]
        %v6852 = vld [vmem:[#allocation2 + $0x11a] sm:$0xff]
        %v6853 = vmul.f32 %v6821, %v4732
        %v6854 = vmul.f32 %v6822, %v4737
        %v6855 = vmul.f32 %v6823, %v4742
        %v6856 = vmul.f32 %v6824, %v4747
        %v6857 = vmul.f32 %v6825, %v4752
        %v6858 = vmul.f32 %v6826, %v4757
        %v6859 = vmul.f32 %v6827, %v4762
        %v6860 = vmul.f32 %v6828, %v4767
        %v6861 = vmul.f32 %v6829, %v4772
        %v6862 = vmul.f32 %v6830, %v4777
        %v6863 = vmul.f32 %v6831, %v4782
        %v6864 = vmul.f32 %v6832, %v4787
        %v6865 = vmul.f32 %v6833, %v4792
        %v6866 = vmul.f32 %v6834, %v4797
        %v6867 = vmul.f32 %v6835, %v4802
        %v6868 = vmul.f32 %v6836, %v4807
        %v6869 = vmul.f32 %v6837, %v4812
        %v6870 = vmul.f32 %v6838, %v4817
        %v6871 = vmul.f32 %v6839, %v4822
        %v6872 = vmul.f32 %v6840, %v4827
        %v6873 = vmul.f32 %v6841, %v4832
        %v6874 = vmul.f32 %v6842, %v4837
        %v6875 = vmul.f32 %v6843, %v4842
        %v6876 = vmul.f32 %v6844, %v4847
        %v6877 = vmul.f32 %v6845, %v4852
        %v6878 = vmul.f32 %v6846, %v4857
        %v6879 = vmul.f32 %v6847, %v4862
        %v6880 = vmul.f32 %v6848, %v4867
        %v6881 = vmul.f32 %v6849, %v4872
        %v6882 = vmul.f32 %v6850, %v4877
        %v6883 = vmul.f32 %v6851, %v4882
        %v6884 = vmul.f32 %v6852, %v4887
        %v6885 = vpack.c.bf16 %v6854, %v6853
        %v6886 = vpack.c.bf16 %v6856, %v6855
        %v6887 = vpack.c.bf16 %v6858, %v6857
        %v6888 = vpack.c.bf16 %v6860, %v6859
        %v6889 = vpack.c.bf16 %v6862, %v6861
        %v6890 = vpack.c.bf16 %v6864, %v6863
        %v6891 = vpack.c.bf16 %v6866, %v6865
        %v6892 = vpack.c.bf16 %v6868, %v6867
        %v6893 = vpack.c.bf16 %v6870, %v6869
        %v6894 = vpack.c.bf16 %v6872, %v6871
        %v6895 = vpack.c.bf16 %v6874, %v6873
        %v6896 = vpack.c.bf16 %v6876, %v6875
        %v6897 = vpack.c.bf16 %v6878, %v6877
        %v6898 = vpack.c.bf16 %v6880, %v6879
        %v6899 = vpack.c.bf16 %v6882, %v6881
        %v6900 = vpack.c.bf16 %v6884, %v6883
        %s6901 = scalar_lea.vmem %s2, 512
        %v6902 = vld [vmem:[%s6901] sm:$0xf]
        %v6903 = vld [vmem:[%s6901 + $0x4] sm:$0xf]
        %v6904 = vld [vmem:[%s6901 + $0x8] sm:$0xf]
        %v6905 = vld [vmem:[%s6901 + $0xc] sm:$0xf]
        %v6906 = vld [vmem:[%s6901 + $0x10] sm:$0xf]
        %v6907 = vld [vmem:[%s6901 + $0x14] sm:$0xf]
        %v6908 = vld [vmem:[%s6901 + $0x18] sm:$0xf]
        %v6909 = vld [vmem:[%s6901 + $0x1c] sm:$0xf]
        %v6910 = vld [vmem:[%s6901 + $0x20] sm:$0xf]
        %v6911 = vld [vmem:[%s6901 + $0x24] sm:$0xf]
        %v6912 = vld [vmem:[%s6901 + $0x28] sm:$0xf]
        %v6913 = vld [vmem:[%s6901 + $0x2c] sm:$0xf]
        %v6914 = vld [vmem:[%s6901 + $0x30] sm:$0xf]
        %v6915 = vld [vmem:[%s6901 + $0x34] sm:$0xf]
        %v6916 = vld [vmem:[%s6901 + $0x38] sm:$0xf]
        %v6917 = vld [vmem:[%s6901 + $0x3c] sm:$0xf]
        %v6934 = vunpack.c.l.b16 %v6902
        %v6935 = vunpack.c.l.b16 %v6903
        %v6936 = vunpack.c.l.b16 %v6904
        %v6937 = vunpack.c.l.b16 %v6905
        %v6938 = vunpack.c.l.b16 %v6906
        %v6939 = vunpack.c.l.b16 %v6907
        %v6940 = vunpack.c.l.b16 %v6908
        %v6941 = vunpack.c.l.b16 %v6909
        %v6942 = vunpack.c.l.b16 %v6910
        %v6943 = vunpack.c.l.b16 %v6911
        %v6944 = vunpack.c.l.b16 %v6912
        %v6945 = vunpack.c.l.b16 %v6913
        %v6946 = vunpack.c.l.b16 %v6914
        %v6947 = vunpack.c.l.b16 %v6915
        %v6948 = vunpack.c.l.b16 %v6916
        %v6949 = vunpack.c.l.b16 %v6917
        %v6950 = vpack.c.b16 %v6935, %v6934
        %v6951 = vpack.c.b16 %v6937, %v6936
        %v6952 = vpack.c.b16 %v6939, %v6938
        %v6953 = vpack.c.b16 %v6941, %v6940
        %v6954 = vpack.c.b16 %v6943, %v6942
        %v6955 = vpack.c.b16 %v6945, %v6944
        %v6956 = vpack.c.b16 %v6947, %v6946
        %v6957 = vpack.c.b16 %v6949, %v6948
        %6966 = vmatprep.subr.bf16.mxu0 0
        %6967 = vmatpush1.bf16.msra.mxu0 %v6950
        %6968 = vmatprep.subr.bf16.mxu0 0
        %6969 = vmatpush1.bf16.msra.mxu0 %v6951
        %6970 = vmatprep.subr.bf16.mxu0 0
        %6971 = vmatpush1.bf16.msra.mxu0 %v6952
        %6972 = vmatprep.subr.bf16.mxu0 0
        %6973 = vmatpush1.bf16.msra.mxu0 %v6953
        %6974 = vmatprep.subr.bf16.mxu0 0
        %6975 = vmatpush1.bf16.msra.mxu0 %v6954
        %6976 = vmatprep.subr.bf16.mxu0 0
        %6977 = vmatpush1.bf16.msra.mxu0 %v6955
        %6978 = vmatprep.subr.bf16.mxu0 0
        %6979 = vmatpush1.bf16.msra.mxu0 %v6956
        %6980 = vmatprep.subr.bf16.mxu0 0
        %6981 = vmatpush1.bf16.msra.mxu0 %v6957
        %6982 = vmatprep.subr.bf16.mxu0 0
        %6983 = vmatpush1.bf16.msra.mxu0 0
        %6984 = vmatprep.subr.bf16.mxu0 0
        %6985 = vmatpush1.bf16.msra.mxu0 0
        %6986 = vmatprep.subr.bf16.mxu0 0
        %6987 = vmatpush1.bf16.msra.mxu0 0
        %6988 = vmatprep.subr.bf16.mxu0 0
        %6989 = vmatpush1.bf16.msra.mxu0 0
        %6990 = vmatprep.subr.bf16.mxu0 0
        %6991 = vmatpush1.bf16.msra.mxu0 0
        %6992 = vmatprep.subr.bf16.mxu0 0
        %6993 = vmatpush1.bf16.msra.mxu0 0
        %6994 = vmatprep.subr.bf16.mxu0 0
        %6995 = vmatpush1.bf16.msra.mxu0 0
        %6996 = vmatprep.subr.bf16.mxu0 0
        %6997 = vmatpush1.bf16.msra.mxu0 0
        %6998 = vmatprep.mubr.bf16.mxu0 0
        %6999 = vmatmul.mubr.bf16.gmra.mrb[0].mxu0 %v6885
        %v7000 = vpop.f32.mrb[0].mxu0
        %v7001 = vadd.f32 0.0, %v7000
        %v7002 = vpop.f32.mrb[0].mxu0
        %v7003 = vpop.f32.mrb[0].mxu0
        %v7004 = vadd.f32 0.0, %v7003
        %v7005 = vpop.f32.mrb[0].mxu0
        %7006 = vmatprep.mubr.bf16.mxu0 0
        %7007 = vmatmul.mubr.bf16.gmra.mrb[0].mxu0 %v6886
        %v7008 = vpop.f32.mrb[0].mxu0
        %v7009 = vadd.f32 0.0, %v7008
        %v7010 = vpop.f32.mrb[0].mxu0
        %v7011 = vpop.f32.mrb[0].mxu0
        %v7012 = vadd.f32 0.0, %v7011
        %v7013 = vpop.f32.mrb[0].mxu0
        %7014 = vmatprep.mubr.bf16.mxu0 0
        %7015 = vmatmul.mubr.bf16.gmra.mrb[0].mxu0 %v6887
        %v7016 = vpop.f32.mrb[0].mxu0
        %v7017 = vadd.f32 0.0, %v7016
        %v7018 = vpop.f32.mrb[0].mxu0
        %v7019 = vpop.f32.mrb[0].mxu0
        %v7020 = vadd.f32 0.0, %v7019
        %v7021 = vpop.f32.mrb[0].mxu0
        %7022 = vmatprep.mubr.bf16.mxu0 0
        %7023 = vmatmul.mubr.bf16.gmra.mrb[0].mxu0 %v6888
        %v7024 = vpop.f32.mrb[0].mxu0
        %v7025 = vadd.f32 0.0, %v7024
        %v7026 = vpop.f32.mrb[0].mxu0
        %v7027 = vpop.f32.mrb[0].mxu0
        %v7028 = vadd.f32 0.0, %v7027
        %v7029 = vpop.f32.mrb[0].mxu0
        %7030 = vmatprep.mubr.bf16.mxu0 0
        %7031 = vmatmul.mubr.bf16.gmra.mrb[0].mxu0 %v6889
        %v7032 = vpop.f32.mrb[0].mxu0
        %v7033 = vadd.f32 0.0, %v7032
        %v7034 = vpop.f32.mrb[0].mxu0
        %v7035 = vpop.f32.mrb[0].mxu0
        %v7036 = vadd.f32 0.0, %v7035
        %v7037 = vpop.f32.mrb[0].mxu0
        %7038 = vmatprep.mubr.bf16.mxu0 0
        %7039 = vmatmul.mubr.bf16.gmra.mrb[0].mxu0 %v6890
        %v7040 = vpop.f32.mrb[0].mxu0
        %v7041 = vadd.f32 0.0, %v7040
        %v7042 = vpop.f32.mrb[0].mxu0
        %v7043 = vpop.f32.mrb[0].mxu0
        %v7044 = vadd.f32 0.0, %v7043
        %v7045 = vpop.f32.mrb[0].mxu0
        %7046 = vmatprep.mubr.bf16.mxu0 0
        %7047 = vmatmul.mubr.bf16.gmra.mrb[0].mxu0 %v6891
        %v7048 = vpop.f32.mrb[0].mxu0
        %v7049 = vadd.f32 0.0, %v7048
        %v7050 = vpop.f32.mrb[0].mxu0
        %v7051 = vpop.f32.mrb[0].mxu0
        %v7052 = vadd.f32 0.0, %v7051
        %v7053 = vpop.f32.mrb[0].mxu0
        %7054 = vmatprep.mubr.bf16.mxu0 0
        %7055 = vmatmul.mubr.bf16.gmra.mrb[0].mxu0 %v6892
        %v7056 = vpop.f32.mrb[0].mxu0
        %v7057 = vadd.f32 0.0, %v7056
        %v7058 = vpop.f32.mrb[0].mxu0
        %v7059 = vpop.f32.mrb[0].mxu0
        %v7060 = vadd.f32 0.0, %v7059
        %v7061 = vpop.f32.mrb[0].mxu0
        %7062 = vmatprep.mubr.bf16.mxu0 0
        %7063 = vmatmul.mubr.bf16.gmra.mrb[0].mxu0 %v6893
        %v7064 = vpop.f32.mrb[0].mxu0
        %v7065 = vadd.f32 0.0, %v7064
        %v7066 = vpop.f32.mrb[0].mxu0
        %v7067 = vpop.f32.mrb[0].mxu0
        %v7068 = vadd.f32 0.0, %v7067
        %v7069 = vpop.f32.mrb[0].mxu0
        %7070 = vmatprep.mubr.bf16.mxu0 0
        %7071 = vmatmul.mubr.bf16.gmra.mrb[0].mxu0 %v6894
        %v7072 = vpop.f32.mrb[0].mxu0
        %v7073 = vadd.f32 0.0, %v7072
        %v7074 = vpop.f32.mrb[0].mxu0
        %v7075 = vpop.f32.mrb[0].mxu0
        %v7076 = vadd.f32 0.0, %v7075
        %v7077 = vpop.f32.mrb[0].mxu0
        %7078 = vmatprep.mubr.bf16.mxu0 0
        %7079 = vmatmul.mubr.bf16.gmra.mrb[0].mxu0 %v6895
        %v7080 = vpop.f32.mrb[0].mxu0
        %v7081 = vadd.f32 0.0, %v7080
        %v7082 = vpop.f32.mrb[0].mxu0
        %v7083 = vpop.f32.mrb[0].mxu0
        %v7084 = vadd.f32 0.0, %v7083
        %v7085 = vpop.f32.mrb[0].mxu0
        %7086 = vmatprep.mubr.bf16.mxu0 0
        %7087 = vmatmul.mubr.bf16.gmra.mrb[0].mxu0 %v6896
        %v7088 = vpop.f32.mrb[0].mxu0
        %v7089 = vadd.f32 0.0, %v7088
        %v7090 = vpop.f32.mrb[0].mxu0
        %v7091 = vpop.f32.mrb[0].mxu0
        %v7092 = vadd.f32 0.0, %v7091
        %v7093 = vpop.f32.mrb[0].mxu0
        %7094 = vmatprep.mubr.bf16.mxu0 0
        %7095 = vmatmul.mubr.bf16.gmra.mrb[0].mxu0 %v6897
        %v7096 = vpop.f32.mrb[0].mxu0
        %v7097 = vadd.f32 0.0, %v7096
        %v7098 = vpop.f32.mrb[0].mxu0
        %v7099 = vpop.f32.mrb[0].mxu0
        %v7100 = vadd.f32 0.0, %v7099
        %v7101 = vpop.f32.mrb[0].mxu0
        %7102 = vmatprep.mubr.bf16.mxu0 0
        %7103 = vmatmul.mubr.bf16.gmra.mrb[0].mxu0 %v6898
        %v7104 = vpop.f32.mrb[0].mxu0
        %v7105 = vadd.f32 0.0, %v7104
        %v7106 = vpop.f32.mrb[0].mxu0
        %v7107 = vpop.f32.mrb[0].mxu0
        %v7108 = vadd.f32 0.0, %v7107
        %v7109 = vpop.f32.mrb[0].mxu0
        %7110 = vmatprep.mubr.bf16.mxu0 0
        %7111 = vmatmul.mubr.bf16.gmra.mrb[0].mxu0 %v6899
        %v7112 = vpop.f32.mrb[0].mxu0
        %v7113 = vadd.f32 0.0, %v7112
        %v7114 = vpop.f32.mrb[0].mxu0
        %v7115 = vpop.f32.mrb[0].mxu0
        %v7116 = vadd.f32 0.0, %v7115
        %v7117 = vpop.f32.mrb[0].mxu0
        %7118 = vmatprep.mubr.bf16.mxu0 0
        %7119 = vmatmul.mubr.bf16.gmra.mrb[0].mxu0 %v6900
        %v7120 = vpop.f32.mrb[0].mxu0
        %v7121 = vadd.f32 0.0, %v7120
        %v7122 = vpop.f32.mrb[0].mxu0
        %v7123 = vpop.f32.mrb[0].mxu0
        %v7124 = vadd.f32 0.0, %v7123
        %v7125 = vpop.f32.mrb[0].mxu0
        %7126 = vdwg.mxu0
        %v7127 = vadd.f32 %v6789, %v7001
        %v7128 = vadd.f32 %v6790, %v7004
        %v7129 = vadd.f32 %v6791, %v7009
        %v7130 = vadd.f32 %v6792, %v7012
        %v7131 = vadd.f32 %v6793, %v7017
        %v7132 = vadd.f32 %v6794, %v7020
        %v7133 = vadd.f32 %v6795, %v7025
        %v7134 = vadd.f32 %v6796, %v7028
        %v7135 = vadd.f32 %v6797, %v7033
        %v7136 = vadd.f32 %v6798, %v7036
        %v7137 = vadd.f32 %v6799, %v7041
        %v7138 = vadd.f32 %v6800, %v7044
        %v7139 = vadd.f32 %v6801, %v7049
        %v7140 = vadd.f32 %v6802, %v7052
        %v7141 = vadd.f32 %v6803, %v7057
        %v7142 = vadd.f32 %v6804, %v7060
        %v7143 = vadd.f32 %v6805, %v7065
        %v7144 = vadd.f32 %v6806, %v7068
        %v7145 = vadd.f32 %v6807, %v7073
        %v7146 = vadd.f32 %v6808, %v7076
        %v7147 = vadd.f32 %v6809, %v7081
        %v7148 = vadd.f32 %v6810, %v7084
        %v7149 = vadd.f32 %v6811, %v7089
        %v7150 = vadd.f32 %v6812, %v7092
        %v7151 = vadd.f32 %v6813, %v7097
        %v7152 = vadd.f32 %v6814, %v7100
        %v7153 = vadd.f32 %v6815, %v7105
        %v7154 = vadd.f32 %v6816, %v7108
        %v7155 = vadd.f32 %v6817, %v7113
        %v7156 = vadd.f32 %v6818, %v7116
        %v7157 = vadd.f32 %v6819, %v7121
        %v7158 = vadd.f32 %v6820, %v7124
        %v7159 = vadd.f32 %v7127, %v7128
        %v7160 = vadd.f32 %v7159, %v7129
        %v7161 = vadd.f32 %v7160, %v7130
        %v7162 = vadd.f32 %v7161, %v7131
        %v7163 = vadd.f32 %v7162, %v7132
        %v7164 = vadd.f32 %v7163, %v7133
        %v7165 = vadd.f32 %v7164, %v7134
        %v7166 = vadd.f32 %v7165, %v7135
        %v7167 = vadd.f32 %v7166, %v7136
        %v7168 = vadd.f32 %v7167, %v7137
        %v7169 = vadd.f32 %v7168, %v7138
        %v7170 = vadd.f32 %v7169, %v7139
        %v7171 = vadd.f32 %v7170, %v7140
        %v7172 = vadd.f32 %v7171, %v7141
        %v7173 = vadd.f32 %v7172, %v7142
        %v7174 = vadd.f32 %v7173, %v7143
        %v7175 = vadd.f32 %v7174, %v7144
        %v7176 = vadd.f32 %v7175, %v7145
        %v7177 = vadd.f32 %v7176, %v7146
        %v7178 = vadd.f32 %v7177, %v7147
        %v7179 = vadd.f32 %v7178, %v7148
        %v7180 = vadd.f32 %v7179, %v7149
        %v7181 = vadd.f32 %v7180, %v7150
        %v7182 = vadd.f32 %v7181, %v7151
        %v7183 = vadd.f32 %v7182, %v7152
        %v7184 = vadd.f32 %v7183, %v7153
        %v7185 = vadd.f32 %v7184, %v7154
        %v7186 = vadd.f32 %v7185, %v7155
        %v7187 = vadd.f32 %v7186, %v7156
        %v7188 = vadd.f32 %v7187, %v7157
        %v7189 = vadd.f32 %v7188, %v7158
        %v7190 = vrot.slane %v7189, 4
        %v7191 = vadd.f32 %v7189, %v7190
        %v7192 = vrot.slane %v7191, 2
        %v7193 = vadd.f32 %v7191, %v7192
        %v7194 = vrot.slane %v7193, 1
        %v7195 = vadd.f32 %v7193, %v7194
        %v7196 = vmul.f32 %v7195, %v3608
        %v7197 = vsub.f32 %v7127, %v7196
        %v7198 = vsub.f32 %v7128, %v7196
        %v7199 = vsub.f32 %v7129, %v7196
        %v7200 = vsub.f32 %v7130, %v7196
        %v7201 = vsub.f32 %v7131, %v7196
        %v7202 = vsub.f32 %v7132, %v7196
        %v7203 = vsub.f32 %v7133, %v7196
        %v7204 = vsub.f32 %v7134, %v7196
        %v7205 = vsub.f32 %v7135, %v7196
        %v7206 = vsub.f32 %v7136, %v7196
        %v7207 = vsub.f32 %v7137, %v7196
        %v7208 = vsub.f32 %v7138, %v7196
        %v7209 = vsub.f32 %v7139, %v7196
        %v7210 = vsub.f32 %v7140, %v7196
        %v7211 = vsub.f32 %v7141, %v7196
        %v7212 = vsub.f32 %v7142, %v7196
        %v7213 = vsub.f32 %v7143, %v7196
        %v7214 = vsub.f32 %v7144, %v7196
        %v7215 = vsub.f32 %v7145, %v7196
        %v7216 = vsub.f32 %v7146, %v7196
        %v7217 = vsub.f32 %v7147, %v7196
        %v7218 = vsub.f32 %v7148, %v7196
        %v7219 = vsub.f32 %v7149, %v7196
        %v7220 = vsub.f32 %v7150, %v7196
        %v7221 = vsub.f32 %v7151, %v7196
        %v7222 = vsub.f32 %v7152, %v7196
        %v7223 = vsub.f32 %v7153, %v7196
        %v7224 = vsub.f32 %v7154, %v7196
        %v7225 = vsub.f32 %v7155, %v7196
        %v7226 = vsub.f32 %v7156, %v7196
        %v7227 = vsub.f32 %v7157, %v7196
        %v7228 = vsub.f32 %v7158, %v7196
        %v7229 = vmul.f32 %v7197, %v7197
        %v7230 = vmul.f32 %v7198, %v7198
        %v7231 = vmul.f32 %v7199, %v7199
        %v7232 = vmul.f32 %v7200, %v7200
        %v7233 = vmul.f32 %v7201, %v7201
        %v7234 = vmul.f32 %v7202, %v7202
        %v7235 = vmul.f32 %v7203, %v7203
        %v7236 = vmul.f32 %v7204, %v7204
        %v7237 = vmul.f32 %v7205, %v7205
        %v7238 = vmul.f32 %v7206, %v7206
        %v7239 = vmul.f32 %v7207, %v7207
        %v7240 = vmul.f32 %v7208, %v7208
        %v7241 = vmul.f32 %v7209, %v7209
        %v7242 = vmul.f32 %v7210, %v7210
        %v7243 = vmul.f32 %v7211, %v7211
        %v7244 = vmul.f32 %v7212, %v7212
        %v7245 = vmul.f32 %v7213, %v7213
        %v7246 = vmul.f32 %v7214, %v7214
        %v7247 = vmul.f32 %v7215, %v7215
        %v7248 = vmul.f32 %v7216, %v7216
        %v7249 = vmul.f32 %v7217, %v7217
        %v7250 = vmul.f32 %v7218, %v7218
        %v7251 = vmul.f32 %v7219, %v7219
        %v7252 = vmul.f32 %v7220, %v7220
        %v7253 = vmul.f32 %v7221, %v7221
        %v7254 = vmul.f32 %v7222, %v7222
        %v7255 = vmul.f32 %v7223, %v7223
        %v7256 = vmul.f32 %v7224, %v7224
        %v7257 = vmul.f32 %v7225, %v7225
        %v7258 = vmul.f32 %v7226, %v7226
        %v7259 = vmul.f32 %v7227, %v7227
        %v7260 = vmul.f32 %v7228, %v7228
        %v7261 = vadd.f32 %v7229, %v7230
        %v7262 = vadd.f32 %v7261, %v7231
        %v7263 = vadd.f32 %v7262, %v7232
        %v7264 = vadd.f32 %v7263, %v7233
        %v7265 = vadd.f32 %v7264, %v7234
        %v7266 = vadd.f32 %v7265, %v7235
        %v7267 = vadd.f32 %v7266, %v7236
        %v7268 = vadd.f32 %v7267, %v7237
        %v7269 = vadd.f32 %v7268, %v7238
        %v7270 = vadd.f32 %v7269, %v7239
        %v7271 = vadd.f32 %v7270, %v7240
        %v7272 = vadd.f32 %v7271, %v7241
        %v7273 = vadd.f32 %v7272, %v7242
        %v7274 = vadd.f32 %v7273, %v7243
        %v7275 = vadd.f32 %v7274, %v7244
        %v7276 = vadd.f32 %v7275, %v7245
        %v7277 = vadd.f32 %v7276, %v7246
        %v7278 = vadd.f32 %v7277, %v7247
        %v7279 = vadd.f32 %v7278, %v7248
        %v7280 = vadd.f32 %v7279, %v7249
        %v7281 = vadd.f32 %v7280, %v7250
        %v7282 = vadd.f32 %v7281, %v7251
        %v7283 = vadd.f32 %v7282, %v7252
        %v7284 = vadd.f32 %v7283, %v7253
        %v7285 = vadd.f32 %v7284, %v7254
        %v7286 = vadd.f32 %v7285, %v7255
        %v7287 = vadd.f32 %v7286, %v7256
        %v7288 = vadd.f32 %v7287, %v7257
        %v7289 = vadd.f32 %v7288, %v7258
        %v7290 = vadd.f32 %v7289, %v7259
        %v7291 = vadd.f32 %v7290, %v7260
        %v7292 = vrot.slane %v7291, 4
        %v7293 = vadd.f32 %v7291, %v7292
        %v7294 = vrot.slane %v7293, 2
        %v7295 = vadd.f32 %v7293, %v7294
        %v7296 = vrot.slane %v7295, 1
        %v7297 = vadd.f32 %v7295, %v7296
        %v7298 = vmul.f32 %v7297, %v3608
        %v7299 = vadd.f32 %v7298, 1e-05
        %v7300 = vrsqrt.pop %v7299
        %v7301 = vmul.f32 %v7197, %v7300
        %v7302 = vmul.f32 %v7198, %v7300
        %v7303 = vmul.f32 %v7199, %v7300
        %v7304 = vmul.f32 %v7200, %v7300
        %v7305 = vmul.f32 %v7201, %v7300
        %v7306 = vmul.f32 %v7202, %v7300
        %v7307 = vmul.f32 %v7203, %v7300
        %v7308 = vmul.f32 %v7204, %v7300
        %v7309 = vmul.f32 %v7205, %v7300
        %v7310 = vmul.f32 %v7206, %v7300
        %v7311 = vmul.f32 %v7207, %v7300
        %v7312 = vmul.f32 %v7208, %v7300
        %v7313 = vmul.f32 %v7209, %v7300
        %v7314 = vmul.f32 %v7210, %v7300
        %v7315 = vmul.f32 %v7211, %v7300
        %v7316 = vmul.f32 %v7212, %v7300
        %v7317 = vmul.f32 %v7213, %v7300
        %v7318 = vmul.f32 %v7214, %v7300
        %v7319 = vmul.f32 %v7215, %v7300
        %v7320 = vmul.f32 %v7216, %v7300
        %v7321 = vmul.f32 %v7217, %v7300
        %v7322 = vmul.f32 %v7218, %v7300
        %v7323 = vmul.f32 %v7219, %v7300
        %v7324 = vmul.f32 %v7220, %v7300
        %v7325 = vmul.f32 %v7221, %v7300
        %v7326 = vmul.f32 %v7222, %v7300
        %v7327 = vmul.f32 %v7223, %v7300
        %v7328 = vmul.f32 %v7224, %v7300
        %v7329 = vmul.f32 %v7225, %v7300
        %v7330 = vmul.f32 %v7226, %v7300
        %v7331 = vmul.f32 %v7227, %v7300
        %v7332 = vmul.f32 %v7228, %v7300
        %v7333 = vld [vmem:[%s6] sm:$0x1]
        %v7335 = vlaneseq
        %v7336 = vshrl.u32 %v7335, 7
        %v7337 = vsub.s32 0, %v7336
        %v7338 = vrot.slane %v7333, %v7337
        %v7340 = vmul.f32 %v7301, %v7338
        %v7341 = vmul.f32 %v7302, %v7338
        %v7342 = vmul.f32 %v7303, %v7338
        %v7343 = vmul.f32 %v7304, %v7338
        %v7344 = vmul.f32 %v7305, %v7338
        %v7345 = vmul.f32 %v7306, %v7338
        %v7346 = vmul.f32 %v7307, %v7338
        %v7347 = vmul.f32 %v7308, %v7338
        %v7348 = vmul.f32 %v7309, %v7338
        %v7349 = vmul.f32 %v7310, %v7338
        %v7350 = vmul.f32 %v7311, %v7338
        %v7351 = vmul.f32 %v7312, %v7338
        %v7352 = vmul.f32 %v7313, %v7338
        %v7353 = vmul.f32 %v7314, %v7338
        %v7354 = vmul.f32 %v7315, %v7338
        %v7355 = vmul.f32 %v7316, %v7338
        %v7356 = vmul.f32 %v7317, %v7338
        %v7357 = vmul.f32 %v7318, %v7338
        %v7358 = vmul.f32 %v7319, %v7338
        %v7359 = vmul.f32 %v7320, %v7338
        %v7360 = vmul.f32 %v7321, %v7338
        %v7361 = vmul.f32 %v7322, %v7338
        %v7362 = vmul.f32 %v7323, %v7338
        %v7363 = vmul.f32 %v7324, %v7338
        %v7364 = vmul.f32 %v7325, %v7338
        %v7365 = vmul.f32 %v7326, %v7338
        %v7366 = vmul.f32 %v7327, %v7338
        %v7367 = vmul.f32 %v7328, %v7338
        %v7368 = vmul.f32 %v7329, %v7338
        %v7369 = vmul.f32 %v7330, %v7338
        %v7370 = vmul.f32 %v7331, %v7338
        %v7371 = vmul.f32 %v7332, %v7338
        %v7372 = vld [vmem:[%s7] sm:$0x1]
        %v7374 = vlaneseq
        %v7375 = vshrl.u32 %v7374, 7
        %v7376 = vsub.s32 0, %v7375
        %v7377 = vrot.slane %v7372, %v7376
        %v7379 = vadd.f32 %v7340, %v7377
        %v7380 = vadd.f32 %v7341, %v7377
        %v7381 = vadd.f32 %v7342, %v7377
        %v7382 = vadd.f32 %v7343, %v7377
        %v7383 = vadd.f32 %v7344, %v7377
        %v7384 = vadd.f32 %v7345, %v7377
        %v7385 = vadd.f32 %v7346, %v7377
        %v7386 = vadd.f32 %v7347, %v7377
        %v7387 = vadd.f32 %v7348, %v7377
        %v7388 = vadd.f32 %v7349, %v7377
        %v7389 = vadd.f32 %v7350, %v7377
        %v7390 = vadd.f32 %v7351, %v7377
        %v7391 = vadd.f32 %v7352, %v7377
        %v7392 = vadd.f32 %v7353, %v7377
        %v7393 = vadd.f32 %v7354, %v7377
        %v7394 = vadd.f32 %v7355, %v7377
        %v7395 = vadd.f32 %v7356, %v7377
        %v7396 = vadd.f32 %v7357, %v7377
        %v7397 = vadd.f32 %v7358, %v7377
        %v7398 = vadd.f32 %v7359, %v7377
        %v7399 = vadd.f32 %v7360, %v7377
        %v7400 = vadd.f32 %v7361, %v7377
        %v7401 = vadd.f32 %v7362, %v7377
        %v7402 = vadd.f32 %v7363, %v7377
        %v7403 = vadd.f32 %v7364, %v7377
        %v7404 = vadd.f32 %v7365, %v7377
        %v7405 = vadd.f32 %v7366, %v7377
        %v7406 = vadd.f32 %v7367, %v7377
        %v7407 = vadd.f32 %v7368, %v7377
        %v7408 = vadd.f32 %v7369, %v7377
        %v7409 = vadd.f32 %v7370, %v7377
        %v7410 = vadd.f32 %v7371, %v7377
        %v7411 = vld [vmem:[%s303 + $0x11] sm:$0xff]
        %v7412 = vld [vmem:[%s303 + $0x19] sm:$0xff]
        %v7413 = vld [vmem:[%s303 + $0x21] sm:$0xff]
        %v7414 = vld [vmem:[%s303 + $0x29] sm:$0xff]
        %v7415 = vld [vmem:[%s303 + $0x31] sm:$0xff]
        %v7416 = vld [vmem:[%s303 + $0x39] sm:$0xff]
        %v7417 = vld [vmem:[%s303 + $0x41] sm:$0xff]
        %v7418 = vld [vmem:[%s303 + $0x49] sm:$0xff]
        %v7419 = vld [vmem:[%s303 + $0x51] sm:$0xff]
        %v7420 = vld [vmem:[%s303 + $0x59] sm:$0xff]
        %v7421 = vld [vmem:[%s303 + $0x61] sm:$0xff]
        %v7422 = vld [vmem:[%s303 + $0x69] sm:$0xff]
        %v7423 = vld [vmem:[%s303 + $0x71] sm:$0xff]
        %v7424 = vld [vmem:[%s303 + $0x79] sm:$0xff]
        %v7425 = vld [vmem:[%s303 + $0x81] sm:$0xff]
        %v7426 = vld [vmem:[%s303 + $0x89] sm:$0xff]
        %v7427 = vld [vmem:[%s303 + $0x91] sm:$0xff]
        %v7428 = vld [vmem:[%s303 + $0x99] sm:$0xff]
        %v7429 = vld [vmem:[%s303 + $0xa1] sm:$0xff]
        %v7430 = vld [vmem:[%s303 + $0xa9] sm:$0xff]
        %v7431 = vld [vmem:[%s303 + $0xb1] sm:$0xff]
        %v7432 = vld [vmem:[%s303 + $0xb9] sm:$0xff]
        %v7433 = vld [vmem:[%s303 + $0xc1] sm:$0xff]
        %v7434 = vld [vmem:[%s303 + $0xc9] sm:$0xff]
        %v7435 = vld [vmem:[%s303 + $0xd1] sm:$0xff]
        %v7436 = vld [vmem:[%s303 + $0xd9] sm:$0xff]
        %v7437 = vld [vmem:[%s303 + $0xe1] sm:$0xff]
        %v7438 = vld [vmem:[%s303 + $0xe9] sm:$0xff]
        %v7439 = vld [vmem:[%s303 + $0xf1] sm:$0xff]
        %v7440 = vld [vmem:[%s303 + $0xf9] sm:$0xff]
        %v7441 = vld [vmem:[%s303 + $0x101] sm:$0xff]
        %v7442 = vld [vmem:[%s303 + $0x109] sm:$0xff]
        %v7443 = vadd.f32 %v7411, %v7379
        %v7444 = vadd.f32 %v7412, %v7380
        %v7445 = vadd.f32 %v7413, %v7381
        %v7446 = vadd.f32 %v7414, %v7382
        %v7447 = vadd.f32 %v7415, %v7383
        %v7448 = vadd.f32 %v7416, %v7384
        %v7449 = vadd.f32 %v7417, %v7385
        %v7450 = vadd.f32 %v7418, %v7386
        %v7451 = vadd.f32 %v7419, %v7387
        %v7452 = vadd.f32 %v7420, %v7388
        %v7453 = vadd.f32 %v7421, %v7389
        %v7454 = vadd.f32 %v7422, %v7390
        %v7455 = vadd.f32 %v7423, %v7391
        %v7456 = vadd.f32 %v7424, %v7392
        %v7457 = vadd.f32 %v7425, %v7393
        %v7458 = vadd.f32 %v7426, %v7394
        %v7459 = vadd.f32 %v7427, %v7395
        %v7460 = vadd.f32 %v7428, %v7396
        %v7461 = vadd.f32 %v7429, %v7397
        %v7462 = vadd.f32 %v7430, %v7398
        %v7463 = vadd.f32 %v7431, %v7399
        %v7464 = vadd.f32 %v7432, %v7400
        %v7465 = vadd.f32 %v7433, %v7401
        %v7466 = vadd.f32 %v7434, %v7402
        %v7467 = vadd.f32 %v7435, %v7403
        %v7468 = vadd.f32 %v7436, %v7404
        %v7469 = vadd.f32 %v7437, %v7405
        %v7470 = vadd.f32 %v7438, %v7406
        %v7471 = vadd.f32 %v7439, %v7407
        %v7472 = vadd.f32 %v7440, %v7408
        %v7473 = vadd.f32 %v7441, %v7409
        %v7474 = vadd.f32 %v7442, %v7410
        %7475 = vst [vmem:[%s298] sm:$0xff] %v7443
        %7476 = vst [vmem:[%s298 + $0x8] sm:$0xff] %v7444
        %7477 = vst [vmem:[%s298 + $0x10] sm:$0xff] %v7445
        %7478 = vst [vmem:[%s298 + $0x18] sm:$0xff] %v7446
        %7479 = vst [vmem:[%s298 + $0x20] sm:$0xff] %v7447
        %7480 = vst [vmem:[%s298 + $0x28] sm:$0xff] %v7448
        %7481 = vst [vmem:[%s298 + $0x30] sm:$0xff] %v7449
        %7482 = vst [vmem:[%s298 + $0x38] sm:$0xff] %v7450
        %7483 = vst [vmem:[%s298 + $0x40] sm:$0xff] %v7451
        %7484 = vst [vmem:[%s298 + $0x48] sm:$0xff] %v7452
        %7485 = vst [vmem:[%s298 + $0x50] sm:$0xff] %v7453
        %7486 = vst [vmem:[%s298 + $0x58] sm:$0xff] %v7454
        %7487 = vst [vmem:[%s298 + $0x60] sm:$0xff] %v7455
        %7488 = vst [vmem:[%s298 + $0x68] sm:$0xff] %v7456
        %7489 = vst [vmem:[%s298 + $0x70] sm:$0xff] %v7457
        %7490 = vst [vmem:[%s298 + $0x78] sm:$0xff] %v7458
        %7491 = vst [vmem:[%s298 + $0x80] sm:$0xff] %v7459
        %7492 = vst [vmem:[%s298 + $0x88] sm:$0xff] %v7460
        %7493 = vst [vmem:[%s298 + $0x90] sm:$0xff] %v7461
        %7494 = vst [vmem:[%s298 + $0x98] sm:$0xff] %v7462
        %7495 = vst [vmem:[%s298 + $0xa0] sm:$0xff] %v7463
        %7496 = vst [vmem:[%s298 + $0xa8] sm:$0xff] %v7464
        %7497 = vst [vmem:[%s298 + $0xb0] sm:$0xff] %v7465
        %7498 = vst [vmem:[%s298 + $0xb8] sm:$0xff] %v7466
        %7499 = vst [vmem:[%s298 + $0xc0] sm:$0xff] %v7467
        %7500 = vst [vmem:[%s298 + $0xc8] sm:$0xff] %v7468
        %7501 = vst [vmem:[%s298 + $0xd0] sm:$0xff] %v7469
        %7502 = vst [vmem:[%s298 + $0xd8] sm:$0xff] %v7470
        %7503 = vst [vmem:[%s298 + $0xe0] sm:$0xff] %v7471
        %7504 = vst [vmem:[%s298 + $0xe8] sm:$0xff] %v7472
        %7505 = vst [vmem:[%s298 + $0xf0] sm:$0xff] %v7473
        %7506 = vst [vmem:[%s298 + $0xf8] sm:$0xff] %v7474
        %s7507 = sand.u32 %s203, 1
        %s7508 = scalar_lea.sflag [#allocation4], %s7507
        %s7509 = sand.u32 %s203, 1
        %s7510 = smul.addr %s7509, 256
        %s7511 = scalar_lea.vmem [#allocation3], %s7510
        // Predicated region
        $region53: #{image_residual_block.1} parent=51 // pred_check
          %p7512 = pneg %p213
        $region54: #{image_residual_block.1} parent=51 // pred_check_branch
          %7514 = sbr.rel (%p7512) target = $region56
        $region55: #{image_residual_block.1} parent=51 // pred_region
          %s7516 = ssub.s32 4096, 4096
          %7517 = vsyncadd %s7508, %s7516
          %s7518 = smul.addr %s22, 32
          %s7519 = smul.addr %s7518, 128
          %s7520 = scalar_lea.hbm %s8, %s7519
          %s7521 = sshll.u32 %s7511, 4
          %s7522 = int_to_ptr.vmem [resolvable:$true] %s7521
          %7527 = dma.vmem_to_hbm [thread:$0]  %s7522, 4096, %s7520, %s7508, 128, 128, 8
        $region56: #{image_residual_block.1} parent=51 // pred_fallthru
          _
      $region52: #{image_residual_block.1} parent=5 // pred_fallthru
        _
      %p7528 = scmp.le.s32.totalorder 2, %s17
      // Predicated region
      $region57: #{image_residual_block.1} parent=5 // pred_check
        %p7529 = pneg %p7528
      $region58: #{image_residual_block.1} parent=5 // pred_check_branch
        %7531 = sbr.rel (%p7529) target = $region60
      $region59: #{image_residual_block.1} parent=5 // pred_region
        %s7532 = ssub.s32 %s17, 2
        // Predicated region
        $region61: #{image_residual_block.1} parent=59 // pred_check
          %p7533 = pneg %p219
        $region62: #{image_residual_block.1} parent=59 // pred_check_branch
          %7535 = sbr.rel (%p7533) target = $region64
        $region63: #{image_residual_block.1} parent=59 // pred_region
          %s7536 = sand.u32 %s204, 1
          %s7537 = scalar_lea.sflag [#allocation4], %s7536
          %s7538 = sand.u32 %s204, 1
          %s7539 = smul.addr %s7538, 256
          %s7540 = scalar_lea.vmem [#allocation3], %s7539
          %7541 = dma.done %s7537, 4096
        $region64: #{image_residual_block.1} parent=59 // pred_fallthru
          _
      $region60: #{image_residual_block.1} parent=5 // pred_fallthru
        _
    $region6: #{image_residual_block.1} parent=1 // loop_footer
      %s21 = sadd.s32 1, %s17
    $region7: #{image_residual_block.1} parent=1 // loop_footer_branch
      %16 = sbr.rel target = $region3
    $region8: #{image_residual_block.1} parent=1 // loop_exit
      _
    %7542 = vsyncpa [#allocation4], 1
    %s7543 = scalar_lea.sflag [#allocation4], 1
    %7544 = vsyncpa %s7543, 1

</llo_original>
